<compile_context>
chip_gen: v7x
topology: tpu7x:2x2x1
jax: 0.10.0
libtpu: 0.0.40
codegen_flags: <defaults>
</compile_context>

<pallas_src>
import functools

import numpy as np
import jax
import jax.numpy as jnp
from jax.experimental import pallas as pl
from jax.experimental.pallas import tpu as pltpu


# ----------------------------------------------------------------------------- helpers


def _layer_norm(x, gamma, beta, eps=1e-6):
    mean = jnp.mean(x, axis=-1, keepdims=True)
    cent = x - mean
    var = jnp.mean(cent * cent, axis=-1, keepdims=True)
    return cent * jax.lax.rsqrt(var + eps) * gamma + beta


# ----------------------------------------------------------------------------- kernel


def _cross_fused_kernel(
    # scalar prefetch (query-modality index tables; only used by index_maps)
    j1_ref, j2_ref,
    # activations (one target modality per grid step)
    xq1_ref, xq2_ref, xkv_ref,
    # weights
    wq1_ref, wq2_ref, wk_ref, wv_ref, wfc_ref, wv_read_ref,
    small_ref, w1_ref, b1_ref, w2_ref,
    # output
    out_ref,
    *, n_head, d_k, d_v, batch, len_q, len_k,
):
    del j1_ref, j2_ref
    f32 = jnp.float32

    # Packed small parameters: rows = [ln0_g, ln0_b, w_read0*s, w_read1*s,
    #                                  lnr_g, lnr_b, b2, lnf_g, lnf_b]
    small = small_ref[...]
    ln0_g, ln0_b = small[0:1], small[1:2]
    w_read = small[2:4]                       # (2, Dm), pre-scaled by 1/sqrt(d_model)
    lnr_g, lnr_b = small[4:5], small[5:6]
    b2 = small[6:7]
    lnf_g, lnf_b = small[7:8], small[8:9]

    # ---- shared K / V projections (fused across heads), reused by both branches ----
    xkv = xkv_ref[...].astype(f32)                                       # (B*Lk, Dm)
    k_all = jnp.dot(xkv, wk_ref[...], preferred_element_type=f32)        # (B*Lk, H*d_k)
    v_all = jnp.dot(xkv, wv_ref[...], preferred_element_type=f32)        # (B*Lk, H*d_v)
    wfc = wfc_ref[...]                                                   # (H*d_v, Dm)

    def attend(xq_ref, wq_ref):
        # Fused Q projection; wq is pre-scaled by 1/sqrt(d_k).
        xq = xq_ref[...].astype(f32)                                     # (B*Lq, Dm)
        q_all = jnp.dot(xq, wq_ref[...], preferred_element_type=f32)     # (B*Lq, H*d_k)
        out_rows = []
        for b in range(batch):
            qb = q_all[b * len_q:(b + 1) * len_q]
            kb = k_all[b * len_k:(b + 1) * len_k]
            vb = v_all[b * len_k:(b + 1) * len_k]
            acc = None
            for h in range(n_head):
                qh = qb[:, h * d_k:(h + 1) * d_k]
                kh = kb[:, h * d_k:(h + 1) * d_k]
                vh = vb[:, h * d_v:(h + 1) * d_v]
                # scores: contract d_k of both operands (no transpose op)
                s = jax.lax.dot_general(
                    qh, kh, (((1,), (1,)), ((), ())),
                    preferred_element_type=f32)                           # (Lq, Lk)
                s = s - jnp.max(s, axis=-1, keepdims=True)
                e = jnp.exp(s)
                p = e * pl.reciprocal(jnp.sum(e, axis=-1, keepdims=True), approx=True)
                ctx = jnp.dot(p, vh, preferred_element_type=f32)          # (Lq, d_v)
                # per-head slice of the output projection (concat-heads @ Wfc)
                part = jnp.dot(ctx, wfc[h * d_v:(h + 1) * d_v, :],
                               preferred_element_type=f32)                # (Lq, Dm)
                acc = part if acc is None else acc + part
            out_rows.append(acc)
        o = jnp.concatenate(out_rows, axis=0)                             # (B*Lq, Dm)
        return _layer_norm(o, ln0_g, ln0_b)

    q1 = attend(xq1_ref, wq1_ref)                                         # (B*Lq, Dm)
    q2 = attend(xq2_ref, wq2_ref)                                         # (B*Lq, Dm)

    # ---- MultiHeadReadOutAttention(n_head=1, l=2) over the two branches ----
    wv_read = wv_read_ref[...]                                            # (Dm, Dm)
    v1 = jnp.dot(q1, wv_read, preferred_element_type=f32)
    v2 = jnp.dot(q2, wv_read, preferred_element_type=f32)
    a1 = jnp.sum(q1 * w_read[0:1], axis=-1, keepdims=True)                # (B*Lq, 1)
    a2 = jnp.sum(q2 * w_read[1:2], axis=-1, keepdims=True)
    mx = jnp.maximum(a1, a2)
    e1 = jnp.exp(a1 - mx)
    e2 = jnp.exp(a2 - mx)
    inv_den = pl.reciprocal(e1 + e2, approx=True)
    ro = (v1 * e1 + v2 * e2) * inv_den                                    # (B*Lq, Dm)
    ro = _layer_norm(ro, lnr_g, lnr_b)

    # ---- PositionwiseFeedForward(d_model, d_inner) with residual + LayerNorm ----
    hdn = jnp.maximum(
        jnp.dot(ro, w1_ref[...], preferred_element_type=f32) + b1_ref[...], 0.0)
    y = jnp.dot(hdn, w2_ref[...], preferred_element_type=f32) + b2 + ro
    y = _layer_norm(y, lnf_g, lnf_b)

    out_ref[...] = y.astype(out_ref.dtype)


# ----------------------------------------------------------------------------- wrapper


def cross_global_multi_head_attention(input_t, input_a, input_v, kp,
                                      *, n_head, d_k, d_v):
    """kp: kernel-layout parameter dict (see to_kernel_layout)."""
    B, S, Dm = input_t.shape
    assert input_a.shape == (B, S, Dm) and input_v.shape == (B, S, Dm)
    BL = B * S
    HK = n_head * d_k
    HV = n_head * d_v

    # Stack the three modalities and fold batch into the matmul row dimension.
    x_all = jnp.stack([input_t, input_a, input_v], axis=0).reshape(3, BL, Dm)

    # Query-modality selection tables: for target i, queries are j1[i], j2[i] (ascending).
    j1 = jnp.array([1, 0, 0], dtype=jnp.int32)
    j2 = jnp.array([2, 2, 1], dtype=jnp.int32)

    wq_all = kp["wq_all"]            # (3, Dm, H*d_k), pre-scaled by 1/sqrt(d_k)
    wk, wv, wfc = kp["wk"], kp["wv"], kp["wfc"]
    wv_read, small = kp["wv_read"], kp["small"]
    w1, b1, w2 = kp["w1"], kp["b1"], kp["w2"]
    d_inner = w1.shape[1]

    def _const(arr):
        zeros = (0,) * arr.ndim
        return pl.BlockSpec(arr.shape, lambda m, a, b, _z=zeros: _z)

    act_q1 = pl.BlockSpec((None, BL, Dm), lambda m, a, b: (a[m], 0, 0))
    act_q2 = pl.BlockSpec((None, BL, Dm), lambda m, a, b: (b[m], 0, 0))
    act_kv = pl.BlockSpec((None, BL, Dm), lambda m, a, b: (m, 0, 0))
    wq1_spec = pl.BlockSpec((None, Dm, HK), lambda m, a, b: (a[m], 0, 0))
    wq2_spec = pl.BlockSpec((None, Dm, HK), lambda m, a, b: (b[m], 0, 0))
    out_spec = pl.BlockSpec((None, BL, Dm), lambda m, a, b: (m, 0, 0))

    # Advisory cost estimate so XLA schedules surrounding ops around the custom call.
    flops_mod = (
        2 * BL * Dm * HK + 2 * BL * Dm * HV                               # K, V proj
        + 2 * (2 * BL * Dm * HK                                           # Q proj (x2 branches)
               + 2 * B * n_head * S * S * (d_k + d_v)                     # scores + ctx
               + 2 * BL * HV * Dm)                                        # concat-heads @ Wfc
        + 2 * (2 * BL * Dm * Dm)                                          # readout v proj
        + 2 * 2 * BL * Dm * d_inner                                       # FFN
    )
    trans_mod = 2 * B * n_head * S * S + 2 * BL
    weight_bytes = sum(int(np.prod(a.shape)) * a.dtype.itemsize
                       for a in (wq_all, wk, wv, wfc, wv_read, small, w1, b1, w2))
    cost = pl.CostEstimate(
        flops=int(3 * flops_mod),
        transcendentals=int(3 * trans_mod),
        bytes_accessed=int(weight_bytes + 4 * 3 * BL * Dm * 4),
    )

    kernel = functools.partial(
        _cross_fused_kernel, n_head=n_head, d_k=d_k, d_v=d_v,
        batch=B, len_q=S, len_k=S)

    out = pl.pallas_call(
        kernel,
        out_shape=jax.ShapeDtypeStruct((3, BL, Dm), input_t.dtype),
        grid_spec=pltpu.PrefetchScalarGridSpec(
            num_scalar_prefetch=2,
            grid=(3,),                                     # one step per target modality
            in_specs=[act_q1, act_q2, act_kv,
                      wq1_spec, wq2_spec,
                      _const(wk), _const(wv), _const(wfc), _const(wv_read),
                      _const(small), _const(w1), _const(b1), _const(w2)],
            out_specs=out_spec,
        ),
        compiler_params=pltpu.CompilerParams(
            dimension_semantics=("parallel",),             # shard modalities across TCs on v7x
        ),
        cost_estimate=cost,
    )(j1, j2, x_all, x_all, x_all,
      wq_all, wq_all, wk, wv, wfc, wv_read, small, w1, b1, w2)

    out = out.reshape(3, B, S, Dm)
    return [out[0], out[1], out[2]], None


# ----------------------------------------------------------------------------- params


def init_params(key, d_model, n_head, d_k, d_v, d_inner):
    ks = jax.random.split(key, 18)
    f32 = jnp.float32

    def lin(k, fin, fout):
        return jax.random.normal(k, (fin, fout), f32) / np.sqrt(fin)

    p = {
        "wq": [lin(ks[0], d_model, n_head * d_k),
               lin(ks[1], d_model, n_head * d_k),
               lin(ks[2], d_model, n_head * d_k)],
        "wk": lin(ks[3], d_model, n_head * d_k),
        "wv": lin(ks[4], d_model, n_head * d_v),
        "wfc": lin(ks[5], n_head * d_v, d_model),
        "ln0_g": 1.0 + 0.1 * jax.random.normal(ks[6], (d_model,), f32),
        "ln0_b": 0.1 * jax.random.normal(ks[7], (d_model,), f32),
        "w_read": jax.random.normal(ks[8], (2, d_model), f32) / np.sqrt(d_model),
        "wv_read": lin(ks[9], d_model, d_model),
        "lnr_g": 1.0 + 0.1 * jax.random.normal(ks[10], (d_model,), f32),
        "lnr_b": 0.1 * jax.random.normal(ks[11], (d_model,), f32),
        "w1": lin(ks[12], d_model, d_inner),
        "b1": 0.1 * jax.random.normal(ks[13], (d_inner,), f32),
        "w2": lin(ks[14], d_inner, d_model),
        "b2": 0.1 * jax.random.normal(ks[15], (d_model,), f32),
        "lnf_g": 1.0 + 0.1 * jax.random.normal(ks[16], (d_model,), f32),
        "lnf_b": 0.1 * jax.random.normal(ks[17], (d_model,), f32),
    }
    return p


def to_kernel_layout(p, n_head, d_k, d_v, d_model):
    """Host-side, one-time layout conversion:
       - stack the three Wq and fold 1/sqrt(d_k) into them,
       - fold 1/sqrt(d_model) into the readout w,
       - pack all tiny (d_model,)-wide params into one (9, d_model) operand."""
    inv_dk = 1.0 / (d_k ** 0.5)
    inv_dm = 1.0 / (d_model ** 0.5)
    small = jnp.stack([
        p["ln0_g"], p["ln0_b"],
        p["w_read"][0] * inv_dm, p["w_read"][1] * inv_dm,
        p["lnr_g"], p["lnr_b"],
        p["b2"],
        p["lnf_g"], p["lnf_b"],
    ], axis=0)                                              # (9, Dm)

    kp = {
        "wq_all": jnp.stack(p["wq"], axis=0) * inv_dk,      # (3, Dm, H*d_k)
        "wk": p["wk"],                                      # (Dm, H*d_k)
        "wv": p["wv"],                                      # (Dm, H*d_v)
        "wfc": p["wfc"],                                    # (H*d_v, Dm)
        "wv_read": p["wv_read"],                            # (Dm, Dm)
        "small": small,                                     # (9, Dm)
        "w1": p["w1"],                                      # (Dm, d_inner)
        "b1": p["b1"].reshape(1, -1),                       # (1, d_inner)
        "w2": p["w2"],                                      # (d_inner, Dm)
    }
    return kp


# ----------------------------------------------------------------------------- reference


def reference_forward(inputs, p, n_head, d_k, d_v):
    """Pure-JAX mirror of the PyTorch forward (eval mode, mask=None)."""
    d_model = inputs[0].shape[-1]

    def layer_norm(x, g, b, eps=1e-6):
        mu = jnp.mean(x, -1, keepdims=True)
        var = jnp.mean((x - mu) ** 2, -1, keepdims=True)
        return (x - mu) / jnp.sqrt(var + eps) * g + b

    res = []
    for i in range(3):
        kv = inputs[i]
        B, Lk, _ = kv.shape
        k = (kv @ p["wk"]).reshape(B, Lk, n_head, d_k).transpose(0, 2, 1, 3)
        v = (kv @ p["wv"]).reshape(B, Lk, n_head, d_v).transpose(0, 2, 1, 3)
        qs = []
        for j in range(3):
            if j == i:
                continue
            xq = inputs[j]
            Lq = xq.shape[1]
            q = (xq @ p["wq"][j]).reshape(B, Lq, n_head, d_k).transpose(0, 2, 1, 3)
            attn = jnp.einsum("bhqd,bhkd->bhqk", q / (d_k ** 0.5), k)
            attn = jax.nn.softmax(attn, axis=-1)
            o = jnp.einsum("bhqk,bhkd->bhqd", attn, v)
            o = o.transpose(0, 2, 1, 3).reshape(B, Lq, n_head * d_v)
            o = layer_norm(o @ p["wfc"], p["ln0_g"], p["ln0_b"])
            qs.append(o)
        x = jnp.stack(qs, axis=2)                                    # (B, Lq, 2, Dm)
        vr = x @ p["wv_read"]
        a = jnp.sum(x / (d_model ** 0.5) * p["w_read"], axis=-1)     # (B, Lq, 2)
        a = jax.nn.softmax(a, axis=-1)
        ro = jnp.einsum("blc,blcd->bld", a, vr)
        ro = layer_norm(ro, p["lnr_g"], p["lnr_b"])
        h = jnp.maximum(ro @ p["w1"] + p["b1"], 0.0)
        y = h @ p["w2"] + p["b2"] + ro
        y = layer_norm(y, p["lnf_g"], p["lnf_b"])
        res.append(y)
    return res


# ----------------------------------------------------------------------------- main


if __name__ == "__main__":
    B, S, d_model = 2, 8, 32
    n_head, d_k, d_v, d_inner = 4, 8, 8, 2048   # d_inner=2048: MultiHeadReadOutAttention default

    root = jax.random.PRNGKey(0)
    k_in, k_par = jax.random.split(root)
    ki = jax.random.split(k_in, 3)
    input_t = jax.random.normal(ki[0], (B, S, d_model), jnp.float32)
    input_a = jax.random.normal(ki[1], (B, S, d_model), jnp.float32)
    input_v = jax.random.normal(ki[2], (B, S, d_model), jnp.float32)

    params = init_params(k_par, d_model, n_head, d_k, d_v, d_inner)
    kparams = to_kernel_layout(params, n_head, d_k, d_v, d_model)

    res, _ = cross_global_multi_head_attention(
        input_t, input_a, input_v, kparams, n_head=n_head, d_k=d_k, d_v=d_v)
    res = jax.block_until_ready(res)

    ref = reference_forward([input_t, input_a, input_v], params, n_head, d_k, d_v)
    for got, want in zip(res, ref):
        np.testing.assert_allclose(np.asarray(got), np.asarray(want), rtol=3e-2, atol=3e-2)

    print("KERNEL_OK")
</pallas_src>

<mosaic_0001>
module attributes {stable_mosaic.version = 11 : i64} {
  func.func @_cross_fused_kernel(%arg0: i32, %arg1: memref<3xi32, #tpu.memory_space<smem>>, %arg2: memref<3xi32, #tpu.memory_space<smem>>, %arg3: memref<1x16x32xf32, #tpu.memory_space<vmem>>, %arg4: memref<1x16x32xf32, #tpu.memory_space<vmem>>, %arg5: memref<1x16x32xf32, #tpu.memory_space<vmem>>, %arg6: memref<1x32x32xf32, #tpu.memory_space<vmem>>, %arg7: memref<1x32x32xf32, #tpu.memory_space<vmem>>, %arg8: memref<32x32xf32, #tpu.memory_space<vmem>>, %arg9: memref<32x32xf32, #tpu.memory_space<vmem>>, %arg10: memref<32x32xf32, #tpu.memory_space<vmem>>, %arg11: memref<32x32xf32, #tpu.memory_space<vmem>>, %arg12: memref<9x32xf32, #tpu.memory_space<vmem>>, %arg13: memref<32x2048xf32, #tpu.memory_space<vmem>>, %arg14: memref<1x2048xf32, #tpu.memory_space<vmem>>, %arg15: memref<2048x32xf32, #tpu.memory_space<vmem>>, %arg16: memref<1x16x32xf32, #tpu.memory_space<vmem>>) attributes {dimension_semantics = [#tpu.dimension_semantics<parallel>], iteration_bounds = array<i64: 3>, scalar_prefetch = 2 : i64, scratch_operands = 0 : i64, tpu.core_type = #tpu.core_type<tc>, window_params = [{transform_indices = @transform_0, window_bounds = array<i64: 1, 16, 32>}, {transform_indices = @transform_1, window_bounds = array<i64: 1, 16, 32>}, {transform_indices = @transform_2, window_bounds = array<i64: 1, 16, 32>}, {transform_indices = @transform_3, window_bounds = array<i64: 1, 32, 32>}, {transform_indices = @transform_4, window_bounds = array<i64: 1, 32, 32>}, {pipeline_mode = #tpu.pipeline_mode<synchronous>, transform_indices = @transform_5, window_bounds = array<i64: 32, 32>}, {pipeline_mode = #tpu.pipeline_mode<synchronous>, transform_indices = @transform_6, window_bounds = array<i64: 32, 32>}, {pipeline_mode = #tpu.pipeline_mode<synchronous>, transform_indices = @transform_7, window_bounds = array<i64: 32, 32>}, {pipeline_mode = #tpu.pipeline_mode<synchronous>, transform_indices = @transform_8, window_bounds = array<i64: 32, 32>}, {pipeline_mode = #tpu.pipeline_mode<synchronous>, transform_indices = @transform_9, window_bounds = array<i64: 9, 32>}, {pipeline_mode = #tpu.pipeline_mode<synchronous>, transform_indices = @transform_10, window_bounds = array<i64: 32, 2048>}, {pipeline_mode = #tpu.pipeline_mode<synchronous>, transform_indices = @transform_11, window_bounds = array<i64: 1, 2048>}, {pipeline_mode = #tpu.pipeline_mode<synchronous>, transform_indices = @transform_12, window_bounds = array<i64: 2048, 32>}, {transform_indices = @transform_13, window_bounds = array<i64: 1, 16, 32>}]} {
    %c0 = arith.constant 0 : index
    %c0_0 = arith.constant 0 : index
    %0 = vector.load %arg12[%c0, %c0_0] : memref<9x32xf32, #tpu.memory_space<vmem>>, vector<9x32xf32>
    %1 = vector.extract_strided_slice %0 {offsets = [0, 0], sizes = [1, 32], strides = [1, 1]} : vector<9x32xf32> to vector<1x32xf32>
    %2 = vector.extract_strided_slice %0 {offsets = [1, 0], sizes = [1, 32], strides = [1, 1]} : vector<9x32xf32> to vector<1x32xf32>
    %3 = vector.extract_strided_slice %0 {offsets = [2, 0], sizes = [2, 32], strides = [1, 1]} : vector<9x32xf32> to vector<2x32xf32>
    %4 = vector.extract_strided_slice %0 {offsets = [4, 0], sizes = [1, 32], strides = [1, 1]} : vector<9x32xf32> to vector<1x32xf32>
    %5 = vector.extract_strided_slice %0 {offsets = [5, 0], sizes = [1, 32], strides = [1, 1]} : vector<9x32xf32> to vector<1x32xf32>
    %6 = vector.extract_strided_slice %0 {offsets = [6, 0], sizes = [1, 32], strides = [1, 1]} : vector<9x32xf32> to vector<1x32xf32>
    %7 = vector.extract_strided_slice %0 {offsets = [7, 0], sizes = [1, 32], strides = [1, 1]} : vector<9x32xf32> to vector<1x32xf32>
    %8 = vector.extract_strided_slice %0 {offsets = [8, 0], sizes = [1, 32], strides = [1, 1]} : vector<9x32xf32> to vector<1x32xf32>
    %c0_1 = arith.constant 0 : index
    %c0_2 = arith.constant 0 : index
    %c0_3 = arith.constant 0 : index
    %9 = vector.load %arg5[%c0_1, %c0_2, %c0_3] : memref<1x16x32xf32, #tpu.memory_space<vmem>>, vector<1x16x32xf32>
    %10 = vector.shape_cast %9 : vector<1x16x32xf32> to vector<16x32xf32>
    %c0_4 = arith.constant 0 : index
    %c0_5 = arith.constant 0 : index
    %11 = vector.load %arg8[%c0_4, %c0_5] : memref<32x32xf32, #tpu.memory_space<vmem>>, vector<32x32xf32>
    %cst = arith.constant dense<0.000000e+00> : vector<16x32xf32>
    %12 = tpu.matmul %10, %11, %cst {dimension_numbers = #tpu.dot_dimension_numbers<[1], [0], [0], [1], [0, 0, 1, 1], [], []>} : vector<16x32xf32>, vector<32x32xf32>, vector<16x32xf32> -> vector<16x32xf32>
    %c0_6 = arith.constant 0 : index
    %c0_7 = arith.constant 0 : index
    %13 = vector.load %arg9[%c0_6, %c0_7] : memref<32x32xf32, #tpu.memory_space<vmem>>, vector<32x32xf32>
    %cst_8 = arith.constant dense<0.000000e+00> : vector<16x32xf32>
    %14 = tpu.matmul %10, %13, %cst_8 {dimension_numbers = #tpu.dot_dimension_numbers<[1], [0], [0], [1], [0, 0, 1, 1], [], []>} : vector<16x32xf32>, vector<32x32xf32>, vector<16x32xf32> -> vector<16x32xf32>
    %c0_9 = arith.constant 0 : index
    %c0_10 = arith.constant 0 : index
    %15 = vector.load %arg10[%c0_9, %c0_10] : memref<32x32xf32, #tpu.memory_space<vmem>>, vector<32x32xf32>
    %c0_11 = arith.constant 0 : index
    %c0_12 = arith.constant 0 : index
    %c0_13 = arith.constant 0 : index
    %16 = vector.load %arg3[%c0_11, %c0_12, %c0_13] : memref<1x16x32xf32, #tpu.memory_space<vmem>>, vector<1x16x32xf32>
    %17 = vector.shape_cast %16 : vector<1x16x32xf32> to vector<16x32xf32>
    %c0_14 = arith.constant 0 : index
    %c0_15 = arith.constant 0 : index
    %c0_16 = arith.constant 0 : index
    %18 = vector.load %arg6[%c0_14, %c0_15, %c0_16] : memref<1x32x32xf32, #tpu.memory_space<vmem>>, vector<1x32x32xf32>
    %19 = vector.shape_cast %18 : vector<1x32x32xf32> to vector<32x32xf32>
    %cst_17 = arith.constant dense<0.000000e+00> : vector<16x32xf32>
    %20 = tpu.matmul %17, %19, %cst_17 {dimension_numbers = #tpu.dot_dimension_numbers<[1], [0], [0], [1], [0, 0, 1, 1], [], []>} : vector<16x32xf32>, vector<32x32xf32>, vector<16x32xf32> -> vector<16x32xf32>
    %21 = vector.extract_strided_slice %20 {offsets = [0, 0], sizes = [8, 32], strides = [1, 1]} : vector<16x32xf32> to vector<8x32xf32>
    %22 = vector.extract_strided_slice %12 {offsets = [0, 0], sizes = [8, 32], strides = [1, 1]} : vector<16x32xf32> to vector<8x32xf32>
    %23 = vector.extract_strided_slice %14 {offsets = [0, 0], sizes = [8, 32], strides = [1, 1]} : vector<16x32xf32> to vector<8x32xf32>
    %24 = vector.extract_strided_slice %21 {offsets = [0, 0], sizes = [8, 8], strides = [1, 1]} : vector<8x32xf32> to vector<8x8xf32>
    %25 = vector.extract_strided_slice %22 {offsets = [0, 0], sizes = [8, 8], strides = [1, 1]} : vector<8x32xf32> to vector<8x8xf32>
    %26 = vector.extract_strided_slice %23 {offsets = [0, 0], sizes = [8, 8], strides = [1, 1]} : vector<8x32xf32> to vector<8x8xf32>
    %cst_18 = arith.constant dense<0.000000e+00> : vector<8x8xf32>
    %27 = tpu.matmul %24, %25, %cst_18 {dimension_numbers = #tpu.dot_dimension_numbers<[1], [1], [0], [0], [0, 0, 1, 0], [], []>} : vector<8x8xf32>, vector<8x8xf32>, vector<8x8xf32> -> vector<8x8xf32>
    %cst_19 = arith.constant dense<0xFF800000> : vector<8xf32>
    %28 = vector.multi_reduction <maximumf>, %27, %cst_19 [1] : vector<8x8xf32> to vector<8xf32>
    %29 = vector.shape_cast %28 : vector<8xf32> to vector<8x1xf32>
    %30 = vector.broadcast %29 : vector<8x1xf32> to vector<8x8xf32>
    %31 = arith.subf %27, %30 : vector<8x8xf32>
    %32 = math.exp %31 : vector<8x8xf32>
    %cst_20 = arith.constant dense<0.000000e+00> : vector<8xf32>
    %33 = vector.multi_reduction <add>, %32, %cst_20 [1] : vector<8x8xf32> to vector<8xf32>
    %34 = vector.shape_cast %33 : vector<8xf32> to vector<8x1xf32>
    %35 = tpu.reciprocal %34 {approx = true} : vector<8x1xf32> -> vector<8x1xf32>
    %36 = vector.broadcast %35 : vector<8x1xf32> to vector<8x8xf32>
    %37 = arith.mulf %32, %36 : vector<8x8xf32>
    %cst_21 = arith.constant dense<0.000000e+00> : vector<8x8xf32>
    %38 = tpu.matmul %37, %26, %cst_21 {dimension_numbers = #tpu.dot_dimension_numbers<[1], [0], [0], [1], [0, 0, 1, 1], [], []>} : vector<8x8xf32>, vector<8x8xf32>, vector<8x8xf32> -> vector<8x8xf32>
    %39 = vector.extract_strided_slice %15 {offsets = [0, 0], sizes = [8, 32], strides = [1, 1]} : vector<32x32xf32> to vector<8x32xf32>
    %cst_22 = arith.constant dense<0.000000e+00> : vector<8x32xf32>
    %40 = tpu.matmul %38, %39, %cst_22 {dimension_numbers = #tpu.dot_dimension_numbers<[1], [0], [0], [1], [0, 0, 1, 1], [], []>} : vector<8x8xf32>, vector<8x32xf32>, vector<8x32xf32> -> vector<8x32xf32>
    %41 = vector.extract_strided_slice %21 {offsets = [0, 8], sizes = [8, 8], strides = [1, 1]} : vector<8x32xf32> to vector<8x8xf32>
    %42 = vector.extract_strided_slice %22 {offsets = [0, 8], sizes = [8, 8], strides = [1, 1]} : vector<8x32xf32> to vector<8x8xf32>
    %43 = vector.extract_strided_slice %23 {offsets = [0, 8], sizes = [8, 8], strides = [1, 1]} : vector<8x32xf32> to vector<8x8xf32>
    %cst_23 = arith.constant dense<0.000000e+00> : vector<8x8xf32>
    %44 = tpu.matmul %41, %42, %cst_23 {dimension_numbers = #tpu.dot_dimension_numbers<[1], [1], [0], [0], [0, 0, 1, 0], [], []>} : vector<8x8xf32>, vector<8x8xf32>, vector<8x8xf32> -> vector<8x8xf32>
    %cst_24 = arith.constant dense<0xFF800000> : vector<8xf32>
    %45 = vector.multi_reduction <maximumf>, %44, %cst_24 [1] : vector<8x8xf32> to vector<8xf32>
    %46 = vector.shape_cast %45 : vector<8xf32> to vector<8x1xf32>
    %47 = vector.broadcast %46 : vector<8x1xf32> to vector<8x8xf32>
    %48 = arith.subf %44, %47 : vector<8x8xf32>
    %49 = math.exp %48 : vector<8x8xf32>
    %cst_25 = arith.constant dense<0.000000e+00> : vector<8xf32>
    %50 = vector.multi_reduction <add>, %49, %cst_25 [1] : vector<8x8xf32> to vector<8xf32>
    %51 = vector.shape_cast %50 : vector<8xf32> to vector<8x1xf32>
    %52 = tpu.reciprocal %51 {approx = true} : vector<8x1xf32> -> vector<8x1xf32>
    %53 = vector.broadcast %52 : vector<8x1xf32> to vector<8x8xf32>
    %54 = arith.mulf %49, %53 : vector<8x8xf32>
    %cst_26 = arith.constant dense<0.000000e+00> : vector<8x8xf32>
    %55 = tpu.matmul %54, %43, %cst_26 {dimension_numbers = #tpu.dot_dimension_numbers<[1], [0], [0], [1], [0, 0, 1, 1], [], []>} : vector<8x8xf32>, vector<8x8xf32>, vector<8x8xf32> -> vector<8x8xf32>
    %56 = vector.extract_strided_slice %15 {offsets = [8, 0], sizes = [8, 32], strides = [1, 1]} : vector<32x32xf32> to vector<8x32xf32>
    %cst_27 = arith.constant dense<0.000000e+00> : vector<8x32xf32>
    %57 = tpu.matmul %55, %56, %cst_27 {dimension_numbers = #tpu.dot_dimension_numbers<[1], [0], [0], [1], [0, 0, 1, 1], [], []>} : vector<8x8xf32>, vector<8x32xf32>, vector<8x32xf32> -> vector<8x32xf32>
    %58 = arith.addf %40, %57 : vector<8x32xf32>
    %59 = vector.extract_strided_slice %21 {offsets = [0, 16], sizes = [8, 8], strides = [1, 1]} : vector<8x32xf32> to vector<8x8xf32>
    %60 = vector.extract_strided_slice %22 {offsets = [0, 16], sizes = [8, 8], strides = [1, 1]} : vector<8x32xf32> to vector<8x8xf32>
    %61 = vector.extract_strided_slice %23 {offsets = [0, 16], sizes = [8, 8], strides = [1, 1]} : vector<8x32xf32> to vector<8x8xf32>
    %cst_28 = arith.constant dense<0.000000e+00> : vector<8x8xf32>
    %62 = tpu.matmul %59, %60, %cst_28 {dimension_numbers = #tpu.dot_dimension_numbers<[1], [1], [0], [0], [0, 0, 1, 0], [], []>} : vector<8x8xf32>, vector<8x8xf32>, vector<8x8xf32> -> vector<8x8xf32>
    %cst_29 = arith.constant dense<0xFF800000> : vector<8xf32>
    %63 = vector.multi_reduction <maximumf>, %62, %cst_29 [1] : vector<8x8xf32> to vector<8xf32>
    %64 = vector.shape_cast %63 : vector<8xf32> to vector<8x1xf32>
    %65 = vector.broadcast %64 : vector<8x1xf32> to vector<8x8xf32>
    %66 = arith.subf %62, %65 : vector<8x8xf32>
    %67 = math.exp %66 : vector<8x8xf32>
    %cst_30 = arith.constant dense<0.000000e+00> : vector<8xf32>
    %68 = vector.multi_reduction <add>, %67, %cst_30 [1] : vector<8x8xf32> to vector<8xf32>
    %69 = vector.shape_cast %68 : vector<8xf32> to vector<8x1xf32>
    %70 = tpu.reciprocal %69 {approx = true} : vector<8x1xf32> -> vector<8x1xf32>
    %71 = vector.broadcast %70 : vector<8x1xf32> to vector<8x8xf32>
    %72 = arith.mulf %67, %71 : vector<8x8xf32>
    %cst_31 = arith.constant dense<0.000000e+00> : vector<8x8xf32>
    %73 = tpu.matmul %72, %61, %cst_31 {dimension_numbers = #tpu.dot_dimension_numbers<[1], [0], [0], [1], [0, 0, 1, 1], [], []>} : vector<8x8xf32>, vector<8x8xf32>, vector<8x8xf32> -> vector<8x8xf32>
    %74 = vector.extract_strided_slice %15 {offsets = [16, 0], sizes = [8, 32], strides = [1, 1]} : vector<32x32xf32> to vector<8x32xf32>
    %cst_32 = arith.constant dense<0.000000e+00> : vector<8x32xf32>
    %75 = tpu.matmul %73, %74, %cst_32 {dimension_numbers = #tpu.dot_dimension_numbers<[1], [0], [0], [1], [0, 0, 1, 1], [], []>} : vector<8x8xf32>, vector<8x32xf32>, vector<8x32xf32> -> vector<8x32xf32>
    %76 = arith.addf %58, %75 : vector<8x32xf32>
    %77 = vector.extract_strided_slice %21 {offsets = [0, 24], sizes = [8, 8], strides = [1, 1]} : vector<8x32xf32> to vector<8x8xf32>
    %78 = vector.extract_strided_slice %22 {offsets = [0, 24], sizes = [8, 8], strides = [1, 1]} : vector<8x32xf32> to vector<8x8xf32>
    %79 = vector.extract_strided_slice %23 {offsets = [0, 24], sizes = [8, 8], strides = [1, 1]} : vector<8x32xf32> to vector<8x8xf32>
    %cst_33 = arith.constant dense<0.000000e+00> : vector<8x8xf32>
    %80 = tpu.matmul %77, %78, %cst_33 {dimension_numbers = #tpu.dot_dimension_numbers<[1], [1], [0], [0], [0, 0, 1, 0], [], []>} : vector<8x8xf32>, vector<8x8xf32>, vector<8x8xf32> -> vector<8x8xf32>
    %cst_34 = arith.constant dense<0xFF800000> : vector<8xf32>
    %81 = vector.multi_reduction <maximumf>, %80, %cst_34 [1] : vector<8x8xf32> to vector<8xf32>
    %82 = vector.shape_cast %81 : vector<8xf32> to vector<8x1xf32>
    %83 = vector.broadcast %82 : vector<8x1xf32> to vector<8x8xf32>
    %84 = arith.subf %80, %83 : vector<8x8xf32>
    %85 = math.exp %84 : vector<8x8xf32>
    %cst_35 = arith.constant dense<0.000000e+00> : vector<8xf32>
    %86 = vector.multi_reduction <add>, %85, %cst_35 [1] : vector<8x8xf32> to vector<8xf32>
    %87 = vector.shape_cast %86 : vector<8xf32> to vector<8x1xf32>
    %88 = tpu.reciprocal %87 {approx = true} : vector<8x1xf32> -> vector<8x1xf32>
    %89 = vector.broadcast %88 : vector<8x1xf32> to vector<8x8xf32>
    %90 = arith.mulf %85, %89 : vector<8x8xf32>
    %cst_36 = arith.constant dense<0.000000e+00> : vector<8x8xf32>
    %91 = tpu.matmul %90, %79, %cst_36 {dimension_numbers = #tpu.dot_dimension_numbers<[1], [0], [0], [1], [0, 0, 1, 1], [], []>} : vector<8x8xf32>, vector<8x8xf32>, vector<8x8xf32> -> vector<8x8xf32>
    %92 = vector.extract_strided_slice %15 {offsets = [24, 0], sizes = [8, 32], strides = [1, 1]} : vector<32x32xf32> to vector<8x32xf32>
    %cst_37 = arith.constant dense<0.000000e+00> : vector<8x32xf32>
    %93 = tpu.matmul %91, %92, %cst_37 {dimension_numbers = #tpu.dot_dimension_numbers<[1], [0], [0], [1], [0, 0, 1, 1], [], []>} : vector<8x8xf32>, vector<8x32xf32>, vector<8x32xf32> -> vector<8x32xf32>
    %94 = arith.addf %76, %93 : vector<8x32xf32>
    %95 = vector.extract_strided_slice %20 {offsets = [8, 0], sizes = [8, 32], strides = [1, 1]} : vector<16x32xf32> to vector<8x32xf32>
    %96 = vector.extract_strided_slice %12 {offsets = [8, 0], sizes = [8, 32], strides = [1, 1]} : vector<16x32xf32> to vector<8x32xf32>
    %97 = vector.extract_strided_slice %14 {offsets = [8, 0], sizes = [8, 32], strides = [1, 1]} : vector<16x32xf32> to vector<8x32xf32>
    %98 = vector.extract_strided_slice %95 {offsets = [0, 0], sizes = [8, 8], strides = [1, 1]} : vector<8x32xf32> to vector<8x8xf32>
    %99 = vector.extract_strided_slice %96 {offsets = [0, 0], sizes = [8, 8], strides = [1, 1]} : vector<8x32xf32> to vector<8x8xf32>
    %100 = vector.extract_strided_slice %97 {offsets = [0, 0], sizes = [8, 8], strides = [1, 1]} : vector<8x32xf32> to vector<8x8xf32>
    %cst_38 = arith.constant dense<0.000000e+00> : vector<8x8xf32>
    %101 = tpu.matmul %98, %99, %cst_38 {dimension_numbers = #tpu.dot_dimension_numbers<[1], [1], [0], [0], [0, 0, 1, 0], [], []>} : vector<8x8xf32>, vector<8x8xf32>, vector<8x8xf32> -> vector<8x8xf32>
    %cst_39 = arith.constant dense<0xFF800000> : vector<8xf32>
    %102 = vector.multi_reduction <maximumf>, %101, %cst_39 [1] : vector<8x8xf32> to vector<8xf32>
    %103 = vector.shape_cast %102 : vector<8xf32> to vector<8x1xf32>
    %104 = vector.broadcast %103 : vector<8x1xf32> to vector<8x8xf32>
    %105 = arith.subf %101, %104 : vector<8x8xf32>
    %106 = math.exp %105 : vector<8x8xf32>
    %cst_40 = arith.constant dense<0.000000e+00> : vector<8xf32>
    %107 = vector.multi_reduction <add>, %106, %cst_40 [1] : vector<8x8xf32> to vector<8xf32>
    %108 = vector.shape_cast %107 : vector<8xf32> to vector<8x1xf32>
    %109 = tpu.reciprocal %108 {approx = true} : vector<8x1xf32> -> vector<8x1xf32>
    %110 = vector.broadcast %109 : vector<8x1xf32> to vector<8x8xf32>
    %111 = arith.mulf %106, %110 : vector<8x8xf32>
    %cst_41 = arith.constant dense<0.000000e+00> : vector<8x8xf32>
    %112 = tpu.matmul %111, %100, %cst_41 {dimension_numbers = #tpu.dot_dimension_numbers<[1], [0], [0], [1], [0, 0, 1, 1], [], []>} : vector<8x8xf32>, vector<8x8xf32>, vector<8x8xf32> -> vector<8x8xf32>
    %113 = vector.extract_strided_slice %15 {offsets = [0, 0], sizes = [8, 32], strides = [1, 1]} : vector<32x32xf32> to vector<8x32xf32>
    %cst_42 = arith.constant dense<0.000000e+00> : vector<8x32xf32>
    %114 = tpu.matmul %112, %113, %cst_42 {dimension_numbers = #tpu.dot_dimension_numbers<[1], [0], [0], [1], [0, 0, 1, 1], [], []>} : vector<8x8xf32>, vector<8x32xf32>, vector<8x32xf32> -> vector<8x32xf32>
    %115 = vector.extract_strided_slice %95 {offsets = [0, 8], sizes = [8, 8], strides = [1, 1]} : vector<8x32xf32> to vector<8x8xf32>
    %116 = vector.extract_strided_slice %96 {offsets = [0, 8], sizes = [8, 8], strides = [1, 1]} : vector<8x32xf32> to vector<8x8xf32>
    %117 = vector.extract_strided_slice %97 {offsets = [0, 8], sizes = [8, 8], strides = [1, 1]} : vector<8x32xf32> to vector<8x8xf32>
    %cst_43 = arith.constant dense<0.000000e+00> : vector<8x8xf32>
    %118 = tpu.matmul %115, %116, %cst_43 {dimension_numbers = #tpu.dot_dimension_numbers<[1], [1], [0], [0], [0, 0, 1, 0], [], []>} : vector<8x8xf32>, vector<8x8xf32>, vector<8x8xf32> -> vector<8x8xf32>
    %cst_44 = arith.constant dense<0xFF800000> : vector<8xf32>
    %119 = vector.multi_reduction <maximumf>, %118, %cst_44 [1] : vector<8x8xf32> to vector<8xf32>
    %120 = vector.shape_cast %119 : vector<8xf32> to vector<8x1xf32>
    %121 = vector.broadcast %120 : vector<8x1xf32> to vector<8x8xf32>
    %122 = arith.subf %118, %121 : vector<8x8xf32>
    %123 = math.exp %122 : vector<8x8xf32>
    %cst_45 = arith.constant dense<0.000000e+00> : vector<8xf32>
    %124 = vector.multi_reduction <add>, %123, %cst_45 [1] : vector<8x8xf32> to vector<8xf32>
    %125 = vector.shape_cast %124 : vector<8xf32> to vector<8x1xf32>
    %126 = tpu.reciprocal %125 {approx = true} : vector<8x1xf32> -> vector<8x1xf32>
    %127 = vector.broadcast %126 : vector<8x1xf32> to vector<8x8xf32>
    %128 = arith.mulf %123, %127 : vector<8x8xf32>
    %cst_46 = arith.constant dense<0.000000e+00> : vector<8x8xf32>
    %129 = tpu.matmul %128, %117, %cst_46 {dimension_numbers = #tpu.dot_dimension_numbers<[1], [0], [0], [1], [0, 0, 1, 1], [], []>} : vector<8x8xf32>, vector<8x8xf32>, vector<8x8xf32> -> vector<8x8xf32>
    %130 = vector.extract_strided_slice %15 {offsets = [8, 0], sizes = [8, 32], strides = [1, 1]} : vector<32x32xf32> to vector<8x32xf32>
    %cst_47 = arith.constant dense<0.000000e+00> : vector<8x32xf32>
    %131 = tpu.matmul %129, %130, %cst_47 {dimension_numbers = #tpu.dot_dimension_numbers<[1], [0], [0], [1], [0, 0, 1, 1], [], []>} : vector<8x8xf32>, vector<8x32xf32>, vector<8x32xf32> -> vector<8x32xf32>
    %132 = arith.addf %114, %131 : vector<8x32xf32>
    %133 = vector.extract_strided_slice %95 {offsets = [0, 16], sizes = [8, 8], strides = [1, 1]} : vector<8x32xf32> to vector<8x8xf32>
    %134 = vector.extract_strided_slice %96 {offsets = [0, 16], sizes = [8, 8], strides = [1, 1]} : vector<8x32xf32> to vector<8x8xf32>
    %135 = vector.extract_strided_slice %97 {offsets = [0, 16], sizes = [8, 8], strides = [1, 1]} : vector<8x32xf32> to vector<8x8xf32>
    %cst_48 = arith.constant dense<0.000000e+00> : vector<8x8xf32>
    %136 = tpu.matmul %133, %134, %cst_48 {dimension_numbers = #tpu.dot_dimension_numbers<[1], [1], [0], [0], [0, 0, 1, 0], [], []>} : vector<8x8xf32>, vector<8x8xf32>, vector<8x8xf32> -> vector<8x8xf32>
    %cst_49 = arith.constant dense<0xFF800000> : vector<8xf32>
    %137 = vector.multi_reduction <maximumf>, %136, %cst_49 [1] : vector<8x8xf32> to vector<8xf32>
    %138 = vector.shape_cast %137 : vector<8xf32> to vector<8x1xf32>
    %139 = vector.broadcast %138 : vector<8x1xf32> to vector<8x8xf32>
    %140 = arith.subf %136, %139 : vector<8x8xf32>
    %141 = math.exp %140 : vector<8x8xf32>
    %cst_50 = arith.constant dense<0.000000e+00> : vector<8xf32>
    %142 = vector.multi_reduction <add>, %141, %cst_50 [1] : vector<8x8xf32> to vector<8xf32>
    %143 = vector.shape_cast %142 : vector<8xf32> to vector<8x1xf32>
    %144 = tpu.reciprocal %143 {approx = true} : vector<8x1xf32> -> vector<8x1xf32>
    %145 = vector.broadcast %144 : vector<8x1xf32> to vector<8x8xf32>
    %146 = arith.mulf %141, %145 : vector<8x8xf32>
    %cst_51 = arith.constant dense<0.000000e+00> : vector<8x8xf32>
    %147 = tpu.matmul %146, %135, %cst_51 {dimension_numbers = #tpu.dot_dimension_numbers<[1], [0], [0], [1], [0, 0, 1, 1], [], []>} : vector<8x8xf32>, vector<8x8xf32>, vector<8x8xf32> -> vector<8x8xf32>
    %148 = vector.extract_strided_slice %15 {offsets = [16, 0], sizes = [8, 32], strides = [1, 1]} : vector<32x32xf32> to vector<8x32xf32>
    %cst_52 = arith.constant dense<0.000000e+00> : vector<8x32xf32>
    %149 = tpu.matmul %147, %148, %cst_52 {dimension_numbers = #tpu.dot_dimension_numbers<[1], [0], [0], [1], [0, 0, 1, 1], [], []>} : vector<8x8xf32>, vector<8x32xf32>, vector<8x32xf32> -> vector<8x32xf32>
    %150 = arith.addf %132, %149 : vector<8x32xf32>
    %151 = vector.extract_strided_slice %95 {offsets = [0, 24], sizes = [8, 8], strides = [1, 1]} : vector<8x32xf32> to vector<8x8xf32>
    %152 = vector.extract_strided_slice %96 {offsets = [0, 24], sizes = [8, 8], strides = [1, 1]} : vector<8x32xf32> to vector<8x8xf32>
    %153 = vector.extract_strided_slice %97 {offsets = [0, 24], sizes = [8, 8], strides = [1, 1]} : vector<8x32xf32> to vector<8x8xf32>
    %cst_53 = arith.constant dense<0.000000e+00> : vector<8x8xf32>
    %154 = tpu.matmul %151, %152, %cst_53 {dimension_numbers = #tpu.dot_dimension_numbers<[1], [1], [0], [0], [0, 0, 1, 0], [], []>} : vector<8x8xf32>, vector<8x8xf32>, vector<8x8xf32> -> vector<8x8xf32>
    %cst_54 = arith.constant dense<0xFF800000> : vector<8xf32>
    %155 = vector.multi_reduction <maximumf>, %154, %cst_54 [1] : vector<8x8xf32> to vector<8xf32>
    %156 = vector.shape_cast %155 : vector<8xf32> to vector<8x1xf32>
    %157 = vector.broadcast %156 : vector<8x1xf32> to vector<8x8xf32>
    %158 = arith.subf %154, %157 : vector<8x8xf32>
    %159 = math.exp %158 : vector<8x8xf32>
    %cst_55 = arith.constant dense<0.000000e+00> : vector<8xf32>
    %160 = vector.multi_reduction <add>, %159, %cst_55 [1] : vector<8x8xf32> to vector<8xf32>
    %161 = vector.shape_cast %160 : vector<8xf32> to vector<8x1xf32>
    %162 = tpu.reciprocal %161 {approx = true} : vector<8x1xf32> -> vector<8x1xf32>
    %163 = vector.broadcast %162 : vector<8x1xf32> to vector<8x8xf32>
    %164 = arith.mulf %159, %163 : vector<8x8xf32>
    %cst_56 = arith.constant dense<0.000000e+00> : vector<8x8xf32>
    %165 = tpu.matmul %164, %153, %cst_56 {dimension_numbers = #tpu.dot_dimension_numbers<[1], [0], [0], [1], [0, 0, 1, 1], [], []>} : vector<8x8xf32>, vector<8x8xf32>, vector<8x8xf32> -> vector<8x8xf32>
    %166 = vector.extract_strided_slice %15 {offsets = [24, 0], sizes = [8, 32], strides = [1, 1]} : vector<32x32xf32> to vector<8x32xf32>
    %cst_57 = arith.constant dense<0.000000e+00> : vector<8x32xf32>
    %167 = tpu.matmul %165, %166, %cst_57 {dimension_numbers = #tpu.dot_dimension_numbers<[1], [0], [0], [1], [0, 0, 1, 1], [], []>} : vector<8x8xf32>, vector<8x32xf32>, vector<8x32xf32> -> vector<8x32xf32>
    %168 = arith.addf %150, %167 : vector<8x32xf32>
    %169 = tpu.concatenate %94, %168 in 0 : vector<8x32xf32>, vector<8x32xf32> -> vector<16x32xf32>
    %cst_58 = arith.constant dense<0.000000e+00> : vector<16xf32>
    %170 = vector.multi_reduction <add>, %169, %cst_58 [1] : vector<16x32xf32> to vector<16xf32>
    %171 = vector.shape_cast %170 : vector<16xf32> to vector<16x1xf32>
    %cst_59 = arith.constant 3.200000e+01 : f32
    %172 = vector.broadcast %cst_59 : f32 to vector<16x1xf32>
    %173 = arith.divf %171, %172 : vector<16x1xf32>
    %174 = vector.broadcast %173 : vector<16x1xf32> to vector<16x32xf32>
    %175 = arith.subf %169, %174 : vector<16x32xf32>
    %176 = arith.mulf %175, %175 : vector<16x32xf32>
    %cst_60 = arith.constant dense<0.000000e+00> : vector<16xf32>
    %177 = vector.multi_reduction <add>, %176, %cst_60 [1] : vector<16x32xf32> to vector<16xf32>
    %178 = vector.shape_cast %177 : vector<16xf32> to vector<16x1xf32>
    %cst_61 = arith.constant 3.200000e+01 : f32
    %179 = vector.broadcast %cst_61 : f32 to vector<16x1xf32>
    %180 = arith.divf %178, %179 : vector<16x1xf32>
    %cst_62 = arith.constant 9.99999997E-7 : f32
    %181 = vector.broadcast %cst_62 : f32 to vector<16x1xf32>
    %182 = arith.addf %180, %181 : vector<16x1xf32>
    %183 = math.rsqrt %182 : vector<16x1xf32>
    %184 = vector.broadcast %183 : vector<16x1xf32> to vector<16x32xf32>
    %185 = arith.mulf %175, %184 : vector<16x32xf32>
    %186 = vector.broadcast %1 : vector<1x32xf32> to vector<16x32xf32>
    %187 = arith.mulf %185, %186 : vector<16x32xf32>
    %188 = vector.broadcast %2 : vector<1x32xf32> to vector<16x32xf32>
    %189 = arith.addf %187, %188 : vector<16x32xf32>
    %c0_63 = arith.constant 0 : index
    %c0_64 = arith.constant 0 : index
    %c0_65 = arith.constant 0 : index
    %190 = vector.load %arg4[%c0_63, %c0_64, %c0_65] : memref<1x16x32xf32, #tpu.memory_space<vmem>>, vector<1x16x32xf32>
    %191 = vector.shape_cast %190 : vector<1x16x32xf32> to vector<16x32xf32>
    %c0_66 = arith.constant 0 : index
    %c0_67 = arith.constant 0 : index
    %c0_68 = arith.constant 0 : index
    %192 = vector.load %arg7[%c0_66, %c0_67, %c0_68] : memref<1x32x32xf32, #tpu.memory_space<vmem>>, vector<1x32x32xf32>
    %193 = vector.shape_cast %192 : vector<1x32x32xf32> to vector<32x32xf32>
    %cst_69 = arith.constant dense<0.000000e+00> : vector<16x32xf32>
    %194 = tpu.matmul %191, %193, %cst_69 {dimension_numbers = #tpu.dot_dimension_numbers<[1], [0], [0], [1], [0, 0, 1, 1], [], []>} : vector<16x32xf32>, vector<32x32xf32>, vector<16x32xf32> -> vector<16x32xf32>
    %195 = vector.extract_strided_slice %194 {offsets = [0, 0], sizes = [8, 32], strides = [1, 1]} : vector<16x32xf32> to vector<8x32xf32>
    %196 = vector.extract_strided_slice %12 {offsets = [0, 0], sizes = [8, 32], strides = [1, 1]} : vector<16x32xf32> to vector<8x32xf32>
    %197 = vector.extract_strided_slice %14 {offsets = [0, 0], sizes = [8, 32], strides = [1, 1]} : vector<16x32xf32> to vector<8x32xf32>
    %198 = vector.extract_strided_slice %195 {offsets = [0, 0], sizes = [8, 8], strides = [1, 1]} : vector<8x32xf32> to vector<8x8xf32>
    %199 = vector.extract_strided_slice %196 {offsets = [0, 0], sizes = [8, 8], strides = [1, 1]} : vector<8x32xf32> to vector<8x8xf32>
    %200 = vector.extract_strided_slice %197 {offsets = [0, 0], sizes = [8, 8], strides = [1, 1]} : vector<8x32xf32> to vector<8x8xf32>
    %cst_70 = arith.constant dense<0.000000e+00> : vector<8x8xf32>
    %201 = tpu.matmul %198, %199, %cst_70 {dimension_numbers = #tpu.dot_dimension_numbers<[1], [1], [0], [0], [0, 0, 1, 0], [], []>} : vector<8x8xf32>, vector<8x8xf32>, vector<8x8xf32> -> vector<8x8xf32>
    %cst_71 = arith.constant dense<0xFF800000> : vector<8xf32>
    %202 = vector.multi_reduction <maximumf>, %201, %cst_71 [1] : vector<8x8xf32> to vector<8xf32>
    %203 = vector.shape_cast %202 : vector<8xf32> to vector<8x1xf32>
    %204 = vector.broadcast %203 : vector<8x1xf32> to vector<8x8xf32>
    %205 = arith.subf %201, %204 : vector<8x8xf32>
    %206 = math.exp %205 : vector<8x8xf32>
    %cst_72 = arith.constant dense<0.000000e+00> : vector<8xf32>
    %207 = vector.multi_reduction <add>, %206, %cst_72 [1] : vector<8x8xf32> to vector<8xf32>
    %208 = vector.shape_cast %207 : vector<8xf32> to vector<8x1xf32>
    %209 = tpu.reciprocal %208 {approx = true} : vector<8x1xf32> -> vector<8x1xf32>
    %210 = vector.broadcast %209 : vector<8x1xf32> to vector<8x8xf32>
    %211 = arith.mulf %206, %210 : vector<8x8xf32>
    %cst_73 = arith.constant dense<0.000000e+00> : vector<8x8xf32>
    %212 = tpu.matmul %211, %200, %cst_73 {dimension_numbers = #tpu.dot_dimension_numbers<[1], [0], [0], [1], [0, 0, 1, 1], [], []>} : vector<8x8xf32>, vector<8x8xf32>, vector<8x8xf32> -> vector<8x8xf32>
    %213 = vector.extract_strided_slice %15 {offsets = [0, 0], sizes = [8, 32], strides = [1, 1]} : vector<32x32xf32> to vector<8x32xf32>
    %cst_74 = arith.constant dense<0.000000e+00> : vector<8x32xf32>
    %214 = tpu.matmul %212, %213, %cst_74 {dimension_numbers = #tpu.dot_dimension_numbers<[1], [0], [0], [1], [0, 0, 1, 1], [], []>} : vector<8x8xf32>, vector<8x32xf32>, vector<8x32xf32> -> vector<8x32xf32>
    %215 = vector.extract_strided_slice %195 {offsets = [0, 8], sizes = [8, 8], strides = [1, 1]} : vector<8x32xf32> to vector<8x8xf32>
    %216 = vector.extract_strided_slice %196 {offsets = [0, 8], sizes = [8, 8], strides = [1, 1]} : vector<8x32xf32> to vector<8x8xf32>
    %217 = vector.extract_strided_slice %197 {offsets = [0, 8], sizes = [8, 8], strides = [1, 1]} : vector<8x32xf32> to vector<8x8xf32>
    %cst_75 = arith.constant dense<0.000000e+00> : vector<8x8xf32>
    %218 = tpu.matmul %215, %216, %cst_75 {dimension_numbers = #tpu.dot_dimension_numbers<[1], [1], [0], [0], [0, 0, 1, 0], [], []>} : vector<8x8xf32>, vector<8x8xf32>, vector<8x8xf32> -> vector<8x8xf32>
    %cst_76 = arith.constant dense<0xFF800000> : vector<8xf32>
    %219 = vector.multi_reduction <maximumf>, %218, %cst_76 [1] : vector<8x8xf32> to vector<8xf32>
    %220 = vector.shape_cast %219 : vector<8xf32> to vector<8x1xf32>
    %221 = vector.broadcast %220 : vector<8x1xf32> to vector<8x8xf32>
    %222 = arith.subf %218, %221 : vector<8x8xf32>
    %223 = math.exp %222 : vector<8x8xf32>
    %cst_77 = arith.constant dense<0.000000e+00> : vector<8xf32>
    %224 = vector.multi_reduction <add>, %223, %cst_77 [1] : vector<8x8xf32> to vector<8xf32>
    %225 = vector.shape_cast %224 : vector<8xf32> to vector<8x1xf32>
    %226 = tpu.reciprocal %225 {approx = true} : vector<8x1xf32> -> vector<8x1xf32>
    %227 = vector.broadcast %226 : vector<8x1xf32> to vector<8x8xf32>
    %228 = arith.mulf %223, %227 : vector<8x8xf32>
    %cst_78 = arith.constant dense<0.000000e+00> : vector<8x8xf32>
    %229 = tpu.matmul %228, %217, %cst_78 {dimension_numbers = #tpu.dot_dimension_numbers<[1], [0], [0], [1], [0, 0, 1, 1], [], []>} : vector<8x8xf32>, vector<8x8xf32>, vector<8x8xf32> -> vector<8x8xf32>
    %230 = vector.extract_strided_slice %15 {offsets = [8, 0], sizes = [8, 32], strides = [1, 1]} : vector<32x32xf32> to vector<8x32xf32>
    %cst_79 = arith.constant dense<0.000000e+00> : vector<8x32xf32>
    %231 = tpu.matmul %229, %230, %cst_79 {dimension_numbers = #tpu.dot_dimension_numbers<[1], [0], [0], [1], [0, 0, 1, 1], [], []>} : vector<8x8xf32>, vector<8x32xf32>, vector<8x32xf32> -> vector<8x32xf32>
    %232 = arith.addf %214, %231 : vector<8x32xf32>
    %233 = vector.extract_strided_slice %195 {offsets = [0, 16], sizes = [8, 8], strides = [1, 1]} : vector<8x32xf32> to vector<8x8xf32>
    %234 = vector.extract_strided_slice %196 {offsets = [0, 16], sizes = [8, 8], strides = [1, 1]} : vector<8x32xf32> to vector<8x8xf32>
    %235 = vector.extract_strided_slice %197 {offsets = [0, 16], sizes = [8, 8], strides = [1, 1]} : vector<8x32xf32> to vector<8x8xf32>
    %cst_80 = arith.constant dense<0.000000e+00> : vector<8x8xf32>
    %236 = tpu.matmul %233, %234, %cst_80 {dimension_numbers = #tpu.dot_dimension_numbers<[1], [1], [0], [0], [0, 0, 1, 0], [], []>} : vector<8x8xf32>, vector<8x8xf32>, vector<8x8xf32> -> vector<8x8xf32>
    %cst_81 = arith.constant dense<0xFF800000> : vector<8xf32>
    %237 = vector.multi_reduction <maximumf>, %236, %cst_81 [1] : vector<8x8xf32> to vector<8xf32>
    %238 = vector.shape_cast %237 : vector<8xf32> to vector<8x1xf32>
    %239 = vector.broadcast %238 : vector<8x1xf32> to vector<8x8xf32>
    %240 = arith.subf %236, %239 : vector<8x8xf32>
    %241 = math.exp %240 : vector<8x8xf32>
    %cst_82 = arith.constant dense<0.000000e+00> : vector<8xf32>
    %242 = vector.multi_reduction <add>, %241, %cst_82 [1] : vector<8x8xf32> to vector<8xf32>
    %243 = vector.shape_cast %242 : vector<8xf32> to vector<8x1xf32>
    %244 = tpu.reciprocal %243 {approx = true} : vector<8x1xf32> -> vector<8x1xf32>
    %245 = vector.broadcast %244 : vector<8x1xf32> to vector<8x8xf32>
    %246 = arith.mulf %241, %245 : vector<8x8xf32>
    %cst_83 = arith.constant dense<0.000000e+00> : vector<8x8xf32>
    %247 = tpu.matmul %246, %235, %cst_83 {dimension_numbers = #tpu.dot_dimension_numbers<[1], [0], [0], [1], [0, 0, 1, 1], [], []>} : vector<8x8xf32>, vector<8x8xf32>, vector<8x8xf32> -> vector<8x8xf32>
    %248 = vector.extract_strided_slice %15 {offsets = [16, 0], sizes = [8, 32], strides = [1, 1]} : vector<32x32xf32> to vector<8x32xf32>
    %cst_84 = arith.constant dense<0.000000e+00> : vector<8x32xf32>
    %249 = tpu.matmul %247, %248, %cst_84 {dimension_numbers = #tpu.dot_dimension_numbers<[1], [0], [0], [1], [0, 0, 1, 1], [], []>} : vector<8x8xf32>, vector<8x32xf32>, vector<8x32xf32> -> vector<8x32xf32>
    %250 = arith.addf %232, %249 : vector<8x32xf32>
    %251 = vector.extract_strided_slice %195 {offsets = [0, 24], sizes = [8, 8], strides = [1, 1]} : vector<8x32xf32> to vector<8x8xf32>
    %252 = vector.extract_strided_slice %196 {offsets = [0, 24], sizes = [8, 8], strides = [1, 1]} : vector<8x32xf32> to vector<8x8xf32>
    %253 = vector.extract_strided_slice %197 {offsets = [0, 24], sizes = [8, 8], strides = [1, 1]} : vector<8x32xf32> to vector<8x8xf32>
    %cst_85 = arith.constant dense<0.000000e+00> : vector<8x8xf32>
    %254 = tpu.matmul %251, %252, %cst_85 {dimension_numbers = #tpu.dot_dimension_numbers<[1], [1], [0], [0], [0, 0, 1, 0], [], []>} : vector<8x8xf32>, vector<8x8xf32>, vector<8x8xf32> -> vector<8x8xf32>
    %cst_86 = arith.constant dense<0xFF800000> : vector<8xf32>
    %255 = vector.multi_reduction <maximumf>, %254, %cst_86 [1] : vector<8x8xf32> to vector<8xf32>
    %256 = vector.shape_cast %255 : vector<8xf32> to vector<8x1xf32>
    %257 = vector.broadcast %256 : vector<8x1xf32> to vector<8x8xf32>
    %258 = arith.subf %254, %257 : vector<8x8xf32>
    %259 = math.exp %258 : vector<8x8xf32>
    %cst_87 = arith.constant dense<0.000000e+00> : vector<8xf32>
    %260 = vector.multi_reduction <add>, %259, %cst_87 [1] : vector<8x8xf32> to vector<8xf32>
    %261 = vector.shape_cast %260 : vector<8xf32> to vector<8x1xf32>
    %262 = tpu.reciprocal %261 {approx = true} : vector<8x1xf32> -> vector<8x1xf32>
    %263 = vector.broadcast %262 : vector<8x1xf32> to vector<8x8xf32>
    %264 = arith.mulf %259, %263 : vector<8x8xf32>
    %cst_88 = arith.constant dense<0.000000e+00> : vector<8x8xf32>
    %265 = tpu.matmul %264, %253, %cst_88 {dimension_numbers = #tpu.dot_dimension_numbers<[1], [0], [0], [1], [0, 0, 1, 1], [], []>} : vector<8x8xf32>, vector<8x8xf32>, vector<8x8xf32> -> vector<8x8xf32>
    %266 = vector.extract_strided_slice %15 {offsets = [24, 0], sizes = [8, 32], strides = [1, 1]} : vector<32x32xf32> to vector<8x32xf32>
    %cst_89 = arith.constant dense<0.000000e+00> : vector<8x32xf32>
    %267 = tpu.matmul %265, %266, %cst_89 {dimension_numbers = #tpu.dot_dimension_numbers<[1], [0], [0], [1], [0, 0, 1, 1], [], []>} : vector<8x8xf32>, vector<8x32xf32>, vector<8x32xf32> -> vector<8x32xf32>
    %268 = arith.addf %250, %267 : vector<8x32xf32>
    %269 = vector.extract_strided_slice %194 {offsets = [8, 0], sizes = [8, 32], strides = [1, 1]} : vector<16x32xf32> to vector<8x32xf32>
    %270 = vector.extract_strided_slice %12 {offsets = [8, 0], sizes = [8, 32], strides = [1, 1]} : vector<16x32xf32> to vector<8x32xf32>
    %271 = vector.extract_strided_slice %14 {offsets = [8, 0], sizes = [8, 32], strides = [1, 1]} : vector<16x32xf32> to vector<8x32xf32>
    %272 = vector.extract_strided_slice %269 {offsets = [0, 0], sizes = [8, 8], strides = [1, 1]} : vector<8x32xf32> to vector<8x8xf32>
    %273 = vector.extract_strided_slice %270 {offsets = [0, 0], sizes = [8, 8], strides = [1, 1]} : vector<8x32xf32> to vector<8x8xf32>
    %274 = vector.extract_strided_slice %271 {offsets = [0, 0], sizes = [8, 8], strides = [1, 1]} : vector<8x32xf32> to vector<8x8xf32>
    %cst_90 = arith.constant dense<0.000000e+00> : vector<8x8xf32>
    %275 = tpu.matmul %272, %273, %cst_90 {dimension_numbers = #tpu.dot_dimension_numbers<[1], [1], [0], [0], [0, 0, 1, 0], [], []>} : vector<8x8xf32>, vector<8x8xf32>, vector<8x8xf32> -> vector<8x8xf32>
    %cst_91 = arith.constant dense<0xFF800000> : vector<8xf32>
    %276 = vector.multi_reduction <maximumf>, %275, %cst_91 [1] : vector<8x8xf32> to vector<8xf32>
    %277 = vector.shape_cast %276 : vector<8xf32> to vector<8x1xf32>
    %278 = vector.broadcast %277 : vector<8x1xf32> to vector<8x8xf32>
    %279 = arith.subf %275, %278 : vector<8x8xf32>
    %280 = math.exp %279 : vector<8x8xf32>
    %cst_92 = arith.constant dense<0.000000e+00> : vector<8xf32>
    %281 = vector.multi_reduction <add>, %280, %cst_92 [1] : vector<8x8xf32> to vector<8xf32>
    %282 = vector.shape_cast %281 : vector<8xf32> to vector<8x1xf32>
    %283 = tpu.reciprocal %282 {approx = true} : vector<8x1xf32> -> vector<8x1xf32>
    %284 = vector.broadcast %283 : vector<8x1xf32> to vector<8x8xf32>
    %285 = arith.mulf %280, %284 : vector<8x8xf32>
    %cst_93 = arith.constant dense<0.000000e+00> : vector<8x8xf32>
    %286 = tpu.matmul %285, %274, %cst_93 {dimension_numbers = #tpu.dot_dimension_numbers<[1], [0], [0], [1], [0, 0, 1, 1], [], []>} : vector<8x8xf32>, vector<8x8xf32>, vector<8x8xf32> -> vector<8x8xf32>
    %287 = vector.extract_strided_slice %15 {offsets = [0, 0], sizes = [8, 32], strides = [1, 1]} : vector<32x32xf32> to vector<8x32xf32>
    %cst_94 = arith.constant dense<0.000000e+00> : vector<8x32xf32>
    %288 = tpu.matmul %286, %287, %cst_94 {dimension_numbers = #tpu.dot_dimension_numbers<[1], [0], [0], [1], [0, 0, 1, 1], [], []>} : vector<8x8xf32>, vector<8x32xf32>, vector<8x32xf32> -> vector<8x32xf32>
    %289 = vector.extract_strided_slice %269 {offsets = [0, 8], sizes = [8, 8], strides = [1, 1]} : vector<8x32xf32> to vector<8x8xf32>
    %290 = vector.extract_strided_slice %270 {offsets = [0, 8], sizes = [8, 8], strides = [1, 1]} : vector<8x32xf32> to vector<8x8xf32>
    %291 = vector.extract_strided_slice %271 {offsets = [0, 8], sizes = [8, 8], strides = [1, 1]} : vector<8x32xf32> to vector<8x8xf32>
    %cst_95 = arith.constant dense<0.000000e+00> : vector<8x8xf32>
    %292 = tpu.matmul %289, %290, %cst_95 {dimension_numbers = #tpu.dot_dimension_numbers<[1], [1], [0], [0], [0, 0, 1, 0], [], []>} : vector<8x8xf32>, vector<8x8xf32>, vector<8x8xf32> -> vector<8x8xf32>
    %cst_96 = arith.constant dense<0xFF800000> : vector<8xf32>
    %293 = vector.multi_reduction <maximumf>, %292, %cst_96 [1] : vector<8x8xf32> to vector<8xf32>
    %294 = vector.shape_cast %293 : vector<8xf32> to vector<8x1xf32>
    %295 = vector.broadcast %294 : vector<8x1xf32> to vector<8x8xf32>
    %296 = arith.subf %292, %295 : vector<8x8xf32>
    %297 = math.exp %296 : vector<8x8xf32>
    %cst_97 = arith.constant dense<0.000000e+00> : vector<8xf32>
    %298 = vector.multi_reduction <add>, %297, %cst_97 [1] : vector<8x8xf32> to vector<8xf32>
    %299 = vector.shape_cast %298 : vector<8xf32> to vector<8x1xf32>
    %300 = tpu.reciprocal %299 {approx = true} : vector<8x1xf32> -> vector<8x1xf32>
    %301 = vector.broadcast %300 : vector<8x1xf32> to vector<8x8xf32>
    %302 = arith.mulf %297, %301 : vector<8x8xf32>
    %cst_98 = arith.constant dense<0.000000e+00> : vector<8x8xf32>
    %303 = tpu.matmul %302, %291, %cst_98 {dimension_numbers = #tpu.dot_dimension_numbers<[1], [0], [0], [1], [0, 0, 1, 1], [], []>} : vector<8x8xf32>, vector<8x8xf32>, vector<8x8xf32> -> vector<8x8xf32>
    %304 = vector.extract_strided_slice %15 {offsets = [8, 0], sizes = [8, 32], strides = [1, 1]} : vector<32x32xf32> to vector<8x32xf32>
    %cst_99 = arith.constant dense<0.000000e+00> : vector<8x32xf32>
    %305 = tpu.matmul %303, %304, %cst_99 {dimension_numbers = #tpu.dot_dimension_numbers<[1], [0], [0], [1], [0, 0, 1, 1], [], []>} : vector<8x8xf32>, vector<8x32xf32>, vector<8x32xf32> -> vector<8x32xf32>
    %306 = arith.addf %288, %305 : vector<8x32xf32>
    %307 = vector.extract_strided_slice %269 {offsets = [0, 16], sizes = [8, 8], strides = [1, 1]} : vector<8x32xf32> to vector<8x8xf32>
    %308 = vector.extract_strided_slice %270 {offsets = [0, 16], sizes = [8, 8], strides = [1, 1]} : vector<8x32xf32> to vector<8x8xf32>
    %309 = vector.extract_strided_slice %271 {offsets = [0, 16], sizes = [8, 8], strides = [1, 1]} : vector<8x32xf32> to vector<8x8xf32>
    %cst_100 = arith.constant dense<0.000000e+00> : vector<8x8xf32>
    %310 = tpu.matmul %307, %308, %cst_100 {dimension_numbers = #tpu.dot_dimension_numbers<[1], [1], [0], [0], [0, 0, 1, 0], [], []>} : vector<8x8xf32>, vector<8x8xf32>, vector<8x8xf32> -> vector<8x8xf32>
    %cst_101 = arith.constant dense<0xFF800000> : vector<8xf32>
    %311 = vector.multi_reduction <maximumf>, %310, %cst_101 [1] : vector<8x8xf32> to vector<8xf32>
    %312 = vector.shape_cast %311 : vector<8xf32> to vector<8x1xf32>
    %313 = vector.broadcast %312 : vector<8x1xf32> to vector<8x8xf32>
    %314 = arith.subf %310, %313 : vector<8x8xf32>
    %315 = math.exp %314 : vector<8x8xf32>
    %cst_102 = arith.constant dense<0.000000e+00> : vector<8xf32>
    %316 = vector.multi_reduction <add>, %315, %cst_102 [1] : vector<8x8xf32> to vector<8xf32>
    %317 = vector.shape_cast %316 : vector<8xf32> to vector<8x1xf32>
    %318 = tpu.reciprocal %317 {approx = true} : vector<8x1xf32> -> vector<8x1xf32>
    %319 = vector.broadcast %318 : vector<8x1xf32> to vector<8x8xf32>
    %320 = arith.mulf %315, %319 : vector<8x8xf32>
    %cst_103 = arith.constant dense<0.000000e+00> : vector<8x8xf32>
    %321 = tpu.matmul %320, %309, %cst_103 {dimension_numbers = #tpu.dot_dimension_numbers<[1], [0], [0], [1], [0, 0, 1, 1], [], []>} : vector<8x8xf32>, vector<8x8xf32>, vector<8x8xf32> -> vector<8x8xf32>
    %322 = vector.extract_strided_slice %15 {offsets = [16, 0], sizes = [8, 32], strides = [1, 1]} : vector<32x32xf32> to vector<8x32xf32>
    %cst_104 = arith.constant dense<0.000000e+00> : vector<8x32xf32>
    %323 = tpu.matmul %321, %322, %cst_104 {dimension_numbers = #tpu.dot_dimension_numbers<[1], [0], [0], [1], [0, 0, 1, 1], [], []>} : vector<8x8xf32>, vector<8x32xf32>, vector<8x32xf32> -> vector<8x32xf32>
    %324 = arith.addf %306, %323 : vector<8x32xf32>
    %325 = vector.extract_strided_slice %269 {offsets = [0, 24], sizes = [8, 8], strides = [1, 1]} : vector<8x32xf32> to vector<8x8xf32>
    %326 = vector.extract_strided_slice %270 {offsets = [0, 24], sizes = [8, 8], strides = [1, 1]} : vector<8x32xf32> to vector<8x8xf32>
    %327 = vector.extract_strided_slice %271 {offsets = [0, 24], sizes = [8, 8], strides = [1, 1]} : vector<8x32xf32> to vector<8x8xf32>
    %cst_105 = arith.constant dense<0.000000e+00> : vector<8x8xf32>
    %328 = tpu.matmul %325, %326, %cst_105 {dimension_numbers = #tpu.dot_dimension_numbers<[1], [1], [0], [0], [0, 0, 1, 0], [], []>} : vector<8x8xf32>, vector<8x8xf32>, vector<8x8xf32> -> vector<8x8xf32>
    %cst_106 = arith.constant dense<0xFF800000> : vector<8xf32>
    %329 = vector.multi_reduction <maximumf>, %328, %cst_106 [1] : vector<8x8xf32> to vector<8xf32>
    %330 = vector.shape_cast %329 : vector<8xf32> to vector<8x1xf32>
    %331 = vector.broadcast %330 : vector<8x1xf32> to vector<8x8xf32>
    %332 = arith.subf %328, %331 : vector<8x8xf32>
    %333 = math.exp %332 : vector<8x8xf32>
    %cst_107 = arith.constant dense<0.000000e+00> : vector<8xf32>
    %334 = vector.multi_reduction <add>, %333, %cst_107 [1] : vector<8x8xf32> to vector<8xf32>
    %335 = vector.shape_cast %334 : vector<8xf32> to vector<8x1xf32>
    %336 = tpu.reciprocal %335 {approx = true} : vector<8x1xf32> -> vector<8x1xf32>
    %337 = vector.broadcast %336 : vector<8x1xf32> to vector<8x8xf32>
    %338 = arith.mulf %333, %337 : vector<8x8xf32>
    %cst_108 = arith.constant dense<0.000000e+00> : vector<8x8xf32>
    %339 = tpu.matmul %338, %327, %cst_108 {dimension_numbers = #tpu.dot_dimension_numbers<[1], [0], [0], [1], [0, 0, 1, 1], [], []>} : vector<8x8xf32>, vector<8x8xf32>, vector<8x8xf32> -> vector<8x8xf32>
    %340 = vector.extract_strided_slice %15 {offsets = [24, 0], sizes = [8, 32], strides = [1, 1]} : vector<32x32xf32> to vector<8x32xf32>
    %cst_109 = arith.constant dense<0.000000e+00> : vector<8x32xf32>
    %341 = tpu.matmul %339, %340, %cst_109 {dimension_numbers = #tpu.dot_dimension_numbers<[1], [0], [0], [1], [0, 0, 1, 1], [], []>} : vector<8x8xf32>, vector<8x32xf32>, vector<8x32xf32> -> vector<8x32xf32>
    %342 = arith.addf %324, %341 : vector<8x32xf32>
    %343 = tpu.concatenate %268, %342 in 0 : vector<8x32xf32>, vector<8x32xf32> -> vector<16x32xf32>
    %cst_110 = arith.constant dense<0.000000e+00> : vector<16xf32>
    %344 = vector.multi_reduction <add>, %343, %cst_110 [1] : vector<16x32xf32> to vector<16xf32>
    %345 = vector.shape_cast %344 : vector<16xf32> to vector<16x1xf32>
    %cst_111 = arith.constant 3.200000e+01 : f32
    %346 = vector.broadcast %cst_111 : f32 to vector<16x1xf32>
    %347 = arith.divf %345, %346 : vector<16x1xf32>
    %348 = vector.broadcast %347 : vector<16x1xf32> to vector<16x32xf32>
    %349 = arith.subf %343, %348 : vector<16x32xf32>
    %350 = arith.mulf %349, %349 : vector<16x32xf32>
    %cst_112 = arith.constant dense<0.000000e+00> : vector<16xf32>
    %351 = vector.multi_reduction <add>, %350, %cst_112 [1] : vector<16x32xf32> to vector<16xf32>
    %352 = vector.shape_cast %351 : vector<16xf32> to vector<16x1xf32>
    %cst_113 = arith.constant 3.200000e+01 : f32
    %353 = vector.broadcast %cst_113 : f32 to vector<16x1xf32>
    %354 = arith.divf %352, %353 : vector<16x1xf32>
    %cst_114 = arith.constant 9.99999997E-7 : f32
    %355 = vector.broadcast %cst_114 : f32 to vector<16x1xf32>
    %356 = arith.addf %354, %355 : vector<16x1xf32>
    %357 = math.rsqrt %356 : vector<16x1xf32>
    %358 = vector.broadcast %357 : vector<16x1xf32> to vector<16x32xf32>
    %359 = arith.mulf %349, %358 : vector<16x32xf32>
    %360 = vector.broadcast %1 : vector<1x32xf32> to vector<16x32xf32>
    %361 = arith.mulf %359, %360 : vector<16x32xf32>
    %362 = vector.broadcast %2 : vector<1x32xf32> to vector<16x32xf32>
    %363 = arith.addf %361, %362 : vector<16x32xf32>
    %c0_115 = arith.constant 0 : index
    %c0_116 = arith.constant 0 : index
    %364 = vector.load %arg11[%c0_115, %c0_116] : memref<32x32xf32, #tpu.memory_space<vmem>>, vector<32x32xf32>
    %cst_117 = arith.constant dense<0.000000e+00> : vector<16x32xf32>
    %365 = tpu.matmul %189, %364, %cst_117 {dimension_numbers = #tpu.dot_dimension_numbers<[1], [0], [0], [1], [0, 0, 1, 1], [], []>} : vector<16x32xf32>, vector<32x32xf32>, vector<16x32xf32> -> vector<16x32xf32>
    %cst_118 = arith.constant dense<0.000000e+00> : vector<16x32xf32>
    %366 = tpu.matmul %363, %364, %cst_118 {dimension_numbers = #tpu.dot_dimension_numbers<[1], [0], [0], [1], [0, 0, 1, 1], [], []>} : vector<16x32xf32>, vector<32x32xf32>, vector<16x32xf32> -> vector<16x32xf32>
    %367 = vector.extract_strided_slice %3 {offsets = [0, 0], sizes = [1, 32], strides = [1, 1]} : vector<2x32xf32> to vector<1x32xf32>
    %368 = vector.broadcast %367 : vector<1x32xf32> to vector<16x32xf32>
    %369 = arith.mulf %189, %368 : vector<16x32xf32>
    %cst_119 = arith.constant dense<0.000000e+00> : vector<16xf32>
    %370 = vector.multi_reduction <add>, %369, %cst_119 [1] : vector<16x32xf32> to vector<16xf32>
    %371 = vector.shape_cast %370 : vector<16xf32> to vector<16x1xf32>
    %372 = vector.extract_strided_slice %3 {offsets = [1, 0], sizes = [1, 32], strides = [1, 1]} : vector<2x32xf32> to vector<1x32xf32>
    %373 = vector.broadcast %372 : vector<1x32xf32> to vector<16x32xf32>
    %374 = arith.mulf %363, %373 : vector<16x32xf32>
    %cst_120 = arith.constant dense<0.000000e+00> : vector<16xf32>
    %375 = vector.multi_reduction <add>, %374, %cst_120 [1] : vector<16x32xf32> to vector<16xf32>
    %376 = vector.shape_cast %375 : vector<16xf32> to vector<16x1xf32>
    %377 = arith.maximumf %371, %376 : vector<16x1xf32>
    %378 = arith.subf %371, %377 : vector<16x1xf32>
    %379 = math.exp %378 : vector<16x1xf32>
    %380 = arith.subf %376, %377 : vector<16x1xf32>
    %381 = math.exp %380 : vector<16x1xf32>
    %382 = arith.addf %379, %381 : vector<16x1xf32>
    %383 = tpu.reciprocal %382 {approx = true} : vector<16x1xf32> -> vector<16x1xf32>
    %384 = vector.broadcast %379 : vector<16x1xf32> to vector<16x32xf32>
    %385 = arith.mulf %365, %384 : vector<16x32xf32>
    %386 = vector.broadcast %381 : vector<16x1xf32> to vector<16x32xf32>
    %387 = arith.mulf %366, %386 : vector<16x32xf32>
    %388 = arith.addf %385, %387 : vector<16x32xf32>
    %389 = vector.broadcast %383 : vector<16x1xf32> to vector<16x32xf32>
    %390 = arith.mulf %388, %389 : vector<16x32xf32>
    %cst_121 = arith.constant dense<0.000000e+00> : vector<16xf32>
    %391 = vector.multi_reduction <add>, %390, %cst_121 [1] : vector<16x32xf32> to vector<16xf32>
    %392 = vector.shape_cast %391 : vector<16xf32> to vector<16x1xf32>
    %cst_122 = arith.constant 3.200000e+01 : f32
    %393 = vector.broadcast %cst_122 : f32 to vector<16x1xf32>
    %394 = arith.divf %392, %393 : vector<16x1xf32>
    %395 = vector.broadcast %394 : vector<16x1xf32> to vector<16x32xf32>
    %396 = arith.subf %390, %395 : vector<16x32xf32>
    %397 = arith.mulf %396, %396 : vector<16x32xf32>
    %cst_123 = arith.constant dense<0.000000e+00> : vector<16xf32>
    %398 = vector.multi_reduction <add>, %397, %cst_123 [1] : vector<16x32xf32> to vector<16xf32>
    %399 = vector.shape_cast %398 : vector<16xf32> to vector<16x1xf32>
    %cst_124 = arith.constant 3.200000e+01 : f32
    %400 = vector.broadcast %cst_124 : f32 to vector<16x1xf32>
    %401 = arith.divf %399, %400 : vector<16x1xf32>
    %cst_125 = arith.constant 9.99999997E-7 : f32
    %402 = vector.broadcast %cst_125 : f32 to vector<16x1xf32>
    %403 = arith.addf %401, %402 : vector<16x1xf32>
    %404 = math.rsqrt %403 : vector<16x1xf32>
    %405 = vector.broadcast %404 : vector<16x1xf32> to vector<16x32xf32>
    %406 = arith.mulf %396, %405 : vector<16x32xf32>
    %407 = vector.broadcast %4 : vector<1x32xf32> to vector<16x32xf32>
    %408 = arith.mulf %406, %407 : vector<16x32xf32>
    %409 = vector.broadcast %5 : vector<1x32xf32> to vector<16x32xf32>
    %410 = arith.addf %408, %409 : vector<16x32xf32>
    %c0_126 = arith.constant 0 : index
    %c0_127 = arith.constant 0 : index
    %411 = vector.load %arg13[%c0_126, %c0_127] : memref<32x2048xf32, #tpu.memory_space<vmem>>, vector<32x2048xf32>
    %cst_128 = arith.constant dense<0.000000e+00> : vector<16x2048xf32>
    %412 = tpu.matmul %410, %411, %cst_128 {dimension_numbers = #tpu.dot_dimension_numbers<[1], [0], [0], [1], [0, 0, 1, 1], [], []>} : vector<16x32xf32>, vector<32x2048xf32>, vector<16x2048xf32> -> vector<16x2048xf32>
    %c0_129 = arith.constant 0 : index
    %c0_130 = arith.constant 0 : index
    %413 = vector.load %arg14[%c0_129, %c0_130] : memref<1x2048xf32, #tpu.memory_space<vmem>>, vector<1x2048xf32>
    %414 = vector.broadcast %413 : vector<1x2048xf32> to vector<16x2048xf32>
    %415 = arith.addf %412, %414 : vector<16x2048xf32>
    %cst_131 = arith.constant 0.000000e+00 : f32
    %416 = vector.broadcast %cst_131 : f32 to vector<16x2048xf32>
    %417 = arith.maximumf %415, %416 : vector<16x2048xf32>
    %c0_132 = arith.constant 0 : index
    %c0_133 = arith.constant 0 : index
    %418 = vector.load %arg15[%c0_132, %c0_133] : memref<2048x32xf32, #tpu.memory_space<vmem>>, vector<2048x32xf32>
    %cst_134 = arith.constant dense<0.000000e+00> : vector<16x32xf32>
    %419 = tpu.matmul %417, %418, %cst_134 {dimension_numbers = #tpu.dot_dimension_numbers<[1], [0], [0], [1], [0, 0, 1, 1], [], []>} : vector<16x2048xf32>, vector<2048x32xf32>, vector<16x32xf32> -> vector<16x32xf32>
    %420 = vector.broadcast %6 : vector<1x32xf32> to vector<16x32xf32>
    %421 = arith.addf %419, %420 : vector<16x32xf32>
    %422 = arith.addf %421, %410 : vector<16x32xf32>
    %cst_135 = arith.constant dense<0.000000e+00> : vector<16xf32>
    %423 = vector.multi_reduction <add>, %422, %cst_135 [1] : vector<16x32xf32> to vector<16xf32>
    %424 = vector.shape_cast %423 : vector<16xf32> to vector<16x1xf32>
    %cst_136 = arith.constant 3.200000e+01 : f32
    %425 = vector.broadcast %cst_136 : f32 to vector<16x1xf32>
    %426 = arith.divf %424, %425 : vector<16x1xf32>
    %427 = vector.broadcast %426 : vector<16x1xf32> to vector<16x32xf32>
    %428 = arith.subf %422, %427 : vector<16x32xf32>
    %429 = arith.mulf %428, %428 : vector<16x32xf32>
    %cst_137 = arith.constant dense<0.000000e+00> : vector<16xf32>
    %430 = vector.multi_reduction <add>, %429, %cst_137 [1] : vector<16x32xf32> to vector<16xf32>
    %431 = vector.shape_cast %430 : vector<16xf32> to vector<16x1xf32>
    %cst_138 = arith.constant 3.200000e+01 : f32
    %432 = vector.broadcast %cst_138 : f32 to vector<16x1xf32>
    %433 = arith.divf %431, %432 : vector<16x1xf32>
    %cst_139 = arith.constant 9.99999997E-7 : f32
    %434 = vector.broadcast %cst_139 : f32 to vector<16x1xf32>
    %435 = arith.addf %433, %434 : vector<16x1xf32>
    %436 = math.rsqrt %435 : vector<16x1xf32>
    %437 = vector.broadcast %436 : vector<16x1xf32> to vector<16x32xf32>
    %438 = arith.mulf %428, %437 : vector<16x32xf32>
    %439 = vector.broadcast %7 : vector<1x32xf32> to vector<16x32xf32>
    %440 = arith.mulf %438, %439 : vector<16x32xf32>
    %441 = vector.broadcast %8 : vector<1x32xf32> to vector<16x32xf32>
    %442 = arith.addf %440, %441 : vector<16x32xf32>
    %c0_140 = arith.constant 0 : index
    %c0_141 = arith.constant 0 : index
    %c0_142 = arith.constant 0 : index
    %443 = vector.load %arg16[%c0_140, %c0_141, %c0_142] : memref<1x16x32xf32, #tpu.memory_space<vmem>>, vector<1x16x32xf32>
    %444 = vector.shape_cast %443 : vector<1x16x32xf32> to vector<16x32xf32>
    %445 = vector.shape_cast %442 : vector<16x32xf32> to vector<1x16x32xf32>
    tpu.vector_store %arg16[%c0_140, %c0_141, %c0_142], %445 {strides = array<i32>} : memref<1x16x32xf32, #tpu.memory_space<vmem>>, vector<1x16x32xf32>,
    return
  }
  func.func @transform_0(%arg0: i32, %arg1: memref<3xi32, #tpu.memory_space<smem>>, %arg2: memref<3xi32, #tpu.memory_space<smem>>) -> (i32, i32, i32) {
    %0 = arith.index_cast %arg0 : i32 to index
    %1 = memref.load %arg1[%0] : memref<3xi32, #tpu.memory_space<smem>>
    %c0_i32 = arith.constant 0 : i32
    %c0_i32_0 = arith.constant 0 : i32
    %c0_i32_1 = arith.constant 0 : i32
    return %1, %c0_i32, %c0_i32_0 : i32, i32, i32
  }
  func.func @transform_1(%arg0: i32, %arg1: memref<3xi32, #tpu.memory_space<smem>>, %arg2: memref<3xi32, #tpu.memory_space<smem>>) -> (i32, i32, i32) {
    %0 = arith.index_cast %arg0 : i32 to index
    %1 = memref.load %arg2[%0] : memref<3xi32, #tpu.memory_space<smem>>
    %c0_i32 = arith.constant 0 : i32
    %c0_i32_0 = arith.constant 0 : i32
    %c0_i32_1 = arith.constant 0 : i32
    return %1, %c0_i32, %c0_i32_0 : i32, i32, i32
  }
  func.func @transform_2(%arg0: i32, %arg1: memref<3xi32, #tpu.memory_space<smem>>, %arg2: memref<3xi32, #tpu.memory_space<smem>>) -> (i32, i32, i32) {
    %c0_i32 = arith.constant 0 : i32
    %c0_i32_0 = arith.constant 0 : i32
    %c0_i32_1 = arith.constant 0 : i32
    return %arg0, %c0_i32, %c0_i32_0 : i32, i32, i32
  }
  func.func @transform_3(%arg0: i32, %arg1: memref<3xi32, #tpu.memory_space<smem>>, %arg2: memref<3xi32, #tpu.memory_space<smem>>) -> (i32, i32, i32) {
    %0 = arith.index_cast %arg0 : i32 to index
    %1 = memref.load %arg1[%0] : memref<3xi32, #tpu.memory_space<smem>>
    %c0_i32 = arith.constant 0 : i32
    %c0_i32_0 = arith.constant 0 : i32
    %c0_i32_1 = arith.constant 0 : i32
    return %1, %c0_i32, %c0_i32_0 : i32, i32, i32
  }
  func.func @transform_4(%arg0: i32, %arg1: memref<3xi32, #tpu.memory_space<smem>>, %arg2: memref<3xi32, #tpu.memory_space<smem>>) -> (i32, i32, i32) {
    %0 = arith.index_cast %arg0 : i32 to index
    %1 = memref.load %arg2[%0] : memref<3xi32, #tpu.memory_space<smem>>
    %c0_i32 = arith.constant 0 : i32
    %c0_i32_0 = arith.constant 0 : i32
    %c0_i32_1 = arith.constant 0 : i32
    return %1, %c0_i32, %c0_i32_0 : i32, i32, i32
  }
  func.func @transform_5(%arg0: i32, %arg1: memref<3xi32, #tpu.memory_space<smem>>, %arg2: memref<3xi32, #tpu.memory_space<smem>>) -> (i32, i32) {
    %c0_i32 = arith.constant 0 : i32
    %c0_i32_0 = arith.constant 0 : i32
    %c0_i32_1 = arith.constant 0 : i32
    return %c0_i32, %c0_i32_0 : i32, i32
  }
  func.func @transform_6(%arg0: i32, %arg1: memref<3xi32, #tpu.memory_space<smem>>, %arg2: memref<3xi32, #tpu.memory_space<smem>>) -> (i32, i32) {
    %c0_i32 = arith.constant 0 : i32
    %c0_i32_0 = arith.constant 0 : i32
    %c0_i32_1 = arith.constant 0 : i32
    return %c0_i32, %c0_i32_0 : i32, i32
  }
  func.func @transform_7(%arg0: i32, %arg1: memref<3xi32, #tpu.memory_space<smem>>, %arg2: memref<3xi32, #tpu.memory_space<smem>>) -> (i32, i32) {
    %c0_i32 = arith.constant 0 : i32
    %c0_i32_0 = arith.constant 0 : i32
    %c0_i32_1 = arith.constant 0 : i32
    return %c0_i32, %c0_i32_0 : i32, i32
  }
  func.func @transform_8(%arg0: i32, %arg1: memref<3xi32, #tpu.memory_space<smem>>, %arg2: memref<3xi32, #tpu.memory_space<smem>>) -> (i32, i32) {
    %c0_i32 = arith.constant 0 : i32
    %c0_i32_0 = arith.constant 0 : i32
    %c0_i32_1 = arith.constant 0 : i32
    return %c0_i32, %c0_i32_0 : i32, i32
  }
  func.func @transform_9(%arg0: i32, %arg1: memref<3xi32, #tpu.memory_space<smem>>, %arg2: memref<3xi32, #tpu.memory_space<smem>>) -> (i32, i32) {
    %c0_i32 = arith.constant 0 : i32
    %c0_i32_0 = arith.constant 0 : i32
    %c0_i32_1 = arith.constant 0 : i32
    return %c0_i32, %c0_i32_0 : i32, i32
  }
  func.func @transform_10(%arg0: i32, %arg1: memref<3xi32, #tpu.memory_space<smem>>, %arg2: memref<3xi32, #tpu.memory_space<smem>>) -> (i32, i32) {
    %c0_i32 = arith.constant 0 : i32
    %c0_i32_0 = arith.constant 0 : i32
    %c0_i32_1 = arith.constant 0 : i32
    return %c0_i32, %c0_i32_0 : i32, i32
  }
  func.func @transform_11(%arg0: i32, %arg1: memref<3xi32, #tpu.memory_space<smem>>, %arg2: memref<3xi32, #tpu.memory_space<smem>>) -> (i32, i32) {
    %c0_i32 = arith.constant 0 : i32
    %c0_i32_0 = arith.constant 0 : i32
    %c0_i32_1 = arith.constant 0 : i32
    return %c0_i32, %c0_i32_0 : i32, i32
  }
  func.func @transform_12(%arg0: i32, %arg1: memref<3xi32, #tpu.memory_space<smem>>, %arg2: memref<3xi32, #tpu.memory_space<smem>>) -> (i32, i32) {
    %c0_i32 = arith.constant 0 : i32
    %c0_i32_0 = arith.constant 0 : i32
    %c0_i32_1 = arith.constant 0 : i32
    return %c0_i32, %c0_i32_0 : i32, i32
  }
  func.func @transform_13(%arg0: i32, %arg1: memref<3xi32, #tpu.memory_space<smem>>, %arg2: memref<3xi32, #tpu.memory_space<smem>>) -> (i32, i32, i32) {
    %c0_i32 = arith.constant 0 : i32
    %c0_i32_0 = arith.constant 0 : i32
    %c0_i32_1 = arith.constant 0 : i32
    return %arg0, %c0_i32, %c0_i32_0 : i32, i32, i32
  }
}

</mosaic_0001>

<llo_original>
// kernel: tpu_custom_call.1
$region0: #{tpu_custom_call.1}
  #allocation0 [shape = 'u32[]', space=smem, size = 0x4, offset = 0x4, fixed_abs, tag = 'smem constant byte address 0x4 - core index']
  #allocation1 [shape = 'u32[144,128]{1,0:T(1,128)}', space=vmem, size = 0x12000, scoped, tag = 'internal scratch']
  #allocation2 [shape = 's32[1]{0}', space=sflag, size = 0x4, scoped, tag = 'scoped memory for tpu_custom_call.1']
  #allocation3 [shape = 'u8[512]{0}', space=smem, size = 0x200, scoped, tag = 'prefetched SMEM operand 0']
  #allocation4 [shape = 'u8[512]{0}', space=smem, size = 0x200, scoped, tag = 'prefetched SMEM operand 1']
  %s0 = inlined_call_operand.vmem [shape: s32[3], index: 0, kind: input, shape index: {}]
  %s1 = inlined_call_operand.vmem [shape: s32[3], index: 1, kind: input, shape index: {}]
  %s2 = inlined_call_operand.vmem [shape: f32[3,16,32], index: 2, kind: input, shape index: {}]
  %s3 = inlined_call_operand.vmem [shape: f32[3,16,32], index: 3, kind: input, shape index: {}]
  %s4 = inlined_call_operand.vmem [shape: f32[3,16,32], index: 4, kind: input, shape index: {}]
  %s5 = inlined_call_operand.vmem [shape: f32[3,32,32], index: 5, kind: input, shape index: {}]
  %s6 = inlined_call_operand.vmem [shape: f32[3,32,32], index: 6, kind: input, shape index: {}]
  %s7 = inlined_call_operand.vmem [shape: f32[32,32], index: 7, kind: input, shape index: {}]
  %s8 = inlined_call_operand.vmem [shape: f32[32,32], index: 8, kind: input, shape index: {}]
  %s9 = inlined_call_operand.vmem [shape: f32[32,32], index: 9, kind: input, shape index: {}]
  %s10 = inlined_call_operand.vmem [shape: f32[32,32], index: 10, kind: input, shape index: {}]
  %s11 = inlined_call_operand.vmem [shape: f32[9,32], index: 11, kind: input, shape index: {}]
  %s12 = inlined_call_operand.vmem [shape: f32[32,2048], index: 12, kind: input, shape index: {}]
  %s13 = inlined_call_operand.vmem [shape: f32[1,2048], index: 13, kind: input, shape index: {}]
  %s14 = inlined_call_operand.vmem [shape: f32[2048,32], index: 14, kind: input, shape index: {}]
  %s15 = inlined_call_operand.hbm [shape: f32[3,16,32], index: 15, kind: output, shape index: {}]
  %s16 = sld [smem:[#allocation0]]
  $region85: #{tpu_custom_call.1} parent=0
    _
  %s18 = ssub.s32 1, %s16
  %s19 = scalar_select 0, %s18, %s16
  %s20 = sshll.u32 %s0, 4
  %s21 = int_to_ptr.vmem [resolvable:$true] %s20
  %23 = dma.vmem_to_smem %s21, 16, [#allocation3], [#allocation2]
  %s24 = sshll.u32 %s1, 4
  %s25 = int_to_ptr.vmem [resolvable:$true] %s24
  %27 = dma.vmem_to_smem %s25, 16, [#allocation4], [#allocation2]
  %28 = dma.done [#allocation2], 32
  %29 = sfence
  $region1: #{tpu_custom_call.1} parent=0
    #allocation5 [shape = 'u8[16384]{0}', space=vmem, size = 0x4000, scoped, tag = 'output window, operand 0']
    #allocation6 [shape = 's32[2]{0}', space=sflag, size = 0x8, scoped, tag = 'scoped memory for tpu_custom_call.1']
    %30 = vsyncpa [#allocation6], 0
    %s31 = scalar_lea.sflag [#allocation6], 1
    %32 = vsyncpa %s31, 0
    loop: start=0, step=1, limit=5
    $region2: #{tpu_custom_call.1} parent=1 // loop_pre_header
      _
    $region3: #{tpu_custom_call.1} parent=1 // loop_header
      %s34 = sphi 0, %s38
      %p35 = scmp.ge.s32.totalorder %s34, 5
      %s46 = sphi 0, %s48
      %s49 = sphi 0, %s46
      %s50 = sphi 0, %s49
      %s66 = sphi 0, %s50
      %s74 = sphi 0, %s76
      %s77 = sphi 0, %s74
      %s78 = sphi 0, %s77
      %s94 = sphi 0, %s78
      %s100 = sphi 0, %s102
      %s103 = sphi 0, %s100
      %s104 = sphi 0, %s103
      %s120 = sphi 0, %s104
      %s128 = sphi 0, %s130
      %s131 = sphi 0, %s128
      %s132 = sphi 0, %s131
      %s148 = sphi 0, %s132
      %s156 = sphi 0, %s158
      %s159 = sphi 0, %s156
      %s160 = sphi 0, %s159
      %s176 = sphi 0, %s160
      %s180 = sphi 0, %s180
      %s182 = sphi 0, %s180
      %s183 = sphi 0, %s182
      %s197 = sphi 0, %s183
      %s201 = sphi 0, %s201
      %s203 = sphi 0, %s201
      %s204 = sphi 0, %s203
      %s218 = sphi 0, %s204
      %s222 = sphi 0, %s222
      %s224 = sphi 0, %s222
      %s225 = sphi 0, %s224
      %s239 = sphi 0, %s225
      %s243 = sphi 0, %s243
      %s245 = sphi 0, %s243
      %s246 = sphi 0, %s245
      %s260 = sphi 0, %s246
      %s264 = sphi 0, %s264
      %s266 = sphi 0, %s264
      %s267 = sphi 0, %s266
      %s281 = sphi 0, %s267
      %s285 = sphi 0, %s285
      %s287 = sphi 0, %s285
      %s288 = sphi 0, %s287
      %s302 = sphi 0, %s288
      %s306 = sphi 0, %s306
      %s308 = sphi 0, %s306
      %s309 = sphi 0, %s308
      %s323 = sphi 0, %s309
      %s327 = sphi 0, %s327
      %s329 = sphi 0, %s327
      %s330 = sphi 0, %s329
      %s344 = sphi 0, %s330
      %s350 = sphi 0, %s352
      %s353 = sphi 0, %s350
      %s354 = sphi 0, %s353
      %s370 = sphi 0, %s354
    $region4: #{tpu_custom_call.1} parent=1 // loop_header_branch
      %37 = sbr.rel (%p35) target = $region8
    $region5: #{tpu_custom_call.1} parent=1 // loop_body
      %s39 = ssub.s32 %s34, 1
      %s40 = ssub.s32 %s34, 2
      %s41 = sadd.s32 %s34, 1
      %s42 = sld [smem:[#allocation3 + %s34]]
      %s43 = sld [smem:[#allocation3 + %s41]]
      %s44 = ssub.s32 %s42, %s43
      %p45 = scmp.eq.s32.totalorder %s44, 0
      %s47 = sadd.s32 %s46, 1
      %s48 = scalar_select %p45, %s46, %s47
      %p51 = pneg %p45
      %p52 = scmp.eq.s32.totalorder %s34, 2
      %p53 = por %p51, %p52
      %p54 = scmp.ne.s32.totalorder %s46, %s49
      %p55 = scmp.eq.s32.totalorder %s34, 0
      %p56 = por %p54, %p55
      %p57 = scmp.ne.s32.totalorder %s46, %s49
      %p58 = scmp.eq.s32.totalorder %s39, 2
      %p59 = por %p57, %p58
      %p60 = scmp.ne.s32.totalorder %s49, %s50
      %p61 = scmp.eq.s32.totalorder %s39, 0
      %p62 = por %p60, %p61
      %p63 = scmp.ne.s32.totalorder %s49, %s50
      %p64 = scmp.eq.s32.totalorder %s40, 2
      %p65 = por %p63, %p64
      %p67 = scmp.ne.s32.totalorder %s50, %s66
      %p68 = scmp.eq.s32.totalorder %s40, 0
      %p69 = por %p67, %p68
      %s70 = sld [smem:[#allocation4 + %s34]]
      %s71 = sld [smem:[#allocation4 + %s41]]
      %s72 = ssub.s32 %s70, %s71
      %p73 = scmp.eq.s32.totalorder %s72, 0
      %s75 = sadd.s32 %s74, 1
      %s76 = scalar_select %p73, %s74, %s75
      %p79 = pneg %p73
      %p80 = scmp.eq.s32.totalorder %s34, 2
      %p81 = por %p79, %p80
      %p82 = scmp.ne.s32.totalorder %s74, %s77
      %p83 = scmp.eq.s32.totalorder %s34, 0
      %p84 = por %p82, %p83
      %p85 = scmp.ne.s32.totalorder %s74, %s77
      %p86 = scmp.eq.s32.totalorder %s39, 2
      %p87 = por %p85, %p86
      %p88 = scmp.ne.s32.totalorder %s77, %s78
      %p89 = scmp.eq.s32.totalorder %s39, 0
      %p90 = por %p88, %p89
      %p91 = scmp.ne.s32.totalorder %s77, %s78
      %p92 = scmp.eq.s32.totalorder %s40, 2
      %p93 = por %p91, %p92
      %p95 = scmp.ne.s32.totalorder %s78, %s94
      %p96 = scmp.eq.s32.totalorder %s40, 0
      %p97 = por %p95, %p96
      %s98 = ssub.s32 %s34, %s41
      %p99 = scmp.eq.s32.totalorder %s98, 0
      %s101 = sadd.s32 %s100, 1
      %s102 = scalar_select %p99, %s100, %s101
      %p105 = pneg %p99
      %p106 = scmp.eq.s32.totalorder %s34, 2
      %p107 = por %p105, %p106
      %p108 = scmp.ne.s32.totalorder %s100, %s103
      %p109 = scmp.eq.s32.totalorder %s34, 0
      %p110 = por %p108, %p109
      %p111 = scmp.ne.s32.totalorder %s100, %s103
      %p112 = scmp.eq.s32.totalorder %s39, 2
      %p113 = por %p111, %p112
      %p114 = scmp.ne.s32.totalorder %s103, %s104
      %p115 = scmp.eq.s32.totalorder %s39, 0
      %p116 = por %p114, %p115
      %p117 = scmp.ne.s32.totalorder %s103, %s104
      %p118 = scmp.eq.s32.totalorder %s40, 2
      %p119 = por %p117, %p118
      %p121 = scmp.ne.s32.totalorder %s104, %s120
      %p122 = scmp.eq.s32.totalorder %s40, 0
      %p123 = por %p121, %p122
      %s124 = sld [smem:[#allocation3 + %s34]]
      %s125 = sld [smem:[#allocation3 + %s41]]
      %s126 = ssub.s32 %s124, %s125
      %p127 = scmp.eq.s32.totalorder %s126, 0
      %s129 = sadd.s32 %s128, 1
      %s130 = scalar_select %p127, %s128, %s129
      %p133 = pneg %p127
      %p134 = scmp.eq.s32.totalorder %s34, 2
      %p135 = por %p133, %p134
      %p136 = scmp.ne.s32.totalorder %s128, %s131
      %p137 = scmp.eq.s32.totalorder %s34, 0
      %p138 = por %p136, %p137
      %p139 = scmp.ne.s32.totalorder %s128, %s131
      %p140 = scmp.eq.s32.totalorder %s39, 2
      %p141 = por %p139, %p140
      %p142 = scmp.ne.s32.totalorder %s131, %s132
      %p143 = scmp.eq.s32.totalorder %s39, 0
      %p144 = por %p142, %p143
      %p145 = scmp.ne.s32.totalorder %s131, %s132
      %p146 = scmp.eq.s32.totalorder %s40, 2
      %p147 = por %p145, %p146
      %p149 = scmp.ne.s32.totalorder %s132, %s148
      %p150 = scmp.eq.s32.totalorder %s40, 0
      %p151 = por %p149, %p150
      %s152 = sld [smem:[#allocation4 + %s34]]
      %s153 = sld [smem:[#allocation4 + %s41]]
      %s154 = ssub.s32 %s152, %s153
      %p155 = scmp.eq.s32.totalorder %s154, 0
      %s157 = sadd.s32 %s156, 1
      %s158 = scalar_select %p155, %s156, %s157
      %p161 = pneg %p155
      %p162 = scmp.eq.s32.totalorder %s34, 2
      %p163 = por %p161, %p162
      %p164 = scmp.ne.s32.totalorder %s156, %s159
      %p165 = scmp.eq.s32.totalorder %s34, 0
      %p166 = por %p164, %p165
      %p167 = scmp.ne.s32.totalorder %s156, %s159
      %p168 = scmp.eq.s32.totalorder %s39, 2
      %p169 = por %p167, %p168
      %p170 = scmp.ne.s32.totalorder %s159, %s160
      %p171 = scmp.eq.s32.totalorder %s39, 0
      %p172 = por %p170, %p171
      %p173 = scmp.ne.s32.totalorder %s159, %s160
      %p174 = scmp.eq.s32.totalorder %s40, 2
      %p175 = por %p173, %p174
      %p177 = scmp.ne.s32.totalorder %s160, %s176
      %p178 = scmp.eq.s32.totalorder %s40, 0
      %p179 = por %p177, %p178
      %s181 = sadd.s32 %s180, 1
      %p184 = scmp.eq.s32.totalorder %s34, 2
      %p185 = scmp.ne.s32.totalorder %s180, %s182
      %p186 = scmp.eq.s32.totalorder %s34, 0
      %p187 = por %p185, %p186
      %p188 = scmp.ne.s32.totalorder %s180, %s182
      %p189 = scmp.eq.s32.totalorder %s39, 2
      %p190 = por %p188, %p189
      %p191 = scmp.ne.s32.totalorder %s182, %s183
      %p192 = scmp.eq.s32.totalorder %s39, 0
      %p193 = por %p191, %p192
      %p194 = scmp.ne.s32.totalorder %s182, %s183
      %p195 = scmp.eq.s32.totalorder %s40, 2
      %p196 = por %p194, %p195
      %p198 = scmp.ne.s32.totalorder %s183, %s197
      %p199 = scmp.eq.s32.totalorder %s40, 0
      %p200 = por %p198, %p199
      %s202 = sadd.s32 %s201, 1
      %p205 = scmp.eq.s32.totalorder %s34, 2
      %p206 = scmp.ne.s32.totalorder %s201, %s203
      %p207 = scmp.eq.s32.totalorder %s34, 0
      %p208 = por %p206, %p207
      %p209 = scmp.ne.s32.totalorder %s201, %s203
      %p210 = scmp.eq.s32.totalorder %s39, 2
      %p211 = por %p209, %p210
      %p212 = scmp.ne.s32.totalorder %s203, %s204
      %p213 = scmp.eq.s32.totalorder %s39, 0
      %p214 = por %p212, %p213
      %p215 = scmp.ne.s32.totalorder %s203, %s204
      %p216 = scmp.eq.s32.totalorder %s40, 2
      %p217 = por %p215, %p216
      %p219 = scmp.ne.s32.totalorder %s204, %s218
      %p220 = scmp.eq.s32.totalorder %s40, 0
      %p221 = por %p219, %p220
      %s223 = sadd.s32 %s222, 1
      %p226 = scmp.eq.s32.totalorder %s34, 2
      %p227 = scmp.ne.s32.totalorder %s222, %s224
      %p228 = scmp.eq.s32.totalorder %s34, 0
      %p229 = por %p227, %p228
      %p230 = scmp.ne.s32.totalorder %s222, %s224
      %p231 = scmp.eq.s32.totalorder %s39, 2
      %p232 = por %p230, %p231
      %p233 = scmp.ne.s32.totalorder %s224, %s225
      %p234 = scmp.eq.s32.totalorder %s39, 0
      %p235 = por %p233, %p234
      %p236 = scmp.ne.s32.totalorder %s224, %s225
      %p237 = scmp.eq.s32.totalorder %s40, 2
      %p238 = por %p236, %p237
      %p240 = scmp.ne.s32.totalorder %s225, %s239
      %p241 = scmp.eq.s32.totalorder %s40, 0
      %p242 = por %p240, %p241
      %s244 = sadd.s32 %s243, 1
      %p247 = scmp.eq.s32.totalorder %s34, 2
      %p248 = scmp.ne.s32.totalorder %s243, %s245
      %p249 = scmp.eq.s32.totalorder %s34, 0
      %p250 = por %p248, %p249
      %p251 = scmp.ne.s32.totalorder %s243, %s245
      %p252 = scmp.eq.s32.totalorder %s39, 2
      %p253 = por %p251, %p252
      %p254 = scmp.ne.s32.totalorder %s245, %s246
      %p255 = scmp.eq.s32.totalorder %s39, 0
      %p256 = por %p254, %p255
      %p257 = scmp.ne.s32.totalorder %s245, %s246
      %p258 = scmp.eq.s32.totalorder %s40, 2
      %p259 = por %p257, %p258
      %p261 = scmp.ne.s32.totalorder %s246, %s260
      %p262 = scmp.eq.s32.totalorder %s40, 0
      %p263 = por %p261, %p262
      %s265 = sadd.s32 %s264, 1
      %p268 = scmp.eq.s32.totalorder %s34, 2
      %p269 = scmp.ne.s32.totalorder %s264, %s266
      %p270 = scmp.eq.s32.totalorder %s34, 0
      %p271 = por %p269, %p270
      %p272 = scmp.ne.s32.totalorder %s264, %s266
      %p273 = scmp.eq.s32.totalorder %s39, 2
      %p274 = por %p272, %p273
      %p275 = scmp.ne.s32.totalorder %s266, %s267
      %p276 = scmp.eq.s32.totalorder %s39, 0
      %p277 = por %p275, %p276
      %p278 = scmp.ne.s32.totalorder %s266, %s267
      %p279 = scmp.eq.s32.totalorder %s40, 2
      %p280 = por %p278, %p279
      %p282 = scmp.ne.s32.totalorder %s267, %s281
      %p283 = scmp.eq.s32.totalorder %s40, 0
      %p284 = por %p282, %p283
      %s286 = sadd.s32 %s285, 1
      %p289 = scmp.eq.s32.totalorder %s34, 2
      %p290 = scmp.ne.s32.totalorder %s285, %s287
      %p291 = scmp.eq.s32.totalorder %s34, 0
      %p292 = por %p290, %p291
      %p293 = scmp.ne.s32.totalorder %s285, %s287
      %p294 = scmp.eq.s32.totalorder %s39, 2
      %p295 = por %p293, %p294
      %p296 = scmp.ne.s32.totalorder %s287, %s288
      %p297 = scmp.eq.s32.totalorder %s39, 0
      %p298 = por %p296, %p297
      %p299 = scmp.ne.s32.totalorder %s287, %s288
      %p300 = scmp.eq.s32.totalorder %s40, 2
      %p301 = por %p299, %p300
      %p303 = scmp.ne.s32.totalorder %s288, %s302
      %p304 = scmp.eq.s32.totalorder %s40, 0
      %p305 = por %p303, %p304
      %s307 = sadd.s32 %s306, 1
      %p310 = scmp.eq.s32.totalorder %s34, 2
      %p311 = scmp.ne.s32.totalorder %s306, %s308
      %p312 = scmp.eq.s32.totalorder %s34, 0
      %p313 = por %p311, %p312
      %p314 = scmp.ne.s32.totalorder %s306, %s308
      %p315 = scmp.eq.s32.totalorder %s39, 2
      %p316 = por %p314, %p315
      %p317 = scmp.ne.s32.totalorder %s308, %s309
      %p318 = scmp.eq.s32.totalorder %s39, 0
      %p319 = por %p317, %p318
      %p320 = scmp.ne.s32.totalorder %s308, %s309
      %p321 = scmp.eq.s32.totalorder %s40, 2
      %p322 = por %p320, %p321
      %p324 = scmp.ne.s32.totalorder %s309, %s323
      %p325 = scmp.eq.s32.totalorder %s40, 0
      %p326 = por %p324, %p325
      %s328 = sadd.s32 %s327, 1
      %p331 = scmp.eq.s32.totalorder %s34, 2
      %p332 = scmp.ne.s32.totalorder %s327, %s329
      %p333 = scmp.eq.s32.totalorder %s34, 0
      %p334 = por %p332, %p333
      %p335 = scmp.ne.s32.totalorder %s327, %s329
      %p336 = scmp.eq.s32.totalorder %s39, 2
      %p337 = por %p335, %p336
      %p338 = scmp.ne.s32.totalorder %s329, %s330
      %p339 = scmp.eq.s32.totalorder %s39, 0
      %p340 = por %p338, %p339
      %p341 = scmp.ne.s32.totalorder %s329, %s330
      %p342 = scmp.eq.s32.totalorder %s40, 2
      %p343 = por %p341, %p342
      %p345 = scmp.ne.s32.totalorder %s330, %s344
      %p346 = scmp.eq.s32.totalorder %s40, 0
      %p347 = por %p345, %p346
      %s348 = ssub.s32 %s34, %s41
      %p349 = scmp.eq.s32.totalorder %s348, 0
      %s351 = sadd.s32 %s350, 1
      %s352 = scalar_select %p349, %s350, %s351
      %p355 = pneg %p349
      %p356 = scmp.eq.s32.totalorder %s34, 2
      %p357 = por %p355, %p356
      %p358 = scmp.ne.s32.totalorder %s350, %s353
      %p359 = scmp.eq.s32.totalorder %s34, 0
      %p360 = por %p358, %p359
      %p361 = scmp.ne.s32.totalorder %s350, %s353
      %p362 = scmp.eq.s32.totalorder %s39, 2
      %p363 = por %p361, %p362
      %p364 = scmp.ne.s32.totalorder %s353, %s354
      %p365 = scmp.eq.s32.totalorder %s39, 0
      %p366 = por %p364, %p365
      %p367 = scmp.ne.s32.totalorder %s353, %s354
      %p368 = scmp.eq.s32.totalorder %s40, 2
      %p369 = por %p367, %p368
      %p371 = scmp.ne.s32.totalorder %s354, %s370
      %p372 = scmp.eq.s32.totalorder %s40, 0
      %p373 = por %p371, %p372
      %p374 = scmp.le.s32.totalorder 1, %s34
      %p375 = scmp.lt.s32.totalorder %s34, 4
      %p376 = pnand %p374, %p375
      %p377 = pneg %p376
      // Predicated region
      $region9: #{tpu_custom_call.1} parent=5 // pred_check
        _
      $region10: #{tpu_custom_call.1} parent=5 // pred_check_branch
        %379 = sbr.rel (%p376) target = $region12
      $region11: #{tpu_custom_call.1} parent=5 // pred_region
        %s380 = ssub.s32 %s34, 1
        // Predicated region
        $region13: #{tpu_custom_call.1} parent=11 // pred_check
          %p381 = pneg %p193
        $region14: #{tpu_custom_call.1} parent=11 // pred_check_branch
          %383 = sbr.rel (%p381) target = $region16
        $region15: #{tpu_custom_call.1} parent=11 // pred_region
          _
        $region16: #{tpu_custom_call.1} parent=11 // pred_fallthru
          _
        // Predicated region
        $region17: #{tpu_custom_call.1} parent=11 // pred_check
          %p384 = pneg %p214
        $region18: #{tpu_custom_call.1} parent=11 // pred_check_branch
          %386 = sbr.rel (%p384) target = $region20
        $region19: #{tpu_custom_call.1} parent=11 // pred_region
          _
        $region20: #{tpu_custom_call.1} parent=11 // pred_fallthru
          _
        // Predicated region
        $region21: #{tpu_custom_call.1} parent=11 // pred_check
          %p387 = pneg %p235
        $region22: #{tpu_custom_call.1} parent=11 // pred_check_branch
          %389 = sbr.rel (%p387) target = $region24
        $region23: #{tpu_custom_call.1} parent=11 // pred_region
          _
        $region24: #{tpu_custom_call.1} parent=11 // pred_fallthru
          _
        // Predicated region
        $region25: #{tpu_custom_call.1} parent=11 // pred_check
          %p390 = pneg %p256
        $region26: #{tpu_custom_call.1} parent=11 // pred_check_branch
          %392 = sbr.rel (%p390) target = $region28
        $region27: #{tpu_custom_call.1} parent=11 // pred_region
          _
        $region28: #{tpu_custom_call.1} parent=11 // pred_fallthru
          _
        // Predicated region
        $region29: #{tpu_custom_call.1} parent=11 // pred_check
          %p393 = pneg %p277
        $region30: #{tpu_custom_call.1} parent=11 // pred_check_branch
          %395 = sbr.rel (%p393) target = $region32
        $region31: #{tpu_custom_call.1} parent=11 // pred_region
          _
        $region32: #{tpu_custom_call.1} parent=11 // pred_fallthru
          _
        // Predicated region
        $region33: #{tpu_custom_call.1} parent=11 // pred_check
          %p396 = pneg %p298
        $region34: #{tpu_custom_call.1} parent=11 // pred_check_branch
          %398 = sbr.rel (%p396) target = $region36
        $region35: #{tpu_custom_call.1} parent=11 // pred_region
          _
        $region36: #{tpu_custom_call.1} parent=11 // pred_fallthru
          _
        // Predicated region
        $region37: #{tpu_custom_call.1} parent=11 // pred_check
          %p399 = pneg %p319
        $region38: #{tpu_custom_call.1} parent=11 // pred_check_branch
          %401 = sbr.rel (%p399) target = $region40
        $region39: #{tpu_custom_call.1} parent=11 // pred_region
          _
        $region40: #{tpu_custom_call.1} parent=11 // pred_fallthru
          _
        // Predicated region
        $region41: #{tpu_custom_call.1} parent=11 // pred_check
          %p402 = pneg %p340
        $region42: #{tpu_custom_call.1} parent=11 // pred_check_branch
          %404 = sbr.rel (%p402) target = $region44
        $region43: #{tpu_custom_call.1} parent=11 // pred_region
          _
        $region44: #{tpu_custom_call.1} parent=11 // pred_fallthru
          _
      $region12: #{tpu_custom_call.1} parent=5 // pred_fallthru
        _
      %p405 = scmp.lt.s32.totalorder %s34, 3
      // Predicated region
      $region45: #{tpu_custom_call.1} parent=5 // pred_check
        %p406 = pneg %p405
      $region46: #{tpu_custom_call.1} parent=5 // pred_check_branch
        %408 = sbr.rel (%p406) target = $region48
      $region47: #{tpu_custom_call.1} parent=5 // pred_region
        // Predicated region
        $region49: #{tpu_custom_call.1} parent=47 // pred_check
          %p409 = pneg %p56
        $region50: #{tpu_custom_call.1} parent=47 // pred_check_branch
          %411 = sbr.rel (%p409) target = $region52
        $region51: #{tpu_custom_call.1} parent=47 // pred_region
          %s412 = sld [smem:[#allocation3 + %s34]]
          %p413 = scmp.lt.s32.totalorder %s412, 2
          %s414 = scalar_select %p413, %s412, 2
          %s415 = smul.addr %s414, 2
          %s416 = smul.addr %s415, 8
          %s417 = scalar_lea.vmem %s2, %s416
          %s418 = sld [smem:[#allocation3 + %s34]]
        $region52: #{tpu_custom_call.1} parent=47 // pred_fallthru
          _
        // Predicated region
        $region53: #{tpu_custom_call.1} parent=47 // pred_check
          %p419 = pneg %p84
        $region54: #{tpu_custom_call.1} parent=47 // pred_check_branch
          %421 = sbr.rel (%p419) target = $region56
        $region55: #{tpu_custom_call.1} parent=47 // pred_region
          %s422 = sld [smem:[#allocation4 + %s34]]
          %p423 = scmp.lt.s32.totalorder %s422, 2
          %s424 = scalar_select %p423, %s422, 2
          %s425 = smul.addr %s424, 2
          %s426 = smul.addr %s425, 8
          %s427 = scalar_lea.vmem %s3, %s426
          %s428 = sld [smem:[#allocation4 + %s34]]
        $region56: #{tpu_custom_call.1} parent=47 // pred_fallthru
          _
        // Predicated region
        $region57: #{tpu_custom_call.1} parent=47 // pred_check
          %p429 = pneg %p110
        $region58: #{tpu_custom_call.1} parent=47 // pred_check_branch
          %431 = sbr.rel (%p429) target = $region60
        $region59: #{tpu_custom_call.1} parent=47 // pred_region
          %p432 = scmp.lt.s32.totalorder %s34, 2
          %s433 = scalar_select %p432, %s34, 2
          %s434 = smul.addr %s433, 2
          %s435 = smul.addr %s434, 8
          %s436 = scalar_lea.vmem %s4, %s435
        $region60: #{tpu_custom_call.1} parent=47 // pred_fallthru
          _
        // Predicated region
        $region61: #{tpu_custom_call.1} parent=47 // pred_check
          %p437 = pneg %p138
        $region62: #{tpu_custom_call.1} parent=47 // pred_check_branch
          %439 = sbr.rel (%p437) target = $region64
        $region63: #{tpu_custom_call.1} parent=47 // pred_region
          %s440 = sld [smem:[#allocation3 + %s34]]
          %p441 = scmp.lt.s32.totalorder %s440, 2
          %s442 = scalar_select %p441, %s440, 2
          %s443 = smul.addr %s442, 4
          %s444 = smul.addr %s443, 8
          %s445 = scalar_lea.vmem %s5, %s444
          %s446 = sld [smem:[#allocation3 + %s34]]
        $region64: #{tpu_custom_call.1} parent=47 // pred_fallthru
          _
        // Predicated region
        $region65: #{tpu_custom_call.1} parent=47 // pred_check
          %p447 = pneg %p166
        $region66: #{tpu_custom_call.1} parent=47 // pred_check_branch
          %449 = sbr.rel (%p447) target = $region68
        $region67: #{tpu_custom_call.1} parent=47 // pred_region
          %s450 = sld [smem:[#allocation4 + %s34]]
          %p451 = scmp.lt.s32.totalorder %s450, 2
          %s452 = scalar_select %p451, %s450, 2
          %s453 = smul.addr %s452, 4
          %s454 = smul.addr %s453, 8
          %s455 = scalar_lea.vmem %s6, %s454
          %s456 = sld [smem:[#allocation4 + %s34]]
        $region68: #{tpu_custom_call.1} parent=47 // pred_fallthru
          _
      $region48: #{tpu_custom_call.1} parent=5 // pred_fallthru
        _
      %p457 = scmp.le.s32.totalorder 1, %s34
      %p458 = scmp.lt.s32.totalorder %s34, 4
      %p459 = pnand %p457, %p458
      %p460 = pneg %p459
      // Predicated region
      $region69: #{tpu_custom_call.1} parent=5 // pred_check
        _
      $region70: #{tpu_custom_call.1} parent=5 // pred_check_branch
        %462 = sbr.rel (%p459) target = $region72
      $region71: #{tpu_custom_call.1} parent=5 // pred_region
        %s463 = ssub.s32 %s34, 1
        %s464 = sld [smem:[#allocation3 + %s39]]
        %p465 = scmp.lt.s32.totalorder %s464, 2
        %s466 = scalar_select %p465, %s464, 2
        %s467 = smul.addr %s466, 2
        %s468 = smul.addr %s467, 8
        %s469 = scalar_lea.vmem %s2, %s468
        %p470 = pneg %p62
        %p471 = pneg %p59
        %s472 = sld [smem:[#allocation4 + %s39]]
        %p473 = scmp.lt.s32.totalorder %s472, 2
        %s474 = scalar_select %p473, %s472, 2
        %s475 = smul.addr %s474, 2
        %s476 = smul.addr %s475, 8
        %s477 = scalar_lea.vmem %s3, %s476
        %p478 = pneg %p90
        %p479 = pneg %p87
        %p480 = scmp.lt.s32.totalorder %s39, 2
        %s481 = scalar_select %p480, %s39, 2
        %s482 = smul.addr %s481, 2
        %s483 = smul.addr %s482, 8
        %s484 = scalar_lea.vmem %s4, %s483
        %p485 = pneg %p116
        %p486 = pneg %p113
        %s487 = sld [smem:[#allocation3 + %s39]]
        %p488 = scmp.lt.s32.totalorder %s487, 2
        %s489 = scalar_select %p488, %s487, 2
        %s490 = smul.addr %s489, 4
        %s491 = smul.addr %s490, 8
        %s492 = scalar_lea.vmem %s5, %s491
        %p493 = pneg %p144
        %p494 = pneg %p141
        %s495 = sld [smem:[#allocation4 + %s39]]
        %p496 = scmp.lt.s32.totalorder %s495, 2
        %s497 = scalar_select %p496, %s495, 2
        %s498 = smul.addr %s497, 4
        %s499 = smul.addr %s498, 8
        %s500 = scalar_lea.vmem %s6, %s499
        %p501 = pneg %p172
        %p502 = pneg %p169
        %p503 = pneg %p193
        %p504 = pneg %p190
        %p505 = pneg %p214
        %p506 = pneg %p211
        %p507 = pneg %p235
        %p508 = pneg %p232
        %p509 = pneg %p256
        %p510 = pneg %p253
        %p511 = pneg %p277
        %p512 = pneg %p274
        %p513 = pneg %p298
        %p514 = pneg %p295
        %p515 = pneg %p319
        %p516 = pneg %p316
        %p517 = pneg %p340
        %p518 = pneg %p337
        %p519 = pneg %p366
        %p520 = pneg %p363
        %s521 = sand.u32 %s353, 1
        %s522 = scalar_lea.sflag [#allocation6], %s521
        %s523 = sand.u32 %s353, 1
        %s524 = smul.addr %s523, 16
        %s525 = scalar_lea.vmem [#allocation5], %s524
        %s526 = sld [smem:[#allocation3 + %s39]]
        %p527 = scmp.lt.s32.totalorder %s526, 2
        %s528 = scalar_select %p527, %s526, 2
        %s529 = smul.addr %s528, 2
        %s530 = smul.addr %s529, 8
        %s531 = scalar_lea.vmem %s2, %s530
        %s532 = sld [smem:[#allocation3 + %s39]]
        %s533 = sld [smem:[#allocation4 + %s39]]
        %p534 = scmp.lt.s32.totalorder %s533, 2
        %s535 = scalar_select %p534, %s533, 2
        %s536 = smul.addr %s535, 2
        %s537 = smul.addr %s536, 8
        %s538 = scalar_lea.vmem %s3, %s537
        %s539 = sld [smem:[#allocation4 + %s39]]
        %p540 = scmp.lt.s32.totalorder %s39, 2
        %s541 = scalar_select %p540, %s39, 2
        %s542 = smul.addr %s541, 2
        %s543 = smul.addr %s542, 8
        %s544 = scalar_lea.vmem %s4, %s543
        %s545 = sld [smem:[#allocation3 + %s39]]
        %p546 = scmp.lt.s32.totalorder %s545, 2
        %s547 = scalar_select %p546, %s545, 2
        %s548 = smul.addr %s547, 4
        %s549 = smul.addr %s548, 8
        %s550 = scalar_lea.vmem %s5, %s549
        %s551 = sld [smem:[#allocation3 + %s39]]
        %s552 = sld [smem:[#allocation4 + %s39]]
        %p553 = scmp.lt.s32.totalorder %s552, 2
        %s554 = scalar_select %p553, %s552, 2
        %s555 = smul.addr %s554, 4
        %s556 = smul.addr %s555, 8
        %s557 = scalar_lea.vmem %s6, %s556
        %s558 = sld [smem:[#allocation4 + %s39]]
        %v559 = vld [vmem:[%s11] sm:$0xff]
        %v560 = vld [vmem:[%s11 + $0x8] sm:$0x1]
        %v561 = vld [vmem:[%s544] sm:$0xff]
        %v562 = vld [vmem:[%s544 + $0x8] sm:$0xff]
        %v563 = vld [vmem:[%s7] sm:$0xff]
        %v564 = vld [vmem:[%s7 + $0x8] sm:$0xff]
        %v565 = vld [vmem:[%s7 + $0x10] sm:$0xff]
        %v566 = vld [vmem:[%s7 + $0x18] sm:$0xff]
        %vm567 = vcmask 261120
        %v569 = vsel %vm567, %v561, 0
        %v572 = vsel %vm567, %v562, 0
        %574 = vmatprep.subr.mxu0 0.0
        %575 = vmatpush1.msra.mxu0 %v563
        %576 = vmatprep.subr.mxu0 0.0
        %577 = vmatpush1.msra.mxu0 %v564
        %578 = vmatprep.subr.mxu0 0.0
        %579 = vmatpush1.msra.mxu0 %v565
        %580 = vmatprep.subr.mxu0 0.0
        %581 = vmatpush1.msra.mxu0 %v566
        %582 = vmatprep.subr.mxu0 0.0
        %583 = vmatpush1.msra.mxu0 0.0
        %584 = vmatprep.subr.mxu0 0.0
        %585 = vmatpush1.msra.mxu0 0.0
        %586 = vmatprep.subr.mxu0 0.0
        %587 = vmatpush1.msra.mxu0 0.0
        %588 = vmatprep.subr.mxu0 0.0
        %589 = vmatpush1.msra.mxu0 0.0
        %590 = vmatprep.subr.mxu0 0.0
        %591 = vmatpush1.msra.mxu0 0.0
        %592 = vmatprep.subr.mxu0 0.0
        %593 = vmatpush1.msra.mxu0 0.0
        %594 = vmatprep.subr.mxu0 0.0
        %595 = vmatpush1.msra.mxu0 0.0
        %596 = vmatprep.subr.mxu0 0.0
        %597 = vmatpush1.msra.mxu0 0.0
        %598 = vmatprep.subr.mxu0 0.0
        %599 = vmatpush1.msra.mxu0 0.0
        %600 = vmatprep.subr.mxu0 0.0
        %601 = vmatpush1.msra.mxu0 0.0
        %602 = vmatprep.subr.mxu0 0.0
        %603 = vmatpush1.msra.mxu0 0.0
        %604 = vmatprep.subr.mxu0 0.0
        %605 = vmatpush1.msra.mxu0 0.0
        %606 = vmatprep.subr.mxu0 0.0
        %607 = vmatpush1.msra.mxu0 0.0
        %608 = vmatprep.subr.mxu0 0.0
        %609 = vmatpush1.msra.mxu0 0.0
        %610 = vmatprep.subr.mxu0 0.0
        %611 = vmatpush1.msra.mxu0 0.0
        %612 = vmatprep.subr.mxu0 0.0
        %613 = vmatpush1.msra.mxu0 0.0
        %614 = vmatprep.subr.mxu0 0.0
        %615 = vmatpush1.msra.mxu0 0.0
        %616 = vmatprep.subr.mxu0 0.0
        %617 = vmatpush1.msra.mxu0 0.0
        %618 = vmatprep.subr.mxu0 0.0
        %619 = vmatpush1.msra.mxu0 0.0
        %620 = vmatprep.subr.mxu0 0.0
        %621 = vmatpush1.msra.mxu0 0.0
        %622 = vmatprep.subr.mxu0 0.0
        %623 = vmatpush1.msra.mxu0 0.0
        %624 = vmatprep.subr.mxu0 0.0
        %625 = vmatpush1.msra.mxu0 0.0
        %626 = vmatprep.subr.mxu0 0.0
        %627 = vmatpush1.msra.mxu0 0.0
        %628 = vmatprep.subr.mxu0 0.0
        %629 = vmatpush1.msra.mxu0 0.0
        %630 = vmatprep.subr.mxu0 0.0
        %631 = vmatpush1.msra.mxu0 0.0
        %632 = vmatprep.subr.mxu0 0.0
        %633 = vmatpush1.msra.mxu0 0.0
        %634 = vmatprep.subr.mxu0 0.0
        %635 = vmatpush1.msra.mxu0 0.0
        %636 = vmatprep.subr.mxu0 0.0
        %637 = vmatpush1.msra.mxu0 0.0
        %638 = vmatprep.mubr.f32.mxu0 0.0
        %639 = vmatmul.mubr.f32.gmra.mrb[0].mxu0 %v569
        %v640 = vpop.f32.mrb[0].mxu0
        %v641 = vadd.f32 0.0, %v640
        %v642 = vpop.f32.mrb[0].mxu0
        %643 = vmatprep.mubr.f32.mxu0 0.0
        %644 = vmatmul.mubr.f32.gmra.mrb[0].mxu0 %v572
        %v645 = vpop.f32.mrb[0].mxu0
        %v646 = vadd.f32 0.0, %v645
        %v647 = vpop.f32.mrb[0].mxu0
        %648 = vdwg.mxu0
        %v649 = vld [vmem:[%s8] sm:$0xff]
        %v650 = vld [vmem:[%s8 + $0x8] sm:$0xff]
        %v651 = vld [vmem:[%s8 + $0x10] sm:$0xff]
        %v652 = vld [vmem:[%s8 + $0x18] sm:$0xff]
        %653 = vmatprep.subr.mxu0 0.0
        %654 = vmatpush1.msra.mxu0 %v649
        %655 = vmatprep.subr.mxu0 0.0
        %656 = vmatpush1.msra.mxu0 %v650
        %657 = vmatprep.subr.mxu0 0.0
        %658 = vmatpush1.msra.mxu0 %v651
        %659 = vmatprep.subr.mxu0 0.0
        %660 = vmatpush1.msra.mxu0 %v652
        %661 = vmatprep.subr.mxu0 0.0
        %662 = vmatpush1.msra.mxu0 0.0
        %663 = vmatprep.subr.mxu0 0.0
        %664 = vmatpush1.msra.mxu0 0.0
        %665 = vmatprep.subr.mxu0 0.0
        %666 = vmatpush1.msra.mxu0 0.0
        %667 = vmatprep.subr.mxu0 0.0
        %668 = vmatpush1.msra.mxu0 0.0
        %669 = vmatprep.subr.mxu0 0.0
        %670 = vmatpush1.msra.mxu0 0.0
        %671 = vmatprep.subr.mxu0 0.0
        %672 = vmatpush1.msra.mxu0 0.0
        %673 = vmatprep.subr.mxu0 0.0
        %674 = vmatpush1.msra.mxu0 0.0
        %675 = vmatprep.subr.mxu0 0.0
        %676 = vmatpush1.msra.mxu0 0.0
        %677 = vmatprep.subr.mxu0 0.0
        %678 = vmatpush1.msra.mxu0 0.0
        %679 = vmatprep.subr.mxu0 0.0
        %680 = vmatpush1.msra.mxu0 0.0
        %681 = vmatprep.subr.mxu0 0.0
        %682 = vmatpush1.msra.mxu0 0.0
        %683 = vmatprep.subr.mxu0 0.0
        %684 = vmatpush1.msra.mxu0 0.0
        %685 = vmatprep.subr.mxu0 0.0
        %686 = vmatpush1.msra.mxu0 0.0
        %687 = vmatprep.subr.mxu0 0.0
        %688 = vmatpush1.msra.mxu0 0.0
        %689 = vmatprep.subr.mxu0 0.0
        %690 = vmatpush1.msra.mxu0 0.0
        %691 = vmatprep.subr.mxu0 0.0
        %692 = vmatpush1.msra.mxu0 0.0
        %693 = vmatprep.subr.mxu0 0.0
        %694 = vmatpush1.msra.mxu0 0.0
        %695 = vmatprep.subr.mxu0 0.0
        %696 = vmatpush1.msra.mxu0 0.0
        %697 = vmatprep.subr.mxu0 0.0
        %698 = vmatpush1.msra.mxu0 0.0
        %699 = vmatprep.subr.mxu0 0.0
        %700 = vmatpush1.msra.mxu0 0.0
        %701 = vmatprep.subr.mxu0 0.0
        %702 = vmatpush1.msra.mxu0 0.0
        %703 = vmatprep.subr.mxu0 0.0
        %704 = vmatpush1.msra.mxu0 0.0
        %705 = vmatprep.subr.mxu0 0.0
        %706 = vmatpush1.msra.mxu0 0.0
        %707 = vmatprep.subr.mxu0 0.0
        %708 = vmatpush1.msra.mxu0 0.0
        %709 = vmatprep.subr.mxu0 0.0
        %710 = vmatpush1.msra.mxu0 0.0
        %711 = vmatprep.subr.mxu0 0.0
        %712 = vmatpush1.msra.mxu0 0.0
        %713 = vmatprep.subr.mxu0 0.0
        %714 = vmatpush1.msra.mxu0 0.0
        %715 = vmatprep.subr.mxu0 0.0
        %716 = vmatpush1.msra.mxu0 0.0
        %717 = vmatprep.mubr.f32.mxu0 0.0
        %718 = vmatmul.mubr.f32.gmra.mrb[0].mxu0 %v569
        %v719 = vpop.f32.mrb[0].mxu0
        %v720 = vadd.f32 0.0, %v719
        %v721 = vpop.f32.mrb[0].mxu0
        %722 = vmatprep.mubr.f32.mxu0 0.0
        %723 = vmatmul.mubr.f32.gmra.mrb[0].mxu0 %v572
        %v724 = vpop.f32.mrb[0].mxu0
        %v725 = vadd.f32 0.0, %v724
        %v726 = vpop.f32.mrb[0].mxu0
        %727 = vdwg.mxu0
        %v728 = vld [vmem:[%s9] sm:$0xff]
        %v729 = vld [vmem:[%s9 + $0x8] sm:$0xff]
        %v730 = vld [vmem:[%s9 + $0x10] sm:$0xff]
        %v731 = vld [vmem:[%s9 + $0x18] sm:$0xff]
        %v732 = vld [vmem:[%s531] sm:$0xff]
        %v733 = vld [vmem:[%s531 + $0x8] sm:$0xff]
        %v734 = vld [vmem:[%s550] sm:$0xff]
        %v735 = vld [vmem:[%s550 + $0x8] sm:$0xff]
        %v736 = vld [vmem:[%s550 + $0x10] sm:$0xff]
        %v737 = vld [vmem:[%s550 + $0x18] sm:$0xff]
        %v739 = vsel %vm567, %v732, 0
        %v742 = vsel %vm567, %v733, 0
        %744 = vmatprep.subr.mxu0 0.0
        %745 = vmatpush1.msra.mxu0 %v734
        %746 = vmatprep.subr.mxu0 0.0
        %747 = vmatpush1.msra.mxu0 %v735
        %748 = vmatprep.subr.mxu0 0.0
        %749 = vmatpush1.msra.mxu0 %v736
        %750 = vmatprep.subr.mxu0 0.0
        %751 = vmatpush1.msra.mxu0 %v737
        %752 = vmatprep.subr.mxu0 0.0
        %753 = vmatpush1.msra.mxu0 0.0
        %754 = vmatprep.subr.mxu0 0.0
        %755 = vmatpush1.msra.mxu0 0.0
        %756 = vmatprep.subr.mxu0 0.0
        %757 = vmatpush1.msra.mxu0 0.0
        %758 = vmatprep.subr.mxu0 0.0
        %759 = vmatpush1.msra.mxu0 0.0
        %760 = vmatprep.subr.mxu0 0.0
        %761 = vmatpush1.msra.mxu0 0.0
        %762 = vmatprep.subr.mxu0 0.0
        %763 = vmatpush1.msra.mxu0 0.0
        %764 = vmatprep.subr.mxu0 0.0
        %765 = vmatpush1.msra.mxu0 0.0
        %766 = vmatprep.subr.mxu0 0.0
        %767 = vmatpush1.msra.mxu0 0.0
        %768 = vmatprep.subr.mxu0 0.0
        %769 = vmatpush1.msra.mxu0 0.0
        %770 = vmatprep.subr.mxu0 0.0
        %771 = vmatpush1.msra.mxu0 0.0
        %772 = vmatprep.subr.mxu0 0.0
        %773 = vmatpush1.msra.mxu0 0.0
        %774 = vmatprep.subr.mxu0 0.0
        %775 = vmatpush1.msra.mxu0 0.0
        %776 = vmatprep.subr.mxu0 0.0
        %777 = vmatpush1.msra.mxu0 0.0
        %778 = vmatprep.subr.mxu0 0.0
        %779 = vmatpush1.msra.mxu0 0.0
        %780 = vmatprep.subr.mxu0 0.0
        %781 = vmatpush1.msra.mxu0 0.0
        %782 = vmatprep.subr.mxu0 0.0
        %783 = vmatpush1.msra.mxu0 0.0
        %784 = vmatprep.subr.mxu0 0.0
        %785 = vmatpush1.msra.mxu0 0.0
        %786 = vmatprep.subr.mxu0 0.0
        %787 = vmatpush1.msra.mxu0 0.0
        %788 = vmatprep.subr.mxu0 0.0
        %789 = vmatpush1.msra.mxu0 0.0
        %790 = vmatprep.subr.mxu0 0.0
        %791 = vmatpush1.msra.mxu0 0.0
        %792 = vmatprep.subr.mxu0 0.0
        %793 = vmatpush1.msra.mxu0 0.0
        %794 = vmatprep.subr.mxu0 0.0
        %795 = vmatpush1.msra.mxu0 0.0
        %796 = vmatprep.subr.mxu0 0.0
        %797 = vmatpush1.msra.mxu0 0.0
        %798 = vmatprep.subr.mxu0 0.0
        %799 = vmatpush1.msra.mxu0 0.0
        %800 = vmatprep.subr.mxu0 0.0
        %801 = vmatpush1.msra.mxu0 0.0
        %802 = vmatprep.subr.mxu0 0.0
        %803 = vmatpush1.msra.mxu0 0.0
        %804 = vmatprep.subr.mxu0 0.0
        %805 = vmatpush1.msra.mxu0 0.0
        %806 = vmatprep.subr.mxu0 0.0
        %807 = vmatpush1.msra.mxu0 0.0
        %808 = vmatprep.mubr.f32.mxu0 0.0
        %809 = vmatmul.mubr.f32.gmra.mrb[0].mxu0 %v739
        %v810 = vpop.f32.mrb[0].mxu0
        %v811 = vadd.f32 0.0, %v810
        %v812 = vpop.f32.mrb[0].mxu0
        %813 = vmatprep.mubr.f32.mxu0 0.0
        %814 = vmatmul.mubr.f32.gmra.mrb[0].mxu0 %v742
        %v815 = vpop.f32.mrb[0].mxu0
        %v816 = vadd.f32 0.0, %v815
        %v817 = vpop.f32.mrb[0].mxu0
        %818 = vdwg.mxu0
        %vm819 = vcmask 64512
        %v821 = vsel %vm819, %v811, 0
        %v824 = vsel %vm819, %v641, 0
        %826 = vmatprep.subr.mxu0 0.0
        %827 = vmatpush1.xpose.msra.mxu0 %v824
        %828 = vmatprep.subr.mxu0 0.0
        %829 = vmatpush1.xpose.msra.mxu0 0.0
        %830 = vmatprep.subr.mxu0 0.0
        %831 = vmatpush1.xpose.msra.mxu0 0.0
        %832 = vmatprep.subr.mxu0 0.0
        %833 = vmatpush1.xpose.msra.mxu0 0.0
        %834 = vmatprep.subr.mxu0 0.0
        %835 = vmatpush1.xpose.msra.mxu0 0.0
        %836 = vmatprep.subr.mxu0 0.0
        %837 = vmatpush1.xpose.msra.mxu0 0.0
        %838 = vmatprep.subr.mxu0 0.0
        %839 = vmatpush1.xpose.msra.mxu0 0.0
        %840 = vmatprep.subr.mxu0 0.0
        %841 = vmatpush1.xpose.msra.mxu0 0.0
        %842 = vmatprep.subr.mxu0 0.0
        %843 = vmatpush1.xpose.msra.mxu0 0.0
        %844 = vmatprep.subr.mxu0 0.0
        %845 = vmatpush1.xpose.msra.mxu0 0.0
        %846 = vmatprep.subr.mxu0 0.0
        %847 = vmatpush1.xpose.msra.mxu0 0.0
        %848 = vmatprep.subr.mxu0 0.0
        %849 = vmatpush1.xpose.msra.mxu0 0.0
        %850 = vmatprep.subr.mxu0 0.0
        %851 = vmatpush1.xpose.msra.mxu0 0.0
        %852 = vmatprep.subr.mxu0 0.0
        %853 = vmatpush1.xpose.msra.mxu0 0.0
        %854 = vmatprep.subr.mxu0 0.0
        %855 = vmatpush1.xpose.msra.mxu0 0.0
        %856 = vmatprep.subr.mxu0 0.0
        %857 = vmatpush1.xpose.msra.mxu0 0.0
        %858 = vmatprep.subr.mxu0 0.0
        %859 = vmatpush1.xpose.msra.mxu0 0.0
        %860 = vmatprep.subr.mxu0 0.0
        %861 = vmatpush1.xpose.msra.mxu0 0.0
        %862 = vmatprep.subr.mxu0 0.0
        %863 = vmatpush1.xpose.msra.mxu0 0.0
        %864 = vmatprep.subr.mxu0 0.0
        %865 = vmatpush1.xpose.msra.mxu0 0.0
        %866 = vmatprep.subr.mxu0 0.0
        %867 = vmatpush1.xpose.msra.mxu0 0.0
        %868 = vmatprep.subr.mxu0 0.0
        %869 = vmatpush1.xpose.msra.mxu0 0.0
        %870 = vmatprep.subr.mxu0 0.0
        %871 = vmatpush1.xpose.msra.mxu0 0.0
        %872 = vmatprep.subr.mxu0 0.0
        %873 = vmatpush1.xpose.msra.mxu0 0.0
        %874 = vmatprep.subr.mxu0 0.0
        %875 = vmatpush1.xpose.msra.mxu0 0.0
        %876 = vmatprep.subr.mxu0 0.0
        %877 = vmatpush1.xpose.msra.mxu0 0.0
        %878 = vmatprep.subr.mxu0 0.0
        %879 = vmatpush1.xpose.msra.mxu0 0.0
        %880 = vmatprep.subr.mxu0 0.0
        %881 = vmatpush1.xpose.msra.mxu0 0.0
        %882 = vmatprep.subr.mxu0 0.0
        %883 = vmatpush1.xpose.msra.mxu0 0.0
        %884 = vmatprep.subr.mxu0 0.0
        %885 = vmatpush1.xpose.msra.mxu0 0.0
        %886 = vmatprep.subr.mxu0 0.0
        %887 = vmatpush1.xpose.msra.mxu0 0.0
        %888 = vmatprep.subr.mxu0 0.0
        %889 = vmatpush1.xpose.msra.mxu0 0.0
        %890 = vmatprep.mubr.f32.mxu0 0.0
        %891 = vmatmul.mubr.f32.gmra.mrb[0].mxu0 %v821
        %v892 = vpop.f32.mrb[0].mxu0
        %v893 = vadd.f32 0.0, %v892
        %v894 = vpop.f32.mrb[0].mxu0
        %895 = vdwg.mxu0
        %v896 = vsel %vm819, %v893, -inf
        %897 = vmax.xlane.f32.xlu0 %v896
        %v898 = vpop.xlane.xlu0 %897
        %v899 = vsub.f32 %v893, %v898
        %v900 = vmul.f32 %v899, 1.442695
        %v901 = vpow.pop %v900
        %v902 = vsel %vm819, %v901, 0.0
        %903 = vadd.xlane.f32.xlu0 %v902
        %v904 = vpop.xlane.xlu0 %903
        %v905 = vrcp.pop %v904
        %v906 = vmul.f32 %v901, %v905
        %v908 = vsel %vm819, %v906, 0
        %910 = vmatprep.subr.mxu0 0.0
        %911 = vmatpush1.msra.mxu0 %v720
        %912 = vmatprep.subr.mxu0 0.0
        %913 = vmatpush1.msra.mxu0 0.0
        %914 = vmatprep.subr.mxu0 0.0
        %915 = vmatpush1.msra.mxu0 0.0
        %916 = vmatprep.subr.mxu0 0.0
        %917 = vmatpush1.msra.mxu0 0.0
        %918 = vmatprep.subr.mxu0 0.0
        %919 = vmatpush1.msra.mxu0 0.0
        %920 = vmatprep.subr.mxu0 0.0
        %921 = vmatpush1.msra.mxu0 0.0
        %922 = vmatprep.subr.mxu0 0.0
        %923 = vmatpush1.msra.mxu0 0.0
        %924 = vmatprep.subr.mxu0 0.0
        %925 = vmatpush1.msra.mxu0 0.0
        %926 = vmatprep.subr.mxu0 0.0
        %927 = vmatpush1.msra.mxu0 0.0
        %928 = vmatprep.subr.mxu0 0.0
        %929 = vmatpush1.msra.mxu0 0.0
        %930 = vmatprep.subr.mxu0 0.0
        %931 = vmatpush1.msra.mxu0 0.0
        %932 = vmatprep.subr.mxu0 0.0
        %933 = vmatpush1.msra.mxu0 0.0
        %934 = vmatprep.subr.mxu0 0.0
        %935 = vmatpush1.msra.mxu0 0.0
        %936 = vmatprep.subr.mxu0 0.0
        %937 = vmatpush1.msra.mxu0 0.0
        %938 = vmatprep.subr.mxu0 0.0
        %939 = vmatpush1.msra.mxu0 0.0
        %940 = vmatprep.subr.mxu0 0.0
        %941 = vmatpush1.msra.mxu0 0.0
        %942 = vmatprep.subr.mxu0 0.0
        %943 = vmatpush1.msra.mxu0 0.0
        %944 = vmatprep.subr.mxu0 0.0
        %945 = vmatpush1.msra.mxu0 0.0
        %946 = vmatprep.subr.mxu0 0.0
        %947 = vmatpush1.msra.mxu0 0.0
        %948 = vmatprep.subr.mxu0 0.0
        %949 = vmatpush1.msra.mxu0 0.0
        %950 = vmatprep.subr.mxu0 0.0
        %951 = vmatpush1.msra.mxu0 0.0
        %952 = vmatprep.subr.mxu0 0.0
        %953 = vmatpush1.msra.mxu0 0.0
        %954 = vmatprep.subr.mxu0 0.0
        %955 = vmatpush1.msra.mxu0 0.0
        %956 = vmatprep.subr.mxu0 0.0
        %957 = vmatpush1.msra.mxu0 0.0
        %958 = vmatprep.subr.mxu0 0.0
        %959 = vmatpush1.msra.mxu0 0.0
        %960 = vmatprep.subr.mxu0 0.0
        %961 = vmatpush1.msra.mxu0 0.0
        %962 = vmatprep.subr.mxu0 0.0
        %963 = vmatpush1.msra.mxu0 0.0
        %964 = vmatprep.subr.mxu0 0.0
        %965 = vmatpush1.msra.mxu0 0.0
        %966 = vmatprep.subr.mxu0 0.0
        %967 = vmatpush1.msra.mxu0 0.0
        %968 = vmatprep.subr.mxu0 0.0
        %969 = vmatpush1.msra.mxu0 0.0
        %970 = vmatprep.subr.mxu0 0.0
        %971 = vmatpush1.msra.mxu0 0.0
        %972 = vmatprep.subr.mxu0 0.0
        %973 = vmatpush1.msra.mxu0 0.0
        %974 = vmatprep.mubr.f32.mxu0 0.0
        %975 = vmatmul.mubr.f32.gmra.mrb[0].mxu0 %v908
        %v976 = vpop.f32.mrb[0].mxu0
        %v977 = vadd.f32 0.0, %v976
        %v978 = vpop.f32.mrb[0].mxu0
        %979 = vdwg.mxu0
        %980 = vrot.lane.b32.xlu0 %v811, 120
        %v981 = vpop.permute.xlu0 %980
        %982 = vrot.lane.b32.xlu0 %v641, 120
        %v983 = vpop.permute.xlu0 %982
        %v984 = vsel %vm819, %v981, 0
        %v986 = vsel %vm819, %v983, 0
        %988 = vmatprep.subr.mxu0 0.0
        %989 = vmatpush1.xpose.msra.mxu0 %v986
        %990 = vmatprep.subr.mxu0 0.0
        %991 = vmatpush1.xpose.msra.mxu0 0.0
        %992 = vmatprep.subr.mxu0 0.0
        %993 = vmatpush1.xpose.msra.mxu0 0.0
        %994 = vmatprep.subr.mxu0 0.0
        %995 = vmatpush1.xpose.msra.mxu0 0.0
        %996 = vmatprep.subr.mxu0 0.0
        %997 = vmatpush1.xpose.msra.mxu0 0.0
        %998 = vmatprep.subr.mxu0 0.0
        %999 = vmatpush1.xpose.msra.mxu0 0.0
        %1000 = vmatprep.subr.mxu0 0.0
        %1001 = vmatpush1.xpose.msra.mxu0 0.0
        %1002 = vmatprep.subr.mxu0 0.0
        %1003 = vmatpush1.xpose.msra.mxu0 0.0
        %1004 = vmatprep.subr.mxu0 0.0
        %1005 = vmatpush1.xpose.msra.mxu0 0.0
        %1006 = vmatprep.subr.mxu0 0.0
        %1007 = vmatpush1.xpose.msra.mxu0 0.0
        %1008 = vmatprep.subr.mxu0 0.0
        %1009 = vmatpush1.xpose.msra.mxu0 0.0
        %1010 = vmatprep.subr.mxu0 0.0
        %1011 = vmatpush1.xpose.msra.mxu0 0.0
        %1012 = vmatprep.subr.mxu0 0.0
        %1013 = vmatpush1.xpose.msra.mxu0 0.0
        %1014 = vmatprep.subr.mxu0 0.0
        %1015 = vmatpush1.xpose.msra.mxu0 0.0
        %1016 = vmatprep.subr.mxu0 0.0
        %1017 = vmatpush1.xpose.msra.mxu0 0.0
        %1018 = vmatprep.subr.mxu0 0.0
        %1019 = vmatpush1.xpose.msra.mxu0 0.0
        %1020 = vmatprep.subr.mxu0 0.0
        %1021 = vmatpush1.xpose.msra.mxu0 0.0
        %1022 = vmatprep.subr.mxu0 0.0
        %1023 = vmatpush1.xpose.msra.mxu0 0.0
        %1024 = vmatprep.subr.mxu0 0.0
        %1025 = vmatpush1.xpose.msra.mxu0 0.0
        %1026 = vmatprep.subr.mxu0 0.0
        %1027 = vmatpush1.xpose.msra.mxu0 0.0
        %1028 = vmatprep.subr.mxu0 0.0
        %1029 = vmatpush1.xpose.msra.mxu0 0.0
        %1030 = vmatprep.subr.mxu0 0.0
        %1031 = vmatpush1.xpose.msra.mxu0 0.0
        %1032 = vmatprep.subr.mxu0 0.0
        %1033 = vmatpush1.xpose.msra.mxu0 0.0
        %1034 = vmatprep.subr.mxu0 0.0
        %1035 = vmatpush1.xpose.msra.mxu0 0.0
        %1036 = vmatprep.subr.mxu0 0.0
        %1037 = vmatpush1.xpose.msra.mxu0 0.0
        %1038 = vmatprep.subr.mxu0 0.0
        %1039 = vmatpush1.xpose.msra.mxu0 0.0
        %1040 = vmatprep.subr.mxu0 0.0
        %1041 = vmatpush1.xpose.msra.mxu0 0.0
        %1042 = vmatprep.subr.mxu0 0.0
        %1043 = vmatpush1.xpose.msra.mxu0 0.0
        %1044 = vmatprep.subr.mxu0 0.0
        %1045 = vmatpush1.xpose.msra.mxu0 0.0
        %1046 = vmatprep.subr.mxu0 0.0
        %1047 = vmatpush1.xpose.msra.mxu0 0.0
        %1048 = vmatprep.subr.mxu0 0.0
        %1049 = vmatpush1.xpose.msra.mxu0 0.0
        %1050 = vmatprep.subr.mxu0 0.0
        %1051 = vmatpush1.xpose.msra.mxu0 0.0
        %1052 = vmatprep.mubr.f32.mxu0 0.0
        %1053 = vmatmul.mubr.f32.gmra.mrb[0].mxu0 %v984
        %v1054 = vpop.f32.mrb[0].mxu0
        %v1055 = vadd.f32 0.0, %v1054
        %v1056 = vpop.f32.mrb[0].mxu0
        %1057 = vdwg.mxu0
        %v1058 = vsel %vm819, %v1055, -inf
        %1059 = vmax.xlane.f32.xlu0 %v1058
        %v1060 = vpop.xlane.xlu0 %1059
        %v1061 = vsub.f32 %v1055, %v1060
        %v1062 = vmul.f32 %v1061, 1.442695
        %v1063 = vpow.pop %v1062
        %v1064 = vsel %vm819, %v1063, 0.0
        %1065 = vadd.xlane.f32.xlu0 %v1064
        %v1066 = vpop.xlane.xlu0 %1065
        %v1067 = vrcp.pop %v1066
        %v1068 = vmul.f32 %v1063, %v1067
        %1070 = vrot.lane.b32.xlu0 %v720, 120
        %v1071 = vpop.permute.xlu0 %1070
        %v1074 = vsel %vm819, %v1068, 0
        %1076 = vmatprep.subr.mxu0 0.0
        %1077 = vmatpush1.msra.mxu0 %v1071
        %1078 = vmatprep.subr.mxu0 0.0
        %1079 = vmatpush1.msra.mxu0 0.0
        %1080 = vmatprep.subr.mxu0 0.0
        %1081 = vmatpush1.msra.mxu0 0.0
        %1082 = vmatprep.subr.mxu0 0.0
        %1083 = vmatpush1.msra.mxu0 0.0
        %1084 = vmatprep.subr.mxu0 0.0
        %1085 = vmatpush1.msra.mxu0 0.0
        %1086 = vmatprep.subr.mxu0 0.0
        %1087 = vmatpush1.msra.mxu0 0.0
        %1088 = vmatprep.subr.mxu0 0.0
        %1089 = vmatpush1.msra.mxu0 0.0
        %1090 = vmatprep.subr.mxu0 0.0
        %1091 = vmatpush1.msra.mxu0 0.0
        %1092 = vmatprep.subr.mxu0 0.0
        %1093 = vmatpush1.msra.mxu0 0.0
        %1094 = vmatprep.subr.mxu0 0.0
        %1095 = vmatpush1.msra.mxu0 0.0
        %1096 = vmatprep.subr.mxu0 0.0
        %1097 = vmatpush1.msra.mxu0 0.0
        %1098 = vmatprep.subr.mxu0 0.0
        %1099 = vmatpush1.msra.mxu0 0.0
        %1100 = vmatprep.subr.mxu0 0.0
        %1101 = vmatpush1.msra.mxu0 0.0
        %1102 = vmatprep.subr.mxu0 0.0
        %1103 = vmatpush1.msra.mxu0 0.0
        %1104 = vmatprep.subr.mxu0 0.0
        %1105 = vmatpush1.msra.mxu0 0.0
        %1106 = vmatprep.subr.mxu0 0.0
        %1107 = vmatpush1.msra.mxu0 0.0
        %1108 = vmatprep.subr.mxu0 0.0
        %1109 = vmatpush1.msra.mxu0 0.0
        %1110 = vmatprep.subr.mxu0 0.0
        %1111 = vmatpush1.msra.mxu0 0.0
        %1112 = vmatprep.subr.mxu0 0.0
        %1113 = vmatpush1.msra.mxu0 0.0
        %1114 = vmatprep.subr.mxu0 0.0
        %1115 = vmatpush1.msra.mxu0 0.0
        %1116 = vmatprep.subr.mxu0 0.0
        %1117 = vmatpush1.msra.mxu0 0.0
        %1118 = vmatprep.subr.mxu0 0.0
        %1119 = vmatpush1.msra.mxu0 0.0
        %1120 = vmatprep.subr.mxu0 0.0
        %1121 = vmatpush1.msra.mxu0 0.0
        %1122 = vmatprep.subr.mxu0 0.0
        %1123 = vmatpush1.msra.mxu0 0.0
        %1124 = vmatprep.subr.mxu0 0.0
        %1125 = vmatpush1.msra.mxu0 0.0
        %1126 = vmatprep.subr.mxu0 0.0
        %1127 = vmatpush1.msra.mxu0 0.0
        %1128 = vmatprep.subr.mxu0 0.0
        %1129 = vmatpush1.msra.mxu0 0.0
        %1130 = vmatprep.subr.mxu0 0.0
        %1131 = vmatpush1.msra.mxu0 0.0
        %1132 = vmatprep.subr.mxu0 0.0
        %1133 = vmatpush1.msra.mxu0 0.0
        %1134 = vmatprep.subr.mxu0 0.0
        %1135 = vmatpush1.msra.mxu0 0.0
        %1136 = vmatprep.subr.mxu0 0.0
        %1137 = vmatpush1.msra.mxu0 0.0
        %1138 = vmatprep.subr.mxu0 0.0
        %1139 = vmatpush1.msra.mxu0 0.0
        %1140 = vmatprep.mubr.f32.mxu0 0.0
        %1141 = vmatmul.mubr.f32.gmra.mrb[0].mxu0 %v1074
        %v1142 = vpop.f32.mrb[0].mxu0
        %v1143 = vadd.f32 0.0, %v1142
        %v1144 = vpop.f32.mrb[0].mxu0
        %1145 = vdwg.mxu0
        %v1147 = vsel %vm819, %v1143, 0
        %1149 = vmatprep.subr.mxu0 0.0
        %1150 = vmatpush1.msra.mxu0 %v729
        %1151 = vmatprep.subr.mxu0 0.0
        %1152 = vmatpush1.msra.mxu0 0.0
        %1153 = vmatprep.subr.mxu0 0.0
        %1154 = vmatpush1.msra.mxu0 0.0
        %1155 = vmatprep.subr.mxu0 0.0
        %1156 = vmatpush1.msra.mxu0 0.0
        %1157 = vmatprep.subr.mxu0 0.0
        %1158 = vmatpush1.msra.mxu0 0.0
        %1159 = vmatprep.subr.mxu0 0.0
        %1160 = vmatpush1.msra.mxu0 0.0
        %1161 = vmatprep.subr.mxu0 0.0
        %1162 = vmatpush1.msra.mxu0 0.0
        %1163 = vmatprep.subr.mxu0 0.0
        %1164 = vmatpush1.msra.mxu0 0.0
        %1165 = vmatprep.subr.mxu0 0.0
        %1166 = vmatpush1.msra.mxu0 0.0
        %1167 = vmatprep.subr.mxu0 0.0
        %1168 = vmatpush1.msra.mxu0 0.0
        %1169 = vmatprep.subr.mxu0 0.0
        %1170 = vmatpush1.msra.mxu0 0.0
        %1171 = vmatprep.subr.mxu0 0.0
        %1172 = vmatpush1.msra.mxu0 0.0
        %1173 = vmatprep.subr.mxu0 0.0
        %1174 = vmatpush1.msra.mxu0 0.0
        %1175 = vmatprep.subr.mxu0 0.0
        %1176 = vmatpush1.msra.mxu0 0.0
        %1177 = vmatprep.subr.mxu0 0.0
        %1178 = vmatpush1.msra.mxu0 0.0
        %1179 = vmatprep.subr.mxu0 0.0
        %1180 = vmatpush1.msra.mxu0 0.0
        %1181 = vmatprep.subr.mxu0 0.0
        %1182 = vmatpush1.msra.mxu0 0.0
        %1183 = vmatprep.subr.mxu0 0.0
        %1184 = vmatpush1.msra.mxu0 0.0
        %1185 = vmatprep.subr.mxu0 0.0
        %1186 = vmatpush1.msra.mxu0 0.0
        %1187 = vmatprep.subr.mxu0 0.0
        %1188 = vmatpush1.msra.mxu0 0.0
        %1189 = vmatprep.subr.mxu0 0.0
        %1190 = vmatpush1.msra.mxu0 0.0
        %1191 = vmatprep.subr.mxu0 0.0
        %1192 = vmatpush1.msra.mxu0 0.0
        %1193 = vmatprep.subr.mxu0 0.0
        %1194 = vmatpush1.msra.mxu0 0.0
        %1195 = vmatprep.subr.mxu0 0.0
        %1196 = vmatpush1.msra.mxu0 0.0
        %1197 = vmatprep.subr.mxu0 0.0
        %1198 = vmatpush1.msra.mxu0 0.0
        %1199 = vmatprep.subr.mxu0 0.0
        %1200 = vmatpush1.msra.mxu0 0.0
        %1201 = vmatprep.subr.mxu0 0.0
        %1202 = vmatpush1.msra.mxu0 0.0
        %1203 = vmatprep.subr.mxu0 0.0
        %1204 = vmatpush1.msra.mxu0 0.0
        %1205 = vmatprep.subr.mxu0 0.0
        %1206 = vmatpush1.msra.mxu0 0.0
        %1207 = vmatprep.subr.mxu0 0.0
        %1208 = vmatpush1.msra.mxu0 0.0
        %1209 = vmatprep.subr.mxu0 0.0
        %1210 = vmatpush1.msra.mxu0 0.0
        %1211 = vmatprep.subr.mxu0 0.0
        %1212 = vmatpush1.msra.mxu0 0.0
        %1213 = vmatprep.mubr.f32.mxu0 0.0
        %1214 = vmatmul.mubr.f32.gmra.mrb[0].mxu0 %v1147
        %v1215 = vpop.f32.mrb[0].mxu0
        %v1216 = vadd.f32 0.0, %v1215
        %v1217 = vpop.f32.mrb[0].mxu0
        %1218 = vdwg.mxu0
        %v1220 = vsel %vm819, %v977, 0
        %1222 = vmatprep.subr.mxu0 0.0
        %1223 = vmatpush1.msra.mxu0 %v728
        %1224 = vmatprep.subr.mxu0 0.0
        %1225 = vmatpush1.msra.mxu0 0.0
        %1226 = vmatprep.subr.mxu0 0.0
        %1227 = vmatpush1.msra.mxu0 0.0
        %1228 = vmatprep.subr.mxu0 0.0
        %1229 = vmatpush1.msra.mxu0 0.0
        %1230 = vmatprep.subr.mxu0 0.0
        %1231 = vmatpush1.msra.mxu0 0.0
        %1232 = vmatprep.subr.mxu0 0.0
        %1233 = vmatpush1.msra.mxu0 0.0
        %1234 = vmatprep.subr.mxu0 0.0
        %1235 = vmatpush1.msra.mxu0 0.0
        %1236 = vmatprep.subr.mxu0 0.0
        %1237 = vmatpush1.msra.mxu0 0.0
        %1238 = vmatprep.subr.mxu0 0.0
        %1239 = vmatpush1.msra.mxu0 0.0
        %1240 = vmatprep.subr.mxu0 0.0
        %1241 = vmatpush1.msra.mxu0 0.0
        %1242 = vmatprep.subr.mxu0 0.0
        %1243 = vmatpush1.msra.mxu0 0.0
        %1244 = vmatprep.subr.mxu0 0.0
        %1245 = vmatpush1.msra.mxu0 0.0
        %1246 = vmatprep.subr.mxu0 0.0
        %1247 = vmatpush1.msra.mxu0 0.0
        %1248 = vmatprep.subr.mxu0 0.0
        %1249 = vmatpush1.msra.mxu0 0.0
        %1250 = vmatprep.subr.mxu0 0.0
        %1251 = vmatpush1.msra.mxu0 0.0
        %1252 = vmatprep.subr.mxu0 0.0
        %1253 = vmatpush1.msra.mxu0 0.0
        %1254 = vmatprep.subr.mxu0 0.0
        %1255 = vmatpush1.msra.mxu0 0.0
        %1256 = vmatprep.subr.mxu0 0.0
        %1257 = vmatpush1.msra.mxu0 0.0
        %1258 = vmatprep.subr.mxu0 0.0
        %1259 = vmatpush1.msra.mxu0 0.0
        %1260 = vmatprep.subr.mxu0 0.0
        %1261 = vmatpush1.msra.mxu0 0.0
        %1262 = vmatprep.subr.mxu0 0.0
        %1263 = vmatpush1.msra.mxu0 0.0
        %1264 = vmatprep.subr.mxu0 0.0
        %1265 = vmatpush1.msra.mxu0 0.0
        %1266 = vmatprep.subr.mxu0 0.0
        %1267 = vmatpush1.msra.mxu0 0.0
        %1268 = vmatprep.subr.mxu0 0.0
        %1269 = vmatpush1.msra.mxu0 0.0
        %1270 = vmatprep.subr.mxu0 0.0
        %1271 = vmatpush1.msra.mxu0 0.0
        %1272 = vmatprep.subr.mxu0 0.0
        %1273 = vmatpush1.msra.mxu0 0.0
        %1274 = vmatprep.subr.mxu0 0.0
        %1275 = vmatpush1.msra.mxu0 0.0
        %1276 = vmatprep.subr.mxu0 0.0
        %1277 = vmatpush1.msra.mxu0 0.0
        %1278 = vmatprep.subr.mxu0 0.0
        %1279 = vmatpush1.msra.mxu0 0.0
        %1280 = vmatprep.subr.mxu0 0.0
        %1281 = vmatpush1.msra.mxu0 0.0
        %1282 = vmatprep.subr.mxu0 0.0
        %1283 = vmatpush1.msra.mxu0 0.0
        %1284 = vmatprep.subr.mxu0 0.0
        %1285 = vmatpush1.msra.mxu0 0.0
        %1286 = vmatprep.mubr.f32.mxu0 0.0
        %1287 = vmatmul.mubr.f32.gmra.mrb[0].mxu0 %v1220
        %v1288 = vpop.f32.mrb[0].mxu0
        %v1289 = vadd.f32 %v1216, %v1288
        %v1290 = vpop.f32.mrb[0].mxu0
        %1291 = vdwg.mxu0
        %1292 = vrot.lane.b32.xlu0 %v811, 112
        %v1293 = vpop.permute.xlu0 %1292
        %1294 = vrot.lane.b32.xlu0 %v641, 112
        %v1295 = vpop.permute.xlu0 %1294
        %v1296 = vsel %vm819, %v1293, 0
        %v1298 = vsel %vm819, %v1295, 0
        %1300 = vmatprep.subr.mxu0 0.0
        %1301 = vmatpush1.xpose.msra.mxu0 %v1298
        %1302 = vmatprep.subr.mxu0 0.0
        %1303 = vmatpush1.xpose.msra.mxu0 0.0
        %1304 = vmatprep.subr.mxu0 0.0
        %1305 = vmatpush1.xpose.msra.mxu0 0.0
        %1306 = vmatprep.subr.mxu0 0.0
        %1307 = vmatpush1.xpose.msra.mxu0 0.0
        %1308 = vmatprep.subr.mxu0 0.0
        %1309 = vmatpush1.xpose.msra.mxu0 0.0
        %1310 = vmatprep.subr.mxu0 0.0
        %1311 = vmatpush1.xpose.msra.mxu0 0.0
        %1312 = vmatprep.subr.mxu0 0.0
        %1313 = vmatpush1.xpose.msra.mxu0 0.0
        %1314 = vmatprep.subr.mxu0 0.0
        %1315 = vmatpush1.xpose.msra.mxu0 0.0
        %1316 = vmatprep.subr.mxu0 0.0
        %1317 = vmatpush1.xpose.msra.mxu0 0.0
        %1318 = vmatprep.subr.mxu0 0.0
        %1319 = vmatpush1.xpose.msra.mxu0 0.0
        %1320 = vmatprep.subr.mxu0 0.0
        %1321 = vmatpush1.xpose.msra.mxu0 0.0
        %1322 = vmatprep.subr.mxu0 0.0
        %1323 = vmatpush1.xpose.msra.mxu0 0.0
        %1324 = vmatprep.subr.mxu0 0.0
        %1325 = vmatpush1.xpose.msra.mxu0 0.0
        %1326 = vmatprep.subr.mxu0 0.0
        %1327 = vmatpush1.xpose.msra.mxu0 0.0
        %1328 = vmatprep.subr.mxu0 0.0
        %1329 = vmatpush1.xpose.msra.mxu0 0.0
        %1330 = vmatprep.subr.mxu0 0.0
        %1331 = vmatpush1.xpose.msra.mxu0 0.0
        %1332 = vmatprep.subr.mxu0 0.0
        %1333 = vmatpush1.xpose.msra.mxu0 0.0
        %1334 = vmatprep.subr.mxu0 0.0
        %1335 = vmatpush1.xpose.msra.mxu0 0.0
        %1336 = vmatprep.subr.mxu0 0.0
        %1337 = vmatpush1.xpose.msra.mxu0 0.0
        %1338 = vmatprep.subr.mxu0 0.0
        %1339 = vmatpush1.xpose.msra.mxu0 0.0
        %1340 = vmatprep.subr.mxu0 0.0
        %1341 = vmatpush1.xpose.msra.mxu0 0.0
        %1342 = vmatprep.subr.mxu0 0.0
        %1343 = vmatpush1.xpose.msra.mxu0 0.0
        %1344 = vmatprep.subr.mxu0 0.0
        %1345 = vmatpush1.xpose.msra.mxu0 0.0
        %1346 = vmatprep.subr.mxu0 0.0
        %1347 = vmatpush1.xpose.msra.mxu0 0.0
        %1348 = vmatprep.subr.mxu0 0.0
        %1349 = vmatpush1.xpose.msra.mxu0 0.0
        %1350 = vmatprep.subr.mxu0 0.0
        %1351 = vmatpush1.xpose.msra.mxu0 0.0
        %1352 = vmatprep.subr.mxu0 0.0
        %1353 = vmatpush1.xpose.msra.mxu0 0.0
        %1354 = vmatprep.subr.mxu0 0.0
        %1355 = vmatpush1.xpose.msra.mxu0 0.0
        %1356 = vmatprep.subr.mxu0 0.0
        %1357 = vmatpush1.xpose.msra.mxu0 0.0
        %1358 = vmatprep.subr.mxu0 0.0
        %1359 = vmatpush1.xpose.msra.mxu0 0.0
        %1360 = vmatprep.subr.mxu0 0.0
        %1361 = vmatpush1.xpose.msra.mxu0 0.0
        %1362 = vmatprep.subr.mxu0 0.0
        %1363 = vmatpush1.xpose.msra.mxu0 0.0
        %1364 = vmatprep.mubr.f32.mxu0 0.0
        %1365 = vmatmul.mubr.f32.gmra.mrb[0].mxu0 %v1296
        %v1366 = vpop.f32.mrb[0].mxu0
        %v1367 = vadd.f32 0.0, %v1366
        %v1368 = vpop.f32.mrb[0].mxu0
        %1369 = vdwg.mxu0
        %v1370 = vsel %vm819, %v1367, -inf
        %1371 = vmax.xlane.f32.xlu0 %v1370
        %v1372 = vpop.xlane.xlu0 %1371
        %v1373 = vsub.f32 %v1367, %v1372
        %v1374 = vmul.f32 %v1373, 1.442695
        %v1375 = vpow.pop %v1374
        %v1376 = vsel %vm819, %v1375, 0.0
        %1377 = vadd.xlane.f32.xlu0 %v1376
        %v1378 = vpop.xlane.xlu0 %1377
        %v1379 = vrcp.pop %v1378
        %v1380 = vmul.f32 %v1375, %v1379
        %1381 = vrot.lane.b32.xlu0 %v720, 112
        %v1382 = vpop.permute.xlu0 %1381
        %v1385 = vsel %vm819, %v1380, 0
        %1387 = vmatprep.subr.mxu0 0.0
        %1388 = vmatpush1.msra.mxu0 %v1382
        %1389 = vmatprep.subr.mxu0 0.0
        %1390 = vmatpush1.msra.mxu0 0.0
        %1391 = vmatprep.subr.mxu0 0.0
        %1392 = vmatpush1.msra.mxu0 0.0
        %1393 = vmatprep.subr.mxu0 0.0
        %1394 = vmatpush1.msra.mxu0 0.0
        %1395 = vmatprep.subr.mxu0 0.0
        %1396 = vmatpush1.msra.mxu0 0.0
        %1397 = vmatprep.subr.mxu0 0.0
        %1398 = vmatpush1.msra.mxu0 0.0
        %1399 = vmatprep.subr.mxu0 0.0
        %1400 = vmatpush1.msra.mxu0 0.0
        %1401 = vmatprep.subr.mxu0 0.0
        %1402 = vmatpush1.msra.mxu0 0.0
        %1403 = vmatprep.subr.mxu0 0.0
        %1404 = vmatpush1.msra.mxu0 0.0
        %1405 = vmatprep.subr.mxu0 0.0
        %1406 = vmatpush1.msra.mxu0 0.0
        %1407 = vmatprep.subr.mxu0 0.0
        %1408 = vmatpush1.msra.mxu0 0.0
        %1409 = vmatprep.subr.mxu0 0.0
        %1410 = vmatpush1.msra.mxu0 0.0
        %1411 = vmatprep.subr.mxu0 0.0
        %1412 = vmatpush1.msra.mxu0 0.0
        %1413 = vmatprep.subr.mxu0 0.0
        %1414 = vmatpush1.msra.mxu0 0.0
        %1415 = vmatprep.subr.mxu0 0.0
        %1416 = vmatpush1.msra.mxu0 0.0
        %1417 = vmatprep.subr.mxu0 0.0
        %1418 = vmatpush1.msra.mxu0 0.0
        %1419 = vmatprep.subr.mxu0 0.0
        %1420 = vmatpush1.msra.mxu0 0.0
        %1421 = vmatprep.subr.mxu0 0.0
        %1422 = vmatpush1.msra.mxu0 0.0
        %1423 = vmatprep.subr.mxu0 0.0
        %1424 = vmatpush1.msra.mxu0 0.0
        %1425 = vmatprep.subr.mxu0 0.0
        %1426 = vmatpush1.msra.mxu0 0.0
        %1427 = vmatprep.subr.mxu0 0.0
        %1428 = vmatpush1.msra.mxu0 0.0
        %1429 = vmatprep.subr.mxu0 0.0
        %1430 = vmatpush1.msra.mxu0 0.0
        %1431 = vmatprep.subr.mxu0 0.0
        %1432 = vmatpush1.msra.mxu0 0.0
        %1433 = vmatprep.subr.mxu0 0.0
        %1434 = vmatpush1.msra.mxu0 0.0
        %1435 = vmatprep.subr.mxu0 0.0
        %1436 = vmatpush1.msra.mxu0 0.0
        %1437 = vmatprep.subr.mxu0 0.0
        %1438 = vmatpush1.msra.mxu0 0.0
        %1439 = vmatprep.subr.mxu0 0.0
        %1440 = vmatpush1.msra.mxu0 0.0
        %1441 = vmatprep.subr.mxu0 0.0
        %1442 = vmatpush1.msra.mxu0 0.0
        %1443 = vmatprep.subr.mxu0 0.0
        %1444 = vmatpush1.msra.mxu0 0.0
        %1445 = vmatprep.subr.mxu0 0.0
        %1446 = vmatpush1.msra.mxu0 0.0
        %1447 = vmatprep.subr.mxu0 0.0
        %1448 = vmatpush1.msra.mxu0 0.0
        %1449 = vmatprep.subr.mxu0 0.0
        %1450 = vmatpush1.msra.mxu0 0.0
        %1451 = vmatprep.mubr.f32.mxu0 0.0
        %1452 = vmatmul.mubr.f32.gmra.mrb[0].mxu0 %v1385
        %v1453 = vpop.f32.mrb[0].mxu0
        %v1454 = vadd.f32 0.0, %v1453
        %v1455 = vpop.f32.mrb[0].mxu0
        %1456 = vdwg.mxu0
        %v1458 = vsel %vm819, %v1454, 0
        %1460 = vmatprep.subr.mxu0 0.0
        %1461 = vmatpush1.msra.mxu0 %v730
        %1462 = vmatprep.subr.mxu0 0.0
        %1463 = vmatpush1.msra.mxu0 0.0
        %1464 = vmatprep.subr.mxu0 0.0
        %1465 = vmatpush1.msra.mxu0 0.0
        %1466 = vmatprep.subr.mxu0 0.0
        %1467 = vmatpush1.msra.mxu0 0.0
        %1468 = vmatprep.subr.mxu0 0.0
        %1469 = vmatpush1.msra.mxu0 0.0
        %1470 = vmatprep.subr.mxu0 0.0
        %1471 = vmatpush1.msra.mxu0 0.0
        %1472 = vmatprep.subr.mxu0 0.0
        %1473 = vmatpush1.msra.mxu0 0.0
        %1474 = vmatprep.subr.mxu0 0.0
        %1475 = vmatpush1.msra.mxu0 0.0
        %1476 = vmatprep.subr.mxu0 0.0
        %1477 = vmatpush1.msra.mxu0 0.0
        %1478 = vmatprep.subr.mxu0 0.0
        %1479 = vmatpush1.msra.mxu0 0.0
        %1480 = vmatprep.subr.mxu0 0.0
        %1481 = vmatpush1.msra.mxu0 0.0
        %1482 = vmatprep.subr.mxu0 0.0
        %1483 = vmatpush1.msra.mxu0 0.0
        %1484 = vmatprep.subr.mxu0 0.0
        %1485 = vmatpush1.msra.mxu0 0.0
        %1486 = vmatprep.subr.mxu0 0.0
        %1487 = vmatpush1.msra.mxu0 0.0
        %1488 = vmatprep.subr.mxu0 0.0
        %1489 = vmatpush1.msra.mxu0 0.0
        %1490 = vmatprep.subr.mxu0 0.0
        %1491 = vmatpush1.msra.mxu0 0.0
        %1492 = vmatprep.subr.mxu0 0.0
        %1493 = vmatpush1.msra.mxu0 0.0
        %1494 = vmatprep.subr.mxu0 0.0
        %1495 = vmatpush1.msra.mxu0 0.0
        %1496 = vmatprep.subr.mxu0 0.0
        %1497 = vmatpush1.msra.mxu0 0.0
        %1498 = vmatprep.subr.mxu0 0.0
        %1499 = vmatpush1.msra.mxu0 0.0
        %1500 = vmatprep.subr.mxu0 0.0
        %1501 = vmatpush1.msra.mxu0 0.0
        %1502 = vmatprep.subr.mxu0 0.0
        %1503 = vmatpush1.msra.mxu0 0.0
        %1504 = vmatprep.subr.mxu0 0.0
        %1505 = vmatpush1.msra.mxu0 0.0
        %1506 = vmatprep.subr.mxu0 0.0
        %1507 = vmatpush1.msra.mxu0 0.0
        %1508 = vmatprep.subr.mxu0 0.0
        %1509 = vmatpush1.msra.mxu0 0.0
        %1510 = vmatprep.subr.mxu0 0.0
        %1511 = vmatpush1.msra.mxu0 0.0
        %1512 = vmatprep.subr.mxu0 0.0
        %1513 = vmatpush1.msra.mxu0 0.0
        %1514 = vmatprep.subr.mxu0 0.0
        %1515 = vmatpush1.msra.mxu0 0.0
        %1516 = vmatprep.subr.mxu0 0.0
        %1517 = vmatpush1.msra.mxu0 0.0
        %1518 = vmatprep.subr.mxu0 0.0
        %1519 = vmatpush1.msra.mxu0 0.0
        %1520 = vmatprep.subr.mxu0 0.0
        %1521 = vmatpush1.msra.mxu0 0.0
        %1522 = vmatprep.subr.mxu0 0.0
        %1523 = vmatpush1.msra.mxu0 0.0
        %1524 = vmatprep.mubr.f32.mxu0 0.0
        %1525 = vmatmul.mubr.f32.gmra.mrb[0].mxu0 %v1458
        %v1526 = vpop.f32.mrb[0].mxu0
        %v1527 = vadd.f32 0.0, %v1526
        %v1528 = vpop.f32.mrb[0].mxu0
        %1529 = vdwg.mxu0
        %v1530 = vadd.f32 %v1289, %v1527
        %1531 = vrot.lane.b32.xlu0 %v811, 104
        %v1532 = vpop.permute.xlu0 %1531
        %1533 = vrot.lane.b32.xlu0 %v641, 104
        %v1534 = vpop.permute.xlu0 %1533
        %v1535 = vsel %vm819, %v1532, 0
        %v1537 = vsel %vm819, %v1534, 0
        %1539 = vmatprep.subr.mxu0 0.0
        %1540 = vmatpush1.xpose.msra.mxu0 %v1537
        %1541 = vmatprep.subr.mxu0 0.0
        %1542 = vmatpush1.xpose.msra.mxu0 0.0
        %1543 = vmatprep.subr.mxu0 0.0
        %1544 = vmatpush1.xpose.msra.mxu0 0.0
        %1545 = vmatprep.subr.mxu0 0.0
        %1546 = vmatpush1.xpose.msra.mxu0 0.0
        %1547 = vmatprep.subr.mxu0 0.0
        %1548 = vmatpush1.xpose.msra.mxu0 0.0
        %1549 = vmatprep.subr.mxu0 0.0
        %1550 = vmatpush1.xpose.msra.mxu0 0.0
        %1551 = vmatprep.subr.mxu0 0.0
        %1552 = vmatpush1.xpose.msra.mxu0 0.0
        %1553 = vmatprep.subr.mxu0 0.0
        %1554 = vmatpush1.xpose.msra.mxu0 0.0
        %1555 = vmatprep.subr.mxu0 0.0
        %1556 = vmatpush1.xpose.msra.mxu0 0.0
        %1557 = vmatprep.subr.mxu0 0.0
        %1558 = vmatpush1.xpose.msra.mxu0 0.0
        %1559 = vmatprep.subr.mxu0 0.0
        %1560 = vmatpush1.xpose.msra.mxu0 0.0
        %1561 = vmatprep.subr.mxu0 0.0
        %1562 = vmatpush1.xpose.msra.mxu0 0.0
        %1563 = vmatprep.subr.mxu0 0.0
        %1564 = vmatpush1.xpose.msra.mxu0 0.0
        %1565 = vmatprep.subr.mxu0 0.0
        %1566 = vmatpush1.xpose.msra.mxu0 0.0
        %1567 = vmatprep.subr.mxu0 0.0
        %1568 = vmatpush1.xpose.msra.mxu0 0.0
        %1569 = vmatprep.subr.mxu0 0.0
        %1570 = vmatpush1.xpose.msra.mxu0 0.0
        %1571 = vmatprep.subr.mxu0 0.0
        %1572 = vmatpush1.xpose.msra.mxu0 0.0
        %1573 = vmatprep.subr.mxu0 0.0
        %1574 = vmatpush1.xpose.msra.mxu0 0.0
        %1575 = vmatprep.subr.mxu0 0.0
        %1576 = vmatpush1.xpose.msra.mxu0 0.0
        %1577 = vmatprep.subr.mxu0 0.0
        %1578 = vmatpush1.xpose.msra.mxu0 0.0
        %1579 = vmatprep.subr.mxu0 0.0
        %1580 = vmatpush1.xpose.msra.mxu0 0.0
        %1581 = vmatprep.subr.mxu0 0.0
        %1582 = vmatpush1.xpose.msra.mxu0 0.0
        %1583 = vmatprep.subr.mxu0 0.0
        %1584 = vmatpush1.xpose.msra.mxu0 0.0
        %1585 = vmatprep.subr.mxu0 0.0
        %1586 = vmatpush1.xpose.msra.mxu0 0.0
        %1587 = vmatprep.subr.mxu0 0.0
        %1588 = vmatpush1.xpose.msra.mxu0 0.0
        %1589 = vmatprep.subr.mxu0 0.0
        %1590 = vmatpush1.xpose.msra.mxu0 0.0
        %1591 = vmatprep.subr.mxu0 0.0
        %1592 = vmatpush1.xpose.msra.mxu0 0.0
        %1593 = vmatprep.subr.mxu0 0.0
        %1594 = vmatpush1.xpose.msra.mxu0 0.0
        %1595 = vmatprep.subr.mxu0 0.0
        %1596 = vmatpush1.xpose.msra.mxu0 0.0
        %1597 = vmatprep.subr.mxu0 0.0
        %1598 = vmatpush1.xpose.msra.mxu0 0.0
        %1599 = vmatprep.subr.mxu0 0.0
        %1600 = vmatpush1.xpose.msra.mxu0 0.0
        %1601 = vmatprep.subr.mxu0 0.0
        %1602 = vmatpush1.xpose.msra.mxu0 0.0
        %1603 = vmatprep.mubr.f32.mxu0 0.0
        %1604 = vmatmul.mubr.f32.gmra.mrb[0].mxu0 %v1535
        %v1605 = vpop.f32.mrb[0].mxu0
        %v1606 = vadd.f32 0.0, %v1605
        %v1607 = vpop.f32.mrb[0].mxu0
        %1608 = vdwg.mxu0
        %v1609 = vsel %vm819, %v1606, -inf
        %1610 = vmax.xlane.f32.xlu0 %v1609
        %v1611 = vpop.xlane.xlu0 %1610
        %v1612 = vsub.f32 %v1606, %v1611
        %v1613 = vmul.f32 %v1612, 1.442695
        %v1614 = vpow.pop %v1613
        %v1615 = vsel %vm819, %v1614, 0.0
        %1616 = vadd.xlane.f32.xlu0 %v1615
        %v1617 = vpop.xlane.xlu0 %1616
        %v1618 = vrcp.pop %v1617
        %v1619 = vmul.f32 %v1614, %v1618
        %1620 = vrot.lane.b32.xlu0 %v720, 104
        %v1621 = vpop.permute.xlu0 %1620
        %v1624 = vsel %vm819, %v1619, 0
        %1626 = vmatprep.subr.mxu0 0.0
        %1627 = vmatpush1.msra.mxu0 %v1621
        %1628 = vmatprep.subr.mxu0 0.0
        %1629 = vmatpush1.msra.mxu0 0.0
        %1630 = vmatprep.subr.mxu0 0.0
        %1631 = vmatpush1.msra.mxu0 0.0
        %1632 = vmatprep.subr.mxu0 0.0
        %1633 = vmatpush1.msra.mxu0 0.0
        %1634 = vmatprep.subr.mxu0 0.0
        %1635 = vmatpush1.msra.mxu0 0.0
        %1636 = vmatprep.subr.mxu0 0.0
        %1637 = vmatpush1.msra.mxu0 0.0
        %1638 = vmatprep.subr.mxu0 0.0
        %1639 = vmatpush1.msra.mxu0 0.0
        %1640 = vmatprep.subr.mxu0 0.0
        %1641 = vmatpush1.msra.mxu0 0.0
        %1642 = vmatprep.subr.mxu0 0.0
        %1643 = vmatpush1.msra.mxu0 0.0
        %1644 = vmatprep.subr.mxu0 0.0
        %1645 = vmatpush1.msra.mxu0 0.0
        %1646 = vmatprep.subr.mxu0 0.0
        %1647 = vmatpush1.msra.mxu0 0.0
        %1648 = vmatprep.subr.mxu0 0.0
        %1649 = vmatpush1.msra.mxu0 0.0
        %1650 = vmatprep.subr.mxu0 0.0
        %1651 = vmatpush1.msra.mxu0 0.0
        %1652 = vmatprep.subr.mxu0 0.0
        %1653 = vmatpush1.msra.mxu0 0.0
        %1654 = vmatprep.subr.mxu0 0.0
        %1655 = vmatpush1.msra.mxu0 0.0
        %1656 = vmatprep.subr.mxu0 0.0
        %1657 = vmatpush1.msra.mxu0 0.0
        %1658 = vmatprep.subr.mxu0 0.0
        %1659 = vmatpush1.msra.mxu0 0.0
        %1660 = vmatprep.subr.mxu0 0.0
        %1661 = vmatpush1.msra.mxu0 0.0
        %1662 = vmatprep.subr.mxu0 0.0
        %1663 = vmatpush1.msra.mxu0 0.0
        %1664 = vmatprep.subr.mxu0 0.0
        %1665 = vmatpush1.msra.mxu0 0.0
        %1666 = vmatprep.subr.mxu0 0.0
        %1667 = vmatpush1.msra.mxu0 0.0
        %1668 = vmatprep.subr.mxu0 0.0
        %1669 = vmatpush1.msra.mxu0 0.0
        %1670 = vmatprep.subr.mxu0 0.0
        %1671 = vmatpush1.msra.mxu0 0.0
        %1672 = vmatprep.subr.mxu0 0.0
        %1673 = vmatpush1.msra.mxu0 0.0
        %1674 = vmatprep.subr.mxu0 0.0
        %1675 = vmatpush1.msra.mxu0 0.0
        %1676 = vmatprep.subr.mxu0 0.0
        %1677 = vmatpush1.msra.mxu0 0.0
        %1678 = vmatprep.subr.mxu0 0.0
        %1679 = vmatpush1.msra.mxu0 0.0
        %1680 = vmatprep.subr.mxu0 0.0
        %1681 = vmatpush1.msra.mxu0 0.0
        %1682 = vmatprep.subr.mxu0 0.0
        %1683 = vmatpush1.msra.mxu0 0.0
        %1684 = vmatprep.subr.mxu0 0.0
        %1685 = vmatpush1.msra.mxu0 0.0
        %1686 = vmatprep.subr.mxu0 0.0
        %1687 = vmatpush1.msra.mxu0 0.0
        %1688 = vmatprep.subr.mxu0 0.0
        %1689 = vmatpush1.msra.mxu0 0.0
        %1690 = vmatprep.mubr.f32.mxu0 0.0
        %1691 = vmatmul.mubr.f32.gmra.mrb[0].mxu0 %v1624
        %v1692 = vpop.f32.mrb[0].mxu0
        %v1693 = vadd.f32 0.0, %v1692
        %v1694 = vpop.f32.mrb[0].mxu0
        %1695 = vdwg.mxu0
        %v1697 = vsel %vm819, %v1693, 0
        %1699 = vmatprep.subr.mxu0 0.0
        %1700 = vmatpush1.msra.mxu0 %v731
        %1701 = vmatprep.subr.mxu0 0.0
        %1702 = vmatpush1.msra.mxu0 0.0
        %1703 = vmatprep.subr.mxu0 0.0
        %1704 = vmatpush1.msra.mxu0 0.0
        %1705 = vmatprep.subr.mxu0 0.0
        %1706 = vmatpush1.msra.mxu0 0.0
        %1707 = vmatprep.subr.mxu0 0.0
        %1708 = vmatpush1.msra.mxu0 0.0
        %1709 = vmatprep.subr.mxu0 0.0
        %1710 = vmatpush1.msra.mxu0 0.0
        %1711 = vmatprep.subr.mxu0 0.0
        %1712 = vmatpush1.msra.mxu0 0.0
        %1713 = vmatprep.subr.mxu0 0.0
        %1714 = vmatpush1.msra.mxu0 0.0
        %1715 = vmatprep.subr.mxu0 0.0
        %1716 = vmatpush1.msra.mxu0 0.0
        %1717 = vmatprep.subr.mxu0 0.0
        %1718 = vmatpush1.msra.mxu0 0.0
        %1719 = vmatprep.subr.mxu0 0.0
        %1720 = vmatpush1.msra.mxu0 0.0
        %1721 = vmatprep.subr.mxu0 0.0
        %1722 = vmatpush1.msra.mxu0 0.0
        %1723 = vmatprep.subr.mxu0 0.0
        %1724 = vmatpush1.msra.mxu0 0.0
        %1725 = vmatprep.subr.mxu0 0.0
        %1726 = vmatpush1.msra.mxu0 0.0
        %1727 = vmatprep.subr.mxu0 0.0
        %1728 = vmatpush1.msra.mxu0 0.0
        %1729 = vmatprep.subr.mxu0 0.0
        %1730 = vmatpush1.msra.mxu0 0.0
        %1731 = vmatprep.subr.mxu0 0.0
        %1732 = vmatpush1.msra.mxu0 0.0
        %1733 = vmatprep.subr.mxu0 0.0
        %1734 = vmatpush1.msra.mxu0 0.0
        %1735 = vmatprep.subr.mxu0 0.0
        %1736 = vmatpush1.msra.mxu0 0.0
        %1737 = vmatprep.subr.mxu0 0.0
        %1738 = vmatpush1.msra.mxu0 0.0
        %1739 = vmatprep.subr.mxu0 0.0
        %1740 = vmatpush1.msra.mxu0 0.0
        %1741 = vmatprep.subr.mxu0 0.0
        %1742 = vmatpush1.msra.mxu0 0.0
        %1743 = vmatprep.subr.mxu0 0.0
        %1744 = vmatpush1.msra.mxu0 0.0
        %1745 = vmatprep.subr.mxu0 0.0
        %1746 = vmatpush1.msra.mxu0 0.0
        %1747 = vmatprep.subr.mxu0 0.0
        %1748 = vmatpush1.msra.mxu0 0.0
        %1749 = vmatprep.subr.mxu0 0.0
        %1750 = vmatpush1.msra.mxu0 0.0
        %1751 = vmatprep.subr.mxu0 0.0
        %1752 = vmatpush1.msra.mxu0 0.0
        %1753 = vmatprep.subr.mxu0 0.0
        %1754 = vmatpush1.msra.mxu0 0.0
        %1755 = vmatprep.subr.mxu0 0.0
        %1756 = vmatpush1.msra.mxu0 0.0
        %1757 = vmatprep.subr.mxu0 0.0
        %1758 = vmatpush1.msra.mxu0 0.0
        %1759 = vmatprep.subr.mxu0 0.0
        %1760 = vmatpush1.msra.mxu0 0.0
        %1761 = vmatprep.subr.mxu0 0.0
        %1762 = vmatpush1.msra.mxu0 0.0
        %1763 = vmatprep.mubr.f32.mxu0 0.0
        %1764 = vmatmul.mubr.f32.gmra.mrb[0].mxu0 %v1697
        %v1765 = vpop.f32.mrb[0].mxu0
        %v1766 = vadd.f32 0.0, %v1765
        %v1767 = vpop.f32.mrb[0].mxu0
        %1768 = vdwg.mxu0
        %v1769 = vadd.f32 %v1530, %v1766
        %v1771 = vsel %vm819, %v816, 0
        %v1774 = vsel %vm819, %v646, 0
        %1776 = vmatprep.subr.mxu0 0.0
        %1777 = vmatpush1.xpose.msra.mxu0 %v1774
        %1778 = vmatprep.subr.mxu0 0.0
        %1779 = vmatpush1.xpose.msra.mxu0 0.0
        %1780 = vmatprep.subr.mxu0 0.0
        %1781 = vmatpush1.xpose.msra.mxu0 0.0
        %1782 = vmatprep.subr.mxu0 0.0
        %1783 = vmatpush1.xpose.msra.mxu0 0.0
        %1784 = vmatprep.subr.mxu0 0.0
        %1785 = vmatpush1.xpose.msra.mxu0 0.0
        %1786 = vmatprep.subr.mxu0 0.0
        %1787 = vmatpush1.xpose.msra.mxu0 0.0
        %1788 = vmatprep.subr.mxu0 0.0
        %1789 = vmatpush1.xpose.msra.mxu0 0.0
        %1790 = vmatprep.subr.mxu0 0.0
        %1791 = vmatpush1.xpose.msra.mxu0 0.0
        %1792 = vmatprep.subr.mxu0 0.0
        %1793 = vmatpush1.xpose.msra.mxu0 0.0
        %1794 = vmatprep.subr.mxu0 0.0
        %1795 = vmatpush1.xpose.msra.mxu0 0.0
        %1796 = vmatprep.subr.mxu0 0.0
        %1797 = vmatpush1.xpose.msra.mxu0 0.0
        %1798 = vmatprep.subr.mxu0 0.0
        %1799 = vmatpush1.xpose.msra.mxu0 0.0
        %1800 = vmatprep.subr.mxu0 0.0
        %1801 = vmatpush1.xpose.msra.mxu0 0.0
        %1802 = vmatprep.subr.mxu0 0.0
        %1803 = vmatpush1.xpose.msra.mxu0 0.0
        %1804 = vmatprep.subr.mxu0 0.0
        %1805 = vmatpush1.xpose.msra.mxu0 0.0
        %1806 = vmatprep.subr.mxu0 0.0
        %1807 = vmatpush1.xpose.msra.mxu0 0.0
        %1808 = vmatprep.subr.mxu0 0.0
        %1809 = vmatpush1.xpose.msra.mxu0 0.0
        %1810 = vmatprep.subr.mxu0 0.0
        %1811 = vmatpush1.xpose.msra.mxu0 0.0
        %1812 = vmatprep.subr.mxu0 0.0
        %1813 = vmatpush1.xpose.msra.mxu0 0.0
        %1814 = vmatprep.subr.mxu0 0.0
        %1815 = vmatpush1.xpose.msra.mxu0 0.0
        %1816 = vmatprep.subr.mxu0 0.0
        %1817 = vmatpush1.xpose.msra.mxu0 0.0
        %1818 = vmatprep.subr.mxu0 0.0
        %1819 = vmatpush1.xpose.msra.mxu0 0.0
        %1820 = vmatprep.subr.mxu0 0.0
        %1821 = vmatpush1.xpose.msra.mxu0 0.0
        %1822 = vmatprep.subr.mxu0 0.0
        %1823 = vmatpush1.xpose.msra.mxu0 0.0
        %1824 = vmatprep.subr.mxu0 0.0
        %1825 = vmatpush1.xpose.msra.mxu0 0.0
        %1826 = vmatprep.subr.mxu0 0.0
        %1827 = vmatpush1.xpose.msra.mxu0 0.0
        %1828 = vmatprep.subr.mxu0 0.0
        %1829 = vmatpush1.xpose.msra.mxu0 0.0
        %1830 = vmatprep.subr.mxu0 0.0
        %1831 = vmatpush1.xpose.msra.mxu0 0.0
        %1832 = vmatprep.subr.mxu0 0.0
        %1833 = vmatpush1.xpose.msra.mxu0 0.0
        %1834 = vmatprep.subr.mxu0 0.0
        %1835 = vmatpush1.xpose.msra.mxu0 0.0
        %1836 = vmatprep.subr.mxu0 0.0
        %1837 = vmatpush1.xpose.msra.mxu0 0.0
        %1838 = vmatprep.subr.mxu0 0.0
        %1839 = vmatpush1.xpose.msra.mxu0 0.0
        %1840 = vmatprep.mubr.f32.mxu0 0.0
        %1841 = vmatmul.mubr.f32.gmra.mrb[0].mxu0 %v1771
        %v1842 = vpop.f32.mrb[0].mxu0
        %v1843 = vadd.f32 0.0, %v1842
        %v1844 = vpop.f32.mrb[0].mxu0
        %1845 = vdwg.mxu0
        %v1846 = vsel %vm819, %v1843, -inf
        %1847 = vmax.xlane.f32.xlu0 %v1846
        %v1848 = vpop.xlane.xlu0 %1847
        %v1849 = vsub.f32 %v1843, %v1848
        %v1850 = vmul.f32 %v1849, 1.442695
        %v1851 = vpow.pop %v1850
        %v1852 = vsel %vm819, %v1851, 0.0
        %1853 = vadd.xlane.f32.xlu0 %v1852
        %v1854 = vpop.xlane.xlu0 %1853
        %v1855 = vrcp.pop %v1854
        %v1856 = vmul.f32 %v1851, %v1855
        %v1858 = vsel %vm819, %v1856, 0
        %1860 = vmatprep.subr.mxu0 0.0
        %1861 = vmatpush1.msra.mxu0 %v725
        %1862 = vmatprep.subr.mxu0 0.0
        %1863 = vmatpush1.msra.mxu0 0.0
        %1864 = vmatprep.subr.mxu0 0.0
        %1865 = vmatpush1.msra.mxu0 0.0
        %1866 = vmatprep.subr.mxu0 0.0
        %1867 = vmatpush1.msra.mxu0 0.0
        %1868 = vmatprep.subr.mxu0 0.0
        %1869 = vmatpush1.msra.mxu0 0.0
        %1870 = vmatprep.subr.mxu0 0.0
        %1871 = vmatpush1.msra.mxu0 0.0
        %1872 = vmatprep.subr.mxu0 0.0
        %1873 = vmatpush1.msra.mxu0 0.0
        %1874 = vmatprep.subr.mxu0 0.0
        %1875 = vmatpush1.msra.mxu0 0.0
        %1876 = vmatprep.subr.mxu0 0.0
        %1877 = vmatpush1.msra.mxu0 0.0
        %1878 = vmatprep.subr.mxu0 0.0
        %1879 = vmatpush1.msra.mxu0 0.0
        %1880 = vmatprep.subr.mxu0 0.0
        %1881 = vmatpush1.msra.mxu0 0.0
        %1882 = vmatprep.subr.mxu0 0.0
        %1883 = vmatpush1.msra.mxu0 0.0
        %1884 = vmatprep.subr.mxu0 0.0
        %1885 = vmatpush1.msra.mxu0 0.0
        %1886 = vmatprep.subr.mxu0 0.0
        %1887 = vmatpush1.msra.mxu0 0.0
        %1888 = vmatprep.subr.mxu0 0.0
        %1889 = vmatpush1.msra.mxu0 0.0
        %1890 = vmatprep.subr.mxu0 0.0
        %1891 = vmatpush1.msra.mxu0 0.0
        %1892 = vmatprep.subr.mxu0 0.0
        %1893 = vmatpush1.msra.mxu0 0.0
        %1894 = vmatprep.subr.mxu0 0.0
        %1895 = vmatpush1.msra.mxu0 0.0
        %1896 = vmatprep.subr.mxu0 0.0
        %1897 = vmatpush1.msra.mxu0 0.0
        %1898 = vmatprep.subr.mxu0 0.0
        %1899 = vmatpush1.msra.mxu0 0.0
        %1900 = vmatprep.subr.mxu0 0.0
        %1901 = vmatpush1.msra.mxu0 0.0
        %1902 = vmatprep.subr.mxu0 0.0
        %1903 = vmatpush1.msra.mxu0 0.0
        %1904 = vmatprep.subr.mxu0 0.0
        %1905 = vmatpush1.msra.mxu0 0.0
        %1906 = vmatprep.subr.mxu0 0.0
        %1907 = vmatpush1.msra.mxu0 0.0
        %1908 = vmatprep.subr.mxu0 0.0
        %1909 = vmatpush1.msra.mxu0 0.0
        %1910 = vmatprep.subr.mxu0 0.0
        %1911 = vmatpush1.msra.mxu0 0.0
        %1912 = vmatprep.subr.mxu0 0.0
        %1913 = vmatpush1.msra.mxu0 0.0
        %1914 = vmatprep.subr.mxu0 0.0
        %1915 = vmatpush1.msra.mxu0 0.0
        %1916 = vmatprep.subr.mxu0 0.0
        %1917 = vmatpush1.msra.mxu0 0.0
        %1918 = vmatprep.subr.mxu0 0.0
        %1919 = vmatpush1.msra.mxu0 0.0
        %1920 = vmatprep.subr.mxu0 0.0
        %1921 = vmatpush1.msra.mxu0 0.0
        %1922 = vmatprep.subr.mxu0 0.0
        %1923 = vmatpush1.msra.mxu0 0.0
        %1924 = vmatprep.mubr.f32.mxu0 0.0
        %1925 = vmatmul.mubr.f32.gmra.mrb[0].mxu0 %v1858
        %v1926 = vpop.f32.mrb[0].mxu0
        %v1927 = vadd.f32 0.0, %v1926
        %v1928 = vpop.f32.mrb[0].mxu0
        %1929 = vdwg.mxu0
        %1930 = vrot.lane.b32.xlu0 %v816, 120
        %v1931 = vpop.permute.xlu0 %1930
        %1932 = vrot.lane.b32.xlu0 %v646, 120
        %v1933 = vpop.permute.xlu0 %1932
        %v1934 = vsel %vm819, %v1931, 0
        %v1936 = vsel %vm819, %v1933, 0
        %1938 = vmatprep.subr.mxu0 0.0
        %1939 = vmatpush1.xpose.msra.mxu0 %v1936
        %1940 = vmatprep.subr.mxu0 0.0
        %1941 = vmatpush1.xpose.msra.mxu0 0.0
        %1942 = vmatprep.subr.mxu0 0.0
        %1943 = vmatpush1.xpose.msra.mxu0 0.0
        %1944 = vmatprep.subr.mxu0 0.0
        %1945 = vmatpush1.xpose.msra.mxu0 0.0
        %1946 = vmatprep.subr.mxu0 0.0
        %1947 = vmatpush1.xpose.msra.mxu0 0.0
        %1948 = vmatprep.subr.mxu0 0.0
        %1949 = vmatpush1.xpose.msra.mxu0 0.0
        %1950 = vmatprep.subr.mxu0 0.0
        %1951 = vmatpush1.xpose.msra.mxu0 0.0
        %1952 = vmatprep.subr.mxu0 0.0
        %1953 = vmatpush1.xpose.msra.mxu0 0.0
        %1954 = vmatprep.subr.mxu0 0.0
        %1955 = vmatpush1.xpose.msra.mxu0 0.0
        %1956 = vmatprep.subr.mxu0 0.0
        %1957 = vmatpush1.xpose.msra.mxu0 0.0
        %1958 = vmatprep.subr.mxu0 0.0
        %1959 = vmatpush1.xpose.msra.mxu0 0.0
        %1960 = vmatprep.subr.mxu0 0.0
        %1961 = vmatpush1.xpose.msra.mxu0 0.0
        %1962 = vmatprep.subr.mxu0 0.0
        %1963 = vmatpush1.xpose.msra.mxu0 0.0
        %1964 = vmatprep.subr.mxu0 0.0
        %1965 = vmatpush1.xpose.msra.mxu0 0.0
        %1966 = vmatprep.subr.mxu0 0.0
        %1967 = vmatpush1.xpose.msra.mxu0 0.0
        %1968 = vmatprep.subr.mxu0 0.0
        %1969 = vmatpush1.xpose.msra.mxu0 0.0
        %1970 = vmatprep.subr.mxu0 0.0
        %1971 = vmatpush1.xpose.msra.mxu0 0.0
        %1972 = vmatprep.subr.mxu0 0.0
        %1973 = vmatpush1.xpose.msra.mxu0 0.0
        %1974 = vmatprep.subr.mxu0 0.0
        %1975 = vmatpush1.xpose.msra.mxu0 0.0
        %1976 = vmatprep.subr.mxu0 0.0
        %1977 = vmatpush1.xpose.msra.mxu0 0.0
        %1978 = vmatprep.subr.mxu0 0.0
        %1979 = vmatpush1.xpose.msra.mxu0 0.0
        %1980 = vmatprep.subr.mxu0 0.0
        %1981 = vmatpush1.xpose.msra.mxu0 0.0
        %1982 = vmatprep.subr.mxu0 0.0
        %1983 = vmatpush1.xpose.msra.mxu0 0.0
        %1984 = vmatprep.subr.mxu0 0.0
        %1985 = vmatpush1.xpose.msra.mxu0 0.0
        %1986 = vmatprep.subr.mxu0 0.0
        %1987 = vmatpush1.xpose.msra.mxu0 0.0
        %1988 = vmatprep.subr.mxu0 0.0
        %1989 = vmatpush1.xpose.msra.mxu0 0.0
        %1990 = vmatprep.subr.mxu0 0.0
        %1991 = vmatpush1.xpose.msra.mxu0 0.0
        %1992 = vmatprep.subr.mxu0 0.0
        %1993 = vmatpush1.xpose.msra.mxu0 0.0
        %1994 = vmatprep.subr.mxu0 0.0
        %1995 = vmatpush1.xpose.msra.mxu0 0.0
        %1996 = vmatprep.subr.mxu0 0.0
        %1997 = vmatpush1.xpose.msra.mxu0 0.0
        %1998 = vmatprep.subr.mxu0 0.0
        %1999 = vmatpush1.xpose.msra.mxu0 0.0
        %2000 = vmatprep.subr.mxu0 0.0
        %2001 = vmatpush1.xpose.msra.mxu0 0.0
        %2002 = vmatprep.mubr.f32.mxu0 0.0
        %2003 = vmatmul.mubr.f32.gmra.mrb[0].mxu0 %v1934
        %v2004 = vpop.f32.mrb[0].mxu0
        %v2005 = vadd.f32 0.0, %v2004
        %v2006 = vpop.f32.mrb[0].mxu0
        %2007 = vdwg.mxu0
        %v2008 = vsel %vm819, %v2005, -inf
        %2009 = vmax.xlane.f32.xlu0 %v2008
        %v2010 = vpop.xlane.xlu0 %2009
        %v2011 = vsub.f32 %v2005, %v2010
        %v2012 = vmul.f32 %v2011, 1.442695
        %v2013 = vpow.pop %v2012
        %v2014 = vsel %vm819, %v2013, 0.0
        %2015 = vadd.xlane.f32.xlu0 %v2014
        %v2016 = vpop.xlane.xlu0 %2015
        %v2017 = vrcp.pop %v2016
        %v2018 = vmul.f32 %v2013, %v2017
        %2020 = vrot.lane.b32.xlu0 %v725, 120
        %v2021 = vpop.permute.xlu0 %2020
        %v2024 = vsel %vm819, %v2018, 0
        %2026 = vmatprep.subr.mxu0 0.0
        %2027 = vmatpush1.msra.mxu0 %v2021
        %2028 = vmatprep.subr.mxu0 0.0
        %2029 = vmatpush1.msra.mxu0 0.0
        %2030 = vmatprep.subr.mxu0 0.0
        %2031 = vmatpush1.msra.mxu0 0.0
        %2032 = vmatprep.subr.mxu0 0.0
        %2033 = vmatpush1.msra.mxu0 0.0
        %2034 = vmatprep.subr.mxu0 0.0
        %2035 = vmatpush1.msra.mxu0 0.0
        %2036 = vmatprep.subr.mxu0 0.0
        %2037 = vmatpush1.msra.mxu0 0.0
        %2038 = vmatprep.subr.mxu0 0.0
        %2039 = vmatpush1.msra.mxu0 0.0
        %2040 = vmatprep.subr.mxu0 0.0
        %2041 = vmatpush1.msra.mxu0 0.0
        %2042 = vmatprep.subr.mxu0 0.0
        %2043 = vmatpush1.msra.mxu0 0.0
        %2044 = vmatprep.subr.mxu0 0.0
        %2045 = vmatpush1.msra.mxu0 0.0
        %2046 = vmatprep.subr.mxu0 0.0
        %2047 = vmatpush1.msra.mxu0 0.0
        %2048 = vmatprep.subr.mxu0 0.0
        %2049 = vmatpush1.msra.mxu0 0.0
        %2050 = vmatprep.subr.mxu0 0.0
        %2051 = vmatpush1.msra.mxu0 0.0
        %2052 = vmatprep.subr.mxu0 0.0
        %2053 = vmatpush1.msra.mxu0 0.0
        %2054 = vmatprep.subr.mxu0 0.0
        %2055 = vmatpush1.msra.mxu0 0.0
        %2056 = vmatprep.subr.mxu0 0.0
        %2057 = vmatpush1.msra.mxu0 0.0
        %2058 = vmatprep.subr.mxu0 0.0
        %2059 = vmatpush1.msra.mxu0 0.0
        %2060 = vmatprep.subr.mxu0 0.0
        %2061 = vmatpush1.msra.mxu0 0.0
        %2062 = vmatprep.subr.mxu0 0.0
        %2063 = vmatpush1.msra.mxu0 0.0
        %2064 = vmatprep.subr.mxu0 0.0
        %2065 = vmatpush1.msra.mxu0 0.0
        %2066 = vmatprep.subr.mxu0 0.0
        %2067 = vmatpush1.msra.mxu0 0.0
        %2068 = vmatprep.subr.mxu0 0.0
        %2069 = vmatpush1.msra.mxu0 0.0
        %2070 = vmatprep.subr.mxu0 0.0
        %2071 = vmatpush1.msra.mxu0 0.0
        %2072 = vmatprep.subr.mxu0 0.0
        %2073 = vmatpush1.msra.mxu0 0.0
        %2074 = vmatprep.subr.mxu0 0.0
        %2075 = vmatpush1.msra.mxu0 0.0
        %2076 = vmatprep.subr.mxu0 0.0
        %2077 = vmatpush1.msra.mxu0 0.0
        %2078 = vmatprep.subr.mxu0 0.0
        %2079 = vmatpush1.msra.mxu0 0.0
        %2080 = vmatprep.subr.mxu0 0.0
        %2081 = vmatpush1.msra.mxu0 0.0
        %2082 = vmatprep.subr.mxu0 0.0
        %2083 = vmatpush1.msra.mxu0 0.0
        %2084 = vmatprep.subr.mxu0 0.0
        %2085 = vmatpush1.msra.mxu0 0.0
        %2086 = vmatprep.subr.mxu0 0.0
        %2087 = vmatpush1.msra.mxu0 0.0
        %2088 = vmatprep.subr.mxu0 0.0
        %2089 = vmatpush1.msra.mxu0 0.0
        %2090 = vmatprep.mubr.f32.mxu0 0.0
        %2091 = vmatmul.mubr.f32.gmra.mrb[0].mxu0 %v2024
        %v2092 = vpop.f32.mrb[0].mxu0
        %v2093 = vadd.f32 0.0, %v2092
        %v2094 = vpop.f32.mrb[0].mxu0
        %2095 = vdwg.mxu0
        %v2097 = vsel %vm819, %v2093, 0
        %2099 = vmatprep.subr.mxu0 0.0
        %2100 = vmatpush1.msra.mxu0 %v729
        %2101 = vmatprep.subr.mxu0 0.0
        %2102 = vmatpush1.msra.mxu0 0.0
        %2103 = vmatprep.subr.mxu0 0.0
        %2104 = vmatpush1.msra.mxu0 0.0
        %2105 = vmatprep.subr.mxu0 0.0
        %2106 = vmatpush1.msra.mxu0 0.0
        %2107 = vmatprep.subr.mxu0 0.0
        %2108 = vmatpush1.msra.mxu0 0.0
        %2109 = vmatprep.subr.mxu0 0.0
        %2110 = vmatpush1.msra.mxu0 0.0
        %2111 = vmatprep.subr.mxu0 0.0
        %2112 = vmatpush1.msra.mxu0 0.0
        %2113 = vmatprep.subr.mxu0 0.0
        %2114 = vmatpush1.msra.mxu0 0.0
        %2115 = vmatprep.subr.mxu0 0.0
        %2116 = vmatpush1.msra.mxu0 0.0
        %2117 = vmatprep.subr.mxu0 0.0
        %2118 = vmatpush1.msra.mxu0 0.0
        %2119 = vmatprep.subr.mxu0 0.0
        %2120 = vmatpush1.msra.mxu0 0.0
        %2121 = vmatprep.subr.mxu0 0.0
        %2122 = vmatpush1.msra.mxu0 0.0
        %2123 = vmatprep.subr.mxu0 0.0
        %2124 = vmatpush1.msra.mxu0 0.0
        %2125 = vmatprep.subr.mxu0 0.0
        %2126 = vmatpush1.msra.mxu0 0.0
        %2127 = vmatprep.subr.mxu0 0.0
        %2128 = vmatpush1.msra.mxu0 0.0
        %2129 = vmatprep.subr.mxu0 0.0
        %2130 = vmatpush1.msra.mxu0 0.0
        %2131 = vmatprep.subr.mxu0 0.0
        %2132 = vmatpush1.msra.mxu0 0.0
        %2133 = vmatprep.subr.mxu0 0.0
        %2134 = vmatpush1.msra.mxu0 0.0
        %2135 = vmatprep.subr.mxu0 0.0
        %2136 = vmatpush1.msra.mxu0 0.0
        %2137 = vmatprep.subr.mxu0 0.0
        %2138 = vmatpush1.msra.mxu0 0.0
        %2139 = vmatprep.subr.mxu0 0.0
        %2140 = vmatpush1.msra.mxu0 0.0
        %2141 = vmatprep.subr.mxu0 0.0
        %2142 = vmatpush1.msra.mxu0 0.0
        %2143 = vmatprep.subr.mxu0 0.0
        %2144 = vmatpush1.msra.mxu0 0.0
        %2145 = vmatprep.subr.mxu0 0.0
        %2146 = vmatpush1.msra.mxu0 0.0
        %2147 = vmatprep.subr.mxu0 0.0
        %2148 = vmatpush1.msra.mxu0 0.0
        %2149 = vmatprep.subr.mxu0 0.0
        %2150 = vmatpush1.msra.mxu0 0.0
        %2151 = vmatprep.subr.mxu0 0.0
        %2152 = vmatpush1.msra.mxu0 0.0
        %2153 = vmatprep.subr.mxu0 0.0
        %2154 = vmatpush1.msra.mxu0 0.0
        %2155 = vmatprep.subr.mxu0 0.0
        %2156 = vmatpush1.msra.mxu0 0.0
        %2157 = vmatprep.subr.mxu0 0.0
        %2158 = vmatpush1.msra.mxu0 0.0
        %2159 = vmatprep.subr.mxu0 0.0
        %2160 = vmatpush1.msra.mxu0 0.0
        %2161 = vmatprep.subr.mxu0 0.0
        %2162 = vmatpush1.msra.mxu0 0.0
        %2163 = vmatprep.mubr.f32.mxu0 0.0
        %2164 = vmatmul.mubr.f32.gmra.mrb[0].mxu0 %v2097
        %v2165 = vpop.f32.mrb[0].mxu0
        %v2166 = vadd.f32 0.0, %v2165
        %v2167 = vpop.f32.mrb[0].mxu0
        %2168 = vdwg.mxu0
        %v2170 = vsel %vm819, %v1927, 0
        %2172 = vmatprep.subr.mxu0 0.0
        %2173 = vmatpush1.msra.mxu0 %v728
        %2174 = vmatprep.subr.mxu0 0.0
        %2175 = vmatpush1.msra.mxu0 0.0
        %2176 = vmatprep.subr.mxu0 0.0
        %2177 = vmatpush1.msra.mxu0 0.0
        %2178 = vmatprep.subr.mxu0 0.0
        %2179 = vmatpush1.msra.mxu0 0.0
        %2180 = vmatprep.subr.mxu0 0.0
        %2181 = vmatpush1.msra.mxu0 0.0
        %2182 = vmatprep.subr.mxu0 0.0
        %2183 = vmatpush1.msra.mxu0 0.0
        %2184 = vmatprep.subr.mxu0 0.0
        %2185 = vmatpush1.msra.mxu0 0.0
        %2186 = vmatprep.subr.mxu0 0.0
        %2187 = vmatpush1.msra.mxu0 0.0
        %2188 = vmatprep.subr.mxu0 0.0
        %2189 = vmatpush1.msra.mxu0 0.0
        %2190 = vmatprep.subr.mxu0 0.0
        %2191 = vmatpush1.msra.mxu0 0.0
        %2192 = vmatprep.subr.mxu0 0.0
        %2193 = vmatpush1.msra.mxu0 0.0
        %2194 = vmatprep.subr.mxu0 0.0
        %2195 = vmatpush1.msra.mxu0 0.0
        %2196 = vmatprep.subr.mxu0 0.0
        %2197 = vmatpush1.msra.mxu0 0.0
        %2198 = vmatprep.subr.mxu0 0.0
        %2199 = vmatpush1.msra.mxu0 0.0
        %2200 = vmatprep.subr.mxu0 0.0
        %2201 = vmatpush1.msra.mxu0 0.0
        %2202 = vmatprep.subr.mxu0 0.0
        %2203 = vmatpush1.msra.mxu0 0.0
        %2204 = vmatprep.subr.mxu0 0.0
        %2205 = vmatpush1.msra.mxu0 0.0
        %2206 = vmatprep.subr.mxu0 0.0
        %2207 = vmatpush1.msra.mxu0 0.0
        %2208 = vmatprep.subr.mxu0 0.0
        %2209 = vmatpush1.msra.mxu0 0.0
        %2210 = vmatprep.subr.mxu0 0.0
        %2211 = vmatpush1.msra.mxu0 0.0
        %2212 = vmatprep.subr.mxu0 0.0
        %2213 = vmatpush1.msra.mxu0 0.0
        %2214 = vmatprep.subr.mxu0 0.0
        %2215 = vmatpush1.msra.mxu0 0.0
        %2216 = vmatprep.subr.mxu0 0.0
        %2217 = vmatpush1.msra.mxu0 0.0
        %2218 = vmatprep.subr.mxu0 0.0
        %2219 = vmatpush1.msra.mxu0 0.0
        %2220 = vmatprep.subr.mxu0 0.0
        %2221 = vmatpush1.msra.mxu0 0.0
        %2222 = vmatprep.subr.mxu0 0.0
        %2223 = vmatpush1.msra.mxu0 0.0
        %2224 = vmatprep.subr.mxu0 0.0
        %2225 = vmatpush1.msra.mxu0 0.0
        %2226 = vmatprep.subr.mxu0 0.0
        %2227 = vmatpush1.msra.mxu0 0.0
        %2228 = vmatprep.subr.mxu0 0.0
        %2229 = vmatpush1.msra.mxu0 0.0
        %2230 = vmatprep.subr.mxu0 0.0
        %2231 = vmatpush1.msra.mxu0 0.0
        %2232 = vmatprep.subr.mxu0 0.0
        %2233 = vmatpush1.msra.mxu0 0.0
        %2234 = vmatprep.subr.mxu0 0.0
        %2235 = vmatpush1.msra.mxu0 0.0
        %2236 = vmatprep.mubr.f32.mxu0 0.0
        %2237 = vmatmul.mubr.f32.gmra.mrb[0].mxu0 %v2170
        %v2238 = vpop.f32.mrb[0].mxu0
        %v2239 = vadd.f32 %v2166, %v2238
        %v2240 = vpop.f32.mrb[0].mxu0
        %2241 = vdwg.mxu0
        %2242 = vrot.lane.b32.xlu0 %v816, 112
        %v2243 = vpop.permute.xlu0 %2242
        %2244 = vrot.lane.b32.xlu0 %v646, 112
        %v2245 = vpop.permute.xlu0 %2244
        %v2246 = vsel %vm819, %v2243, 0
        %v2248 = vsel %vm819, %v2245, 0
        %2250 = vmatprep.subr.mxu0 0.0
        %2251 = vmatpush1.xpose.msra.mxu0 %v2248
        %2252 = vmatprep.subr.mxu0 0.0
        %2253 = vmatpush1.xpose.msra.mxu0 0.0
        %2254 = vmatprep.subr.mxu0 0.0
        %2255 = vmatpush1.xpose.msra.mxu0 0.0
        %2256 = vmatprep.subr.mxu0 0.0
        %2257 = vmatpush1.xpose.msra.mxu0 0.0
        %2258 = vmatprep.subr.mxu0 0.0
        %2259 = vmatpush1.xpose.msra.mxu0 0.0
        %2260 = vmatprep.subr.mxu0 0.0
        %2261 = vmatpush1.xpose.msra.mxu0 0.0
        %2262 = vmatprep.subr.mxu0 0.0
        %2263 = vmatpush1.xpose.msra.mxu0 0.0
        %2264 = vmatprep.subr.mxu0 0.0
        %2265 = vmatpush1.xpose.msra.mxu0 0.0
        %2266 = vmatprep.subr.mxu0 0.0
        %2267 = vmatpush1.xpose.msra.mxu0 0.0
        %2268 = vmatprep.subr.mxu0 0.0
        %2269 = vmatpush1.xpose.msra.mxu0 0.0
        %2270 = vmatprep.subr.mxu0 0.0
        %2271 = vmatpush1.xpose.msra.mxu0 0.0
        %2272 = vmatprep.subr.mxu0 0.0
        %2273 = vmatpush1.xpose.msra.mxu0 0.0
        %2274 = vmatprep.subr.mxu0 0.0
        %2275 = vmatpush1.xpose.msra.mxu0 0.0
        %2276 = vmatprep.subr.mxu0 0.0
        %2277 = vmatpush1.xpose.msra.mxu0 0.0
        %2278 = vmatprep.subr.mxu0 0.0
        %2279 = vmatpush1.xpose.msra.mxu0 0.0
        %2280 = vmatprep.subr.mxu0 0.0
        %2281 = vmatpush1.xpose.msra.mxu0 0.0
        %2282 = vmatprep.subr.mxu0 0.0
        %2283 = vmatpush1.xpose.msra.mxu0 0.0
        %2284 = vmatprep.subr.mxu0 0.0
        %2285 = vmatpush1.xpose.msra.mxu0 0.0
        %2286 = vmatprep.subr.mxu0 0.0
        %2287 = vmatpush1.xpose.msra.mxu0 0.0
        %2288 = vmatprep.subr.mxu0 0.0
        %2289 = vmatpush1.xpose.msra.mxu0 0.0
        %2290 = vmatprep.subr.mxu0 0.0
        %2291 = vmatpush1.xpose.msra.mxu0 0.0
        %2292 = vmatprep.subr.mxu0 0.0
        %2293 = vmatpush1.xpose.msra.mxu0 0.0
        %2294 = vmatprep.subr.mxu0 0.0
        %2295 = vmatpush1.xpose.msra.mxu0 0.0
        %2296 = vmatprep.subr.mxu0 0.0
        %2297 = vmatpush1.xpose.msra.mxu0 0.0
        %2298 = vmatprep.subr.mxu0 0.0
        %2299 = vmatpush1.xpose.msra.mxu0 0.0
        %2300 = vmatprep.subr.mxu0 0.0
        %2301 = vmatpush1.xpose.msra.mxu0 0.0
        %2302 = vmatprep.subr.mxu0 0.0
        %2303 = vmatpush1.xpose.msra.mxu0 0.0
        %2304 = vmatprep.subr.mxu0 0.0
        %2305 = vmatpush1.xpose.msra.mxu0 0.0
        %2306 = vmatprep.subr.mxu0 0.0
        %2307 = vmatpush1.xpose.msra.mxu0 0.0
        %2308 = vmatprep.subr.mxu0 0.0
        %2309 = vmatpush1.xpose.msra.mxu0 0.0
        %2310 = vmatprep.subr.mxu0 0.0
        %2311 = vmatpush1.xpose.msra.mxu0 0.0
        %2312 = vmatprep.subr.mxu0 0.0
        %2313 = vmatpush1.xpose.msra.mxu0 0.0
        %2314 = vmatprep.mubr.f32.mxu0 0.0
        %2315 = vmatmul.mubr.f32.gmra.mrb[0].mxu0 %v2246
        %v2316 = vpop.f32.mrb[0].mxu0
        %v2317 = vadd.f32 0.0, %v2316
        %v2318 = vpop.f32.mrb[0].mxu0
        %2319 = vdwg.mxu0
        %v2320 = vsel %vm819, %v2317, -inf
        %2321 = vmax.xlane.f32.xlu0 %v2320
        %v2322 = vpop.xlane.xlu0 %2321
        %v2323 = vsub.f32 %v2317, %v2322
        %v2324 = vmul.f32 %v2323, 1.442695
        %v2325 = vpow.pop %v2324
        %v2326 = vsel %vm819, %v2325, 0.0
        %2327 = vadd.xlane.f32.xlu0 %v2326
        %v2328 = vpop.xlane.xlu0 %2327
        %v2329 = vrcp.pop %v2328
        %v2330 = vmul.f32 %v2325, %v2329
        %2331 = vrot.lane.b32.xlu0 %v725, 112
        %v2332 = vpop.permute.xlu0 %2331
        %v2335 = vsel %vm819, %v2330, 0
        %2337 = vmatprep.subr.mxu0 0.0
        %2338 = vmatpush1.msra.mxu0 %v2332
        %2339 = vmatprep.subr.mxu0 0.0
        %2340 = vmatpush1.msra.mxu0 0.0
        %2341 = vmatprep.subr.mxu0 0.0
        %2342 = vmatpush1.msra.mxu0 0.0
        %2343 = vmatprep.subr.mxu0 0.0
        %2344 = vmatpush1.msra.mxu0 0.0
        %2345 = vmatprep.subr.mxu0 0.0
        %2346 = vmatpush1.msra.mxu0 0.0
        %2347 = vmatprep.subr.mxu0 0.0
        %2348 = vmatpush1.msra.mxu0 0.0
        %2349 = vmatprep.subr.mxu0 0.0
        %2350 = vmatpush1.msra.mxu0 0.0
        %2351 = vmatprep.subr.mxu0 0.0
        %2352 = vmatpush1.msra.mxu0 0.0
        %2353 = vmatprep.subr.mxu0 0.0
        %2354 = vmatpush1.msra.mxu0 0.0
        %2355 = vmatprep.subr.mxu0 0.0
        %2356 = vmatpush1.msra.mxu0 0.0
        %2357 = vmatprep.subr.mxu0 0.0
        %2358 = vmatpush1.msra.mxu0 0.0
        %2359 = vmatprep.subr.mxu0 0.0
        %2360 = vmatpush1.msra.mxu0 0.0
        %2361 = vmatprep.subr.mxu0 0.0
        %2362 = vmatpush1.msra.mxu0 0.0
        %2363 = vmatprep.subr.mxu0 0.0
        %2364 = vmatpush1.msra.mxu0 0.0
        %2365 = vmatprep.subr.mxu0 0.0
        %2366 = vmatpush1.msra.mxu0 0.0
        %2367 = vmatprep.subr.mxu0 0.0
        %2368 = vmatpush1.msra.mxu0 0.0
        %2369 = vmatprep.subr.mxu0 0.0
        %2370 = vmatpush1.msra.mxu0 0.0
        %2371 = vmatprep.subr.mxu0 0.0
        %2372 = vmatpush1.msra.mxu0 0.0
        %2373 = vmatprep.subr.mxu0 0.0
        %2374 = vmatpush1.msra.mxu0 0.0
        %2375 = vmatprep.subr.mxu0 0.0
        %2376 = vmatpush1.msra.mxu0 0.0
        %2377 = vmatprep.subr.mxu0 0.0
        %2378 = vmatpush1.msra.mxu0 0.0
        %2379 = vmatprep.subr.mxu0 0.0
        %2380 = vmatpush1.msra.mxu0 0.0
        %2381 = vmatprep.subr.mxu0 0.0
        %2382 = vmatpush1.msra.mxu0 0.0
        %2383 = vmatprep.subr.mxu0 0.0
        %2384 = vmatpush1.msra.mxu0 0.0
        %2385 = vmatprep.subr.mxu0 0.0
        %2386 = vmatpush1.msra.mxu0 0.0
        %2387 = vmatprep.subr.mxu0 0.0
        %2388 = vmatpush1.msra.mxu0 0.0
        %2389 = vmatprep.subr.mxu0 0.0
        %2390 = vmatpush1.msra.mxu0 0.0
        %2391 = vmatprep.subr.mxu0 0.0
        %2392 = vmatpush1.msra.mxu0 0.0
        %2393 = vmatprep.subr.mxu0 0.0
        %2394 = vmatpush1.msra.mxu0 0.0
        %2395 = vmatprep.subr.mxu0 0.0
        %2396 = vmatpush1.msra.mxu0 0.0
        %2397 = vmatprep.subr.mxu0 0.0
        %2398 = vmatpush1.msra.mxu0 0.0
        %2399 = vmatprep.subr.mxu0 0.0
        %2400 = vmatpush1.msra.mxu0 0.0
        %2401 = vmatprep.mubr.f32.mxu0 0.0
        %2402 = vmatmul.mubr.f32.gmra.mrb[0].mxu0 %v2335
        %v2403 = vpop.f32.mrb[0].mxu0
        %v2404 = vadd.f32 0.0, %v2403
        %v2405 = vpop.f32.mrb[0].mxu0
        %2406 = vdwg.mxu0
        %v2408 = vsel %vm819, %v2404, 0
        %2410 = vmatprep.subr.mxu0 0.0
        %2411 = vmatpush1.msra.mxu0 %v730
        %2412 = vmatprep.subr.mxu0 0.0
        %2413 = vmatpush1.msra.mxu0 0.0
        %2414 = vmatprep.subr.mxu0 0.0
        %2415 = vmatpush1.msra.mxu0 0.0
        %2416 = vmatprep.subr.mxu0 0.0
        %2417 = vmatpush1.msra.mxu0 0.0
        %2418 = vmatprep.subr.mxu0 0.0
        %2419 = vmatpush1.msra.mxu0 0.0
        %2420 = vmatprep.subr.mxu0 0.0
        %2421 = vmatpush1.msra.mxu0 0.0
        %2422 = vmatprep.subr.mxu0 0.0
        %2423 = vmatpush1.msra.mxu0 0.0
        %2424 = vmatprep.subr.mxu0 0.0
        %2425 = vmatpush1.msra.mxu0 0.0
        %2426 = vmatprep.subr.mxu0 0.0
        %2427 = vmatpush1.msra.mxu0 0.0
        %2428 = vmatprep.subr.mxu0 0.0
        %2429 = vmatpush1.msra.mxu0 0.0
        %2430 = vmatprep.subr.mxu0 0.0
        %2431 = vmatpush1.msra.mxu0 0.0
        %2432 = vmatprep.subr.mxu0 0.0
        %2433 = vmatpush1.msra.mxu0 0.0
        %2434 = vmatprep.subr.mxu0 0.0
        %2435 = vmatpush1.msra.mxu0 0.0
        %2436 = vmatprep.subr.mxu0 0.0
        %2437 = vmatpush1.msra.mxu0 0.0
        %2438 = vmatprep.subr.mxu0 0.0
        %2439 = vmatpush1.msra.mxu0 0.0
        %2440 = vmatprep.subr.mxu0 0.0
        %2441 = vmatpush1.msra.mxu0 0.0
        %2442 = vmatprep.subr.mxu0 0.0
        %2443 = vmatpush1.msra.mxu0 0.0
        %2444 = vmatprep.subr.mxu0 0.0
        %2445 = vmatpush1.msra.mxu0 0.0
        %2446 = vmatprep.subr.mxu0 0.0
        %2447 = vmatpush1.msra.mxu0 0.0
        %2448 = vmatprep.subr.mxu0 0.0
        %2449 = vmatpush1.msra.mxu0 0.0
        %2450 = vmatprep.subr.mxu0 0.0
        %2451 = vmatpush1.msra.mxu0 0.0
        %2452 = vmatprep.subr.mxu0 0.0
        %2453 = vmatpush1.msra.mxu0 0.0
        %2454 = vmatprep.subr.mxu0 0.0
        %2455 = vmatpush1.msra.mxu0 0.0
        %2456 = vmatprep.subr.mxu0 0.0
        %2457 = vmatpush1.msra.mxu0 0.0
        %2458 = vmatprep.subr.mxu0 0.0
        %2459 = vmatpush1.msra.mxu0 0.0
        %2460 = vmatprep.subr.mxu0 0.0
        %2461 = vmatpush1.msra.mxu0 0.0
        %2462 = vmatprep.subr.mxu0 0.0
        %2463 = vmatpush1.msra.mxu0 0.0
        %2464 = vmatprep.subr.mxu0 0.0
        %2465 = vmatpush1.msra.mxu0 0.0
        %2466 = vmatprep.subr.mxu0 0.0
        %2467 = vmatpush1.msra.mxu0 0.0
        %2468 = vmatprep.subr.mxu0 0.0
        %2469 = vmatpush1.msra.mxu0 0.0
        %2470 = vmatprep.subr.mxu0 0.0
        %2471 = vmatpush1.msra.mxu0 0.0
        %2472 = vmatprep.subr.mxu0 0.0
        %2473 = vmatpush1.msra.mxu0 0.0
        %2474 = vmatprep.mubr.f32.mxu0 0.0
        %2475 = vmatmul.mubr.f32.gmra.mrb[0].mxu0 %v2408
        %v2476 = vpop.f32.mrb[0].mxu0
        %v2477 = vadd.f32 0.0, %v2476
        %v2478 = vpop.f32.mrb[0].mxu0
        %2479 = vdwg.mxu0
        %v2480 = vadd.f32 %v2239, %v2477
        %2481 = vrot.lane.b32.xlu0 %v816, 104
        %v2482 = vpop.permute.xlu0 %2481
        %2483 = vrot.lane.b32.xlu0 %v646, 104
        %v2484 = vpop.permute.xlu0 %2483
        %v2485 = vsel %vm819, %v2482, 0
        %v2487 = vsel %vm819, %v2484, 0
        %2489 = vmatprep.subr.mxu0 0.0
        %2490 = vmatpush1.xpose.msra.mxu0 %v2487
        %2491 = vmatprep.subr.mxu0 0.0
        %2492 = vmatpush1.xpose.msra.mxu0 0.0
        %2493 = vmatprep.subr.mxu0 0.0
        %2494 = vmatpush1.xpose.msra.mxu0 0.0
        %2495 = vmatprep.subr.mxu0 0.0
        %2496 = vmatpush1.xpose.msra.mxu0 0.0
        %2497 = vmatprep.subr.mxu0 0.0
        %2498 = vmatpush1.xpose.msra.mxu0 0.0
        %2499 = vmatprep.subr.mxu0 0.0
        %2500 = vmatpush1.xpose.msra.mxu0 0.0
        %2501 = vmatprep.subr.mxu0 0.0
        %2502 = vmatpush1.xpose.msra.mxu0 0.0
        %2503 = vmatprep.subr.mxu0 0.0
        %2504 = vmatpush1.xpose.msra.mxu0 0.0
        %2505 = vmatprep.subr.mxu0 0.0
        %2506 = vmatpush1.xpose.msra.mxu0 0.0
        %2507 = vmatprep.subr.mxu0 0.0
        %2508 = vmatpush1.xpose.msra.mxu0 0.0
        %2509 = vmatprep.subr.mxu0 0.0
        %2510 = vmatpush1.xpose.msra.mxu0 0.0
        %2511 = vmatprep.subr.mxu0 0.0
        %2512 = vmatpush1.xpose.msra.mxu0 0.0
        %2513 = vmatprep.subr.mxu0 0.0
        %2514 = vmatpush1.xpose.msra.mxu0 0.0
        %2515 = vmatprep.subr.mxu0 0.0
        %2516 = vmatpush1.xpose.msra.mxu0 0.0
        %2517 = vmatprep.subr.mxu0 0.0
        %2518 = vmatpush1.xpose.msra.mxu0 0.0
        %2519 = vmatprep.subr.mxu0 0.0
        %2520 = vmatpush1.xpose.msra.mxu0 0.0
        %2521 = vmatprep.subr.mxu0 0.0
        %2522 = vmatpush1.xpose.msra.mxu0 0.0
        %2523 = vmatprep.subr.mxu0 0.0
        %2524 = vmatpush1.xpose.msra.mxu0 0.0
        %2525 = vmatprep.subr.mxu0 0.0
        %2526 = vmatpush1.xpose.msra.mxu0 0.0
        %2527 = vmatprep.subr.mxu0 0.0
        %2528 = vmatpush1.xpose.msra.mxu0 0.0
        %2529 = vmatprep.subr.mxu0 0.0
        %2530 = vmatpush1.xpose.msra.mxu0 0.0
        %2531 = vmatprep.subr.mxu0 0.0
        %2532 = vmatpush1.xpose.msra.mxu0 0.0
        %2533 = vmatprep.subr.mxu0 0.0
        %2534 = vmatpush1.xpose.msra.mxu0 0.0
        %2535 = vmatprep.subr.mxu0 0.0
        %2536 = vmatpush1.xpose.msra.mxu0 0.0
        %2537 = vmatprep.subr.mxu0 0.0
        %2538 = vmatpush1.xpose.msra.mxu0 0.0
        %2539 = vmatprep.subr.mxu0 0.0
        %2540 = vmatpush1.xpose.msra.mxu0 0.0
        %2541 = vmatprep.subr.mxu0 0.0
        %2542 = vmatpush1.xpose.msra.mxu0 0.0
        %2543 = vmatprep.subr.mxu0 0.0
        %2544 = vmatpush1.xpose.msra.mxu0 0.0
        %2545 = vmatprep.subr.mxu0 0.0
        %2546 = vmatpush1.xpose.msra.mxu0 0.0
        %2547 = vmatprep.subr.mxu0 0.0
        %2548 = vmatpush1.xpose.msra.mxu0 0.0
        %2549 = vmatprep.subr.mxu0 0.0
        %2550 = vmatpush1.xpose.msra.mxu0 0.0
        %2551 = vmatprep.subr.mxu0 0.0
        %2552 = vmatpush1.xpose.msra.mxu0 0.0
        %2553 = vmatprep.mubr.f32.mxu0 0.0
        %2554 = vmatmul.mubr.f32.gmra.mrb[0].mxu0 %v2485
        %v2555 = vpop.f32.mrb[0].mxu0
        %v2556 = vadd.f32 0.0, %v2555
        %v2557 = vpop.f32.mrb[0].mxu0
        %2558 = vdwg.mxu0
        %v2559 = vsel %vm819, %v2556, -inf
        %2560 = vmax.xlane.f32.xlu0 %v2559
        %v2561 = vpop.xlane.xlu0 %2560
        %v2562 = vsub.f32 %v2556, %v2561
        %v2563 = vmul.f32 %v2562, 1.442695
        %v2564 = vpow.pop %v2563
        %v2565 = vsel %vm819, %v2564, 0.0
        %2566 = vadd.xlane.f32.xlu0 %v2565
        %v2567 = vpop.xlane.xlu0 %2566
        %v2568 = vrcp.pop %v2567
        %v2569 = vmul.f32 %v2564, %v2568
        %2570 = vrot.lane.b32.xlu0 %v725, 104
        %v2571 = vpop.permute.xlu0 %2570
        %v2574 = vsel %vm819, %v2569, 0
        %2576 = vmatprep.subr.mxu0 0.0
        %2577 = vmatpush1.msra.mxu0 %v2571
        %2578 = vmatprep.subr.mxu0 0.0
        %2579 = vmatpush1.msra.mxu0 0.0
        %2580 = vmatprep.subr.mxu0 0.0
        %2581 = vmatpush1.msra.mxu0 0.0
        %2582 = vmatprep.subr.mxu0 0.0
        %2583 = vmatpush1.msra.mxu0 0.0
        %2584 = vmatprep.subr.mxu0 0.0
        %2585 = vmatpush1.msra.mxu0 0.0
        %2586 = vmatprep.subr.mxu0 0.0
        %2587 = vmatpush1.msra.mxu0 0.0
        %2588 = vmatprep.subr.mxu0 0.0
        %2589 = vmatpush1.msra.mxu0 0.0
        %2590 = vmatprep.subr.mxu0 0.0
        %2591 = vmatpush1.msra.mxu0 0.0
        %2592 = vmatprep.subr.mxu0 0.0
        %2593 = vmatpush1.msra.mxu0 0.0
        %2594 = vmatprep.subr.mxu0 0.0
        %2595 = vmatpush1.msra.mxu0 0.0
        %2596 = vmatprep.subr.mxu0 0.0
        %2597 = vmatpush1.msra.mxu0 0.0
        %2598 = vmatprep.subr.mxu0 0.0
        %2599 = vmatpush1.msra.mxu0 0.0
        %2600 = vmatprep.subr.mxu0 0.0
        %2601 = vmatpush1.msra.mxu0 0.0
        %2602 = vmatprep.subr.mxu0 0.0
        %2603 = vmatpush1.msra.mxu0 0.0
        %2604 = vmatprep.subr.mxu0 0.0
        %2605 = vmatpush1.msra.mxu0 0.0
        %2606 = vmatprep.subr.mxu0 0.0
        %2607 = vmatpush1.msra.mxu0 0.0
        %2608 = vmatprep.subr.mxu0 0.0
        %2609 = vmatpush1.msra.mxu0 0.0
        %2610 = vmatprep.subr.mxu0 0.0
        %2611 = vmatpush1.msra.mxu0 0.0
        %2612 = vmatprep.subr.mxu0 0.0
        %2613 = vmatpush1.msra.mxu0 0.0
        %2614 = vmatprep.subr.mxu0 0.0
        %2615 = vmatpush1.msra.mxu0 0.0
        %2616 = vmatprep.subr.mxu0 0.0
        %2617 = vmatpush1.msra.mxu0 0.0
        %2618 = vmatprep.subr.mxu0 0.0
        %2619 = vmatpush1.msra.mxu0 0.0
        %2620 = vmatprep.subr.mxu0 0.0
        %2621 = vmatpush1.msra.mxu0 0.0
        %2622 = vmatprep.subr.mxu0 0.0
        %2623 = vmatpush1.msra.mxu0 0.0
        %2624 = vmatprep.subr.mxu0 0.0
        %2625 = vmatpush1.msra.mxu0 0.0
        %2626 = vmatprep.subr.mxu0 0.0
        %2627 = vmatpush1.msra.mxu0 0.0
        %2628 = vmatprep.subr.mxu0 0.0
        %2629 = vmatpush1.msra.mxu0 0.0
        %2630 = vmatprep.subr.mxu0 0.0
        %2631 = vmatpush1.msra.mxu0 0.0
        %2632 = vmatprep.subr.mxu0 0.0
        %2633 = vmatpush1.msra.mxu0 0.0
        %2634 = vmatprep.subr.mxu0 0.0
        %2635 = vmatpush1.msra.mxu0 0.0
        %2636 = vmatprep.subr.mxu0 0.0
        %2637 = vmatpush1.msra.mxu0 0.0
        %2638 = vmatprep.subr.mxu0 0.0
        %2639 = vmatpush1.msra.mxu0 0.0
        %2640 = vmatprep.mubr.f32.mxu0 0.0
        %2641 = vmatmul.mubr.f32.gmra.mrb[0].mxu0 %v2574
        %v2642 = vpop.f32.mrb[0].mxu0
        %v2643 = vadd.f32 0.0, %v2642
        %v2644 = vpop.f32.mrb[0].mxu0
        %2645 = vdwg.mxu0
        %v2647 = vsel %vm819, %v2643, 0
        %2649 = vmatprep.subr.mxu0 0.0
        %2650 = vmatpush1.msra.mxu0 %v731
        %2651 = vmatprep.subr.mxu0 0.0
        %2652 = vmatpush1.msra.mxu0 0.0
        %2653 = vmatprep.subr.mxu0 0.0
        %2654 = vmatpush1.msra.mxu0 0.0
        %2655 = vmatprep.subr.mxu0 0.0
        %2656 = vmatpush1.msra.mxu0 0.0
        %2657 = vmatprep.subr.mxu0 0.0
        %2658 = vmatpush1.msra.mxu0 0.0
        %2659 = vmatprep.subr.mxu0 0.0
        %2660 = vmatpush1.msra.mxu0 0.0
        %2661 = vmatprep.subr.mxu0 0.0
        %2662 = vmatpush1.msra.mxu0 0.0
        %2663 = vmatprep.subr.mxu0 0.0
        %2664 = vmatpush1.msra.mxu0 0.0
        %2665 = vmatprep.subr.mxu0 0.0
        %2666 = vmatpush1.msra.mxu0 0.0
        %2667 = vmatprep.subr.mxu0 0.0
        %2668 = vmatpush1.msra.mxu0 0.0
        %2669 = vmatprep.subr.mxu0 0.0
        %2670 = vmatpush1.msra.mxu0 0.0
        %2671 = vmatprep.subr.mxu0 0.0
        %2672 = vmatpush1.msra.mxu0 0.0
        %2673 = vmatprep.subr.mxu0 0.0
        %2674 = vmatpush1.msra.mxu0 0.0
        %2675 = vmatprep.subr.mxu0 0.0
        %2676 = vmatpush1.msra.mxu0 0.0
        %2677 = vmatprep.subr.mxu0 0.0
        %2678 = vmatpush1.msra.mxu0 0.0
        %2679 = vmatprep.subr.mxu0 0.0
        %2680 = vmatpush1.msra.mxu0 0.0
        %2681 = vmatprep.subr.mxu0 0.0
        %2682 = vmatpush1.msra.mxu0 0.0
        %2683 = vmatprep.subr.mxu0 0.0
        %2684 = vmatpush1.msra.mxu0 0.0
        %2685 = vmatprep.subr.mxu0 0.0
        %2686 = vmatpush1.msra.mxu0 0.0
        %2687 = vmatprep.subr.mxu0 0.0
        %2688 = vmatpush1.msra.mxu0 0.0
        %2689 = vmatprep.subr.mxu0 0.0
        %2690 = vmatpush1.msra.mxu0 0.0
        %2691 = vmatprep.subr.mxu0 0.0
        %2692 = vmatpush1.msra.mxu0 0.0
        %2693 = vmatprep.subr.mxu0 0.0
        %2694 = vmatpush1.msra.mxu0 0.0
        %2695 = vmatprep.subr.mxu0 0.0
        %2696 = vmatpush1.msra.mxu0 0.0
        %2697 = vmatprep.subr.mxu0 0.0
        %2698 = vmatpush1.msra.mxu0 0.0
        %2699 = vmatprep.subr.mxu0 0.0
        %2700 = vmatpush1.msra.mxu0 0.0
        %2701 = vmatprep.subr.mxu0 0.0
        %2702 = vmatpush1.msra.mxu0 0.0
        %2703 = vmatprep.subr.mxu0 0.0
        %2704 = vmatpush1.msra.mxu0 0.0
        %2705 = vmatprep.subr.mxu0 0.0
        %2706 = vmatpush1.msra.mxu0 0.0
        %2707 = vmatprep.subr.mxu0 0.0
        %2708 = vmatpush1.msra.mxu0 0.0
        %2709 = vmatprep.subr.mxu0 0.0
        %2710 = vmatpush1.msra.mxu0 0.0
        %2711 = vmatprep.subr.mxu0 0.0
        %2712 = vmatpush1.msra.mxu0 0.0
        %2713 = vmatprep.mubr.f32.mxu0 0.0
        %2714 = vmatmul.mubr.f32.gmra.mrb[0].mxu0 %v2647
        %v2715 = vpop.f32.mrb[0].mxu0
        %v2716 = vadd.f32 0.0, %v2715
        %v2717 = vpop.f32.mrb[0].mxu0
        %2718 = vdwg.mxu0
        %v2719 = vadd.f32 %v2480, %v2716
        %v2720 = vsel %vm567, %v1769, 0.0
        %2721 = vadd.xlane.f32.xlu0 %v2720
        %v2722 = vpop.xlane.xlu0 %2721
        %v2723 = vsel %vm567, %v2719, 0.0
        %2724 = vadd.xlane.f32.xlu0 %v2723
        %v2725 = vpop.xlane.xlu0 %2724
        %v2726 = vrcp.pop 32.0
        %v2727 = vmul.f32 %v2722, %v2726
        %v2728 = vmul.f32 %v2725, %v2726
        %v2729 = vsub.f32 %v1769, %v2727
        %v2730 = vsub.f32 %v2719, %v2728
        %v2731 = vmul.f32 %v2729, %v2729
        %v2732 = vmul.f32 %v2730, %v2730
        %v2733 = vsel %vm567, %v2731, 0.0
        %2734 = vadd.xlane.f32.xlu0 %v2733
        %v2735 = vpop.xlane.xlu0 %2734
        %v2736 = vsel %vm567, %v2732, 0.0
        %2737 = vadd.xlane.f32.xlu0 %v2736
        %v2738 = vpop.xlane.xlu0 %2737
        %v2739 = vmul.f32 %v2735, %v2726
        %v2740 = vmul.f32 %v2738, %v2726
        %v2741 = vadd.f32 %v2739, 1e-06
        %v2742 = vadd.f32 %v2740, 1e-06
        %v2743 = vrsqrt.pop %v2741
        %v2744 = vrsqrt.pop %v2742
        %v2745 = vmul.f32 %v2729, %v2743
        %v2746 = vmul.f32 %v2730, %v2744
        %v2747 = vlaneseq
        %v2748 = vshrl.u32 %v2747, 7
        %v2749 = vsub.s32 0, %v2748
        %v2750 = vrot.slane %v559, %v2749
        %v2751 = vmul.f32 %v2745, %v2750
        %v2752 = vmul.f32 %v2746, %v2750
        %v2753 = vlaneseq
        %v2754 = vshrl.u32 %v2753, 7
        %v2755 = vsub.s32 1, %v2754
        %v2756 = vrot.slane %v559, %v2755
        %v2757 = vadd.f32 %v2751, %v2756
        %v2758 = vadd.f32 %v2752, %v2756
        %v2759 = vld [vmem:[%s538] sm:$0xff]
        %v2760 = vld [vmem:[%s538 + $0x8] sm:$0xff]
        %v2761 = vld [vmem:[%s557] sm:$0xff]
        %v2762 = vld [vmem:[%s557 + $0x8] sm:$0xff]
        %v2763 = vld [vmem:[%s557 + $0x10] sm:$0xff]
        %v2764 = vld [vmem:[%s557 + $0x18] sm:$0xff]
        %v2766 = vsel %vm567, %v2759, 0
        %v2769 = vsel %vm567, %v2760, 0
        %2771 = vmatprep.subr.mxu0 0.0
        %2772 = vmatpush1.msra.mxu0 %v2761
        %2773 = vmatprep.subr.mxu0 0.0
        %2774 = vmatpush1.msra.mxu0 %v2762
        %2775 = vmatprep.subr.mxu0 0.0
        %2776 = vmatpush1.msra.mxu0 %v2763
        %2777 = vmatprep.subr.mxu0 0.0
        %2778 = vmatpush1.msra.mxu0 %v2764
        %2779 = vmatprep.subr.mxu0 0.0
        %2780 = vmatpush1.msra.mxu0 0.0
        %2781 = vmatprep.subr.mxu0 0.0
        %2782 = vmatpush1.msra.mxu0 0.0
        %2783 = vmatprep.subr.mxu0 0.0
        %2784 = vmatpush1.msra.mxu0 0.0
        %2785 = vmatprep.subr.mxu0 0.0
        %2786 = vmatpush1.msra.mxu0 0.0
        %2787 = vmatprep.subr.mxu0 0.0
        %2788 = vmatpush1.msra.mxu0 0.0
        %2789 = vmatprep.subr.mxu0 0.0
        %2790 = vmatpush1.msra.mxu0 0.0
        %2791 = vmatprep.subr.mxu0 0.0
        %2792 = vmatpush1.msra.mxu0 0.0
        %2793 = vmatprep.subr.mxu0 0.0
        %2794 = vmatpush1.msra.mxu0 0.0
        %2795 = vmatprep.subr.mxu0 0.0
        %2796 = vmatpush1.msra.mxu0 0.0
        %2797 = vmatprep.subr.mxu0 0.0
        %2798 = vmatpush1.msra.mxu0 0.0
        %2799 = vmatprep.subr.mxu0 0.0
        %2800 = vmatpush1.msra.mxu0 0.0
        %2801 = vmatprep.subr.mxu0 0.0
        %2802 = vmatpush1.msra.mxu0 0.0
        %2803 = vmatprep.subr.mxu0 0.0
        %2804 = vmatpush1.msra.mxu0 0.0
        %2805 = vmatprep.subr.mxu0 0.0
        %2806 = vmatpush1.msra.mxu0 0.0
        %2807 = vmatprep.subr.mxu0 0.0
        %2808 = vmatpush1.msra.mxu0 0.0
        %2809 = vmatprep.subr.mxu0 0.0
        %2810 = vmatpush1.msra.mxu0 0.0
        %2811 = vmatprep.subr.mxu0 0.0
        %2812 = vmatpush1.msra.mxu0 0.0
        %2813 = vmatprep.subr.mxu0 0.0
        %2814 = vmatpush1.msra.mxu0 0.0
        %2815 = vmatprep.subr.mxu0 0.0
        %2816 = vmatpush1.msra.mxu0 0.0
        %2817 = vmatprep.subr.mxu0 0.0
        %2818 = vmatpush1.msra.mxu0 0.0
        %2819 = vmatprep.subr.mxu0 0.0
        %2820 = vmatpush1.msra.mxu0 0.0
        %2821 = vmatprep.subr.mxu0 0.0
        %2822 = vmatpush1.msra.mxu0 0.0
        %2823 = vmatprep.subr.mxu0 0.0
        %2824 = vmatpush1.msra.mxu0 0.0
        %2825 = vmatprep.subr.mxu0 0.0
        %2826 = vmatpush1.msra.mxu0 0.0
        %2827 = vmatprep.subr.mxu0 0.0
        %2828 = vmatpush1.msra.mxu0 0.0
        %2829 = vmatprep.subr.mxu0 0.0
        %2830 = vmatpush1.msra.mxu0 0.0
        %2831 = vmatprep.subr.mxu0 0.0
        %2832 = vmatpush1.msra.mxu0 0.0
        %2833 = vmatprep.subr.mxu0 0.0
        %2834 = vmatpush1.msra.mxu0 0.0
        %2835 = vmatprep.mubr.f32.mxu0 0.0
        %2836 = vmatmul.mubr.f32.gmra.mrb[0].mxu0 %v2766
        %v2837 = vpop.f32.mrb[0].mxu0
        %v2838 = vadd.f32 0.0, %v2837
        %v2839 = vpop.f32.mrb[0].mxu0
        %2840 = vmatprep.mubr.f32.mxu0 0.0
        %2841 = vmatmul.mubr.f32.gmra.mrb[0].mxu0 %v2769
        %v2842 = vpop.f32.mrb[0].mxu0
        %v2843 = vadd.f32 0.0, %v2842
        %v2844 = vpop.f32.mrb[0].mxu0
        %2845 = vdwg.mxu0
        %v2847 = vsel %vm819, %v2838, 0
        %2849 = vmatprep.subr.mxu0 0.0
        %2850 = vmatpush1.xpose.msra.mxu0 %v824
        %2851 = vmatprep.subr.mxu0 0.0
        %2852 = vmatpush1.xpose.msra.mxu0 0.0
        %2853 = vmatprep.subr.mxu0 0.0
        %2854 = vmatpush1.xpose.msra.mxu0 0.0
        %2855 = vmatprep.subr.mxu0 0.0
        %2856 = vmatpush1.xpose.msra.mxu0 0.0
        %2857 = vmatprep.subr.mxu0 0.0
        %2858 = vmatpush1.xpose.msra.mxu0 0.0
        %2859 = vmatprep.subr.mxu0 0.0
        %2860 = vmatpush1.xpose.msra.mxu0 0.0
        %2861 = vmatprep.subr.mxu0 0.0
        %2862 = vmatpush1.xpose.msra.mxu0 0.0
        %2863 = vmatprep.subr.mxu0 0.0
        %2864 = vmatpush1.xpose.msra.mxu0 0.0
        %2865 = vmatprep.subr.mxu0 0.0
        %2866 = vmatpush1.xpose.msra.mxu0 0.0
        %2867 = vmatprep.subr.mxu0 0.0
        %2868 = vmatpush1.xpose.msra.mxu0 0.0
        %2869 = vmatprep.subr.mxu0 0.0
        %2870 = vmatpush1.xpose.msra.mxu0 0.0
        %2871 = vmatprep.subr.mxu0 0.0
        %2872 = vmatpush1.xpose.msra.mxu0 0.0
        %2873 = vmatprep.subr.mxu0 0.0
        %2874 = vmatpush1.xpose.msra.mxu0 0.0
        %2875 = vmatprep.subr.mxu0 0.0
        %2876 = vmatpush1.xpose.msra.mxu0 0.0
        %2877 = vmatprep.subr.mxu0 0.0
        %2878 = vmatpush1.xpose.msra.mxu0 0.0
        %2879 = vmatprep.subr.mxu0 0.0
        %2880 = vmatpush1.xpose.msra.mxu0 0.0
        %2881 = vmatprep.subr.mxu0 0.0
        %2882 = vmatpush1.xpose.msra.mxu0 0.0
        %2883 = vmatprep.subr.mxu0 0.0
        %2884 = vmatpush1.xpose.msra.mxu0 0.0
        %2885 = vmatprep.subr.mxu0 0.0
        %2886 = vmatpush1.xpose.msra.mxu0 0.0
        %2887 = vmatprep.subr.mxu0 0.0
        %2888 = vmatpush1.xpose.msra.mxu0 0.0
        %2889 = vmatprep.subr.mxu0 0.0
        %2890 = vmatpush1.xpose.msra.mxu0 0.0
        %2891 = vmatprep.subr.mxu0 0.0
        %2892 = vmatpush1.xpose.msra.mxu0 0.0
        %2893 = vmatprep.subr.mxu0 0.0
        %2894 = vmatpush1.xpose.msra.mxu0 0.0
        %2895 = vmatprep.subr.mxu0 0.0
        %2896 = vmatpush1.xpose.msra.mxu0 0.0
        %2897 = vmatprep.subr.mxu0 0.0
        %2898 = vmatpush1.xpose.msra.mxu0 0.0
        %2899 = vmatprep.subr.mxu0 0.0
        %2900 = vmatpush1.xpose.msra.mxu0 0.0
        %2901 = vmatprep.subr.mxu0 0.0
        %2902 = vmatpush1.xpose.msra.mxu0 0.0
        %2903 = vmatprep.subr.mxu0 0.0
        %2904 = vmatpush1.xpose.msra.mxu0 0.0
        %2905 = vmatprep.subr.mxu0 0.0
        %2906 = vmatpush1.xpose.msra.mxu0 0.0
        %2907 = vmatprep.subr.mxu0 0.0
        %2908 = vmatpush1.xpose.msra.mxu0 0.0
        %2909 = vmatprep.subr.mxu0 0.0
        %2910 = vmatpush1.xpose.msra.mxu0 0.0
        %2911 = vmatprep.subr.mxu0 0.0
        %2912 = vmatpush1.xpose.msra.mxu0 0.0
        %2913 = vmatprep.mubr.f32.mxu0 0.0
        %2914 = vmatmul.mubr.f32.gmra.mrb[0].mxu0 %v2847
        %v2915 = vpop.f32.mrb[0].mxu0
        %v2916 = vadd.f32 0.0, %v2915
        %v2917 = vpop.f32.mrb[0].mxu0
        %2918 = vdwg.mxu0
        %v2919 = vsel %vm819, %v2916, -inf
        %2920 = vmax.xlane.f32.xlu0 %v2919
        %v2921 = vpop.xlane.xlu0 %2920
        %v2922 = vsub.f32 %v2916, %v2921
        %v2923 = vmul.f32 %v2922, 1.442695
        %v2924 = vpow.pop %v2923
        %v2925 = vsel %vm819, %v2924, 0.0
        %2926 = vadd.xlane.f32.xlu0 %v2925
        %v2927 = vpop.xlane.xlu0 %2926
        %v2928 = vrcp.pop %v2927
        %v2929 = vmul.f32 %v2924, %v2928
        %v2931 = vsel %vm819, %v2929, 0
        %2933 = vmatprep.subr.mxu0 0.0
        %2934 = vmatpush1.msra.mxu0 %v720
        %2935 = vmatprep.subr.mxu0 0.0
        %2936 = vmatpush1.msra.mxu0 0.0
        %2937 = vmatprep.subr.mxu0 0.0
        %2938 = vmatpush1.msra.mxu0 0.0
        %2939 = vmatprep.subr.mxu0 0.0
        %2940 = vmatpush1.msra.mxu0 0.0
        %2941 = vmatprep.subr.mxu0 0.0
        %2942 = vmatpush1.msra.mxu0 0.0
        %2943 = vmatprep.subr.mxu0 0.0
        %2944 = vmatpush1.msra.mxu0 0.0
        %2945 = vmatprep.subr.mxu0 0.0
        %2946 = vmatpush1.msra.mxu0 0.0
        %2947 = vmatprep.subr.mxu0 0.0
        %2948 = vmatpush1.msra.mxu0 0.0
        %2949 = vmatprep.subr.mxu0 0.0
        %2950 = vmatpush1.msra.mxu0 0.0
        %2951 = vmatprep.subr.mxu0 0.0
        %2952 = vmatpush1.msra.mxu0 0.0
        %2953 = vmatprep.subr.mxu0 0.0
        %2954 = vmatpush1.msra.mxu0 0.0
        %2955 = vmatprep.subr.mxu0 0.0
        %2956 = vmatpush1.msra.mxu0 0.0
        %2957 = vmatprep.subr.mxu0 0.0
        %2958 = vmatpush1.msra.mxu0 0.0
        %2959 = vmatprep.subr.mxu0 0.0
        %2960 = vmatpush1.msra.mxu0 0.0
        %2961 = vmatprep.subr.mxu0 0.0
        %2962 = vmatpush1.msra.mxu0 0.0
        %2963 = vmatprep.subr.mxu0 0.0
        %2964 = vmatpush1.msra.mxu0 0.0
        %2965 = vmatprep.subr.mxu0 0.0
        %2966 = vmatpush1.msra.mxu0 0.0
        %2967 = vmatprep.subr.mxu0 0.0
        %2968 = vmatpush1.msra.mxu0 0.0
        %2969 = vmatprep.subr.mxu0 0.0
        %2970 = vmatpush1.msra.mxu0 0.0
        %2971 = vmatprep.subr.mxu0 0.0
        %2972 = vmatpush1.msra.mxu0 0.0
        %2973 = vmatprep.subr.mxu0 0.0
        %2974 = vmatpush1.msra.mxu0 0.0
        %2975 = vmatprep.subr.mxu0 0.0
        %2976 = vmatpush1.msra.mxu0 0.0
        %2977 = vmatprep.subr.mxu0 0.0
        %2978 = vmatpush1.msra.mxu0 0.0
        %2979 = vmatprep.subr.mxu0 0.0
        %2980 = vmatpush1.msra.mxu0 0.0
        %2981 = vmatprep.subr.mxu0 0.0
        %2982 = vmatpush1.msra.mxu0 0.0
        %2983 = vmatprep.subr.mxu0 0.0
        %2984 = vmatpush1.msra.mxu0 0.0
        %2985 = vmatprep.subr.mxu0 0.0
        %2986 = vmatpush1.msra.mxu0 0.0
        %2987 = vmatprep.subr.mxu0 0.0
        %2988 = vmatpush1.msra.mxu0 0.0
        %2989 = vmatprep.subr.mxu0 0.0
        %2990 = vmatpush1.msra.mxu0 0.0
        %2991 = vmatprep.subr.mxu0 0.0
        %2992 = vmatpush1.msra.mxu0 0.0
        %2993 = vmatprep.subr.mxu0 0.0
        %2994 = vmatpush1.msra.mxu0 0.0
        %2995 = vmatprep.subr.mxu0 0.0
        %2996 = vmatpush1.msra.mxu0 0.0
        %2997 = vmatprep.mubr.f32.mxu0 0.0
        %2998 = vmatmul.mubr.f32.gmra.mrb[0].mxu0 %v2931
        %v2999 = vpop.f32.mrb[0].mxu0
        %v3000 = vadd.f32 0.0, %v2999
        %v3001 = vpop.f32.mrb[0].mxu0
        %3002 = vdwg.mxu0
        %3003 = vrot.lane.b32.xlu0 %v2838, 120
        %v3004 = vpop.permute.xlu0 %3003
        %v3005 = vsel %vm819, %v3004, 0
        %3007 = vmatprep.subr.mxu0 0.0
        %3008 = vmatpush1.xpose.msra.mxu0 %v986
        %3009 = vmatprep.subr.mxu0 0.0
        %3010 = vmatpush1.xpose.msra.mxu0 0.0
        %3011 = vmatprep.subr.mxu0 0.0
        %3012 = vmatpush1.xpose.msra.mxu0 0.0
        %3013 = vmatprep.subr.mxu0 0.0
        %3014 = vmatpush1.xpose.msra.mxu0 0.0
        %3015 = vmatprep.subr.mxu0 0.0
        %3016 = vmatpush1.xpose.msra.mxu0 0.0
        %3017 = vmatprep.subr.mxu0 0.0
        %3018 = vmatpush1.xpose.msra.mxu0 0.0
        %3019 = vmatprep.subr.mxu0 0.0
        %3020 = vmatpush1.xpose.msra.mxu0 0.0
        %3021 = vmatprep.subr.mxu0 0.0
        %3022 = vmatpush1.xpose.msra.mxu0 0.0
        %3023 = vmatprep.subr.mxu0 0.0
        %3024 = vmatpush1.xpose.msra.mxu0 0.0
        %3025 = vmatprep.subr.mxu0 0.0
        %3026 = vmatpush1.xpose.msra.mxu0 0.0
        %3027 = vmatprep.subr.mxu0 0.0
        %3028 = vmatpush1.xpose.msra.mxu0 0.0
        %3029 = vmatprep.subr.mxu0 0.0
        %3030 = vmatpush1.xpose.msra.mxu0 0.0
        %3031 = vmatprep.subr.mxu0 0.0
        %3032 = vmatpush1.xpose.msra.mxu0 0.0
        %3033 = vmatprep.subr.mxu0 0.0
        %3034 = vmatpush1.xpose.msra.mxu0 0.0
        %3035 = vmatprep.subr.mxu0 0.0
        %3036 = vmatpush1.xpose.msra.mxu0 0.0
        %3037 = vmatprep.subr.mxu0 0.0
        %3038 = vmatpush1.xpose.msra.mxu0 0.0
        %3039 = vmatprep.subr.mxu0 0.0
        %3040 = vmatpush1.xpose.msra.mxu0 0.0
        %3041 = vmatprep.subr.mxu0 0.0
        %3042 = vmatpush1.xpose.msra.mxu0 0.0
        %3043 = vmatprep.subr.mxu0 0.0
        %3044 = vmatpush1.xpose.msra.mxu0 0.0
        %3045 = vmatprep.subr.mxu0 0.0
        %3046 = vmatpush1.xpose.msra.mxu0 0.0
        %3047 = vmatprep.subr.mxu0 0.0
        %3048 = vmatpush1.xpose.msra.mxu0 0.0
        %3049 = vmatprep.subr.mxu0 0.0
        %3050 = vmatpush1.xpose.msra.mxu0 0.0
        %3051 = vmatprep.subr.mxu0 0.0
        %3052 = vmatpush1.xpose.msra.mxu0 0.0
        %3053 = vmatprep.subr.mxu0 0.0
        %3054 = vmatpush1.xpose.msra.mxu0 0.0
        %3055 = vmatprep.subr.mxu0 0.0
        %3056 = vmatpush1.xpose.msra.mxu0 0.0
        %3057 = vmatprep.subr.mxu0 0.0
        %3058 = vmatpush1.xpose.msra.mxu0 0.0
        %3059 = vmatprep.subr.mxu0 0.0
        %3060 = vmatpush1.xpose.msra.mxu0 0.0
        %3061 = vmatprep.subr.mxu0 0.0
        %3062 = vmatpush1.xpose.msra.mxu0 0.0
        %3063 = vmatprep.subr.mxu0 0.0
        %3064 = vmatpush1.xpose.msra.mxu0 0.0
        %3065 = vmatprep.subr.mxu0 0.0
        %3066 = vmatpush1.xpose.msra.mxu0 0.0
        %3067 = vmatprep.subr.mxu0 0.0
        %3068 = vmatpush1.xpose.msra.mxu0 0.0
        %3069 = vmatprep.subr.mxu0 0.0
        %3070 = vmatpush1.xpose.msra.mxu0 0.0
        %3071 = vmatprep.mubr.f32.mxu0 0.0
        %3072 = vmatmul.mubr.f32.gmra.mrb[0].mxu0 %v3005
        %v3073 = vpop.f32.mrb[0].mxu0
        %v3074 = vadd.f32 0.0, %v3073
        %v3075 = vpop.f32.mrb[0].mxu0
        %3076 = vdwg.mxu0
        %v3077 = vsel %vm819, %v3074, -inf
        %3078 = vmax.xlane.f32.xlu0 %v3077
        %v3079 = vpop.xlane.xlu0 %3078
        %v3080 = vsub.f32 %v3074, %v3079
        %v3081 = vmul.f32 %v3080, 1.442695
        %v3082 = vpow.pop %v3081
        %v3083 = vsel %vm819, %v3082, 0.0
        %3084 = vadd.xlane.f32.xlu0 %v3083
        %v3085 = vpop.xlane.xlu0 %3084
        %v3086 = vrcp.pop %v3085
        %v3087 = vmul.f32 %v3082, %v3086
        %v3089 = vsel %vm819, %v3087, 0
        %3091 = vmatprep.subr.mxu0 0.0
        %3092 = vmatpush1.msra.mxu0 %v1071
        %3093 = vmatprep.subr.mxu0 0.0
        %3094 = vmatpush1.msra.mxu0 0.0
        %3095 = vmatprep.subr.mxu0 0.0
        %3096 = vmatpush1.msra.mxu0 0.0
        %3097 = vmatprep.subr.mxu0 0.0
        %3098 = vmatpush1.msra.mxu0 0.0
        %3099 = vmatprep.subr.mxu0 0.0
        %3100 = vmatpush1.msra.mxu0 0.0
        %3101 = vmatprep.subr.mxu0 0.0
        %3102 = vmatpush1.msra.mxu0 0.0
        %3103 = vmatprep.subr.mxu0 0.0
        %3104 = vmatpush1.msra.mxu0 0.0
        %3105 = vmatprep.subr.mxu0 0.0
        %3106 = vmatpush1.msra.mxu0 0.0
        %3107 = vmatprep.subr.mxu0 0.0
        %3108 = vmatpush1.msra.mxu0 0.0
        %3109 = vmatprep.subr.mxu0 0.0
        %3110 = vmatpush1.msra.mxu0 0.0
        %3111 = vmatprep.subr.mxu0 0.0
        %3112 = vmatpush1.msra.mxu0 0.0
        %3113 = vmatprep.subr.mxu0 0.0
        %3114 = vmatpush1.msra.mxu0 0.0
        %3115 = vmatprep.subr.mxu0 0.0
        %3116 = vmatpush1.msra.mxu0 0.0
        %3117 = vmatprep.subr.mxu0 0.0
        %3118 = vmatpush1.msra.mxu0 0.0
        %3119 = vmatprep.subr.mxu0 0.0
        %3120 = vmatpush1.msra.mxu0 0.0
        %3121 = vmatprep.subr.mxu0 0.0
        %3122 = vmatpush1.msra.mxu0 0.0
        %3123 = vmatprep.subr.mxu0 0.0
        %3124 = vmatpush1.msra.mxu0 0.0
        %3125 = vmatprep.subr.mxu0 0.0
        %3126 = vmatpush1.msra.mxu0 0.0
        %3127 = vmatprep.subr.mxu0 0.0
        %3128 = vmatpush1.msra.mxu0 0.0
        %3129 = vmatprep.subr.mxu0 0.0
        %3130 = vmatpush1.msra.mxu0 0.0
        %3131 = vmatprep.subr.mxu0 0.0
        %3132 = vmatpush1.msra.mxu0 0.0
        %3133 = vmatprep.subr.mxu0 0.0
        %3134 = vmatpush1.msra.mxu0 0.0
        %3135 = vmatprep.subr.mxu0 0.0
        %3136 = vmatpush1.msra.mxu0 0.0
        %3137 = vmatprep.subr.mxu0 0.0
        %3138 = vmatpush1.msra.mxu0 0.0
        %3139 = vmatprep.subr.mxu0 0.0
        %3140 = vmatpush1.msra.mxu0 0.0
        %3141 = vmatprep.subr.mxu0 0.0
        %3142 = vmatpush1.msra.mxu0 0.0
        %3143 = vmatprep.subr.mxu0 0.0
        %3144 = vmatpush1.msra.mxu0 0.0
        %3145 = vmatprep.subr.mxu0 0.0
        %3146 = vmatpush1.msra.mxu0 0.0
        %3147 = vmatprep.subr.mxu0 0.0
        %3148 = vmatpush1.msra.mxu0 0.0
        %3149 = vmatprep.subr.mxu0 0.0
        %3150 = vmatpush1.msra.mxu0 0.0
        %3151 = vmatprep.subr.mxu0 0.0
        %3152 = vmatpush1.msra.mxu0 0.0
        %3153 = vmatprep.subr.mxu0 0.0
        %3154 = vmatpush1.msra.mxu0 0.0
        %3155 = vmatprep.mubr.f32.mxu0 0.0
        %3156 = vmatmul.mubr.f32.gmra.mrb[0].mxu0 %v3089
        %v3157 = vpop.f32.mrb[0].mxu0
        %v3158 = vadd.f32 0.0, %v3157
        %v3159 = vpop.f32.mrb[0].mxu0
        %3160 = vdwg.mxu0
        %v3162 = vsel %vm819, %v3158, 0
        %3164 = vmatprep.subr.mxu0 0.0
        %3165 = vmatpush1.msra.mxu0 %v729
        %3166 = vmatprep.subr.mxu0 0.0
        %3167 = vmatpush1.msra.mxu0 0.0
        %3168 = vmatprep.subr.mxu0 0.0
        %3169 = vmatpush1.msra.mxu0 0.0
        %3170 = vmatprep.subr.mxu0 0.0
        %3171 = vmatpush1.msra.mxu0 0.0
        %3172 = vmatprep.subr.mxu0 0.0
        %3173 = vmatpush1.msra.mxu0 0.0
        %3174 = vmatprep.subr.mxu0 0.0
        %3175 = vmatpush1.msra.mxu0 0.0
        %3176 = vmatprep.subr.mxu0 0.0
        %3177 = vmatpush1.msra.mxu0 0.0
        %3178 = vmatprep.subr.mxu0 0.0
        %3179 = vmatpush1.msra.mxu0 0.0
        %3180 = vmatprep.subr.mxu0 0.0
        %3181 = vmatpush1.msra.mxu0 0.0
        %3182 = vmatprep.subr.mxu0 0.0
        %3183 = vmatpush1.msra.mxu0 0.0
        %3184 = vmatprep.subr.mxu0 0.0
        %3185 = vmatpush1.msra.mxu0 0.0
        %3186 = vmatprep.subr.mxu0 0.0
        %3187 = vmatpush1.msra.mxu0 0.0
        %3188 = vmatprep.subr.mxu0 0.0
        %3189 = vmatpush1.msra.mxu0 0.0
        %3190 = vmatprep.subr.mxu0 0.0
        %3191 = vmatpush1.msra.mxu0 0.0
        %3192 = vmatprep.subr.mxu0 0.0
        %3193 = vmatpush1.msra.mxu0 0.0
        %3194 = vmatprep.subr.mxu0 0.0
        %3195 = vmatpush1.msra.mxu0 0.0
        %3196 = vmatprep.subr.mxu0 0.0
        %3197 = vmatpush1.msra.mxu0 0.0
        %3198 = vmatprep.subr.mxu0 0.0
        %3199 = vmatpush1.msra.mxu0 0.0
        %3200 = vmatprep.subr.mxu0 0.0
        %3201 = vmatpush1.msra.mxu0 0.0
        %3202 = vmatprep.subr.mxu0 0.0
        %3203 = vmatpush1.msra.mxu0 0.0
        %3204 = vmatprep.subr.mxu0 0.0
        %3205 = vmatpush1.msra.mxu0 0.0
        %3206 = vmatprep.subr.mxu0 0.0
        %3207 = vmatpush1.msra.mxu0 0.0
        %3208 = vmatprep.subr.mxu0 0.0
        %3209 = vmatpush1.msra.mxu0 0.0
        %3210 = vmatprep.subr.mxu0 0.0
        %3211 = vmatpush1.msra.mxu0 0.0
        %3212 = vmatprep.subr.mxu0 0.0
        %3213 = vmatpush1.msra.mxu0 0.0
        %3214 = vmatprep.subr.mxu0 0.0
        %3215 = vmatpush1.msra.mxu0 0.0
        %3216 = vmatprep.subr.mxu0 0.0
        %3217 = vmatpush1.msra.mxu0 0.0
        %3218 = vmatprep.subr.mxu0 0.0
        %3219 = vmatpush1.msra.mxu0 0.0
        %3220 = vmatprep.subr.mxu0 0.0
        %3221 = vmatpush1.msra.mxu0 0.0
        %3222 = vmatprep.subr.mxu0 0.0
        %3223 = vmatpush1.msra.mxu0 0.0
        %3224 = vmatprep.subr.mxu0 0.0
        %3225 = vmatpush1.msra.mxu0 0.0
        %3226 = vmatprep.subr.mxu0 0.0
        %3227 = vmatpush1.msra.mxu0 0.0
        %3228 = vmatprep.mubr.f32.mxu0 0.0
        %3229 = vmatmul.mubr.f32.gmra.mrb[0].mxu0 %v3162
        %v3230 = vpop.f32.mrb[0].mxu0
        %v3231 = vadd.f32 0.0, %v3230
        %v3232 = vpop.f32.mrb[0].mxu0
        %3233 = vdwg.mxu0
        %v3235 = vsel %vm819, %v3000, 0
        %3237 = vmatprep.subr.mxu0 0.0
        %3238 = vmatpush1.msra.mxu0 %v728
        %3239 = vmatprep.subr.mxu0 0.0
        %3240 = vmatpush1.msra.mxu0 0.0
        %3241 = vmatprep.subr.mxu0 0.0
        %3242 = vmatpush1.msra.mxu0 0.0
        %3243 = vmatprep.subr.mxu0 0.0
        %3244 = vmatpush1.msra.mxu0 0.0
        %3245 = vmatprep.subr.mxu0 0.0
        %3246 = vmatpush1.msra.mxu0 0.0
        %3247 = vmatprep.subr.mxu0 0.0
        %3248 = vmatpush1.msra.mxu0 0.0
        %3249 = vmatprep.subr.mxu0 0.0
        %3250 = vmatpush1.msra.mxu0 0.0
        %3251 = vmatprep.subr.mxu0 0.0
        %3252 = vmatpush1.msra.mxu0 0.0
        %3253 = vmatprep.subr.mxu0 0.0
        %3254 = vmatpush1.msra.mxu0 0.0
        %3255 = vmatprep.subr.mxu0 0.0
        %3256 = vmatpush1.msra.mxu0 0.0
        %3257 = vmatprep.subr.mxu0 0.0
        %3258 = vmatpush1.msra.mxu0 0.0
        %3259 = vmatprep.subr.mxu0 0.0
        %3260 = vmatpush1.msra.mxu0 0.0
        %3261 = vmatprep.subr.mxu0 0.0
        %3262 = vmatpush1.msra.mxu0 0.0
        %3263 = vmatprep.subr.mxu0 0.0
        %3264 = vmatpush1.msra.mxu0 0.0
        %3265 = vmatprep.subr.mxu0 0.0
        %3266 = vmatpush1.msra.mxu0 0.0
        %3267 = vmatprep.subr.mxu0 0.0
        %3268 = vmatpush1.msra.mxu0 0.0
        %3269 = vmatprep.subr.mxu0 0.0
        %3270 = vmatpush1.msra.mxu0 0.0
        %3271 = vmatprep.subr.mxu0 0.0
        %3272 = vmatpush1.msra.mxu0 0.0
        %3273 = vmatprep.subr.mxu0 0.0
        %3274 = vmatpush1.msra.mxu0 0.0
        %3275 = vmatprep.subr.mxu0 0.0
        %3276 = vmatpush1.msra.mxu0 0.0
        %3277 = vmatprep.subr.mxu0 0.0
        %3278 = vmatpush1.msra.mxu0 0.0
        %3279 = vmatprep.subr.mxu0 0.0
        %3280 = vmatpush1.msra.mxu0 0.0
        %3281 = vmatprep.subr.mxu0 0.0
        %3282 = vmatpush1.msra.mxu0 0.0
        %3283 = vmatprep.subr.mxu0 0.0
        %3284 = vmatpush1.msra.mxu0 0.0
        %3285 = vmatprep.subr.mxu0 0.0
        %3286 = vmatpush1.msra.mxu0 0.0
        %3287 = vmatprep.subr.mxu0 0.0
        %3288 = vmatpush1.msra.mxu0 0.0
        %3289 = vmatprep.subr.mxu0 0.0
        %3290 = vmatpush1.msra.mxu0 0.0
        %3291 = vmatprep.subr.mxu0 0.0
        %3292 = vmatpush1.msra.mxu0 0.0
        %3293 = vmatprep.subr.mxu0 0.0
        %3294 = vmatpush1.msra.mxu0 0.0
        %3295 = vmatprep.subr.mxu0 0.0
        %3296 = vmatpush1.msra.mxu0 0.0
        %3297 = vmatprep.subr.mxu0 0.0
        %3298 = vmatpush1.msra.mxu0 0.0
        %3299 = vmatprep.subr.mxu0 0.0
        %3300 = vmatpush1.msra.mxu0 0.0
        %3301 = vmatprep.mubr.f32.mxu0 0.0
        %3302 = vmatmul.mubr.f32.gmra.mrb[0].mxu0 %v3235
        %v3303 = vpop.f32.mrb[0].mxu0
        %v3304 = vadd.f32 %v3231, %v3303
        %v3305 = vpop.f32.mrb[0].mxu0
        %3306 = vdwg.mxu0
        %3307 = vrot.lane.b32.xlu0 %v2838, 112
        %v3308 = vpop.permute.xlu0 %3307
        %v3309 = vsel %vm819, %v3308, 0
        %3311 = vmatprep.subr.mxu0 0.0
        %3312 = vmatpush1.xpose.msra.mxu0 %v1298
        %3313 = vmatprep.subr.mxu0 0.0
        %3314 = vmatpush1.xpose.msra.mxu0 0.0
        %3315 = vmatprep.subr.mxu0 0.0
        %3316 = vmatpush1.xpose.msra.mxu0 0.0
        %3317 = vmatprep.subr.mxu0 0.0
        %3318 = vmatpush1.xpose.msra.mxu0 0.0
        %3319 = vmatprep.subr.mxu0 0.0
        %3320 = vmatpush1.xpose.msra.mxu0 0.0
        %3321 = vmatprep.subr.mxu0 0.0
        %3322 = vmatpush1.xpose.msra.mxu0 0.0
        %3323 = vmatprep.subr.mxu0 0.0
        %3324 = vmatpush1.xpose.msra.mxu0 0.0
        %3325 = vmatprep.subr.mxu0 0.0
        %3326 = vmatpush1.xpose.msra.mxu0 0.0
        %3327 = vmatprep.subr.mxu0 0.0
        %3328 = vmatpush1.xpose.msra.mxu0 0.0
        %3329 = vmatprep.subr.mxu0 0.0
        %3330 = vmatpush1.xpose.msra.mxu0 0.0
        %3331 = vmatprep.subr.mxu0 0.0
        %3332 = vmatpush1.xpose.msra.mxu0 0.0
        %3333 = vmatprep.subr.mxu0 0.0
        %3334 = vmatpush1.xpose.msra.mxu0 0.0
        %3335 = vmatprep.subr.mxu0 0.0
        %3336 = vmatpush1.xpose.msra.mxu0 0.0
        %3337 = vmatprep.subr.mxu0 0.0
        %3338 = vmatpush1.xpose.msra.mxu0 0.0
        %3339 = vmatprep.subr.mxu0 0.0
        %3340 = vmatpush1.xpose.msra.mxu0 0.0
        %3341 = vmatprep.subr.mxu0 0.0
        %3342 = vmatpush1.xpose.msra.mxu0 0.0
        %3343 = vmatprep.subr.mxu0 0.0
        %3344 = vmatpush1.xpose.msra.mxu0 0.0
        %3345 = vmatprep.subr.mxu0 0.0
        %3346 = vmatpush1.xpose.msra.mxu0 0.0
        %3347 = vmatprep.subr.mxu0 0.0
        %3348 = vmatpush1.xpose.msra.mxu0 0.0
        %3349 = vmatprep.subr.mxu0 0.0
        %3350 = vmatpush1.xpose.msra.mxu0 0.0
        %3351 = vmatprep.subr.mxu0 0.0
        %3352 = vmatpush1.xpose.msra.mxu0 0.0
        %3353 = vmatprep.subr.mxu0 0.0
        %3354 = vmatpush1.xpose.msra.mxu0 0.0
        %3355 = vmatprep.subr.mxu0 0.0
        %3356 = vmatpush1.xpose.msra.mxu0 0.0
        %3357 = vmatprep.subr.mxu0 0.0
        %3358 = vmatpush1.xpose.msra.mxu0 0.0
        %3359 = vmatprep.subr.mxu0 0.0
        %3360 = vmatpush1.xpose.msra.mxu0 0.0
        %3361 = vmatprep.subr.mxu0 0.0
        %3362 = vmatpush1.xpose.msra.mxu0 0.0
        %3363 = vmatprep.subr.mxu0 0.0
        %3364 = vmatpush1.xpose.msra.mxu0 0.0
        %3365 = vmatprep.subr.mxu0 0.0
        %3366 = vmatpush1.xpose.msra.mxu0 0.0
        %3367 = vmatprep.subr.mxu0 0.0
        %3368 = vmatpush1.xpose.msra.mxu0 0.0
        %3369 = vmatprep.subr.mxu0 0.0
        %3370 = vmatpush1.xpose.msra.mxu0 0.0
        %3371 = vmatprep.subr.mxu0 0.0
        %3372 = vmatpush1.xpose.msra.mxu0 0.0
        %3373 = vmatprep.subr.mxu0 0.0
        %3374 = vmatpush1.xpose.msra.mxu0 0.0
        %3375 = vmatprep.mubr.f32.mxu0 0.0
        %3376 = vmatmul.mubr.f32.gmra.mrb[0].mxu0 %v3309
        %v3377 = vpop.f32.mrb[0].mxu0
        %v3378 = vadd.f32 0.0, %v3377
        %v3379 = vpop.f32.mrb[0].mxu0
        %3380 = vdwg.mxu0
        %v3381 = vsel %vm819, %v3378, -inf
        %3382 = vmax.xlane.f32.xlu0 %v3381
        %v3383 = vpop.xlane.xlu0 %3382
        %v3384 = vsub.f32 %v3378, %v3383
        %v3385 = vmul.f32 %v3384, 1.442695
        %v3386 = vpow.pop %v3385
        %v3387 = vsel %vm819, %v3386, 0.0
        %3388 = vadd.xlane.f32.xlu0 %v3387
        %v3389 = vpop.xlane.xlu0 %3388
        %v3390 = vrcp.pop %v3389
        %v3391 = vmul.f32 %v3386, %v3390
        %v3393 = vsel %vm819, %v3391, 0
        %3395 = vmatprep.subr.mxu0 0.0
        %3396 = vmatpush1.msra.mxu0 %v1382
        %3397 = vmatprep.subr.mxu0 0.0
        %3398 = vmatpush1.msra.mxu0 0.0
        %3399 = vmatprep.subr.mxu0 0.0
        %3400 = vmatpush1.msra.mxu0 0.0
        %3401 = vmatprep.subr.mxu0 0.0
        %3402 = vmatpush1.msra.mxu0 0.0
        %3403 = vmatprep.subr.mxu0 0.0
        %3404 = vmatpush1.msra.mxu0 0.0
        %3405 = vmatprep.subr.mxu0 0.0
        %3406 = vmatpush1.msra.mxu0 0.0
        %3407 = vmatprep.subr.mxu0 0.0
        %3408 = vmatpush1.msra.mxu0 0.0
        %3409 = vmatprep.subr.mxu0 0.0
        %3410 = vmatpush1.msra.mxu0 0.0
        %3411 = vmatprep.subr.mxu0 0.0
        %3412 = vmatpush1.msra.mxu0 0.0
        %3413 = vmatprep.subr.mxu0 0.0
        %3414 = vmatpush1.msra.mxu0 0.0
        %3415 = vmatprep.subr.mxu0 0.0
        %3416 = vmatpush1.msra.mxu0 0.0
        %3417 = vmatprep.subr.mxu0 0.0
        %3418 = vmatpush1.msra.mxu0 0.0
        %3419 = vmatprep.subr.mxu0 0.0
        %3420 = vmatpush1.msra.mxu0 0.0
        %3421 = vmatprep.subr.mxu0 0.0
        %3422 = vmatpush1.msra.mxu0 0.0
        %3423 = vmatprep.subr.mxu0 0.0
        %3424 = vmatpush1.msra.mxu0 0.0
        %3425 = vmatprep.subr.mxu0 0.0
        %3426 = vmatpush1.msra.mxu0 0.0
        %3427 = vmatprep.subr.mxu0 0.0
        %3428 = vmatpush1.msra.mxu0 0.0
        %3429 = vmatprep.subr.mxu0 0.0
        %3430 = vmatpush1.msra.mxu0 0.0
        %3431 = vmatprep.subr.mxu0 0.0
        %3432 = vmatpush1.msra.mxu0 0.0
        %3433 = vmatprep.subr.mxu0 0.0
        %3434 = vmatpush1.msra.mxu0 0.0
        %3435 = vmatprep.subr.mxu0 0.0
        %3436 = vmatpush1.msra.mxu0 0.0
        %3437 = vmatprep.subr.mxu0 0.0
        %3438 = vmatpush1.msra.mxu0 0.0
        %3439 = vmatprep.subr.mxu0 0.0
        %3440 = vmatpush1.msra.mxu0 0.0
        %3441 = vmatprep.subr.mxu0 0.0
        %3442 = vmatpush1.msra.mxu0 0.0
        %3443 = vmatprep.subr.mxu0 0.0
        %3444 = vmatpush1.msra.mxu0 0.0
        %3445 = vmatprep.subr.mxu0 0.0
        %3446 = vmatpush1.msra.mxu0 0.0
        %3447 = vmatprep.subr.mxu0 0.0
        %3448 = vmatpush1.msra.mxu0 0.0
        %3449 = vmatprep.subr.mxu0 0.0
        %3450 = vmatpush1.msra.mxu0 0.0
        %3451 = vmatprep.subr.mxu0 0.0
        %3452 = vmatpush1.msra.mxu0 0.0
        %3453 = vmatprep.subr.mxu0 0.0
        %3454 = vmatpush1.msra.mxu0 0.0
        %3455 = vmatprep.subr.mxu0 0.0
        %3456 = vmatpush1.msra.mxu0 0.0
        %3457 = vmatprep.subr.mxu0 0.0
        %3458 = vmatpush1.msra.mxu0 0.0
        %3459 = vmatprep.mubr.f32.mxu0 0.0
        %3460 = vmatmul.mubr.f32.gmra.mrb[0].mxu0 %v3393
        %v3461 = vpop.f32.mrb[0].mxu0
        %v3462 = vadd.f32 0.0, %v3461
        %v3463 = vpop.f32.mrb[0].mxu0
        %3464 = vdwg.mxu0
        %v3466 = vsel %vm819, %v3462, 0
        %3468 = vmatprep.subr.mxu0 0.0
        %3469 = vmatpush1.msra.mxu0 %v730
        %3470 = vmatprep.subr.mxu0 0.0
        %3471 = vmatpush1.msra.mxu0 0.0
        %3472 = vmatprep.subr.mxu0 0.0
        %3473 = vmatpush1.msra.mxu0 0.0
        %3474 = vmatprep.subr.mxu0 0.0
        %3475 = vmatpush1.msra.mxu0 0.0
        %3476 = vmatprep.subr.mxu0 0.0
        %3477 = vmatpush1.msra.mxu0 0.0
        %3478 = vmatprep.subr.mxu0 0.0
        %3479 = vmatpush1.msra.mxu0 0.0
        %3480 = vmatprep.subr.mxu0 0.0
        %3481 = vmatpush1.msra.mxu0 0.0
        %3482 = vmatprep.subr.mxu0 0.0
        %3483 = vmatpush1.msra.mxu0 0.0
        %3484 = vmatprep.subr.mxu0 0.0
        %3485 = vmatpush1.msra.mxu0 0.0
        %3486 = vmatprep.subr.mxu0 0.0
        %3487 = vmatpush1.msra.mxu0 0.0
        %3488 = vmatprep.subr.mxu0 0.0
        %3489 = vmatpush1.msra.mxu0 0.0
        %3490 = vmatprep.subr.mxu0 0.0
        %3491 = vmatpush1.msra.mxu0 0.0
        %3492 = vmatprep.subr.mxu0 0.0
        %3493 = vmatpush1.msra.mxu0 0.0
        %3494 = vmatprep.subr.mxu0 0.0
        %3495 = vmatpush1.msra.mxu0 0.0
        %3496 = vmatprep.subr.mxu0 0.0
        %3497 = vmatpush1.msra.mxu0 0.0
        %3498 = vmatprep.subr.mxu0 0.0
        %3499 = vmatpush1.msra.mxu0 0.0
        %3500 = vmatprep.subr.mxu0 0.0
        %3501 = vmatpush1.msra.mxu0 0.0
        %3502 = vmatprep.subr.mxu0 0.0
        %3503 = vmatpush1.msra.mxu0 0.0
        %3504 = vmatprep.subr.mxu0 0.0
        %3505 = vmatpush1.msra.mxu0 0.0
        %3506 = vmatprep.subr.mxu0 0.0
        %3507 = vmatpush1.msra.mxu0 0.0
        %3508 = vmatprep.subr.mxu0 0.0
        %3509 = vmatpush1.msra.mxu0 0.0
        %3510 = vmatprep.subr.mxu0 0.0
        %3511 = vmatpush1.msra.mxu0 0.0
        %3512 = vmatprep.subr.mxu0 0.0
        %3513 = vmatpush1.msra.mxu0 0.0
        %3514 = vmatprep.subr.mxu0 0.0
        %3515 = vmatpush1.msra.mxu0 0.0
        %3516 = vmatprep.subr.mxu0 0.0
        %3517 = vmatpush1.msra.mxu0 0.0
        %3518 = vmatprep.subr.mxu0 0.0
        %3519 = vmatpush1.msra.mxu0 0.0
        %3520 = vmatprep.subr.mxu0 0.0
        %3521 = vmatpush1.msra.mxu0 0.0
        %3522 = vmatprep.subr.mxu0 0.0
        %3523 = vmatpush1.msra.mxu0 0.0
        %3524 = vmatprep.subr.mxu0 0.0
        %3525 = vmatpush1.msra.mxu0 0.0
        %3526 = vmatprep.subr.mxu0 0.0
        %3527 = vmatpush1.msra.mxu0 0.0
        %3528 = vmatprep.subr.mxu0 0.0
        %3529 = vmatpush1.msra.mxu0 0.0
        %3530 = vmatprep.subr.mxu0 0.0
        %3531 = vmatpush1.msra.mxu0 0.0
        %3532 = vmatprep.mubr.f32.mxu0 0.0
        %3533 = vmatmul.mubr.f32.gmra.mrb[0].mxu0 %v3466
        %v3534 = vpop.f32.mrb[0].mxu0
        %v3535 = vadd.f32 0.0, %v3534
        %v3536 = vpop.f32.mrb[0].mxu0
        %3537 = vdwg.mxu0
        %v3538 = vadd.f32 %v3304, %v3535
        %3539 = vrot.lane.b32.xlu0 %v2838, 104
        %v3540 = vpop.permute.xlu0 %3539
        %v3541 = vsel %vm819, %v3540, 0
        %3543 = vmatprep.subr.mxu0 0.0
        %3544 = vmatpush1.xpose.msra.mxu0 %v1537
        %3545 = vmatprep.subr.mxu0 0.0
        %3546 = vmatpush1.xpose.msra.mxu0 0.0
        %3547 = vmatprep.subr.mxu0 0.0
        %3548 = vmatpush1.xpose.msra.mxu0 0.0
        %3549 = vmatprep.subr.mxu0 0.0
        %3550 = vmatpush1.xpose.msra.mxu0 0.0
        %3551 = vmatprep.subr.mxu0 0.0
        %3552 = vmatpush1.xpose.msra.mxu0 0.0
        %3553 = vmatprep.subr.mxu0 0.0
        %3554 = vmatpush1.xpose.msra.mxu0 0.0
        %3555 = vmatprep.subr.mxu0 0.0
        %3556 = vmatpush1.xpose.msra.mxu0 0.0
        %3557 = vmatprep.subr.mxu0 0.0
        %3558 = vmatpush1.xpose.msra.mxu0 0.0
        %3559 = vmatprep.subr.mxu0 0.0
        %3560 = vmatpush1.xpose.msra.mxu0 0.0
        %3561 = vmatprep.subr.mxu0 0.0
        %3562 = vmatpush1.xpose.msra.mxu0 0.0
        %3563 = vmatprep.subr.mxu0 0.0
        %3564 = vmatpush1.xpose.msra.mxu0 0.0
        %3565 = vmatprep.subr.mxu0 0.0
        %3566 = vmatpush1.xpose.msra.mxu0 0.0
        %3567 = vmatprep.subr.mxu0 0.0
        %3568 = vmatpush1.xpose.msra.mxu0 0.0
        %3569 = vmatprep.subr.mxu0 0.0
        %3570 = vmatpush1.xpose.msra.mxu0 0.0
        %3571 = vmatprep.subr.mxu0 0.0
        %3572 = vmatpush1.xpose.msra.mxu0 0.0
        %3573 = vmatprep.subr.mxu0 0.0
        %3574 = vmatpush1.xpose.msra.mxu0 0.0
        %3575 = vmatprep.subr.mxu0 0.0
        %3576 = vmatpush1.xpose.msra.mxu0 0.0
        %3577 = vmatprep.subr.mxu0 0.0
        %3578 = vmatpush1.xpose.msra.mxu0 0.0
        %3579 = vmatprep.subr.mxu0 0.0
        %3580 = vmatpush1.xpose.msra.mxu0 0.0
        %3581 = vmatprep.subr.mxu0 0.0
        %3582 = vmatpush1.xpose.msra.mxu0 0.0
        %3583 = vmatprep.subr.mxu0 0.0
        %3584 = vmatpush1.xpose.msra.mxu0 0.0
        %3585 = vmatprep.subr.mxu0 0.0
        %3586 = vmatpush1.xpose.msra.mxu0 0.0
        %3587 = vmatprep.subr.mxu0 0.0
        %3588 = vmatpush1.xpose.msra.mxu0 0.0
        %3589 = vmatprep.subr.mxu0 0.0
        %3590 = vmatpush1.xpose.msra.mxu0 0.0
        %3591 = vmatprep.subr.mxu0 0.0
        %3592 = vmatpush1.xpose.msra.mxu0 0.0
        %3593 = vmatprep.subr.mxu0 0.0
        %3594 = vmatpush1.xpose.msra.mxu0 0.0
        %3595 = vmatprep.subr.mxu0 0.0
        %3596 = vmatpush1.xpose.msra.mxu0 0.0
        %3597 = vmatprep.subr.mxu0 0.0
        %3598 = vmatpush1.xpose.msra.mxu0 0.0
        %3599 = vmatprep.subr.mxu0 0.0
        %3600 = vmatpush1.xpose.msra.mxu0 0.0
        %3601 = vmatprep.subr.mxu0 0.0
        %3602 = vmatpush1.xpose.msra.mxu0 0.0
        %3603 = vmatprep.subr.mxu0 0.0
        %3604 = vmatpush1.xpose.msra.mxu0 0.0
        %3605 = vmatprep.subr.mxu0 0.0
        %3606 = vmatpush1.xpose.msra.mxu0 0.0
        %3607 = vmatprep.mubr.f32.mxu0 0.0
        %3608 = vmatmul.mubr.f32.gmra.mrb[0].mxu0 %v3541
        %v3609 = vpop.f32.mrb[0].mxu0
        %v3610 = vadd.f32 0.0, %v3609
        %v3611 = vpop.f32.mrb[0].mxu0
        %3612 = vdwg.mxu0
        %v3613 = vsel %vm819, %v3610, -inf
        %3614 = vmax.xlane.f32.xlu0 %v3613
        %v3615 = vpop.xlane.xlu0 %3614
        %v3616 = vsub.f32 %v3610, %v3615
        %v3617 = vmul.f32 %v3616, 1.442695
        %v3618 = vpow.pop %v3617
        %v3619 = vsel %vm819, %v3618, 0.0
        %3620 = vadd.xlane.f32.xlu0 %v3619
        %v3621 = vpop.xlane.xlu0 %3620
        %v3622 = vrcp.pop %v3621
        %v3623 = vmul.f32 %v3618, %v3622
        %v3625 = vsel %vm819, %v3623, 0
        %3627 = vmatprep.subr.mxu0 0.0
        %3628 = vmatpush1.msra.mxu0 %v1621
        %3629 = vmatprep.subr.mxu0 0.0
        %3630 = vmatpush1.msra.mxu0 0.0
        %3631 = vmatprep.subr.mxu0 0.0
        %3632 = vmatpush1.msra.mxu0 0.0
        %3633 = vmatprep.subr.mxu0 0.0
        %3634 = vmatpush1.msra.mxu0 0.0
        %3635 = vmatprep.subr.mxu0 0.0
        %3636 = vmatpush1.msra.mxu0 0.0
        %3637 = vmatprep.subr.mxu0 0.0
        %3638 = vmatpush1.msra.mxu0 0.0
        %3639 = vmatprep.subr.mxu0 0.0
        %3640 = vmatpush1.msra.mxu0 0.0
        %3641 = vmatprep.subr.mxu0 0.0
        %3642 = vmatpush1.msra.mxu0 0.0
        %3643 = vmatprep.subr.mxu0 0.0
        %3644 = vmatpush1.msra.mxu0 0.0
        %3645 = vmatprep.subr.mxu0 0.0
        %3646 = vmatpush1.msra.mxu0 0.0
        %3647 = vmatprep.subr.mxu0 0.0
        %3648 = vmatpush1.msra.mxu0 0.0
        %3649 = vmatprep.subr.mxu0 0.0
        %3650 = vmatpush1.msra.mxu0 0.0
        %3651 = vmatprep.subr.mxu0 0.0
        %3652 = vmatpush1.msra.mxu0 0.0
        %3653 = vmatprep.subr.mxu0 0.0
        %3654 = vmatpush1.msra.mxu0 0.0
        %3655 = vmatprep.subr.mxu0 0.0
        %3656 = vmatpush1.msra.mxu0 0.0
        %3657 = vmatprep.subr.mxu0 0.0
        %3658 = vmatpush1.msra.mxu0 0.0
        %3659 = vmatprep.subr.mxu0 0.0
        %3660 = vmatpush1.msra.mxu0 0.0
        %3661 = vmatprep.subr.mxu0 0.0
        %3662 = vmatpush1.msra.mxu0 0.0
        %3663 = vmatprep.subr.mxu0 0.0
        %3664 = vmatpush1.msra.mxu0 0.0
        %3665 = vmatprep.subr.mxu0 0.0
        %3666 = vmatpush1.msra.mxu0 0.0
        %3667 = vmatprep.subr.mxu0 0.0
        %3668 = vmatpush1.msra.mxu0 0.0
        %3669 = vmatprep.subr.mxu0 0.0
        %3670 = vmatpush1.msra.mxu0 0.0
        %3671 = vmatprep.subr.mxu0 0.0
        %3672 = vmatpush1.msra.mxu0 0.0
        %3673 = vmatprep.subr.mxu0 0.0
        %3674 = vmatpush1.msra.mxu0 0.0
        %3675 = vmatprep.subr.mxu0 0.0
        %3676 = vmatpush1.msra.mxu0 0.0
        %3677 = vmatprep.subr.mxu0 0.0
        %3678 = vmatpush1.msra.mxu0 0.0
        %3679 = vmatprep.subr.mxu0 0.0
        %3680 = vmatpush1.msra.mxu0 0.0
        %3681 = vmatprep.subr.mxu0 0.0
        %3682 = vmatpush1.msra.mxu0 0.0
        %3683 = vmatprep.subr.mxu0 0.0
        %3684 = vmatpush1.msra.mxu0 0.0
        %3685 = vmatprep.subr.mxu0 0.0
        %3686 = vmatpush1.msra.mxu0 0.0
        %3687 = vmatprep.subr.mxu0 0.0
        %3688 = vmatpush1.msra.mxu0 0.0
        %3689 = vmatprep.subr.mxu0 0.0
        %3690 = vmatpush1.msra.mxu0 0.0
        %3691 = vmatprep.mubr.f32.mxu0 0.0
        %3692 = vmatmul.mubr.f32.gmra.mrb[0].mxu0 %v3625
        %v3693 = vpop.f32.mrb[0].mxu0
        %v3694 = vadd.f32 0.0, %v3693
        %v3695 = vpop.f32.mrb[0].mxu0
        %3696 = vdwg.mxu0
        %v3698 = vsel %vm819, %v3694, 0
        %3700 = vmatprep.subr.mxu0 0.0
        %3701 = vmatpush1.msra.mxu0 %v731
        %3702 = vmatprep.subr.mxu0 0.0
        %3703 = vmatpush1.msra.mxu0 0.0
        %3704 = vmatprep.subr.mxu0 0.0
        %3705 = vmatpush1.msra.mxu0 0.0
        %3706 = vmatprep.subr.mxu0 0.0
        %3707 = vmatpush1.msra.mxu0 0.0
        %3708 = vmatprep.subr.mxu0 0.0
        %3709 = vmatpush1.msra.mxu0 0.0
        %3710 = vmatprep.subr.mxu0 0.0
        %3711 = vmatpush1.msra.mxu0 0.0
        %3712 = vmatprep.subr.mxu0 0.0
        %3713 = vmatpush1.msra.mxu0 0.0
        %3714 = vmatprep.subr.mxu0 0.0
        %3715 = vmatpush1.msra.mxu0 0.0
        %3716 = vmatprep.subr.mxu0 0.0
        %3717 = vmatpush1.msra.mxu0 0.0
        %3718 = vmatprep.subr.mxu0 0.0
        %3719 = vmatpush1.msra.mxu0 0.0
        %3720 = vmatprep.subr.mxu0 0.0
        %3721 = vmatpush1.msra.mxu0 0.0
        %3722 = vmatprep.subr.mxu0 0.0
        %3723 = vmatpush1.msra.mxu0 0.0
        %3724 = vmatprep.subr.mxu0 0.0
        %3725 = vmatpush1.msra.mxu0 0.0
        %3726 = vmatprep.subr.mxu0 0.0
        %3727 = vmatpush1.msra.mxu0 0.0
        %3728 = vmatprep.subr.mxu0 0.0
        %3729 = vmatpush1.msra.mxu0 0.0
        %3730 = vmatprep.subr.mxu0 0.0
        %3731 = vmatpush1.msra.mxu0 0.0
        %3732 = vmatprep.subr.mxu0 0.0
        %3733 = vmatpush1.msra.mxu0 0.0
        %3734 = vmatprep.subr.mxu0 0.0
        %3735 = vmatpush1.msra.mxu0 0.0
        %3736 = vmatprep.subr.mxu0 0.0
        %3737 = vmatpush1.msra.mxu0 0.0
        %3738 = vmatprep.subr.mxu0 0.0
        %3739 = vmatpush1.msra.mxu0 0.0
        %3740 = vmatprep.subr.mxu0 0.0
        %3741 = vmatpush1.msra.mxu0 0.0
        %3742 = vmatprep.subr.mxu0 0.0
        %3743 = vmatpush1.msra.mxu0 0.0
        %3744 = vmatprep.subr.mxu0 0.0
        %3745 = vmatpush1.msra.mxu0 0.0
        %3746 = vmatprep.subr.mxu0 0.0
        %3747 = vmatpush1.msra.mxu0 0.0
        %3748 = vmatprep.subr.mxu0 0.0
        %3749 = vmatpush1.msra.mxu0 0.0
        %3750 = vmatprep.subr.mxu0 0.0
        %3751 = vmatpush1.msra.mxu0 0.0
        %3752 = vmatprep.subr.mxu0 0.0
        %3753 = vmatpush1.msra.mxu0 0.0
        %3754 = vmatprep.subr.mxu0 0.0
        %3755 = vmatpush1.msra.mxu0 0.0
        %3756 = vmatprep.subr.mxu0 0.0
        %3757 = vmatpush1.msra.mxu0 0.0
        %3758 = vmatprep.subr.mxu0 0.0
        %3759 = vmatpush1.msra.mxu0 0.0
        %3760 = vmatprep.subr.mxu0 0.0
        %3761 = vmatpush1.msra.mxu0 0.0
        %3762 = vmatprep.subr.mxu0 0.0
        %3763 = vmatpush1.msra.mxu0 0.0
        %3764 = vmatprep.mubr.f32.mxu0 0.0
        %3765 = vmatmul.mubr.f32.gmra.mrb[0].mxu0 %v3698
        %v3766 = vpop.f32.mrb[0].mxu0
        %v3767 = vadd.f32 0.0, %v3766
        %v3768 = vpop.f32.mrb[0].mxu0
        %3769 = vdwg.mxu0
        %v3770 = vadd.f32 %v3538, %v3767
        %v3772 = vsel %vm819, %v2843, 0
        %3774 = vmatprep.subr.mxu0 0.0
        %3775 = vmatpush1.xpose.msra.mxu0 %v1774
        %3776 = vmatprep.subr.mxu0 0.0
        %3777 = vmatpush1.xpose.msra.mxu0 0.0
        %3778 = vmatprep.subr.mxu0 0.0
        %3779 = vmatpush1.xpose.msra.mxu0 0.0
        %3780 = vmatprep.subr.mxu0 0.0
        %3781 = vmatpush1.xpose.msra.mxu0 0.0
        %3782 = vmatprep.subr.mxu0 0.0
        %3783 = vmatpush1.xpose.msra.mxu0 0.0
        %3784 = vmatprep.subr.mxu0 0.0
        %3785 = vmatpush1.xpose.msra.mxu0 0.0
        %3786 = vmatprep.subr.mxu0 0.0
        %3787 = vmatpush1.xpose.msra.mxu0 0.0
        %3788 = vmatprep.subr.mxu0 0.0
        %3789 = vmatpush1.xpose.msra.mxu0 0.0
        %3790 = vmatprep.subr.mxu0 0.0
        %3791 = vmatpush1.xpose.msra.mxu0 0.0
        %3792 = vmatprep.subr.mxu0 0.0
        %3793 = vmatpush1.xpose.msra.mxu0 0.0
        %3794 = vmatprep.subr.mxu0 0.0
        %3795 = vmatpush1.xpose.msra.mxu0 0.0
        %3796 = vmatprep.subr.mxu0 0.0
        %3797 = vmatpush1.xpose.msra.mxu0 0.0
        %3798 = vmatprep.subr.mxu0 0.0
        %3799 = vmatpush1.xpose.msra.mxu0 0.0
        %3800 = vmatprep.subr.mxu0 0.0
        %3801 = vmatpush1.xpose.msra.mxu0 0.0
        %3802 = vmatprep.subr.mxu0 0.0
        %3803 = vmatpush1.xpose.msra.mxu0 0.0
        %3804 = vmatprep.subr.mxu0 0.0
        %3805 = vmatpush1.xpose.msra.mxu0 0.0
        %3806 = vmatprep.subr.mxu0 0.0
        %3807 = vmatpush1.xpose.msra.mxu0 0.0
        %3808 = vmatprep.subr.mxu0 0.0
        %3809 = vmatpush1.xpose.msra.mxu0 0.0
        %3810 = vmatprep.subr.mxu0 0.0
        %3811 = vmatpush1.xpose.msra.mxu0 0.0
        %3812 = vmatprep.subr.mxu0 0.0
        %3813 = vmatpush1.xpose.msra.mxu0 0.0
        %3814 = vmatprep.subr.mxu0 0.0
        %3815 = vmatpush1.xpose.msra.mxu0 0.0
        %3816 = vmatprep.subr.mxu0 0.0
        %3817 = vmatpush1.xpose.msra.mxu0 0.0
        %3818 = vmatprep.subr.mxu0 0.0
        %3819 = vmatpush1.xpose.msra.mxu0 0.0
        %3820 = vmatprep.subr.mxu0 0.0
        %3821 = vmatpush1.xpose.msra.mxu0 0.0
        %3822 = vmatprep.subr.mxu0 0.0
        %3823 = vmatpush1.xpose.msra.mxu0 0.0
        %3824 = vmatprep.subr.mxu0 0.0
        %3825 = vmatpush1.xpose.msra.mxu0 0.0
        %3826 = vmatprep.subr.mxu0 0.0
        %3827 = vmatpush1.xpose.msra.mxu0 0.0
        %3828 = vmatprep.subr.mxu0 0.0
        %3829 = vmatpush1.xpose.msra.mxu0 0.0
        %3830 = vmatprep.subr.mxu0 0.0
        %3831 = vmatpush1.xpose.msra.mxu0 0.0
        %3832 = vmatprep.subr.mxu0 0.0
        %3833 = vmatpush1.xpose.msra.mxu0 0.0
        %3834 = vmatprep.subr.mxu0 0.0
        %3835 = vmatpush1.xpose.msra.mxu0 0.0
        %3836 = vmatprep.subr.mxu0 0.0
        %3837 = vmatpush1.xpose.msra.mxu0 0.0
        %3838 = vmatprep.mubr.f32.mxu0 0.0
        %3839 = vmatmul.mubr.f32.gmra.mrb[0].mxu0 %v3772
        %v3840 = vpop.f32.mrb[0].mxu0
        %v3841 = vadd.f32 0.0, %v3840
        %v3842 = vpop.f32.mrb[0].mxu0
        %3843 = vdwg.mxu0
        %v3844 = vsel %vm819, %v3841, -inf
        %3845 = vmax.xlane.f32.xlu0 %v3844
        %v3846 = vpop.xlane.xlu0 %3845
        %v3847 = vsub.f32 %v3841, %v3846
        %v3848 = vmul.f32 %v3847, 1.442695
        %v3849 = vpow.pop %v3848
        %v3850 = vsel %vm819, %v3849, 0.0
        %3851 = vadd.xlane.f32.xlu0 %v3850
        %v3852 = vpop.xlane.xlu0 %3851
        %v3853 = vrcp.pop %v3852
        %v3854 = vmul.f32 %v3849, %v3853
        %v3856 = vsel %vm819, %v3854, 0
        %3858 = vmatprep.subr.mxu0 0.0
        %3859 = vmatpush1.msra.mxu0 %v725
        %3860 = vmatprep.subr.mxu0 0.0
        %3861 = vmatpush1.msra.mxu0 0.0
        %3862 = vmatprep.subr.mxu0 0.0
        %3863 = vmatpush1.msra.mxu0 0.0
        %3864 = vmatprep.subr.mxu0 0.0
        %3865 = vmatpush1.msra.mxu0 0.0
        %3866 = vmatprep.subr.mxu0 0.0
        %3867 = vmatpush1.msra.mxu0 0.0
        %3868 = vmatprep.subr.mxu0 0.0
        %3869 = vmatpush1.msra.mxu0 0.0
        %3870 = vmatprep.subr.mxu0 0.0
        %3871 = vmatpush1.msra.mxu0 0.0
        %3872 = vmatprep.subr.mxu0 0.0
        %3873 = vmatpush1.msra.mxu0 0.0
        %3874 = vmatprep.subr.mxu0 0.0
        %3875 = vmatpush1.msra.mxu0 0.0
        %3876 = vmatprep.subr.mxu0 0.0
        %3877 = vmatpush1.msra.mxu0 0.0
        %3878 = vmatprep.subr.mxu0 0.0
        %3879 = vmatpush1.msra.mxu0 0.0
        %3880 = vmatprep.subr.mxu0 0.0
        %3881 = vmatpush1.msra.mxu0 0.0
        %3882 = vmatprep.subr.mxu0 0.0
        %3883 = vmatpush1.msra.mxu0 0.0
        %3884 = vmatprep.subr.mxu0 0.0
        %3885 = vmatpush1.msra.mxu0 0.0
        %3886 = vmatprep.subr.mxu0 0.0
        %3887 = vmatpush1.msra.mxu0 0.0
        %3888 = vmatprep.subr.mxu0 0.0
        %3889 = vmatpush1.msra.mxu0 0.0
        %3890 = vmatprep.subr.mxu0 0.0
        %3891 = vmatpush1.msra.mxu0 0.0
        %3892 = vmatprep.subr.mxu0 0.0
        %3893 = vmatpush1.msra.mxu0 0.0
        %3894 = vmatprep.subr.mxu0 0.0
        %3895 = vmatpush1.msra.mxu0 0.0
        %3896 = vmatprep.subr.mxu0 0.0
        %3897 = vmatpush1.msra.mxu0 0.0
        %3898 = vmatprep.subr.mxu0 0.0
        %3899 = vmatpush1.msra.mxu0 0.0
        %3900 = vmatprep.subr.mxu0 0.0
        %3901 = vmatpush1.msra.mxu0 0.0
        %3902 = vmatprep.subr.mxu0 0.0
        %3903 = vmatpush1.msra.mxu0 0.0
        %3904 = vmatprep.subr.mxu0 0.0
        %3905 = vmatpush1.msra.mxu0 0.0
        %3906 = vmatprep.subr.mxu0 0.0
        %3907 = vmatpush1.msra.mxu0 0.0
        %3908 = vmatprep.subr.mxu0 0.0
        %3909 = vmatpush1.msra.mxu0 0.0
        %3910 = vmatprep.subr.mxu0 0.0
        %3911 = vmatpush1.msra.mxu0 0.0
        %3912 = vmatprep.subr.mxu0 0.0
        %3913 = vmatpush1.msra.mxu0 0.0
        %3914 = vmatprep.subr.mxu0 0.0
        %3915 = vmatpush1.msra.mxu0 0.0
        %3916 = vmatprep.subr.mxu0 0.0
        %3917 = vmatpush1.msra.mxu0 0.0
        %3918 = vmatprep.subr.mxu0 0.0
        %3919 = vmatpush1.msra.mxu0 0.0
        %3920 = vmatprep.subr.mxu0 0.0
        %3921 = vmatpush1.msra.mxu0 0.0
        %3922 = vmatprep.mubr.f32.mxu0 0.0
        %3923 = vmatmul.mubr.f32.gmra.mrb[0].mxu0 %v3856
        %v3924 = vpop.f32.mrb[0].mxu0
        %v3925 = vadd.f32 0.0, %v3924
        %v3926 = vpop.f32.mrb[0].mxu0
        %3927 = vdwg.mxu0
        %3928 = vrot.lane.b32.xlu0 %v2843, 120
        %v3929 = vpop.permute.xlu0 %3928
        %v3930 = vsel %vm819, %v3929, 0
        %3932 = vmatprep.subr.mxu0 0.0
        %3933 = vmatpush1.xpose.msra.mxu0 %v1936
        %3934 = vmatprep.subr.mxu0 0.0
        %3935 = vmatpush1.xpose.msra.mxu0 0.0
        %3936 = vmatprep.subr.mxu0 0.0
        %3937 = vmatpush1.xpose.msra.mxu0 0.0
        %3938 = vmatprep.subr.mxu0 0.0
        %3939 = vmatpush1.xpose.msra.mxu0 0.0
        %3940 = vmatprep.subr.mxu0 0.0
        %3941 = vmatpush1.xpose.msra.mxu0 0.0
        %3942 = vmatprep.subr.mxu0 0.0
        %3943 = vmatpush1.xpose.msra.mxu0 0.0
        %3944 = vmatprep.subr.mxu0 0.0
        %3945 = vmatpush1.xpose.msra.mxu0 0.0
        %3946 = vmatprep.subr.mxu0 0.0
        %3947 = vmatpush1.xpose.msra.mxu0 0.0
        %3948 = vmatprep.subr.mxu0 0.0
        %3949 = vmatpush1.xpose.msra.mxu0 0.0
        %3950 = vmatprep.subr.mxu0 0.0
        %3951 = vmatpush1.xpose.msra.mxu0 0.0
        %3952 = vmatprep.subr.mxu0 0.0
        %3953 = vmatpush1.xpose.msra.mxu0 0.0
        %3954 = vmatprep.subr.mxu0 0.0
        %3955 = vmatpush1.xpose.msra.mxu0 0.0
        %3956 = vmatprep.subr.mxu0 0.0
        %3957 = vmatpush1.xpose.msra.mxu0 0.0
        %3958 = vmatprep.subr.mxu0 0.0
        %3959 = vmatpush1.xpose.msra.mxu0 0.0
        %3960 = vmatprep.subr.mxu0 0.0
        %3961 = vmatpush1.xpose.msra.mxu0 0.0
        %3962 = vmatprep.subr.mxu0 0.0
        %3963 = vmatpush1.xpose.msra.mxu0 0.0
        %3964 = vmatprep.subr.mxu0 0.0
        %3965 = vmatpush1.xpose.msra.mxu0 0.0
        %3966 = vmatprep.subr.mxu0 0.0
        %3967 = vmatpush1.xpose.msra.mxu0 0.0
        %3968 = vmatprep.subr.mxu0 0.0
        %3969 = vmatpush1.xpose.msra.mxu0 0.0
        %3970 = vmatprep.subr.mxu0 0.0
        %3971 = vmatpush1.xpose.msra.mxu0 0.0
        %3972 = vmatprep.subr.mxu0 0.0
        %3973 = vmatpush1.xpose.msra.mxu0 0.0
        %3974 = vmatprep.subr.mxu0 0.0
        %3975 = vmatpush1.xpose.msra.mxu0 0.0
        %3976 = vmatprep.subr.mxu0 0.0
        %3977 = vmatpush1.xpose.msra.mxu0 0.0
        %3978 = vmatprep.subr.mxu0 0.0
        %3979 = vmatpush1.xpose.msra.mxu0 0.0
        %3980 = vmatprep.subr.mxu0 0.0
        %3981 = vmatpush1.xpose.msra.mxu0 0.0
        %3982 = vmatprep.subr.mxu0 0.0
        %3983 = vmatpush1.xpose.msra.mxu0 0.0
        %3984 = vmatprep.subr.mxu0 0.0
        %3985 = vmatpush1.xpose.msra.mxu0 0.0
        %3986 = vmatprep.subr.mxu0 0.0
        %3987 = vmatpush1.xpose.msra.mxu0 0.0
        %3988 = vmatprep.subr.mxu0 0.0
        %3989 = vmatpush1.xpose.msra.mxu0 0.0
        %3990 = vmatprep.subr.mxu0 0.0
        %3991 = vmatpush1.xpose.msra.mxu0 0.0
        %3992 = vmatprep.subr.mxu0 0.0
        %3993 = vmatpush1.xpose.msra.mxu0 0.0
        %3994 = vmatprep.subr.mxu0 0.0
        %3995 = vmatpush1.xpose.msra.mxu0 0.0
        %3996 = vmatprep.mubr.f32.mxu0 0.0
        %3997 = vmatmul.mubr.f32.gmra.mrb[0].mxu0 %v3930
        %v3998 = vpop.f32.mrb[0].mxu0
        %v3999 = vadd.f32 0.0, %v3998
        %v4000 = vpop.f32.mrb[0].mxu0
        %4001 = vdwg.mxu0
        %v4002 = vsel %vm819, %v3999, -inf
        %4003 = vmax.xlane.f32.xlu0 %v4002
        %v4004 = vpop.xlane.xlu0 %4003
        %v4005 = vsub.f32 %v3999, %v4004
        %v4006 = vmul.f32 %v4005, 1.442695
        %v4007 = vpow.pop %v4006
        %v4008 = vsel %vm819, %v4007, 0.0
        %4009 = vadd.xlane.f32.xlu0 %v4008
        %v4010 = vpop.xlane.xlu0 %4009
        %v4011 = vrcp.pop %v4010
        %v4012 = vmul.f32 %v4007, %v4011
        %v4014 = vsel %vm819, %v4012, 0
        %4016 = vmatprep.subr.mxu0 0.0
        %4017 = vmatpush1.msra.mxu0 %v2021
        %4018 = vmatprep.subr.mxu0 0.0
        %4019 = vmatpush1.msra.mxu0 0.0
        %4020 = vmatprep.subr.mxu0 0.0
        %4021 = vmatpush1.msra.mxu0 0.0
        %4022 = vmatprep.subr.mxu0 0.0
        %4023 = vmatpush1.msra.mxu0 0.0
        %4024 = vmatprep.subr.mxu0 0.0
        %4025 = vmatpush1.msra.mxu0 0.0
        %4026 = vmatprep.subr.mxu0 0.0
        %4027 = vmatpush1.msra.mxu0 0.0
        %4028 = vmatprep.subr.mxu0 0.0
        %4029 = vmatpush1.msra.mxu0 0.0
        %4030 = vmatprep.subr.mxu0 0.0
        %4031 = vmatpush1.msra.mxu0 0.0
        %4032 = vmatprep.subr.mxu0 0.0
        %4033 = vmatpush1.msra.mxu0 0.0
        %4034 = vmatprep.subr.mxu0 0.0
        %4035 = vmatpush1.msra.mxu0 0.0
        %4036 = vmatprep.subr.mxu0 0.0
        %4037 = vmatpush1.msra.mxu0 0.0
        %4038 = vmatprep.subr.mxu0 0.0
        %4039 = vmatpush1.msra.mxu0 0.0
        %4040 = vmatprep.subr.mxu0 0.0
        %4041 = vmatpush1.msra.mxu0 0.0
        %4042 = vmatprep.subr.mxu0 0.0
        %4043 = vmatpush1.msra.mxu0 0.0
        %4044 = vmatprep.subr.mxu0 0.0
        %4045 = vmatpush1.msra.mxu0 0.0
        %4046 = vmatprep.subr.mxu0 0.0
        %4047 = vmatpush1.msra.mxu0 0.0
        %4048 = vmatprep.subr.mxu0 0.0
        %4049 = vmatpush1.msra.mxu0 0.0
        %4050 = vmatprep.subr.mxu0 0.0
        %4051 = vmatpush1.msra.mxu0 0.0
        %4052 = vmatprep.subr.mxu0 0.0
        %4053 = vmatpush1.msra.mxu0 0.0
        %4054 = vmatprep.subr.mxu0 0.0
        %4055 = vmatpush1.msra.mxu0 0.0
        %4056 = vmatprep.subr.mxu0 0.0
        %4057 = vmatpush1.msra.mxu0 0.0
        %4058 = vmatprep.subr.mxu0 0.0
        %4059 = vmatpush1.msra.mxu0 0.0
        %4060 = vmatprep.subr.mxu0 0.0
        %4061 = vmatpush1.msra.mxu0 0.0
        %4062 = vmatprep.subr.mxu0 0.0
        %4063 = vmatpush1.msra.mxu0 0.0
        %4064 = vmatprep.subr.mxu0 0.0
        %4065 = vmatpush1.msra.mxu0 0.0
        %4066 = vmatprep.subr.mxu0 0.0
        %4067 = vmatpush1.msra.mxu0 0.0
        %4068 = vmatprep.subr.mxu0 0.0
        %4069 = vmatpush1.msra.mxu0 0.0
        %4070 = vmatprep.subr.mxu0 0.0
        %4071 = vmatpush1.msra.mxu0 0.0
        %4072 = vmatprep.subr.mxu0 0.0
        %4073 = vmatpush1.msra.mxu0 0.0
        %4074 = vmatprep.subr.mxu0 0.0
        %4075 = vmatpush1.msra.mxu0 0.0
        %4076 = vmatprep.subr.mxu0 0.0
        %4077 = vmatpush1.msra.mxu0 0.0
        %4078 = vmatprep.subr.mxu0 0.0
        %4079 = vmatpush1.msra.mxu0 0.0
        %4080 = vmatprep.mubr.f32.mxu0 0.0
        %4081 = vmatmul.mubr.f32.gmra.mrb[0].mxu0 %v4014
        %v4082 = vpop.f32.mrb[0].mxu0
        %v4083 = vadd.f32 0.0, %v4082
        %v4084 = vpop.f32.mrb[0].mxu0
        %4085 = vdwg.mxu0
        %v4087 = vsel %vm819, %v4083, 0
        %4089 = vmatprep.subr.mxu0 0.0
        %4090 = vmatpush1.msra.mxu0 %v729
        %4091 = vmatprep.subr.mxu0 0.0
        %4092 = vmatpush1.msra.mxu0 0.0
        %4093 = vmatprep.subr.mxu0 0.0
        %4094 = vmatpush1.msra.mxu0 0.0
        %4095 = vmatprep.subr.mxu0 0.0
        %4096 = vmatpush1.msra.mxu0 0.0
        %4097 = vmatprep.subr.mxu0 0.0
        %4098 = vmatpush1.msra.mxu0 0.0
        %4099 = vmatprep.subr.mxu0 0.0
        %4100 = vmatpush1.msra.mxu0 0.0
        %4101 = vmatprep.subr.mxu0 0.0
        %4102 = vmatpush1.msra.mxu0 0.0
        %4103 = vmatprep.subr.mxu0 0.0
        %4104 = vmatpush1.msra.mxu0 0.0
        %4105 = vmatprep.subr.mxu0 0.0
        %4106 = vmatpush1.msra.mxu0 0.0
        %4107 = vmatprep.subr.mxu0 0.0
        %4108 = vmatpush1.msra.mxu0 0.0
        %4109 = vmatprep.subr.mxu0 0.0
        %4110 = vmatpush1.msra.mxu0 0.0
        %4111 = vmatprep.subr.mxu0 0.0
        %4112 = vmatpush1.msra.mxu0 0.0
        %4113 = vmatprep.subr.mxu0 0.0
        %4114 = vmatpush1.msra.mxu0 0.0
        %4115 = vmatprep.subr.mxu0 0.0
        %4116 = vmatpush1.msra.mxu0 0.0
        %4117 = vmatprep.subr.mxu0 0.0
        %4118 = vmatpush1.msra.mxu0 0.0
        %4119 = vmatprep.subr.mxu0 0.0
        %4120 = vmatpush1.msra.mxu0 0.0
        %4121 = vmatprep.subr.mxu0 0.0
        %4122 = vmatpush1.msra.mxu0 0.0
        %4123 = vmatprep.subr.mxu0 0.0
        %4124 = vmatpush1.msra.mxu0 0.0
        %4125 = vmatprep.subr.mxu0 0.0
        %4126 = vmatpush1.msra.mxu0 0.0
        %4127 = vmatprep.subr.mxu0 0.0
        %4128 = vmatpush1.msra.mxu0 0.0
        %4129 = vmatprep.subr.mxu0 0.0
        %4130 = vmatpush1.msra.mxu0 0.0
        %4131 = vmatprep.subr.mxu0 0.0
        %4132 = vmatpush1.msra.mxu0 0.0
        %4133 = vmatprep.subr.mxu0 0.0
        %4134 = vmatpush1.msra.mxu0 0.0
        %4135 = vmatprep.subr.mxu0 0.0
        %4136 = vmatpush1.msra.mxu0 0.0
        %4137 = vmatprep.subr.mxu0 0.0
        %4138 = vmatpush1.msra.mxu0 0.0
        %4139 = vmatprep.subr.mxu0 0.0
        %4140 = vmatpush1.msra.mxu0 0.0
        %4141 = vmatprep.subr.mxu0 0.0
        %4142 = vmatpush1.msra.mxu0 0.0
        %4143 = vmatprep.subr.mxu0 0.0
        %4144 = vmatpush1.msra.mxu0 0.0
        %4145 = vmatprep.subr.mxu0 0.0
        %4146 = vmatpush1.msra.mxu0 0.0
        %4147 = vmatprep.subr.mxu0 0.0
        %4148 = vmatpush1.msra.mxu0 0.0
        %4149 = vmatprep.subr.mxu0 0.0
        %4150 = vmatpush1.msra.mxu0 0.0
        %4151 = vmatprep.subr.mxu0 0.0
        %4152 = vmatpush1.msra.mxu0 0.0
        %4153 = vmatprep.mubr.f32.mxu0 0.0
        %4154 = vmatmul.mubr.f32.gmra.mrb[0].mxu0 %v4087
        %v4155 = vpop.f32.mrb[0].mxu0
        %v4156 = vadd.f32 0.0, %v4155
        %v4157 = vpop.f32.mrb[0].mxu0
        %4158 = vdwg.mxu0
        %v4160 = vsel %vm819, %v3925, 0
        %4162 = vmatprep.subr.mxu0 0.0
        %4163 = vmatpush1.msra.mxu0 %v728
        %4164 = vmatprep.subr.mxu0 0.0
        %4165 = vmatpush1.msra.mxu0 0.0
        %4166 = vmatprep.subr.mxu0 0.0
        %4167 = vmatpush1.msra.mxu0 0.0
        %4168 = vmatprep.subr.mxu0 0.0
        %4169 = vmatpush1.msra.mxu0 0.0
        %4170 = vmatprep.subr.mxu0 0.0
        %4171 = vmatpush1.msra.mxu0 0.0
        %4172 = vmatprep.subr.mxu0 0.0
        %4173 = vmatpush1.msra.mxu0 0.0
        %4174 = vmatprep.subr.mxu0 0.0
        %4175 = vmatpush1.msra.mxu0 0.0
        %4176 = vmatprep.subr.mxu0 0.0
        %4177 = vmatpush1.msra.mxu0 0.0
        %4178 = vmatprep.subr.mxu0 0.0
        %4179 = vmatpush1.msra.mxu0 0.0
        %4180 = vmatprep.subr.mxu0 0.0
        %4181 = vmatpush1.msra.mxu0 0.0
        %4182 = vmatprep.subr.mxu0 0.0
        %4183 = vmatpush1.msra.mxu0 0.0
        %4184 = vmatprep.subr.mxu0 0.0
        %4185 = vmatpush1.msra.mxu0 0.0
        %4186 = vmatprep.subr.mxu0 0.0
        %4187 = vmatpush1.msra.mxu0 0.0
        %4188 = vmatprep.subr.mxu0 0.0
        %4189 = vmatpush1.msra.mxu0 0.0
        %4190 = vmatprep.subr.mxu0 0.0
        %4191 = vmatpush1.msra.mxu0 0.0
        %4192 = vmatprep.subr.mxu0 0.0
        %4193 = vmatpush1.msra.mxu0 0.0
        %4194 = vmatprep.subr.mxu0 0.0
        %4195 = vmatpush1.msra.mxu0 0.0
        %4196 = vmatprep.subr.mxu0 0.0
        %4197 = vmatpush1.msra.mxu0 0.0
        %4198 = vmatprep.subr.mxu0 0.0
        %4199 = vmatpush1.msra.mxu0 0.0
        %4200 = vmatprep.subr.mxu0 0.0
        %4201 = vmatpush1.msra.mxu0 0.0
        %4202 = vmatprep.subr.mxu0 0.0
        %4203 = vmatpush1.msra.mxu0 0.0
        %4204 = vmatprep.subr.mxu0 0.0
        %4205 = vmatpush1.msra.mxu0 0.0
        %4206 = vmatprep.subr.mxu0 0.0
        %4207 = vmatpush1.msra.mxu0 0.0
        %4208 = vmatprep.subr.mxu0 0.0
        %4209 = vmatpush1.msra.mxu0 0.0
        %4210 = vmatprep.subr.mxu0 0.0
        %4211 = vmatpush1.msra.mxu0 0.0
        %4212 = vmatprep.subr.mxu0 0.0
        %4213 = vmatpush1.msra.mxu0 0.0
        %4214 = vmatprep.subr.mxu0 0.0
        %4215 = vmatpush1.msra.mxu0 0.0
        %4216 = vmatprep.subr.mxu0 0.0
        %4217 = vmatpush1.msra.mxu0 0.0
        %4218 = vmatprep.subr.mxu0 0.0
        %4219 = vmatpush1.msra.mxu0 0.0
        %4220 = vmatprep.subr.mxu0 0.0
        %4221 = vmatpush1.msra.mxu0 0.0
        %4222 = vmatprep.subr.mxu0 0.0
        %4223 = vmatpush1.msra.mxu0 0.0
        %4224 = vmatprep.subr.mxu0 0.0
        %4225 = vmatpush1.msra.mxu0 0.0
        %4226 = vmatprep.mubr.f32.mxu0 0.0
        %4227 = vmatmul.mubr.f32.gmra.mrb[0].mxu0 %v4160
        %v4228 = vpop.f32.mrb[0].mxu0
        %v4229 = vadd.f32 %v4156, %v4228
        %v4230 = vpop.f32.mrb[0].mxu0
        %4231 = vdwg.mxu0
        %4232 = vrot.lane.b32.xlu0 %v2843, 112
        %v4233 = vpop.permute.xlu0 %4232
        %v4234 = vsel %vm819, %v4233, 0
        %4236 = vmatprep.subr.mxu0 0.0
        %4237 = vmatpush1.xpose.msra.mxu0 %v2248
        %4238 = vmatprep.subr.mxu0 0.0
        %4239 = vmatpush1.xpose.msra.mxu0 0.0
        %4240 = vmatprep.subr.mxu0 0.0
        %4241 = vmatpush1.xpose.msra.mxu0 0.0
        %4242 = vmatprep.subr.mxu0 0.0
        %4243 = vmatpush1.xpose.msra.mxu0 0.0
        %4244 = vmatprep.subr.mxu0 0.0
        %4245 = vmatpush1.xpose.msra.mxu0 0.0
        %4246 = vmatprep.subr.mxu0 0.0
        %4247 = vmatpush1.xpose.msra.mxu0 0.0
        %4248 = vmatprep.subr.mxu0 0.0
        %4249 = vmatpush1.xpose.msra.mxu0 0.0
        %4250 = vmatprep.subr.mxu0 0.0
        %4251 = vmatpush1.xpose.msra.mxu0 0.0
        %4252 = vmatprep.subr.mxu0 0.0
        %4253 = vmatpush1.xpose.msra.mxu0 0.0
        %4254 = vmatprep.subr.mxu0 0.0
        %4255 = vmatpush1.xpose.msra.mxu0 0.0
        %4256 = vmatprep.subr.mxu0 0.0
        %4257 = vmatpush1.xpose.msra.mxu0 0.0
        %4258 = vmatprep.subr.mxu0 0.0
        %4259 = vmatpush1.xpose.msra.mxu0 0.0
        %4260 = vmatprep.subr.mxu0 0.0
        %4261 = vmatpush1.xpose.msra.mxu0 0.0
        %4262 = vmatprep.subr.mxu0 0.0
        %4263 = vmatpush1.xpose.msra.mxu0 0.0
        %4264 = vmatprep.subr.mxu0 0.0
        %4265 = vmatpush1.xpose.msra.mxu0 0.0
        %4266 = vmatprep.subr.mxu0 0.0
        %4267 = vmatpush1.xpose.msra.mxu0 0.0
        %4268 = vmatprep.subr.mxu0 0.0
        %4269 = vmatpush1.xpose.msra.mxu0 0.0
        %4270 = vmatprep.subr.mxu0 0.0
        %4271 = vmatpush1.xpose.msra.mxu0 0.0
        %4272 = vmatprep.subr.mxu0 0.0
        %4273 = vmatpush1.xpose.msra.mxu0 0.0
        %4274 = vmatprep.subr.mxu0 0.0
        %4275 = vmatpush1.xpose.msra.mxu0 0.0
        %4276 = vmatprep.subr.mxu0 0.0
        %4277 = vmatpush1.xpose.msra.mxu0 0.0
        %4278 = vmatprep.subr.mxu0 0.0
        %4279 = vmatpush1.xpose.msra.mxu0 0.0
        %4280 = vmatprep.subr.mxu0 0.0
        %4281 = vmatpush1.xpose.msra.mxu0 0.0
        %4282 = vmatprep.subr.mxu0 0.0
        %4283 = vmatpush1.xpose.msra.mxu0 0.0
        %4284 = vmatprep.subr.mxu0 0.0
        %4285 = vmatpush1.xpose.msra.mxu0 0.0
        %4286 = vmatprep.subr.mxu0 0.0
        %4287 = vmatpush1.xpose.msra.mxu0 0.0
        %4288 = vmatprep.subr.mxu0 0.0
        %4289 = vmatpush1.xpose.msra.mxu0 0.0
        %4290 = vmatprep.subr.mxu0 0.0
        %4291 = vmatpush1.xpose.msra.mxu0 0.0
        %4292 = vmatprep.subr.mxu0 0.0
        %4293 = vmatpush1.xpose.msra.mxu0 0.0
        %4294 = vmatprep.subr.mxu0 0.0
        %4295 = vmatpush1.xpose.msra.mxu0 0.0
        %4296 = vmatprep.subr.mxu0 0.0
        %4297 = vmatpush1.xpose.msra.mxu0 0.0
        %4298 = vmatprep.subr.mxu0 0.0
        %4299 = vmatpush1.xpose.msra.mxu0 0.0
        %4300 = vmatprep.mubr.f32.mxu0 0.0
        %4301 = vmatmul.mubr.f32.gmra.mrb[0].mxu0 %v4234
        %v4302 = vpop.f32.mrb[0].mxu0
        %v4303 = vadd.f32 0.0, %v4302
        %v4304 = vpop.f32.mrb[0].mxu0
        %4305 = vdwg.mxu0
        %v4306 = vsel %vm819, %v4303, -inf
        %4307 = vmax.xlane.f32.xlu0 %v4306
        %v4308 = vpop.xlane.xlu0 %4307
        %v4309 = vsub.f32 %v4303, %v4308
        %v4310 = vmul.f32 %v4309, 1.442695
        %v4311 = vpow.pop %v4310
        %v4312 = vsel %vm819, %v4311, 0.0
        %4313 = vadd.xlane.f32.xlu0 %v4312
        %v4314 = vpop.xlane.xlu0 %4313
        %v4315 = vrcp.pop %v4314
        %v4316 = vmul.f32 %v4311, %v4315
        %v4318 = vsel %vm819, %v4316, 0
        %4320 = vmatprep.subr.mxu0 0.0
        %4321 = vmatpush1.msra.mxu0 %v2332
        %4322 = vmatprep.subr.mxu0 0.0
        %4323 = vmatpush1.msra.mxu0 0.0
        %4324 = vmatprep.subr.mxu0 0.0
        %4325 = vmatpush1.msra.mxu0 0.0
        %4326 = vmatprep.subr.mxu0 0.0
        %4327 = vmatpush1.msra.mxu0 0.0
        %4328 = vmatprep.subr.mxu0 0.0
        %4329 = vmatpush1.msra.mxu0 0.0
        %4330 = vmatprep.subr.mxu0 0.0
        %4331 = vmatpush1.msra.mxu0 0.0
        %4332 = vmatprep.subr.mxu0 0.0
        %4333 = vmatpush1.msra.mxu0 0.0
        %4334 = vmatprep.subr.mxu0 0.0
        %4335 = vmatpush1.msra.mxu0 0.0
        %4336 = vmatprep.subr.mxu0 0.0
        %4337 = vmatpush1.msra.mxu0 0.0
        %4338 = vmatprep.subr.mxu0 0.0
        %4339 = vmatpush1.msra.mxu0 0.0
        %4340 = vmatprep.subr.mxu0 0.0
        %4341 = vmatpush1.msra.mxu0 0.0
        %4342 = vmatprep.subr.mxu0 0.0
        %4343 = vmatpush1.msra.mxu0 0.0
        %4344 = vmatprep.subr.mxu0 0.0
        %4345 = vmatpush1.msra.mxu0 0.0
        %4346 = vmatprep.subr.mxu0 0.0
        %4347 = vmatpush1.msra.mxu0 0.0
        %4348 = vmatprep.subr.mxu0 0.0
        %4349 = vmatpush1.msra.mxu0 0.0
        %4350 = vmatprep.subr.mxu0 0.0
        %4351 = vmatpush1.msra.mxu0 0.0
        %4352 = vmatprep.subr.mxu0 0.0
        %4353 = vmatpush1.msra.mxu0 0.0
        %4354 = vmatprep.subr.mxu0 0.0
        %4355 = vmatpush1.msra.mxu0 0.0
        %4356 = vmatprep.subr.mxu0 0.0
        %4357 = vmatpush1.msra.mxu0 0.0
        %4358 = vmatprep.subr.mxu0 0.0
        %4359 = vmatpush1.msra.mxu0 0.0
        %4360 = vmatprep.subr.mxu0 0.0
        %4361 = vmatpush1.msra.mxu0 0.0
        %4362 = vmatprep.subr.mxu0 0.0
        %4363 = vmatpush1.msra.mxu0 0.0
        %4364 = vmatprep.subr.mxu0 0.0
        %4365 = vmatpush1.msra.mxu0 0.0
        %4366 = vmatprep.subr.mxu0 0.0
        %4367 = vmatpush1.msra.mxu0 0.0
        %4368 = vmatprep.subr.mxu0 0.0
        %4369 = vmatpush1.msra.mxu0 0.0
        %4370 = vmatprep.subr.mxu0 0.0
        %4371 = vmatpush1.msra.mxu0 0.0
        %4372 = vmatprep.subr.mxu0 0.0
        %4373 = vmatpush1.msra.mxu0 0.0
        %4374 = vmatprep.subr.mxu0 0.0
        %4375 = vmatpush1.msra.mxu0 0.0
        %4376 = vmatprep.subr.mxu0 0.0
        %4377 = vmatpush1.msra.mxu0 0.0
        %4378 = vmatprep.subr.mxu0 0.0
        %4379 = vmatpush1.msra.mxu0 0.0
        %4380 = vmatprep.subr.mxu0 0.0
        %4381 = vmatpush1.msra.mxu0 0.0
        %4382 = vmatprep.subr.mxu0 0.0
        %4383 = vmatpush1.msra.mxu0 0.0
        %4384 = vmatprep.mubr.f32.mxu0 0.0
        %4385 = vmatmul.mubr.f32.gmra.mrb[0].mxu0 %v4318
        %v4386 = vpop.f32.mrb[0].mxu0
        %v4387 = vadd.f32 0.0, %v4386
        %v4388 = vpop.f32.mrb[0].mxu0
        %4389 = vdwg.mxu0
        %v4391 = vsel %vm819, %v4387, 0
        %4393 = vmatprep.subr.mxu0 0.0
        %4394 = vmatpush1.msra.mxu0 %v730
        %4395 = vmatprep.subr.mxu0 0.0
        %4396 = vmatpush1.msra.mxu0 0.0
        %4397 = vmatprep.subr.mxu0 0.0
        %4398 = vmatpush1.msra.mxu0 0.0
        %4399 = vmatprep.subr.mxu0 0.0
        %4400 = vmatpush1.msra.mxu0 0.0
        %4401 = vmatprep.subr.mxu0 0.0
        %4402 = vmatpush1.msra.mxu0 0.0
        %4403 = vmatprep.subr.mxu0 0.0
        %4404 = vmatpush1.msra.mxu0 0.0
        %4405 = vmatprep.subr.mxu0 0.0
        %4406 = vmatpush1.msra.mxu0 0.0
        %4407 = vmatprep.subr.mxu0 0.0
        %4408 = vmatpush1.msra.mxu0 0.0
        %4409 = vmatprep.subr.mxu0 0.0
        %4410 = vmatpush1.msra.mxu0 0.0
        %4411 = vmatprep.subr.mxu0 0.0
        %4412 = vmatpush1.msra.mxu0 0.0
        %4413 = vmatprep.subr.mxu0 0.0
        %4414 = vmatpush1.msra.mxu0 0.0
        %4415 = vmatprep.subr.mxu0 0.0
        %4416 = vmatpush1.msra.mxu0 0.0
        %4417 = vmatprep.subr.mxu0 0.0
        %4418 = vmatpush1.msra.mxu0 0.0
        %4419 = vmatprep.subr.mxu0 0.0
        %4420 = vmatpush1.msra.mxu0 0.0
        %4421 = vmatprep.subr.mxu0 0.0
        %4422 = vmatpush1.msra.mxu0 0.0
        %4423 = vmatprep.subr.mxu0 0.0
        %4424 = vmatpush1.msra.mxu0 0.0
        %4425 = vmatprep.subr.mxu0 0.0
        %4426 = vmatpush1.msra.mxu0 0.0
        %4427 = vmatprep.subr.mxu0 0.0
        %4428 = vmatpush1.msra.mxu0 0.0
        %4429 = vmatprep.subr.mxu0 0.0
        %4430 = vmatpush1.msra.mxu0 0.0
        %4431 = vmatprep.subr.mxu0 0.0
        %4432 = vmatpush1.msra.mxu0 0.0
        %4433 = vmatprep.subr.mxu0 0.0
        %4434 = vmatpush1.msra.mxu0 0.0
        %4435 = vmatprep.subr.mxu0 0.0
        %4436 = vmatpush1.msra.mxu0 0.0
        %4437 = vmatprep.subr.mxu0 0.0
        %4438 = vmatpush1.msra.mxu0 0.0
        %4439 = vmatprep.subr.mxu0 0.0
        %4440 = vmatpush1.msra.mxu0 0.0
        %4441 = vmatprep.subr.mxu0 0.0
        %4442 = vmatpush1.msra.mxu0 0.0
        %4443 = vmatprep.subr.mxu0 0.0
        %4444 = vmatpush1.msra.mxu0 0.0
        %4445 = vmatprep.subr.mxu0 0.0
        %4446 = vmatpush1.msra.mxu0 0.0
        %4447 = vmatprep.subr.mxu0 0.0
        %4448 = vmatpush1.msra.mxu0 0.0
        %4449 = vmatprep.subr.mxu0 0.0
        %4450 = vmatpush1.msra.mxu0 0.0
        %4451 = vmatprep.subr.mxu0 0.0
        %4452 = vmatpush1.msra.mxu0 0.0
        %4453 = vmatprep.subr.mxu0 0.0
        %4454 = vmatpush1.msra.mxu0 0.0
        %4455 = vmatprep.subr.mxu0 0.0
        %4456 = vmatpush1.msra.mxu0 0.0
        %4457 = vmatprep.mubr.f32.mxu0 0.0
        %4458 = vmatmul.mubr.f32.gmra.mrb[0].mxu0 %v4391
        %v4459 = vpop.f32.mrb[0].mxu0
        %v4460 = vadd.f32 0.0, %v4459
        %v4461 = vpop.f32.mrb[0].mxu0
        %4462 = vdwg.mxu0
        %v4463 = vadd.f32 %v4229, %v4460
        %4464 = vrot.lane.b32.xlu0 %v2843, 104
        %v4465 = vpop.permute.xlu0 %4464
        %v4466 = vsel %vm819, %v4465, 0
        %4468 = vmatprep.subr.mxu0 0.0
        %4469 = vmatpush1.xpose.msra.mxu0 %v2487
        %4470 = vmatprep.subr.mxu0 0.0
        %4471 = vmatpush1.xpose.msra.mxu0 0.0
        %4472 = vmatprep.subr.mxu0 0.0
        %4473 = vmatpush1.xpose.msra.mxu0 0.0
        %4474 = vmatprep.subr.mxu0 0.0
        %4475 = vmatpush1.xpose.msra.mxu0 0.0
        %4476 = vmatprep.subr.mxu0 0.0
        %4477 = vmatpush1.xpose.msra.mxu0 0.0
        %4478 = vmatprep.subr.mxu0 0.0
        %4479 = vmatpush1.xpose.msra.mxu0 0.0
        %4480 = vmatprep.subr.mxu0 0.0
        %4481 = vmatpush1.xpose.msra.mxu0 0.0
        %4482 = vmatprep.subr.mxu0 0.0
        %4483 = vmatpush1.xpose.msra.mxu0 0.0
        %4484 = vmatprep.subr.mxu0 0.0
        %4485 = vmatpush1.xpose.msra.mxu0 0.0
        %4486 = vmatprep.subr.mxu0 0.0
        %4487 = vmatpush1.xpose.msra.mxu0 0.0
        %4488 = vmatprep.subr.mxu0 0.0
        %4489 = vmatpush1.xpose.msra.mxu0 0.0
        %4490 = vmatprep.subr.mxu0 0.0
        %4491 = vmatpush1.xpose.msra.mxu0 0.0
        %4492 = vmatprep.subr.mxu0 0.0
        %4493 = vmatpush1.xpose.msra.mxu0 0.0
        %4494 = vmatprep.subr.mxu0 0.0
        %4495 = vmatpush1.xpose.msra.mxu0 0.0
        %4496 = vmatprep.subr.mxu0 0.0
        %4497 = vmatpush1.xpose.msra.mxu0 0.0
        %4498 = vmatprep.subr.mxu0 0.0
        %4499 = vmatpush1.xpose.msra.mxu0 0.0
        %4500 = vmatprep.subr.mxu0 0.0
        %4501 = vmatpush1.xpose.msra.mxu0 0.0
        %4502 = vmatprep.subr.mxu0 0.0
        %4503 = vmatpush1.xpose.msra.mxu0 0.0
        %4504 = vmatprep.subr.mxu0 0.0
        %4505 = vmatpush1.xpose.msra.mxu0 0.0
        %4506 = vmatprep.subr.mxu0 0.0
        %4507 = vmatpush1.xpose.msra.mxu0 0.0
        %4508 = vmatprep.subr.mxu0 0.0
        %4509 = vmatpush1.xpose.msra.mxu0 0.0
        %4510 = vmatprep.subr.mxu0 0.0
        %4511 = vmatpush1.xpose.msra.mxu0 0.0
        %4512 = vmatprep.subr.mxu0 0.0
        %4513 = vmatpush1.xpose.msra.mxu0 0.0
        %4514 = vmatprep.subr.mxu0 0.0
        %4515 = vmatpush1.xpose.msra.mxu0 0.0
        %4516 = vmatprep.subr.mxu0 0.0
        %4517 = vmatpush1.xpose.msra.mxu0 0.0
        %4518 = vmatprep.subr.mxu0 0.0
        %4519 = vmatpush1.xpose.msra.mxu0 0.0
        %4520 = vmatprep.subr.mxu0 0.0
        %4521 = vmatpush1.xpose.msra.mxu0 0.0
        %4522 = vmatprep.subr.mxu0 0.0
        %4523 = vmatpush1.xpose.msra.mxu0 0.0
        %4524 = vmatprep.subr.mxu0 0.0
        %4525 = vmatpush1.xpose.msra.mxu0 0.0
        %4526 = vmatprep.subr.mxu0 0.0
        %4527 = vmatpush1.xpose.msra.mxu0 0.0
        %4528 = vmatprep.subr.mxu0 0.0
        %4529 = vmatpush1.xpose.msra.mxu0 0.0
        %4530 = vmatprep.subr.mxu0 0.0
        %4531 = vmatpush1.xpose.msra.mxu0 0.0
        %4532 = vmatprep.mubr.f32.mxu0 0.0
        %4533 = vmatmul.mubr.f32.gmra.mrb[0].mxu0 %v4466
        %v4534 = vpop.f32.mrb[0].mxu0
        %v4535 = vadd.f32 0.0, %v4534
        %v4536 = vpop.f32.mrb[0].mxu0
        %4537 = vdwg.mxu0
        %v4538 = vsel %vm819, %v4535, -inf
        %4539 = vmax.xlane.f32.xlu0 %v4538
        %v4540 = vpop.xlane.xlu0 %4539
        %v4541 = vsub.f32 %v4535, %v4540
        %v4542 = vmul.f32 %v4541, 1.442695
        %v4543 = vpow.pop %v4542
        %v4544 = vsel %vm819, %v4543, 0.0
        %4545 = vadd.xlane.f32.xlu0 %v4544
        %v4546 = vpop.xlane.xlu0 %4545
        %v4547 = vrcp.pop %v4546
        %v4548 = vmul.f32 %v4543, %v4547
        %v4550 = vsel %vm819, %v4548, 0
        %4552 = vmatprep.subr.mxu0 0.0
        %4553 = vmatpush1.msra.mxu0 %v2571
        %4554 = vmatprep.subr.mxu0 0.0
        %4555 = vmatpush1.msra.mxu0 0.0
        %4556 = vmatprep.subr.mxu0 0.0
        %4557 = vmatpush1.msra.mxu0 0.0
        %4558 = vmatprep.subr.mxu0 0.0
        %4559 = vmatpush1.msra.mxu0 0.0
        %4560 = vmatprep.subr.mxu0 0.0
        %4561 = vmatpush1.msra.mxu0 0.0
        %4562 = vmatprep.subr.mxu0 0.0
        %4563 = vmatpush1.msra.mxu0 0.0
        %4564 = vmatprep.subr.mxu0 0.0
        %4565 = vmatpush1.msra.mxu0 0.0
        %4566 = vmatprep.subr.mxu0 0.0
        %4567 = vmatpush1.msra.mxu0 0.0
        %4568 = vmatprep.subr.mxu0 0.0
        %4569 = vmatpush1.msra.mxu0 0.0
        %4570 = vmatprep.subr.mxu0 0.0
        %4571 = vmatpush1.msra.mxu0 0.0
        %4572 = vmatprep.subr.mxu0 0.0
        %4573 = vmatpush1.msra.mxu0 0.0
        %4574 = vmatprep.subr.mxu0 0.0
        %4575 = vmatpush1.msra.mxu0 0.0
        %4576 = vmatprep.subr.mxu0 0.0
        %4577 = vmatpush1.msra.mxu0 0.0
        %4578 = vmatprep.subr.mxu0 0.0
        %4579 = vmatpush1.msra.mxu0 0.0
        %4580 = vmatprep.subr.mxu0 0.0
        %4581 = vmatpush1.msra.mxu0 0.0
        %4582 = vmatprep.subr.mxu0 0.0
        %4583 = vmatpush1.msra.mxu0 0.0
        %4584 = vmatprep.subr.mxu0 0.0
        %4585 = vmatpush1.msra.mxu0 0.0
        %4586 = vmatprep.subr.mxu0 0.0
        %4587 = vmatpush1.msra.mxu0 0.0
        %4588 = vmatprep.subr.mxu0 0.0
        %4589 = vmatpush1.msra.mxu0 0.0
        %4590 = vmatprep.subr.mxu0 0.0
        %4591 = vmatpush1.msra.mxu0 0.0
        %4592 = vmatprep.subr.mxu0 0.0
        %4593 = vmatpush1.msra.mxu0 0.0
        %4594 = vmatprep.subr.mxu0 0.0
        %4595 = vmatpush1.msra.mxu0 0.0
        %4596 = vmatprep.subr.mxu0 0.0
        %4597 = vmatpush1.msra.mxu0 0.0
        %4598 = vmatprep.subr.mxu0 0.0
        %4599 = vmatpush1.msra.mxu0 0.0
        %4600 = vmatprep.subr.mxu0 0.0
        %4601 = vmatpush1.msra.mxu0 0.0
        %4602 = vmatprep.subr.mxu0 0.0
        %4603 = vmatpush1.msra.mxu0 0.0
        %4604 = vmatprep.subr.mxu0 0.0
        %4605 = vmatpush1.msra.mxu0 0.0
        %4606 = vmatprep.subr.mxu0 0.0
        %4607 = vmatpush1.msra.mxu0 0.0
        %4608 = vmatprep.subr.mxu0 0.0
        %4609 = vmatpush1.msra.mxu0 0.0
        %4610 = vmatprep.subr.mxu0 0.0
        %4611 = vmatpush1.msra.mxu0 0.0
        %4612 = vmatprep.subr.mxu0 0.0
        %4613 = vmatpush1.msra.mxu0 0.0
        %4614 = vmatprep.subr.mxu0 0.0
        %4615 = vmatpush1.msra.mxu0 0.0
        %4616 = vmatprep.mubr.f32.mxu0 0.0
        %4617 = vmatmul.mubr.f32.gmra.mrb[0].mxu0 %v4550
        %v4618 = vpop.f32.mrb[0].mxu0
        %v4619 = vadd.f32 0.0, %v4618
        %v4620 = vpop.f32.mrb[0].mxu0
        %4621 = vdwg.mxu0
        %v4623 = vsel %vm819, %v4619, 0
        %4625 = vmatprep.subr.mxu0 0.0
        %4626 = vmatpush1.msra.mxu0 %v731
        %4627 = vmatprep.subr.mxu0 0.0
        %4628 = vmatpush1.msra.mxu0 0.0
        %4629 = vmatprep.subr.mxu0 0.0
        %4630 = vmatpush1.msra.mxu0 0.0
        %4631 = vmatprep.subr.mxu0 0.0
        %4632 = vmatpush1.msra.mxu0 0.0
        %4633 = vmatprep.subr.mxu0 0.0
        %4634 = vmatpush1.msra.mxu0 0.0
        %4635 = vmatprep.subr.mxu0 0.0
        %4636 = vmatpush1.msra.mxu0 0.0
        %4637 = vmatprep.subr.mxu0 0.0
        %4638 = vmatpush1.msra.mxu0 0.0
        %4639 = vmatprep.subr.mxu0 0.0
        %4640 = vmatpush1.msra.mxu0 0.0
        %4641 = vmatprep.subr.mxu0 0.0
        %4642 = vmatpush1.msra.mxu0 0.0
        %4643 = vmatprep.subr.mxu0 0.0
        %4644 = vmatpush1.msra.mxu0 0.0
        %4645 = vmatprep.subr.mxu0 0.0
        %4646 = vmatpush1.msra.mxu0 0.0
        %4647 = vmatprep.subr.mxu0 0.0
        %4648 = vmatpush1.msra.mxu0 0.0
        %4649 = vmatprep.subr.mxu0 0.0
        %4650 = vmatpush1.msra.mxu0 0.0
        %4651 = vmatprep.subr.mxu0 0.0
        %4652 = vmatpush1.msra.mxu0 0.0
        %4653 = vmatprep.subr.mxu0 0.0
        %4654 = vmatpush1.msra.mxu0 0.0
        %4655 = vmatprep.subr.mxu0 0.0
        %4656 = vmatpush1.msra.mxu0 0.0
        %4657 = vmatprep.subr.mxu0 0.0
        %4658 = vmatpush1.msra.mxu0 0.0
        %4659 = vmatprep.subr.mxu0 0.0
        %4660 = vmatpush1.msra.mxu0 0.0
        %4661 = vmatprep.subr.mxu0 0.0
        %4662 = vmatpush1.msra.mxu0 0.0
        %4663 = vmatprep.subr.mxu0 0.0
        %4664 = vmatpush1.msra.mxu0 0.0
        %4665 = vmatprep.subr.mxu0 0.0
        %4666 = vmatpush1.msra.mxu0 0.0
        %4667 = vmatprep.subr.mxu0 0.0
        %4668 = vmatpush1.msra.mxu0 0.0
        %4669 = vmatprep.subr.mxu0 0.0
        %4670 = vmatpush1.msra.mxu0 0.0
        %4671 = vmatprep.subr.mxu0 0.0
        %4672 = vmatpush1.msra.mxu0 0.0
        %4673 = vmatprep.subr.mxu0 0.0
        %4674 = vmatpush1.msra.mxu0 0.0
        %4675 = vmatprep.subr.mxu0 0.0
        %4676 = vmatpush1.msra.mxu0 0.0
        %4677 = vmatprep.subr.mxu0 0.0
        %4678 = vmatpush1.msra.mxu0 0.0
        %4679 = vmatprep.subr.mxu0 0.0
        %4680 = vmatpush1.msra.mxu0 0.0
        %4681 = vmatprep.subr.mxu0 0.0
        %4682 = vmatpush1.msra.mxu0 0.0
        %4683 = vmatprep.subr.mxu0 0.0
        %4684 = vmatpush1.msra.mxu0 0.0
        %4685 = vmatprep.subr.mxu0 0.0
        %4686 = vmatpush1.msra.mxu0 0.0
        %4687 = vmatprep.subr.mxu0 0.0
        %4688 = vmatpush1.msra.mxu0 0.0
        %4689 = vmatprep.mubr.f32.mxu0 0.0
        %4690 = vmatmul.mubr.f32.gmra.mrb[0].mxu0 %v4623
        %v4691 = vpop.f32.mrb[0].mxu0
        %v4692 = vadd.f32 0.0, %v4691
        %v4693 = vpop.f32.mrb[0].mxu0
        %4694 = vdwg.mxu0
        %v4695 = vadd.f32 %v4463, %v4692
        %v4696 = vsel %vm567, %v3770, 0.0
        %4697 = vadd.xlane.f32.xlu0 %v4696
        %v4698 = vpop.xlane.xlu0 %4697
        %v4699 = vsel %vm567, %v4695, 0.0
        %4700 = vadd.xlane.f32.xlu0 %v4699
        %v4701 = vpop.xlane.xlu0 %4700
        %v4702 = vmul.f32 %v4698, %v2726
        %v4703 = vmul.f32 %v4701, %v2726
        %v4704 = vsub.f32 %v3770, %v4702
        %v4705 = vsub.f32 %v4695, %v4703
        %v4706 = vmul.f32 %v4704, %v4704
        %v4707 = vmul.f32 %v4705, %v4705
        %v4708 = vsel %vm567, %v4706, 0.0
        %4709 = vadd.xlane.f32.xlu0 %v4708
        %v4710 = vpop.xlane.xlu0 %4709
        %v4711 = vsel %vm567, %v4707, 0.0
        %4712 = vadd.xlane.f32.xlu0 %v4711
        %v4713 = vpop.xlane.xlu0 %4712
        %v4714 = vmul.f32 %v4710, %v2726
        %v4715 = vmul.f32 %v4713, %v2726
        %v4716 = vadd.f32 %v4714, 1e-06
        %v4717 = vadd.f32 %v4715, 1e-06
        %v4718 = vrsqrt.pop %v4716
        %v4719 = vrsqrt.pop %v4717
        %v4720 = vmul.f32 %v4704, %v4718
        %v4721 = vmul.f32 %v4705, %v4719
        %v4722 = vmul.f32 %v4720, %v2750
        %v4723 = vmul.f32 %v4721, %v2750
        %v4724 = vadd.f32 %v4722, %v2756
        %v4725 = vadd.f32 %v4723, %v2756
        %v4726 = vld [vmem:[%s10] sm:$0xff]
        %v4727 = vld [vmem:[%s10 + $0x8] sm:$0xff]
        %v4728 = vld [vmem:[%s10 + $0x10] sm:$0xff]
        %v4729 = vld [vmem:[%s10 + $0x18] sm:$0xff]
        %v4731 = vsel %vm567, %v2757, 0
        %v4734 = vsel %vm567, %v2758, 0
        %4736 = vmatprep.subr.mxu0 0.0
        %4737 = vmatpush1.msra.mxu0 %v4726
        %4738 = vmatprep.subr.mxu0 0.0
        %4739 = vmatpush1.msra.mxu0 %v4727
        %4740 = vmatprep.subr.mxu0 0.0
        %4741 = vmatpush1.msra.mxu0 %v4728
        %4742 = vmatprep.subr.mxu0 0.0
        %4743 = vmatpush1.msra.mxu0 %v4729
        %4744 = vmatprep.subr.mxu0 0.0
        %4745 = vmatpush1.msra.mxu0 0.0
        %4746 = vmatprep.subr.mxu0 0.0
        %4747 = vmatpush1.msra.mxu0 0.0
        %4748 = vmatprep.subr.mxu0 0.0
        %4749 = vmatpush1.msra.mxu0 0.0
        %4750 = vmatprep.subr.mxu0 0.0
        %4751 = vmatpush1.msra.mxu0 0.0
        %4752 = vmatprep.subr.mxu0 0.0
        %4753 = vmatpush1.msra.mxu0 0.0
        %4754 = vmatprep.subr.mxu0 0.0
        %4755 = vmatpush1.msra.mxu0 0.0
        %4756 = vmatprep.subr.mxu0 0.0
        %4757 = vmatpush1.msra.mxu0 0.0
        %4758 = vmatprep.subr.mxu0 0.0
        %4759 = vmatpush1.msra.mxu0 0.0
        %4760 = vmatprep.subr.mxu0 0.0
        %4761 = vmatpush1.msra.mxu0 0.0
        %4762 = vmatprep.subr.mxu0 0.0
        %4763 = vmatpush1.msra.mxu0 0.0
        %4764 = vmatprep.subr.mxu0 0.0
        %4765 = vmatpush1.msra.mxu0 0.0
        %4766 = vmatprep.subr.mxu0 0.0
        %4767 = vmatpush1.msra.mxu0 0.0
        %4768 = vmatprep.subr.mxu0 0.0
        %4769 = vmatpush1.msra.mxu0 0.0
        %4770 = vmatprep.subr.mxu0 0.0
        %4771 = vmatpush1.msra.mxu0 0.0
        %4772 = vmatprep.subr.mxu0 0.0
        %4773 = vmatpush1.msra.mxu0 0.0
        %4774 = vmatprep.subr.mxu0 0.0
        %4775 = vmatpush1.msra.mxu0 0.0
        %4776 = vmatprep.subr.mxu0 0.0
        %4777 = vmatpush1.msra.mxu0 0.0
        %4778 = vmatprep.subr.mxu0 0.0
        %4779 = vmatpush1.msra.mxu0 0.0
        %4780 = vmatprep.subr.mxu0 0.0
        %4781 = vmatpush1.msra.mxu0 0.0
        %4782 = vmatprep.subr.mxu0 0.0
        %4783 = vmatpush1.msra.mxu0 0.0
        %4784 = vmatprep.subr.mxu0 0.0
        %4785 = vmatpush1.msra.mxu0 0.0
        %4786 = vmatprep.subr.mxu0 0.0
        %4787 = vmatpush1.msra.mxu0 0.0
        %4788 = vmatprep.subr.mxu0 0.0
        %4789 = vmatpush1.msra.mxu0 0.0
        %4790 = vmatprep.subr.mxu0 0.0
        %4791 = vmatpush1.msra.mxu0 0.0
        %4792 = vmatprep.subr.mxu0 0.0
        %4793 = vmatpush1.msra.mxu0 0.0
        %4794 = vmatprep.subr.mxu0 0.0
        %4795 = vmatpush1.msra.mxu0 0.0
        %4796 = vmatprep.subr.mxu0 0.0
        %4797 = vmatpush1.msra.mxu0 0.0
        %4798 = vmatprep.subr.mxu0 0.0
        %4799 = vmatpush1.msra.mxu0 0.0
        %4800 = vmatprep.mubr.f32.mxu0 0.0
        %4801 = vmatmul.mubr.f32.gmra.mrb[0].mxu0 %v4731
        %v4802 = vpop.f32.mrb[0].mxu0
        %v4803 = vadd.f32 0.0, %v4802
        %v4804 = vpop.f32.mrb[0].mxu0
        %4805 = vmatprep.mubr.f32.mxu0 0.0
        %4806 = vmatmul.mubr.f32.gmra.mrb[0].mxu0 %v4734
        %v4807 = vpop.f32.mrb[0].mxu0
        %v4808 = vadd.f32 0.0, %v4807
        %v4809 = vpop.f32.mrb[0].mxu0
        %4810 = vdwg.mxu0
        %v4812 = vsel %vm567, %v4724, 0
        %v4815 = vsel %vm567, %v4725, 0
        %4817 = vmatprep.subr.mxu0 0.0
        %4818 = vmatpush1.msra.mxu0 %v4726
        %4819 = vmatprep.subr.mxu0 0.0
        %4820 = vmatpush1.msra.mxu0 %v4727
        %4821 = vmatprep.subr.mxu0 0.0
        %4822 = vmatpush1.msra.mxu0 %v4728
        %4823 = vmatprep.subr.mxu0 0.0
        %4824 = vmatpush1.msra.mxu0 %v4729
        %4825 = vmatprep.subr.mxu0 0.0
        %4826 = vmatpush1.msra.mxu0 0.0
        %4827 = vmatprep.subr.mxu0 0.0
        %4828 = vmatpush1.msra.mxu0 0.0
        %4829 = vmatprep.subr.mxu0 0.0
        %4830 = vmatpush1.msra.mxu0 0.0
        %4831 = vmatprep.subr.mxu0 0.0
        %4832 = vmatpush1.msra.mxu0 0.0
        %4833 = vmatprep.subr.mxu0 0.0
        %4834 = vmatpush1.msra.mxu0 0.0
        %4835 = vmatprep.subr.mxu0 0.0
        %4836 = vmatpush1.msra.mxu0 0.0
        %4837 = vmatprep.subr.mxu0 0.0
        %4838 = vmatpush1.msra.mxu0 0.0
        %4839 = vmatprep.subr.mxu0 0.0
        %4840 = vmatpush1.msra.mxu0 0.0
        %4841 = vmatprep.subr.mxu0 0.0
        %4842 = vmatpush1.msra.mxu0 0.0
        %4843 = vmatprep.subr.mxu0 0.0
        %4844 = vmatpush1.msra.mxu0 0.0
        %4845 = vmatprep.subr.mxu0 0.0
        %4846 = vmatpush1.msra.mxu0 0.0
        %4847 = vmatprep.subr.mxu0 0.0
        %4848 = vmatpush1.msra.mxu0 0.0
        %4849 = vmatprep.subr.mxu0 0.0
        %4850 = vmatpush1.msra.mxu0 0.0
        %4851 = vmatprep.subr.mxu0 0.0
        %4852 = vmatpush1.msra.mxu0 0.0
        %4853 = vmatprep.subr.mxu0 0.0
        %4854 = vmatpush1.msra.mxu0 0.0
        %4855 = vmatprep.subr.mxu0 0.0
        %4856 = vmatpush1.msra.mxu0 0.0
        %4857 = vmatprep.subr.mxu0 0.0
        %4858 = vmatpush1.msra.mxu0 0.0
        %4859 = vmatprep.subr.mxu0 0.0
        %4860 = vmatpush1.msra.mxu0 0.0
        %4861 = vmatprep.subr.mxu0 0.0
        %4862 = vmatpush1.msra.mxu0 0.0
        %4863 = vmatprep.subr.mxu0 0.0
        %4864 = vmatpush1.msra.mxu0 0.0
        %4865 = vmatprep.subr.mxu0 0.0
        %4866 = vmatpush1.msra.mxu0 0.0
        %4867 = vmatprep.subr.mxu0 0.0
        %4868 = vmatpush1.msra.mxu0 0.0
        %4869 = vmatprep.subr.mxu0 0.0
        %4870 = vmatpush1.msra.mxu0 0.0
        %4871 = vmatprep.subr.mxu0 0.0
        %4872 = vmatpush1.msra.mxu0 0.0
        %4873 = vmatprep.subr.mxu0 0.0
        %4874 = vmatpush1.msra.mxu0 0.0
        %4875 = vmatprep.subr.mxu0 0.0
        %4876 = vmatpush1.msra.mxu0 0.0
        %4877 = vmatprep.subr.mxu0 0.0
        %4878 = vmatpush1.msra.mxu0 0.0
        %4879 = vmatprep.subr.mxu0 0.0
        %4880 = vmatpush1.msra.mxu0 0.0
        %4881 = vmatprep.mubr.f32.mxu0 0.0
        %4882 = vmatmul.mubr.f32.gmra.mrb[0].mxu0 %v4812
        %v4883 = vpop.f32.mrb[0].mxu0
        %v4884 = vadd.f32 0.0, %v4883
        %v4885 = vpop.f32.mrb[0].mxu0
        %4886 = vmatprep.mubr.f32.mxu0 0.0
        %4887 = vmatmul.mubr.f32.gmra.mrb[0].mxu0 %v4815
        %v4888 = vpop.f32.mrb[0].mxu0
        %v4889 = vadd.f32 0.0, %v4888
        %v4890 = vpop.f32.mrb[0].mxu0
        %4891 = vdwg.mxu0
        %v4892 = vlaneseq
        %v4893 = vshrl.u32 %v4892, 7
        %v4894 = vsub.s32 2, %v4893
        %v4895 = vrot.slane %v559, %v4894
        %v4896 = vmul.f32 %v2757, %v4895
        %v4897 = vmul.f32 %v2758, %v4895
        %v4898 = vsel %vm567, %v4896, 0.0
        %4899 = vadd.xlane.f32.xlu0 %v4898
        %v4900 = vpop.xlane.xlu0 %4899
        %v4901 = vsel %vm567, %v4897, 0.0
        %4902 = vadd.xlane.f32.xlu0 %v4901
        %v4903 = vpop.xlane.xlu0 %4902
        %v4904 = vlaneseq
        %v4905 = vshrl.u32 %v4904, 7
        %v4906 = vsub.s32 3, %v4905
        %v4907 = vrot.slane %v559, %v4906
        %v4908 = vmul.f32 %v4724, %v4907
        %v4909 = vmul.f32 %v4725, %v4907
        %v4910 = vsel %vm567, %v4908, 0.0
        %4911 = vadd.xlane.f32.xlu0 %v4910
        %v4912 = vpop.xlane.xlu0 %4911
        %v4913 = vsel %vm567, %v4909, 0.0
        %4914 = vadd.xlane.f32.xlu0 %v4913
        %v4915 = vpop.xlane.xlu0 %4914
        %v4916 = vmax.f32 %v4900, %v4912
        %v4917 = vmax.f32 %v4903, %v4915
        %v4918 = vsub.f32 %v4900, %v4916
        %v4919 = vsub.f32 %v4903, %v4917
        %v4920 = vmul.f32 %v4918, 1.442695
        %v4921 = vpow.pop %v4920
        %v4922 = vmul.f32 %v4919, 1.442695
        %v4923 = vpow.pop %v4922
        %v4924 = vsub.f32 %v4912, %v4916
        %v4925 = vsub.f32 %v4915, %v4917
        %v4926 = vmul.f32 %v4924, 1.442695
        %v4927 = vpow.pop %v4926
        %v4928 = vmul.f32 %v4925, 1.442695
        %v4929 = vpow.pop %v4928
        %v4930 = vadd.f32 %v4921, %v4927
        %v4931 = vadd.f32 %v4923, %v4929
        %v4932 = vrcp.pop %v4930
        %v4933 = vrcp.pop %v4931
        %v4934 = vmul.f32 %v4803, %v4921
        %v4935 = vmul.f32 %v4808, %v4923
        %v4936 = vmul.f32 %v4884, %v4927
        %v4937 = vmul.f32 %v4889, %v4929
        %v4938 = vadd.f32 %v4934, %v4936
        %v4939 = vadd.f32 %v4935, %v4937
        %v4940 = vmul.f32 %v4938, %v4932
        %v4941 = vmul.f32 %v4939, %v4933
        %v4942 = vsel %vm567, %v4940, 0.0
        %4943 = vadd.xlane.f32.xlu0 %v4942
        %v4944 = vpop.xlane.xlu0 %4943
        %v4945 = vsel %vm567, %v4941, 0.0
        %4946 = vadd.xlane.f32.xlu0 %v4945
        %v4947 = vpop.xlane.xlu0 %4946
        %v4948 = vmul.f32 %v4944, %v2726
        %v4949 = vmul.f32 %v4947, %v2726
        %v4950 = vsub.f32 %v4940, %v4948
        %v4951 = vsub.f32 %v4941, %v4949
        %v4952 = vmul.f32 %v4950, %v4950
        %v4953 = vmul.f32 %v4951, %v4951
        %v4954 = vsel %vm567, %v4952, 0.0
        %4955 = vadd.xlane.f32.xlu0 %v4954
        %v4956 = vpop.xlane.xlu0 %4955
        %v4957 = vsel %vm567, %v4953, 0.0
        %4958 = vadd.xlane.f32.xlu0 %v4957
        %v4959 = vpop.xlane.xlu0 %4958
        %v4960 = vmul.f32 %v4956, %v2726
        %v4961 = vmul.f32 %v4959, %v2726
        %v4962 = vadd.f32 %v4960, 1e-06
        %v4963 = vadd.f32 %v4961, 1e-06
        %v4964 = vrsqrt.pop %v4962
        %v4965 = vrsqrt.pop %v4963
        %v4966 = vmul.f32 %v4950, %v4964
        %v4967 = vmul.f32 %v4951, %v4965
        %v4968 = vlaneseq
        %v4969 = vshrl.u32 %v4968, 7
        %v4970 = vsub.s32 4, %v4969
        %v4971 = vrot.slane %v559, %v4970
        %v4972 = vmul.f32 %v4966, %v4971
        %v4973 = vmul.f32 %v4967, %v4971
        %v4974 = vlaneseq
        %v4975 = vshrl.u32 %v4974, 7
        %v4976 = vsub.s32 5, %v4975
        %v4977 = vrot.slane %v559, %v4976
        %v4978 = vadd.f32 %v4972, %v4977
        %v4979 = vadd.f32 %v4973, %v4977
        %v4980 = vld [vmem:[%s12] sm:$0xff]
        %v4981 = vld [vmem:[%s12 + $0x8] sm:$0xff]
        %v4982 = vld [vmem:[%s12 + $0x10] sm:$0xff]
        %v4983 = vld [vmem:[%s12 + $0x18] sm:$0xff]
        %v4984 = vld [vmem:[%s12 + $0x20] sm:$0xff]
        %v4985 = vld [vmem:[%s12 + $0x28] sm:$0xff]
        %v4986 = vld [vmem:[%s12 + $0x30] sm:$0xff]
        %v4987 = vld [vmem:[%s12 + $0x38] sm:$0xff]
        %v4988 = vld [vmem:[%s12 + $0x40] sm:$0xff]
        %v4989 = vld [vmem:[%s12 + $0x48] sm:$0xff]
        %v4990 = vld [vmem:[%s12 + $0x50] sm:$0xff]
        %v4991 = vld [vmem:[%s12 + $0x58] sm:$0xff]
        %v4992 = vld [vmem:[%s12 + $0x60] sm:$0xff]
        %v4993 = vld [vmem:[%s12 + $0x68] sm:$0xff]
        %v4994 = vld [vmem:[%s12 + $0x70] sm:$0xff]
        %v4995 = vld [vmem:[%s12 + $0x78] sm:$0xff]
        %v4996 = vld [vmem:[%s12 + $0x80] sm:$0xff]
        %v4997 = vld [vmem:[%s12 + $0x88] sm:$0xff]
        %v4998 = vld [vmem:[%s12 + $0x90] sm:$0xff]
        %v4999 = vld [vmem:[%s12 + $0x98] sm:$0xff]
        %v5000 = vld [vmem:[%s12 + $0xa0] sm:$0xff]
        %v5001 = vld [vmem:[%s12 + $0xa8] sm:$0xff]
        %v5002 = vld [vmem:[%s12 + $0xb0] sm:$0xff]
        %v5003 = vld [vmem:[%s12 + $0xb8] sm:$0xff]
        %v5004 = vld [vmem:[%s12 + $0xc0] sm:$0xff]
        %v5005 = vld [vmem:[%s12 + $0xc8] sm:$0xff]
        %v5006 = vld [vmem:[%s12 + $0xd0] sm:$0xff]
        %v5007 = vld [vmem:[%s12 + $0xd8] sm:$0xff]
        %v5008 = vld [vmem:[%s12 + $0xe0] sm:$0xff]
        %v5009 = vld [vmem:[%s12 + $0xe8] sm:$0xff]
        %v5010 = vld [vmem:[%s12 + $0xf0] sm:$0xff]
        %v5011 = vld [vmem:[%s12 + $0xf8] sm:$0xff]
        %v5012 = vld [vmem:[%s12 + $0x100] sm:$0xff]
        %v5013 = vld [vmem:[%s12 + $0x108] sm:$0xff]
        %v5014 = vld [vmem:[%s12 + $0x110] sm:$0xff]
        %v5015 = vld [vmem:[%s12 + $0x118] sm:$0xff]
        %v5016 = vld [vmem:[%s12 + $0x120] sm:$0xff]
        %v5017 = vld [vmem:[%s12 + $0x128] sm:$0xff]
        %v5018 = vld [vmem:[%s12 + $0x130] sm:$0xff]
        %v5019 = vld [vmem:[%s12 + $0x138] sm:$0xff]
        %v5020 = vld [vmem:[%s12 + $0x140] sm:$0xff]
        %v5021 = vld [vmem:[%s12 + $0x148] sm:$0xff]
        %v5022 = vld [vmem:[%s12 + $0x150] sm:$0xff]
        %v5023 = vld [vmem:[%s12 + $0x158] sm:$0xff]
        %v5024 = vld [vmem:[%s12 + $0x160] sm:$0xff]
        %v5025 = vld [vmem:[%s12 + $0x168] sm:$0xff]
        %v5026 = vld [vmem:[%s12 + $0x170] sm:$0xff]
        %v5027 = vld [vmem:[%s12 + $0x178] sm:$0xff]
        %v5028 = vld [vmem:[%s12 + $0x180] sm:$0xff]
        %v5029 = vld [vmem:[%s12 + $0x188] sm:$0xff]
        %v5030 = vld [vmem:[%s12 + $0x190] sm:$0xff]
        %v5031 = vld [vmem:[%s12 + $0x198] sm:$0xff]
        %v5032 = vld [vmem:[%s12 + $0x1a0] sm:$0xff]
        %v5033 = vld [vmem:[%s12 + $0x1a8] sm:$0xff]
        %v5034 = vld [vmem:[%s12 + $0x1b0] sm:$0xff]
        %v5035 = vld [vmem:[%s12 + $0x1b8] sm:$0xff]
        %v5036 = vld [vmem:[%s12 + $0x1c0] sm:$0xff]
        %v5037 = vld [vmem:[%s12 + $0x1c8] sm:$0xff]
        %v5038 = vld [vmem:[%s12 + $0x1d0] sm:$0xff]
        %v5039 = vld [vmem:[%s12 + $0x1d8] sm:$0xff]
        %v5040 = vld [vmem:[%s12 + $0x1e0] sm:$0xff]
        %v5041 = vld [vmem:[%s12 + $0x1e8] sm:$0xff]
        %v5042 = vld [vmem:[%s12 + $0x1f0] sm:$0xff]
        %v5043 = vld [vmem:[%s12 + $0x1f8] sm:$0xff]
        %v5044 = vld [vmem:[%s13] sm:$0xff]
        %v5045 = vld [vmem:[%s13 + $0x8] sm:$0xff]
        %v5048 = vlaneseq
        %v5049 = vshrl.u32 %v5048, 7
        %v5050 = vsub.s32 0, %v5049
        %v5051 = vrot.slane %v5044, %v5050
        %v5052 = vlaneseq
        %v5053 = vshrl.u32 %v5052, 7
        %v5054 = vsub.s32 1, %v5053
        %v5055 = vrot.slane %v5044, %v5054
        %v5056 = vlaneseq
        %v5057 = vshrl.u32 %v5056, 7
        %v5058 = vsub.s32 2, %v5057
        %v5059 = vrot.slane %v5044, %v5058
        %v5060 = vlaneseq
        %v5061 = vshrl.u32 %v5060, 7
        %v5062 = vsub.s32 3, %v5061
        %v5063 = vrot.slane %v5044, %v5062
        %v5064 = vlaneseq
        %v5065 = vshrl.u32 %v5064, 7
        %v5066 = vsub.s32 4, %v5065
        %v5067 = vrot.slane %v5044, %v5066
        %v5068 = vlaneseq
        %v5069 = vshrl.u32 %v5068, 7
        %v5070 = vsub.s32 5, %v5069
        %v5071 = vrot.slane %v5044, %v5070
        %v5072 = vlaneseq
        %v5073 = vshrl.u32 %v5072, 7
        %v5074 = vsub.s32 6, %v5073
        %v5075 = vrot.slane %v5044, %v5074
        %v5076 = vlaneseq
        %v5077 = vshrl.u32 %v5076, 7
        %v5078 = vsub.s32 7, %v5077
        %v5079 = vrot.slane %v5044, %v5078
        %v5080 = vlaneseq
        %v5081 = vshrl.u32 %v5080, 7
        %v5082 = vsub.s32 0, %v5081
        %v5083 = vrot.slane %v5045, %v5082
        %v5084 = vlaneseq
        %v5085 = vshrl.u32 %v5084, 7
        %v5086 = vsub.s32 1, %v5085
        %v5087 = vrot.slane %v5045, %v5086
        %v5088 = vlaneseq
        %v5089 = vshrl.u32 %v5088, 7
        %v5090 = vsub.s32 2, %v5089
        %v5091 = vrot.slane %v5045, %v5090
        %v5092 = vlaneseq
        %v5093 = vshrl.u32 %v5092, 7
        %v5094 = vsub.s32 3, %v5093
        %v5095 = vrot.slane %v5045, %v5094
        %v5096 = vlaneseq
        %v5097 = vshrl.u32 %v5096, 7
        %v5098 = vsub.s32 4, %v5097
        %v5099 = vrot.slane %v5045, %v5098
        %v5100 = vlaneseq
        %v5101 = vshrl.u32 %v5100, 7
        %v5102 = vsub.s32 5, %v5101
        %v5103 = vrot.slane %v5045, %v5102
        %v5104 = vlaneseq
        %v5105 = vshrl.u32 %v5104, 7
        %v5106 = vsub.s32 6, %v5105
        %v5107 = vrot.slane %v5045, %v5106
        %v5108 = vlaneseq
        %v5109 = vshrl.u32 %v5108, 7
        %v5110 = vsub.s32 7, %v5109
        %v5111 = vrot.slane %v5045, %v5110
        %v5129 = vsel %vm567, %v4978, 0
        %v5132 = vsel %vm567, %v4979, 0
        %5134 = vmatprep.subr.mxu0 %v4981
        %5135 = vmatpush1.msra.mxu0 %v4980
        %5136 = vmatprep.subr.mxu0 %v4997
        %5137 = vmatpush1.msra.mxu0 %v4996
        %5138 = vmatprep.subr.mxu0 %v5013
        %5139 = vmatpush1.msra.mxu0 %v5012
        %5140 = vmatprep.subr.mxu0 %v5029
        %5141 = vmatpush1.msra.mxu0 %v5028
        %5142 = vmatprep.subr.mxu0 0.0
        %5143 = vmatpush1.msra.mxu0 0.0
        %5144 = vmatprep.subr.mxu0 0.0
        %5145 = vmatpush1.msra.mxu0 0.0
        %5146 = vmatprep.subr.mxu0 0.0
        %5147 = vmatpush1.msra.mxu0 0.0
        %5148 = vmatprep.subr.mxu0 0.0
        %5149 = vmatpush1.msra.mxu0 0.0
        %5150 = vmatprep.subr.mxu0 0.0
        %5151 = vmatpush1.msra.mxu0 0.0
        %5152 = vmatprep.subr.mxu0 0.0
        %5153 = vmatpush1.msra.mxu0 0.0
        %5154 = vmatprep.subr.mxu0 0.0
        %5155 = vmatpush1.msra.mxu0 0.0
        %5156 = vmatprep.subr.mxu0 0.0
        %5157 = vmatpush1.msra.mxu0 0.0
        %5158 = vmatprep.subr.mxu0 0.0
        %5159 = vmatpush1.msra.mxu0 0.0
        %5160 = vmatprep.subr.mxu0 0.0
        %5161 = vmatpush1.msra.mxu0 0.0
        %5162 = vmatprep.subr.mxu0 0.0
        %5163 = vmatpush1.msra.mxu0 0.0
        %5164 = vmatprep.subr.mxu0 0.0
        %5165 = vmatpush1.msra.mxu0 0.0
        %5166 = vmatprep.subr.mxu0 0.0
        %5167 = vmatpush1.msra.mxu0 0.0
        %5168 = vmatprep.subr.mxu0 0.0
        %5169 = vmatpush1.msra.mxu0 0.0
        %5170 = vmatprep.subr.mxu0 0.0
        %5171 = vmatpush1.msra.mxu0 0.0
        %5172 = vmatprep.subr.mxu0 0.0
        %5173 = vmatpush1.msra.mxu0 0.0
        %5174 = vmatprep.subr.mxu0 0.0
        %5175 = vmatpush1.msra.mxu0 0.0
        %5176 = vmatprep.subr.mxu0 0.0
        %5177 = vmatpush1.msra.mxu0 0.0
        %5178 = vmatprep.subr.mxu0 0.0
        %5179 = vmatpush1.msra.mxu0 0.0
        %5180 = vmatprep.subr.mxu0 0.0
        %5181 = vmatpush1.msra.mxu0 0.0
        %5182 = vmatprep.subr.mxu0 0.0
        %5183 = vmatpush1.msra.mxu0 0.0
        %5184 = vmatprep.subr.mxu0 0.0
        %5185 = vmatpush1.msra.mxu0 0.0
        %5186 = vmatprep.subr.mxu0 0.0
        %5187 = vmatpush1.msra.mxu0 0.0
        %5188 = vmatprep.subr.mxu0 0.0
        %5189 = vmatpush1.msra.mxu0 0.0
        %5190 = vmatprep.subr.mxu0 0.0
        %5191 = vmatpush1.msra.mxu0 0.0
        %5192 = vmatprep.subr.mxu0 0.0
        %5193 = vmatpush1.msra.mxu0 0.0
        %5194 = vmatprep.subr.mxu0 0.0
        %5195 = vmatpush1.msra.mxu0 0.0
        %5196 = vmatprep.subr.mxu0 0.0
        %5197 = vmatpush1.msra.mxu0 0.0
        %5198 = vmatprep.mubr.f32.mxu0 0.0
        %5199 = vmatmul.mubr.f32.gmra.mrb[0].mxu0 %v5129
        %v5200 = vpop.f32.mrb[0].mxu0
        %v5201 = vadd.f32 %v5051, %v5200
        %v5202 = vpop.f32.mrb[0].mxu0
        %v5203 = vadd.f32 %v5055, %v5202
        %5204 = vmatprep.mubr.f32.mxu0 0.0
        %5205 = vmatmul.mubr.f32.gmra.mrb[0].mxu0 %v5132
        %v5206 = vpop.f32.mrb[0].mxu0
        %v5207 = vadd.f32 %v5051, %v5206
        %v5208 = vpop.f32.mrb[0].mxu0
        %v5209 = vadd.f32 %v5055, %v5208
        %5210 = vdwg.mxu0
        %5211 = vmatprep.subr.mxu0 %v4983
        %5212 = vmatpush1.msra.mxu0 %v4982
        %5213 = vmatprep.subr.mxu0 %v4999
        %5214 = vmatpush1.msra.mxu0 %v4998
        %5215 = vmatprep.subr.mxu0 %v5015
        %5216 = vmatpush1.msra.mxu0 %v5014
        %5217 = vmatprep.subr.mxu0 %v5031
        %5218 = vmatpush1.msra.mxu0 %v5030
        %5219 = vmatprep.subr.mxu0 0.0
        %5220 = vmatpush1.msra.mxu0 0.0
        %5221 = vmatprep.subr.mxu0 0.0
        %5222 = vmatpush1.msra.mxu0 0.0
        %5223 = vmatprep.subr.mxu0 0.0
        %5224 = vmatpush1.msra.mxu0 0.0
        %5225 = vmatprep.subr.mxu0 0.0
        %5226 = vmatpush1.msra.mxu0 0.0
        %5227 = vmatprep.subr.mxu0 0.0
        %5228 = vmatpush1.msra.mxu0 0.0
        %5229 = vmatprep.subr.mxu0 0.0
        %5230 = vmatpush1.msra.mxu0 0.0
        %5231 = vmatprep.subr.mxu0 0.0
        %5232 = vmatpush1.msra.mxu0 0.0
        %5233 = vmatprep.subr.mxu0 0.0
        %5234 = vmatpush1.msra.mxu0 0.0
        %5235 = vmatprep.subr.mxu0 0.0
        %5236 = vmatpush1.msra.mxu0 0.0
        %5237 = vmatprep.subr.mxu0 0.0
        %5238 = vmatpush1.msra.mxu0 0.0
        %5239 = vmatprep.subr.mxu0 0.0
        %5240 = vmatpush1.msra.mxu0 0.0
        %5241 = vmatprep.subr.mxu0 0.0
        %5242 = vmatpush1.msra.mxu0 0.0
        %5243 = vmatprep.subr.mxu0 0.0
        %5244 = vmatpush1.msra.mxu0 0.0
        %5245 = vmatprep.subr.mxu0 0.0
        %5246 = vmatpush1.msra.mxu0 0.0
        %5247 = vmatprep.subr.mxu0 0.0
        %5248 = vmatpush1.msra.mxu0 0.0
        %5249 = vmatprep.subr.mxu0 0.0
        %5250 = vmatpush1.msra.mxu0 0.0
        %5251 = vmatprep.subr.mxu0 0.0
        %5252 = vmatpush1.msra.mxu0 0.0
        %5253 = vmatprep.subr.mxu0 0.0
        %5254 = vmatpush1.msra.mxu0 0.0
        %5255 = vmatprep.subr.mxu0 0.0
        %5256 = vmatpush1.msra.mxu0 0.0
        %5257 = vmatprep.subr.mxu0 0.0
        %5258 = vmatpush1.msra.mxu0 0.0
        %5259 = vmatprep.subr.mxu0 0.0
        %5260 = vmatpush1.msra.mxu0 0.0
        %5261 = vmatprep.subr.mxu0 0.0
        %5262 = vmatpush1.msra.mxu0 0.0
        %5263 = vmatprep.subr.mxu0 0.0
        %5264 = vmatpush1.msra.mxu0 0.0
        %5265 = vmatprep.subr.mxu0 0.0
        %5266 = vmatpush1.msra.mxu0 0.0
        %5267 = vmatprep.subr.mxu0 0.0
        %5268 = vmatpush1.msra.mxu0 0.0
        %5269 = vmatprep.subr.mxu0 0.0
        %5270 = vmatpush1.msra.mxu0 0.0
        %5271 = vmatprep.subr.mxu0 0.0
        %5272 = vmatpush1.msra.mxu0 0.0
        %5273 = vmatprep.subr.mxu0 0.0
        %5274 = vmatpush1.msra.mxu0 0.0
        %5275 = vmatprep.mubr.f32.mxu0 0.0
        %5276 = vmatmul.mubr.f32.gmra.mrb[0].mxu0 %v5129
        %v5277 = vpop.f32.mrb[0].mxu0
        %v5278 = vadd.f32 %v5059, %v5277
        %v5279 = vpop.f32.mrb[0].mxu0
        %v5280 = vadd.f32 %v5063, %v5279
        %5281 = vmatprep.mubr.f32.mxu0 0.0
        %5282 = vmatmul.mubr.f32.gmra.mrb[0].mxu0 %v5132
        %v5283 = vpop.f32.mrb[0].mxu0
        %v5284 = vadd.f32 %v5059, %v5283
        %v5285 = vpop.f32.mrb[0].mxu0
        %v5286 = vadd.f32 %v5063, %v5285
        %5287 = vdwg.mxu0
        %5288 = vmatprep.subr.mxu0 %v4985
        %5289 = vmatpush1.msra.mxu0 %v4984
        %5290 = vmatprep.subr.mxu0 %v5001
        %5291 = vmatpush1.msra.mxu0 %v5000
        %5292 = vmatprep.subr.mxu0 %v5017
        %5293 = vmatpush1.msra.mxu0 %v5016
        %5294 = vmatprep.subr.mxu0 %v5033
        %5295 = vmatpush1.msra.mxu0 %v5032
        %5296 = vmatprep.subr.mxu0 0.0
        %5297 = vmatpush1.msra.mxu0 0.0
        %5298 = vmatprep.subr.mxu0 0.0
        %5299 = vmatpush1.msra.mxu0 0.0
        %5300 = vmatprep.subr.mxu0 0.0
        %5301 = vmatpush1.msra.mxu0 0.0
        %5302 = vmatprep.subr.mxu0 0.0
        %5303 = vmatpush1.msra.mxu0 0.0
        %5304 = vmatprep.subr.mxu0 0.0
        %5305 = vmatpush1.msra.mxu0 0.0
        %5306 = vmatprep.subr.mxu0 0.0
        %5307 = vmatpush1.msra.mxu0 0.0
        %5308 = vmatprep.subr.mxu0 0.0
        %5309 = vmatpush1.msra.mxu0 0.0
        %5310 = vmatprep.subr.mxu0 0.0
        %5311 = vmatpush1.msra.mxu0 0.0
        %5312 = vmatprep.subr.mxu0 0.0
        %5313 = vmatpush1.msra.mxu0 0.0
        %5314 = vmatprep.subr.mxu0 0.0
        %5315 = vmatpush1.msra.mxu0 0.0
        %5316 = vmatprep.subr.mxu0 0.0
        %5317 = vmatpush1.msra.mxu0 0.0
        %5318 = vmatprep.subr.mxu0 0.0
        %5319 = vmatpush1.msra.mxu0 0.0
        %5320 = vmatprep.subr.mxu0 0.0
        %5321 = vmatpush1.msra.mxu0 0.0
        %5322 = vmatprep.subr.mxu0 0.0
        %5323 = vmatpush1.msra.mxu0 0.0
        %5324 = vmatprep.subr.mxu0 0.0
        %5325 = vmatpush1.msra.mxu0 0.0
        %5326 = vmatprep.subr.mxu0 0.0
        %5327 = vmatpush1.msra.mxu0 0.0
        %5328 = vmatprep.subr.mxu0 0.0
        %5329 = vmatpush1.msra.mxu0 0.0
        %5330 = vmatprep.subr.mxu0 0.0
        %5331 = vmatpush1.msra.mxu0 0.0
        %5332 = vmatprep.subr.mxu0 0.0
        %5333 = vmatpush1.msra.mxu0 0.0
        %5334 = vmatprep.subr.mxu0 0.0
        %5335 = vmatpush1.msra.mxu0 0.0
        %5336 = vmatprep.subr.mxu0 0.0
        %5337 = vmatpush1.msra.mxu0 0.0
        %5338 = vmatprep.subr.mxu0 0.0
        %5339 = vmatpush1.msra.mxu0 0.0
        %5340 = vmatprep.subr.mxu0 0.0
        %5341 = vmatpush1.msra.mxu0 0.0
        %5342 = vmatprep.subr.mxu0 0.0
        %5343 = vmatpush1.msra.mxu0 0.0
        %5344 = vmatprep.subr.mxu0 0.0
        %5345 = vmatpush1.msra.mxu0 0.0
        %5346 = vmatprep.subr.mxu0 0.0
        %5347 = vmatpush1.msra.mxu0 0.0
        %5348 = vmatprep.subr.mxu0 0.0
        %5349 = vmatpush1.msra.mxu0 0.0
        %5350 = vmatprep.subr.mxu0 0.0
        %5351 = vmatpush1.msra.mxu0 0.0
        %5352 = vmatprep.mubr.f32.mxu0 0.0
        %5353 = vmatmul.mubr.f32.gmra.mrb[0].mxu0 %v5129
        %v5354 = vpop.f32.mrb[0].mxu0
        %v5355 = vadd.f32 %v5067, %v5354
        %v5356 = vpop.f32.mrb[0].mxu0
        %v5357 = vadd.f32 %v5071, %v5356
        %5358 = vmatprep.mubr.f32.mxu0 0.0
        %5359 = vmatmul.mubr.f32.gmra.mrb[0].mxu0 %v5132
        %v5360 = vpop.f32.mrb[0].mxu0
        %v5361 = vadd.f32 %v5067, %v5360
        %v5362 = vpop.f32.mrb[0].mxu0
        %v5363 = vadd.f32 %v5071, %v5362
        %5364 = vdwg.mxu0
        %5365 = vmatprep.subr.mxu0 %v4987
        %5366 = vmatpush1.msra.mxu0 %v4986
        %5367 = vmatprep.subr.mxu0 %v5003
        %5368 = vmatpush1.msra.mxu0 %v5002
        %5369 = vmatprep.subr.mxu0 %v5019
        %5370 = vmatpush1.msra.mxu0 %v5018
        %5371 = vmatprep.subr.mxu0 %v5035
        %5372 = vmatpush1.msra.mxu0 %v5034
        %5373 = vmatprep.subr.mxu0 0.0
        %5374 = vmatpush1.msra.mxu0 0.0
        %5375 = vmatprep.subr.mxu0 0.0
        %5376 = vmatpush1.msra.mxu0 0.0
        %5377 = vmatprep.subr.mxu0 0.0
        %5378 = vmatpush1.msra.mxu0 0.0
        %5379 = vmatprep.subr.mxu0 0.0
        %5380 = vmatpush1.msra.mxu0 0.0
        %5381 = vmatprep.subr.mxu0 0.0
        %5382 = vmatpush1.msra.mxu0 0.0
        %5383 = vmatprep.subr.mxu0 0.0
        %5384 = vmatpush1.msra.mxu0 0.0
        %5385 = vmatprep.subr.mxu0 0.0
        %5386 = vmatpush1.msra.mxu0 0.0
        %5387 = vmatprep.subr.mxu0 0.0
        %5388 = vmatpush1.msra.mxu0 0.0
        %5389 = vmatprep.subr.mxu0 0.0
        %5390 = vmatpush1.msra.mxu0 0.0
        %5391 = vmatprep.subr.mxu0 0.0
        %5392 = vmatpush1.msra.mxu0 0.0
        %5393 = vmatprep.subr.mxu0 0.0
        %5394 = vmatpush1.msra.mxu0 0.0
        %5395 = vmatprep.subr.mxu0 0.0
        %5396 = vmatpush1.msra.mxu0 0.0
        %5397 = vmatprep.subr.mxu0 0.0
        %5398 = vmatpush1.msra.mxu0 0.0
        %5399 = vmatprep.subr.mxu0 0.0
        %5400 = vmatpush1.msra.mxu0 0.0
        %5401 = vmatprep.subr.mxu0 0.0
        %5402 = vmatpush1.msra.mxu0 0.0
        %5403 = vmatprep.subr.mxu0 0.0
        %5404 = vmatpush1.msra.mxu0 0.0
        %5405 = vmatprep.subr.mxu0 0.0
        %5406 = vmatpush1.msra.mxu0 0.0
        %5407 = vmatprep.subr.mxu0 0.0
        %5408 = vmatpush1.msra.mxu0 0.0
        %5409 = vmatprep.subr.mxu0 0.0
        %5410 = vmatpush1.msra.mxu0 0.0
        %5411 = vmatprep.subr.mxu0 0.0
        %5412 = vmatpush1.msra.mxu0 0.0
        %5413 = vmatprep.subr.mxu0 0.0
        %5414 = vmatpush1.msra.mxu0 0.0
        %5415 = vmatprep.subr.mxu0 0.0
        %5416 = vmatpush1.msra.mxu0 0.0
        %5417 = vmatprep.subr.mxu0 0.0
        %5418 = vmatpush1.msra.mxu0 0.0
        %5419 = vmatprep.subr.mxu0 0.0
        %5420 = vmatpush1.msra.mxu0 0.0
        %5421 = vmatprep.subr.mxu0 0.0
        %5422 = vmatpush1.msra.mxu0 0.0
        %5423 = vmatprep.subr.mxu0 0.0
        %5424 = vmatpush1.msra.mxu0 0.0
        %5425 = vmatprep.subr.mxu0 0.0
        %5426 = vmatpush1.msra.mxu0 0.0
        %5427 = vmatprep.subr.mxu0 0.0
        %5428 = vmatpush1.msra.mxu0 0.0
        %5429 = vmatprep.mubr.f32.mxu0 0.0
        %5430 = vmatmul.mubr.f32.gmra.mrb[0].mxu0 %v5129
        %v5431 = vpop.f32.mrb[0].mxu0
        %v5432 = vadd.f32 %v5075, %v5431
        %v5433 = vpop.f32.mrb[0].mxu0
        %v5434 = vadd.f32 %v5079, %v5433
        %5435 = vmatprep.mubr.f32.mxu0 0.0
        %5436 = vmatmul.mubr.f32.gmra.mrb[0].mxu0 %v5132
        %v5437 = vpop.f32.mrb[0].mxu0
        %v5438 = vadd.f32 %v5075, %v5437
        %v5439 = vpop.f32.mrb[0].mxu0
        %v5440 = vadd.f32 %v5079, %v5439
        %5441 = vdwg.mxu0
        %5442 = vmatprep.subr.mxu0 %v4989
        %5443 = vmatpush1.msra.mxu0 %v4988
        %5444 = vmatprep.subr.mxu0 %v5005
        %5445 = vmatpush1.msra.mxu0 %v5004
        %5446 = vmatprep.subr.mxu0 %v5021
        %5447 = vmatpush1.msra.mxu0 %v5020
        %5448 = vmatprep.subr.mxu0 %v5037
        %5449 = vmatpush1.msra.mxu0 %v5036
        %5450 = vmatprep.subr.mxu0 0.0
        %5451 = vmatpush1.msra.mxu0 0.0
        %5452 = vmatprep.subr.mxu0 0.0
        %5453 = vmatpush1.msra.mxu0 0.0
        %5454 = vmatprep.subr.mxu0 0.0
        %5455 = vmatpush1.msra.mxu0 0.0
        %5456 = vmatprep.subr.mxu0 0.0
        %5457 = vmatpush1.msra.mxu0 0.0
        %5458 = vmatprep.subr.mxu0 0.0
        %5459 = vmatpush1.msra.mxu0 0.0
        %5460 = vmatprep.subr.mxu0 0.0
        %5461 = vmatpush1.msra.mxu0 0.0
        %5462 = vmatprep.subr.mxu0 0.0
        %5463 = vmatpush1.msra.mxu0 0.0
        %5464 = vmatprep.subr.mxu0 0.0
        %5465 = vmatpush1.msra.mxu0 0.0
        %5466 = vmatprep.subr.mxu0 0.0
        %5467 = vmatpush1.msra.mxu0 0.0
        %5468 = vmatprep.subr.mxu0 0.0
        %5469 = vmatpush1.msra.mxu0 0.0
        %5470 = vmatprep.subr.mxu0 0.0
        %5471 = vmatpush1.msra.mxu0 0.0
        %5472 = vmatprep.subr.mxu0 0.0
        %5473 = vmatpush1.msra.mxu0 0.0
        %5474 = vmatprep.subr.mxu0 0.0
        %5475 = vmatpush1.msra.mxu0 0.0
        %5476 = vmatprep.subr.mxu0 0.0
        %5477 = vmatpush1.msra.mxu0 0.0
        %5478 = vmatprep.subr.mxu0 0.0
        %5479 = vmatpush1.msra.mxu0 0.0
        %5480 = vmatprep.subr.mxu0 0.0
        %5481 = vmatpush1.msra.mxu0 0.0
        %5482 = vmatprep.subr.mxu0 0.0
        %5483 = vmatpush1.msra.mxu0 0.0
        %5484 = vmatprep.subr.mxu0 0.0
        %5485 = vmatpush1.msra.mxu0 0.0
        %5486 = vmatprep.subr.mxu0 0.0
        %5487 = vmatpush1.msra.mxu0 0.0
        %5488 = vmatprep.subr.mxu0 0.0
        %5489 = vmatpush1.msra.mxu0 0.0
        %5490 = vmatprep.subr.mxu0 0.0
        %5491 = vmatpush1.msra.mxu0 0.0
        %5492 = vmatprep.subr.mxu0 0.0
        %5493 = vmatpush1.msra.mxu0 0.0
        %5494 = vmatprep.subr.mxu0 0.0
        %5495 = vmatpush1.msra.mxu0 0.0
        %5496 = vmatprep.subr.mxu0 0.0
        %5497 = vmatpush1.msra.mxu0 0.0
        %5498 = vmatprep.subr.mxu0 0.0
        %5499 = vmatpush1.msra.mxu0 0.0
        %5500 = vmatprep.subr.mxu0 0.0
        %5501 = vmatpush1.msra.mxu0 0.0
        %5502 = vmatprep.subr.mxu0 0.0
        %5503 = vmatpush1.msra.mxu0 0.0
        %5504 = vmatprep.subr.mxu0 0.0
        %5505 = vmatpush1.msra.mxu0 0.0
        %5506 = vmatprep.mubr.f32.mxu0 0.0
        %5507 = vmatmul.mubr.f32.gmra.mrb[0].mxu0 %v5129
        %v5508 = vpop.f32.mrb[0].mxu0
        %v5509 = vadd.f32 %v5083, %v5508
        %v5510 = vpop.f32.mrb[0].mxu0
        %v5511 = vadd.f32 %v5087, %v5510
        %5512 = vmatprep.mubr.f32.mxu0 0.0
        %5513 = vmatmul.mubr.f32.gmra.mrb[0].mxu0 %v5132
        %v5514 = vpop.f32.mrb[0].mxu0
        %v5515 = vadd.f32 %v5083, %v5514
        %v5516 = vpop.f32.mrb[0].mxu0
        %v5517 = vadd.f32 %v5087, %v5516
        %5518 = vdwg.mxu0
        %5519 = vmatprep.subr.mxu0 %v4991
        %5520 = vmatpush1.msra.mxu0 %v4990
        %5521 = vmatprep.subr.mxu0 %v5007
        %5522 = vmatpush1.msra.mxu0 %v5006
        %5523 = vmatprep.subr.mxu0 %v5023
        %5524 = vmatpush1.msra.mxu0 %v5022
        %5525 = vmatprep.subr.mxu0 %v5039
        %5526 = vmatpush1.msra.mxu0 %v5038
        %5527 = vmatprep.subr.mxu0 0.0
        %5528 = vmatpush1.msra.mxu0 0.0
        %5529 = vmatprep.subr.mxu0 0.0
        %5530 = vmatpush1.msra.mxu0 0.0
        %5531 = vmatprep.subr.mxu0 0.0
        %5532 = vmatpush1.msra.mxu0 0.0
        %5533 = vmatprep.subr.mxu0 0.0
        %5534 = vmatpush1.msra.mxu0 0.0
        %5535 = vmatprep.subr.mxu0 0.0
        %5536 = vmatpush1.msra.mxu0 0.0
        %5537 = vmatprep.subr.mxu0 0.0
        %5538 = vmatpush1.msra.mxu0 0.0
        %5539 = vmatprep.subr.mxu0 0.0
        %5540 = vmatpush1.msra.mxu0 0.0
        %5541 = vmatprep.subr.mxu0 0.0
        %5542 = vmatpush1.msra.mxu0 0.0
        %5543 = vmatprep.subr.mxu0 0.0
        %5544 = vmatpush1.msra.mxu0 0.0
        %5545 = vmatprep.subr.mxu0 0.0
        %5546 = vmatpush1.msra.mxu0 0.0
        %5547 = vmatprep.subr.mxu0 0.0
        %5548 = vmatpush1.msra.mxu0 0.0
        %5549 = vmatprep.subr.mxu0 0.0
        %5550 = vmatpush1.msra.mxu0 0.0
        %5551 = vmatprep.subr.mxu0 0.0
        %5552 = vmatpush1.msra.mxu0 0.0
        %5553 = vmatprep.subr.mxu0 0.0
        %5554 = vmatpush1.msra.mxu0 0.0
        %5555 = vmatprep.subr.mxu0 0.0
        %5556 = vmatpush1.msra.mxu0 0.0
        %5557 = vmatprep.subr.mxu0 0.0
        %5558 = vmatpush1.msra.mxu0 0.0
        %5559 = vmatprep.subr.mxu0 0.0
        %5560 = vmatpush1.msra.mxu0 0.0
        %5561 = vmatprep.subr.mxu0 0.0
        %5562 = vmatpush1.msra.mxu0 0.0
        %5563 = vmatprep.subr.mxu0 0.0
        %5564 = vmatpush1.msra.mxu0 0.0
        %5565 = vmatprep.subr.mxu0 0.0
        %5566 = vmatpush1.msra.mxu0 0.0
        %5567 = vmatprep.subr.mxu0 0.0
        %5568 = vmatpush1.msra.mxu0 0.0
        %5569 = vmatprep.subr.mxu0 0.0
        %5570 = vmatpush1.msra.mxu0 0.0
        %5571 = vmatprep.subr.mxu0 0.0
        %5572 = vmatpush1.msra.mxu0 0.0
        %5573 = vmatprep.subr.mxu0 0.0
        %5574 = vmatpush1.msra.mxu0 0.0
        %5575 = vmatprep.subr.mxu0 0.0
        %5576 = vmatpush1.msra.mxu0 0.0
        %5577 = vmatprep.subr.mxu0 0.0
        %5578 = vmatpush1.msra.mxu0 0.0
        %5579 = vmatprep.subr.mxu0 0.0
        %5580 = vmatpush1.msra.mxu0 0.0
        %5581 = vmatprep.subr.mxu0 0.0
        %5582 = vmatpush1.msra.mxu0 0.0
        %5583 = vmatprep.mubr.f32.mxu0 0.0
        %5584 = vmatmul.mubr.f32.gmra.mrb[0].mxu0 %v5129
        %v5585 = vpop.f32.mrb[0].mxu0
        %v5586 = vadd.f32 %v5091, %v5585
        %v5587 = vpop.f32.mrb[0].mxu0
        %v5588 = vadd.f32 %v5095, %v5587
        %5589 = vmatprep.mubr.f32.mxu0 0.0
        %5590 = vmatmul.mubr.f32.gmra.mrb[0].mxu0 %v5132
        %v5591 = vpop.f32.mrb[0].mxu0
        %v5592 = vadd.f32 %v5091, %v5591
        %v5593 = vpop.f32.mrb[0].mxu0
        %v5594 = vadd.f32 %v5095, %v5593
        %5595 = vdwg.mxu0
        %5596 = vmatprep.subr.mxu0 %v4993
        %5597 = vmatpush1.msra.mxu0 %v4992
        %5598 = vmatprep.subr.mxu0 %v5009
        %5599 = vmatpush1.msra.mxu0 %v5008
        %5600 = vmatprep.subr.mxu0 %v5025
        %5601 = vmatpush1.msra.mxu0 %v5024
        %5602 = vmatprep.subr.mxu0 %v5041
        %5603 = vmatpush1.msra.mxu0 %v5040
        %5604 = vmatprep.subr.mxu0 0.0
        %5605 = vmatpush1.msra.mxu0 0.0
        %5606 = vmatprep.subr.mxu0 0.0
        %5607 = vmatpush1.msra.mxu0 0.0
        %5608 = vmatprep.subr.mxu0 0.0
        %5609 = vmatpush1.msra.mxu0 0.0
        %5610 = vmatprep.subr.mxu0 0.0
        %5611 = vmatpush1.msra.mxu0 0.0
        %5612 = vmatprep.subr.mxu0 0.0
        %5613 = vmatpush1.msra.mxu0 0.0
        %5614 = vmatprep.subr.mxu0 0.0
        %5615 = vmatpush1.msra.mxu0 0.0
        %5616 = vmatprep.subr.mxu0 0.0
        %5617 = vmatpush1.msra.mxu0 0.0
        %5618 = vmatprep.subr.mxu0 0.0
        %5619 = vmatpush1.msra.mxu0 0.0
        %5620 = vmatprep.subr.mxu0 0.0
        %5621 = vmatpush1.msra.mxu0 0.0
        %5622 = vmatprep.subr.mxu0 0.0
        %5623 = vmatpush1.msra.mxu0 0.0
        %5624 = vmatprep.subr.mxu0 0.0
        %5625 = vmatpush1.msra.mxu0 0.0
        %5626 = vmatprep.subr.mxu0 0.0
        %5627 = vmatpush1.msra.mxu0 0.0
        %5628 = vmatprep.subr.mxu0 0.0
        %5629 = vmatpush1.msra.mxu0 0.0
        %5630 = vmatprep.subr.mxu0 0.0
        %5631 = vmatpush1.msra.mxu0 0.0
        %5632 = vmatprep.subr.mxu0 0.0
        %5633 = vmatpush1.msra.mxu0 0.0
        %5634 = vmatprep.subr.mxu0 0.0
        %5635 = vmatpush1.msra.mxu0 0.0
        %5636 = vmatprep.subr.mxu0 0.0
        %5637 = vmatpush1.msra.mxu0 0.0
        %5638 = vmatprep.subr.mxu0 0.0
        %5639 = vmatpush1.msra.mxu0 0.0
        %5640 = vmatprep.subr.mxu0 0.0
        %5641 = vmatpush1.msra.mxu0 0.0
        %5642 = vmatprep.subr.mxu0 0.0
        %5643 = vmatpush1.msra.mxu0 0.0
        %5644 = vmatprep.subr.mxu0 0.0
        %5645 = vmatpush1.msra.mxu0 0.0
        %5646 = vmatprep.subr.mxu0 0.0
        %5647 = vmatpush1.msra.mxu0 0.0
        %5648 = vmatprep.subr.mxu0 0.0
        %5649 = vmatpush1.msra.mxu0 0.0
        %5650 = vmatprep.subr.mxu0 0.0
        %5651 = vmatpush1.msra.mxu0 0.0
        %5652 = vmatprep.subr.mxu0 0.0
        %5653 = vmatpush1.msra.mxu0 0.0
        %5654 = vmatprep.subr.mxu0 0.0
        %5655 = vmatpush1.msra.mxu0 0.0
        %5656 = vmatprep.subr.mxu0 0.0
        %5657 = vmatpush1.msra.mxu0 0.0
        %5658 = vmatprep.subr.mxu0 0.0
        %5659 = vmatpush1.msra.mxu0 0.0
        %5660 = vmatprep.mubr.f32.mxu0 0.0
        %5661 = vmatmul.mubr.f32.gmra.mrb[0].mxu0 %v5129
        %v5662 = vpop.f32.mrb[0].mxu0
        %v5663 = vadd.f32 %v5099, %v5662
        %v5664 = vpop.f32.mrb[0].mxu0
        %v5665 = vadd.f32 %v5103, %v5664
        %5666 = vmatprep.mubr.f32.mxu0 0.0
        %5667 = vmatmul.mubr.f32.gmra.mrb[0].mxu0 %v5132
        %v5668 = vpop.f32.mrb[0].mxu0
        %v5669 = vadd.f32 %v5099, %v5668
        %v5670 = vpop.f32.mrb[0].mxu0
        %v5671 = vadd.f32 %v5103, %v5670
        %5672 = vdwg.mxu0
        %5673 = vmatprep.subr.mxu0 %v4995
        %5674 = vmatpush1.msra.mxu0 %v4994
        %5675 = vmatprep.subr.mxu0 %v5011
        %5676 = vmatpush1.msra.mxu0 %v5010
        %5677 = vmatprep.subr.mxu0 %v5027
        %5678 = vmatpush1.msra.mxu0 %v5026
        %5679 = vmatprep.subr.mxu0 %v5043
        %5680 = vmatpush1.msra.mxu0 %v5042
        %5681 = vmatprep.subr.mxu0 0.0
        %5682 = vmatpush1.msra.mxu0 0.0
        %5683 = vmatprep.subr.mxu0 0.0
        %5684 = vmatpush1.msra.mxu0 0.0
        %5685 = vmatprep.subr.mxu0 0.0
        %5686 = vmatpush1.msra.mxu0 0.0
        %5687 = vmatprep.subr.mxu0 0.0
        %5688 = vmatpush1.msra.mxu0 0.0
        %5689 = vmatprep.subr.mxu0 0.0
        %5690 = vmatpush1.msra.mxu0 0.0
        %5691 = vmatprep.subr.mxu0 0.0
        %5692 = vmatpush1.msra.mxu0 0.0
        %5693 = vmatprep.subr.mxu0 0.0
        %5694 = vmatpush1.msra.mxu0 0.0
        %5695 = vmatprep.subr.mxu0 0.0
        %5696 = vmatpush1.msra.mxu0 0.0
        %5697 = vmatprep.subr.mxu0 0.0
        %5698 = vmatpush1.msra.mxu0 0.0
        %5699 = vmatprep.subr.mxu0 0.0
        %5700 = vmatpush1.msra.mxu0 0.0
        %5701 = vmatprep.subr.mxu0 0.0
        %5702 = vmatpush1.msra.mxu0 0.0
        %5703 = vmatprep.subr.mxu0 0.0
        %5704 = vmatpush1.msra.mxu0 0.0
        %5705 = vmatprep.subr.mxu0 0.0
        %5706 = vmatpush1.msra.mxu0 0.0
        %5707 = vmatprep.subr.mxu0 0.0
        %5708 = vmatpush1.msra.mxu0 0.0
        %5709 = vmatprep.subr.mxu0 0.0
        %5710 = vmatpush1.msra.mxu0 0.0
        %5711 = vmatprep.subr.mxu0 0.0
        %5712 = vmatpush1.msra.mxu0 0.0
        %5713 = vmatprep.subr.mxu0 0.0
        %5714 = vmatpush1.msra.mxu0 0.0
        %5715 = vmatprep.subr.mxu0 0.0
        %5716 = vmatpush1.msra.mxu0 0.0
        %5717 = vmatprep.subr.mxu0 0.0
        %5718 = vmatpush1.msra.mxu0 0.0
        %5719 = vmatprep.subr.mxu0 0.0
        %5720 = vmatpush1.msra.mxu0 0.0
        %5721 = vmatprep.subr.mxu0 0.0
        %5722 = vmatpush1.msra.mxu0 0.0
        %5723 = vmatprep.subr.mxu0 0.0
        %5724 = vmatpush1.msra.mxu0 0.0
        %5725 = vmatprep.subr.mxu0 0.0
        %5726 = vmatpush1.msra.mxu0 0.0
        %5727 = vmatprep.subr.mxu0 0.0
        %5728 = vmatpush1.msra.mxu0 0.0
        %5729 = vmatprep.subr.mxu0 0.0
        %5730 = vmatpush1.msra.mxu0 0.0
        %5731 = vmatprep.subr.mxu0 0.0
        %5732 = vmatpush1.msra.mxu0 0.0
        %5733 = vmatprep.subr.mxu0 0.0
        %5734 = vmatpush1.msra.mxu0 0.0
        %5735 = vmatprep.subr.mxu0 0.0
        %5736 = vmatpush1.msra.mxu0 0.0
        %5737 = vmatprep.mubr.f32.mxu0 0.0
        %5738 = vmatmul.mubr.f32.gmra.mrb[0].mxu0 %v5129
        %v5739 = vpop.f32.mrb[0].mxu0
        %v5740 = vadd.f32 %v5107, %v5739
        %v5741 = vpop.f32.mrb[0].mxu0
        %v5742 = vadd.f32 %v5111, %v5741
        %5743 = vmatprep.mubr.f32.mxu0 0.0
        %5744 = vmatmul.mubr.f32.gmra.mrb[0].mxu0 %v5132
        %v5745 = vpop.f32.mrb[0].mxu0
        %v5746 = vadd.f32 %v5107, %v5745
        %v5747 = vpop.f32.mrb[0].mxu0
        %v5748 = vadd.f32 %v5111, %v5747
        %5749 = vdwg.mxu0
        %v5750 = vmax.f32 %v5201, 0.0
        %v5751 = vmax.f32 %v5203, 0.0
        %v5752 = vmax.f32 %v5278, 0.0
        %v5753 = vmax.f32 %v5280, 0.0
        %v5754 = vmax.f32 %v5355, 0.0
        %v5755 = vmax.f32 %v5357, 0.0
        %v5756 = vmax.f32 %v5432, 0.0
        %v5757 = vmax.f32 %v5434, 0.0
        %v5758 = vmax.f32 %v5509, 0.0
        %v5759 = vmax.f32 %v5511, 0.0
        %v5760 = vmax.f32 %v5586, 0.0
        %v5761 = vmax.f32 %v5588, 0.0
        %v5762 = vmax.f32 %v5663, 0.0
        %v5763 = vmax.f32 %v5665, 0.0
        %v5764 = vmax.f32 %v5740, 0.0
        %v5765 = vmax.f32 %v5742, 0.0
        %v5766 = vmax.f32 %v5207, 0.0
        %v5767 = vmax.f32 %v5209, 0.0
        %v5768 = vmax.f32 %v5284, 0.0
        %v5769 = vmax.f32 %v5286, 0.0
        %v5770 = vmax.f32 %v5361, 0.0
        %v5771 = vmax.f32 %v5363, 0.0
        %v5772 = vmax.f32 %v5438, 0.0
        %v5773 = vmax.f32 %v5440, 0.0
        %v5774 = vmax.f32 %v5515, 0.0
        %v5775 = vmax.f32 %v5517, 0.0
        %v5776 = vmax.f32 %v5592, 0.0
        %v5777 = vmax.f32 %v5594, 0.0
        %v5778 = vmax.f32 %v5669, 0.0
        %v5779 = vmax.f32 %v5671, 0.0
        %v5780 = vmax.f32 %v5746, 0.0
        %v5781 = vmax.f32 %v5748, 0.0
        %v5782 = vld [vmem:[%s14] sm:$0xff]
        %v5783 = vld [vmem:[%s14 + $0x8] sm:$0xff]
        %v5784 = vld [vmem:[%s14 + $0x10] sm:$0xff]
        %v5785 = vld [vmem:[%s14 + $0x18] sm:$0xff]
        %v5786 = vld [vmem:[%s14 + $0x20] sm:$0xff]
        %v5787 = vld [vmem:[%s14 + $0x28] sm:$0xff]
        %v5788 = vld [vmem:[%s14 + $0x30] sm:$0xff]
        %v5789 = vld [vmem:[%s14 + $0x38] sm:$0xff]
        %v5790 = vld [vmem:[%s14 + $0x40] sm:$0xff]
        %v5791 = vld [vmem:[%s14 + $0x48] sm:$0xff]
        %v5792 = vld [vmem:[%s14 + $0x50] sm:$0xff]
        %v5793 = vld [vmem:[%s14 + $0x58] sm:$0xff]
        %v5794 = vld [vmem:[%s14 + $0x60] sm:$0xff]
        %v5795 = vld [vmem:[%s14 + $0x68] sm:$0xff]
        %v5796 = vld [vmem:[%s14 + $0x70] sm:$0xff]
        %v5797 = vld [vmem:[%s14 + $0x78] sm:$0xff]
        %v5798 = vld [vmem:[%s14 + $0x80] sm:$0xff]
        %v5799 = vld [vmem:[%s14 + $0x88] sm:$0xff]
        %v5800 = vld [vmem:[%s14 + $0x90] sm:$0xff]
        %v5801 = vld [vmem:[%s14 + $0x98] sm:$0xff]
        %v5802 = vld [vmem:[%s14 + $0xa0] sm:$0xff]
        %v5803 = vld [vmem:[%s14 + $0xa8] sm:$0xff]
        %v5804 = vld [vmem:[%s14 + $0xb0] sm:$0xff]
        %v5805 = vld [vmem:[%s14 + $0xb8] sm:$0xff]
        %v5806 = vld [vmem:[%s14 + $0xc0] sm:$0xff]
        %v5807 = vld [vmem:[%s14 + $0xc8] sm:$0xff]
        %v5808 = vld [vmem:[%s14 + $0xd0] sm:$0xff]
        %v5809 = vld [vmem:[%s14 + $0xd8] sm:$0xff]
        %v5810 = vld [vmem:[%s14 + $0xe0] sm:$0xff]
        %v5811 = vld [vmem:[%s14 + $0xe8] sm:$0xff]
        %v5812 = vld [vmem:[%s14 + $0xf0] sm:$0xff]
        %v5813 = vld [vmem:[%s14 + $0xf8] sm:$0xff]
        %v5814 = vld [vmem:[%s14 + $0x100] sm:$0xff]
        %v5815 = vld [vmem:[%s14 + $0x108] sm:$0xff]
        %v5816 = vld [vmem:[%s14 + $0x110] sm:$0xff]
        %v5817 = vld [vmem:[%s14 + $0x118] sm:$0xff]
        %v5818 = vld [vmem:[%s14 + $0x120] sm:$0xff]
        %v5819 = vld [vmem:[%s14 + $0x128] sm:$0xff]
        %v5820 = vld [vmem:[%s14 + $0x130] sm:$0xff]
        %v5821 = vld [vmem:[%s14 + $0x138] sm:$0xff]
        %v5822 = vld [vmem:[%s14 + $0x140] sm:$0xff]
        %v5823 = vld [vmem:[%s14 + $0x148] sm:$0xff]
        %v5824 = vld [vmem:[%s14 + $0x150] sm:$0xff]
        %v5825 = vld [vmem:[%s14 + $0x158] sm:$0xff]
        %v5826 = vld [vmem:[%s14 + $0x160] sm:$0xff]
        %v5827 = vld [vmem:[%s14 + $0x168] sm:$0xff]
        %v5828 = vld [vmem:[%s14 + $0x170] sm:$0xff]
        %v5829 = vld [vmem:[%s14 + $0x178] sm:$0xff]
        %v5830 = vld [vmem:[%s14 + $0x180] sm:$0xff]
        %v5831 = vld [vmem:[%s14 + $0x188] sm:$0xff]
        %v5832 = vld [vmem:[%s14 + $0x190] sm:$0xff]
        %v5833 = vld [vmem:[%s14 + $0x198] sm:$0xff]
        %v5834 = vld [vmem:[%s14 + $0x1a0] sm:$0xff]
        %v5835 = vld [vmem:[%s14 + $0x1a8] sm:$0xff]
        %v5836 = vld [vmem:[%s14 + $0x1b0] sm:$0xff]
        %v5837 = vld [vmem:[%s14 + $0x1b8] sm:$0xff]
        %v5838 = vld [vmem:[%s14 + $0x1c0] sm:$0xff]
        %v5839 = vld [vmem:[%s14 + $0x1c8] sm:$0xff]
        %v5840 = vld [vmem:[%s14 + $0x1d0] sm:$0xff]
        %v5841 = vld [vmem:[%s14 + $0x1d8] sm:$0xff]
        %v5842 = vld [vmem:[%s14 + $0x1e0] sm:$0xff]
        %v5843 = vld [vmem:[%s14 + $0x1e8] sm:$0xff]
        %v5844 = vld [vmem:[%s14 + $0x1f0] sm:$0xff]
        %v5845 = vld [vmem:[%s14 + $0x1f8] sm:$0xff]
        %v5846 = vld [vmem:[%s14 + $0x200] sm:$0xff]
        %v5847 = vld [vmem:[%s14 + $0x208] sm:$0xff]
        %v5848 = vld [vmem:[%s14 + $0x210] sm:$0xff]
        %v5849 = vld [vmem:[%s14 + $0x218] sm:$0xff]
        %v5850 = vld [vmem:[%s14 + $0x220] sm:$0xff]
        %v5851 = vld [vmem:[%s14 + $0x228] sm:$0xff]
        %v5852 = vld [vmem:[%s14 + $0x230] sm:$0xff]
        %v5853 = vld [vmem:[%s14 + $0x238] sm:$0xff]
        %v5854 = vld [vmem:[%s14 + $0x240] sm:$0xff]
        %v5855 = vld [vmem:[%s14 + $0x248] sm:$0xff]
        %v5856 = vld [vmem:[%s14 + $0x250] sm:$0xff]
        %v5857 = vld [vmem:[%s14 + $0x258] sm:$0xff]
        %v5858 = vld [vmem:[%s14 + $0x260] sm:$0xff]
        %v5859 = vld [vmem:[%s14 + $0x268] sm:$0xff]
        %v5860 = vld [vmem:[%s14 + $0x270] sm:$0xff]
        %v5861 = vld [vmem:[%s14 + $0x278] sm:$0xff]
        %v5862 = vld [vmem:[%s14 + $0x280] sm:$0xff]
        %v5863 = vld [vmem:[%s14 + $0x288] sm:$0xff]
        %v5864 = vld [vmem:[%s14 + $0x290] sm:$0xff]
        %v5865 = vld [vmem:[%s14 + $0x298] sm:$0xff]
        %v5866 = vld [vmem:[%s14 + $0x2a0] sm:$0xff]
        %v5867 = vld [vmem:[%s14 + $0x2a8] sm:$0xff]
        %v5868 = vld [vmem:[%s14 + $0x2b0] sm:$0xff]
        %v5869 = vld [vmem:[%s14 + $0x2b8] sm:$0xff]
        %v5870 = vld [vmem:[%s14 + $0x2c0] sm:$0xff]
        %v5871 = vld [vmem:[%s14 + $0x2c8] sm:$0xff]
        %v5872 = vld [vmem:[%s14 + $0x2d0] sm:$0xff]
        %v5873 = vld [vmem:[%s14 + $0x2d8] sm:$0xff]
        %v5874 = vld [vmem:[%s14 + $0x2e0] sm:$0xff]
        %v5875 = vld [vmem:[%s14 + $0x2e8] sm:$0xff]
        %v5876 = vld [vmem:[%s14 + $0x2f0] sm:$0xff]
        %v5877 = vld [vmem:[%s14 + $0x2f8] sm:$0xff]
        %v5878 = vld [vmem:[%s14 + $0x300] sm:$0xff]
        %v5879 = vld [vmem:[%s14 + $0x308] sm:$0xff]
        %v5880 = vld [vmem:[%s14 + $0x310] sm:$0xff]
        %v5881 = vld [vmem:[%s14 + $0x318] sm:$0xff]
        %v5882 = vld [vmem:[%s14 + $0x320] sm:$0xff]
        %v5883 = vld [vmem:[%s14 + $0x328] sm:$0xff]
        %v5884 = vld [vmem:[%s14 + $0x330] sm:$0xff]
        %v5885 = vld [vmem:[%s14 + $0x338] sm:$0xff]
        %v5886 = vld [vmem:[%s14 + $0x340] sm:$0xff]
        %v5887 = vld [vmem:[%s14 + $0x348] sm:$0xff]
        %v5888 = vld [vmem:[%s14 + $0x350] sm:$0xff]
        %v5889 = vld [vmem:[%s14 + $0x358] sm:$0xff]
        %v5890 = vld [vmem:[%s14 + $0x360] sm:$0xff]
        %v5891 = vld [vmem:[%s14 + $0x368] sm:$0xff]
        %v5892 = vld [vmem:[%s14 + $0x370] sm:$0xff]
        %v5893 = vld [vmem:[%s14 + $0x378] sm:$0xff]
        %v5894 = vld [vmem:[%s14 + $0x380] sm:$0xff]
        %v5895 = vld [vmem:[%s14 + $0x388] sm:$0xff]
        %v5896 = vld [vmem:[%s14 + $0x390] sm:$0xff]
        %v5897 = vld [vmem:[%s14 + $0x398] sm:$0xff]
        %v5898 = vld [vmem:[%s14 + $0x3a0] sm:$0xff]
        %v5899 = vld [vmem:[%s14 + $0x3a8] sm:$0xff]
        %v5900 = vld [vmem:[%s14 + $0x3b0] sm:$0xff]
        %v5901 = vld [vmem:[%s14 + $0x3b8] sm:$0xff]
        %v5902 = vld [vmem:[%s14 + $0x3c0] sm:$0xff]
        %v5903 = vld [vmem:[%s14 + $0x3c8] sm:$0xff]
        %v5904 = vld [vmem:[%s14 + $0x3d0] sm:$0xff]
        %v5905 = vld [vmem:[%s14 + $0x3d8] sm:$0xff]
        %v5906 = vld [vmem:[%s14 + $0x3e0] sm:$0xff]
        %v5907 = vld [vmem:[%s14 + $0x3e8] sm:$0xff]
        %v5908 = vld [vmem:[%s14 + $0x3f0] sm:$0xff]
        %v5909 = vld [vmem:[%s14 + $0x3f8] sm:$0xff]
        %v5910 = vld [vmem:[%s14 + $0x400] sm:$0xff]
        %v5911 = vld [vmem:[%s14 + $0x408] sm:$0xff]
        %v5912 = vld [vmem:[%s14 + $0x410] sm:$0xff]
        %v5913 = vld [vmem:[%s14 + $0x418] sm:$0xff]
        %v5914 = vld [vmem:[%s14 + $0x420] sm:$0xff]
        %v5915 = vld [vmem:[%s14 + $0x428] sm:$0xff]
        %v5916 = vld [vmem:[%s14 + $0x430] sm:$0xff]
        %v5917 = vld [vmem:[%s14 + $0x438] sm:$0xff]
        %v5918 = vld [vmem:[%s14 + $0x440] sm:$0xff]
        %v5919 = vld [vmem:[%s14 + $0x448] sm:$0xff]
        %v5920 = vld [vmem:[%s14 + $0x450] sm:$0xff]
        %v5921 = vld [vmem:[%s14 + $0x458] sm:$0xff]
        %v5922 = vld [vmem:[%s14 + $0x460] sm:$0xff]
        %v5923 = vld [vmem:[%s14 + $0x468] sm:$0xff]
        %v5924 = vld [vmem:[%s14 + $0x470] sm:$0xff]
        %v5925 = vld [vmem:[%s14 + $0x478] sm:$0xff]
        %v5926 = vld [vmem:[%s14 + $0x480] sm:$0xff]
        %v5927 = vld [vmem:[%s14 + $0x488] sm:$0xff]
        %v5928 = vld [vmem:[%s14 + $0x490] sm:$0xff]
        %v5929 = vld [vmem:[%s14 + $0x498] sm:$0xff]
        %v5930 = vld [vmem:[%s14 + $0x4a0] sm:$0xff]
        %v5931 = vld [vmem:[%s14 + $0x4a8] sm:$0xff]
        %v5932 = vld [vmem:[%s14 + $0x4b0] sm:$0xff]
        %v5933 = vld [vmem:[%s14 + $0x4b8] sm:$0xff]
        %v5934 = vld [vmem:[%s14 + $0x4c0] sm:$0xff]
        %v5935 = vld [vmem:[%s14 + $0x4c8] sm:$0xff]
        %v5936 = vld [vmem:[%s14 + $0x4d0] sm:$0xff]
        %v5937 = vld [vmem:[%s14 + $0x4d8] sm:$0xff]
        %v5938 = vld [vmem:[%s14 + $0x4e0] sm:$0xff]
        %v5939 = vld [vmem:[%s14 + $0x4e8] sm:$0xff]
        %v5940 = vld [vmem:[%s14 + $0x4f0] sm:$0xff]
        %v5941 = vld [vmem:[%s14 + $0x4f8] sm:$0xff]
        %v5942 = vld [vmem:[%s14 + $0x500] sm:$0xff]
        %v5943 = vld [vmem:[%s14 + $0x508] sm:$0xff]
        %v5944 = vld [vmem:[%s14 + $0x510] sm:$0xff]
        %v5945 = vld [vmem:[%s14 + $0x518] sm:$0xff]
        %v5946 = vld [vmem:[%s14 + $0x520] sm:$0xff]
        %v5947 = vld [vmem:[%s14 + $0x528] sm:$0xff]
        %v5948 = vld [vmem:[%s14 + $0x530] sm:$0xff]
        %v5949 = vld [vmem:[%s14 + $0x538] sm:$0xff]
        %v5950 = vld [vmem:[%s14 + $0x540] sm:$0xff]
        %v5951 = vld [vmem:[%s14 + $0x548] sm:$0xff]
        %v5952 = vld [vmem:[%s14 + $0x550] sm:$0xff]
        %v5953 = vld [vmem:[%s14 + $0x558] sm:$0xff]
        %v5954 = vld [vmem:[%s14 + $0x560] sm:$0xff]
        %v5955 = vld [vmem:[%s14 + $0x568] sm:$0xff]
        %v5956 = vld [vmem:[%s14 + $0x570] sm:$0xff]
        %v5957 = vld [vmem:[%s14 + $0x578] sm:$0xff]
        %v5958 = vld [vmem:[%s14 + $0x580] sm:$0xff]
        %v5959 = vld [vmem:[%s14 + $0x588] sm:$0xff]
        %v5960 = vld [vmem:[%s14 + $0x590] sm:$0xff]
        %v5961 = vld [vmem:[%s14 + $0x598] sm:$0xff]
        %v5962 = vld [vmem:[%s14 + $0x5a0] sm:$0xff]
        %v5963 = vld [vmem:[%s14 + $0x5a8] sm:$0xff]
        %v5964 = vld [vmem:[%s14 + $0x5b0] sm:$0xff]
        %v5965 = vld [vmem:[%s14 + $0x5b8] sm:$0xff]
        %v5966 = vld [vmem:[%s14 + $0x5c0] sm:$0xff]
        %v5967 = vld [vmem:[%s14 + $0x5c8] sm:$0xff]
        %v5968 = vld [vmem:[%s14 + $0x5d0] sm:$0xff]
        %v5969 = vld [vmem:[%s14 + $0x5d8] sm:$0xff]
        %v5970 = vld [vmem:[%s14 + $0x5e0] sm:$0xff]
        %v5971 = vld [vmem:[%s14 + $0x5e8] sm:$0xff]
        %v5972 = vld [vmem:[%s14 + $0x5f0] sm:$0xff]
        %v5973 = vld [vmem:[%s14 + $0x5f8] sm:$0xff]
        %v5974 = vld [vmem:[%s14 + $0x600] sm:$0xff]
        %v5975 = vld [vmem:[%s14 + $0x608] sm:$0xff]
        %v5976 = vld [vmem:[%s14 + $0x610] sm:$0xff]
        %v5977 = vld [vmem:[%s14 + $0x618] sm:$0xff]
        %v5978 = vld [vmem:[%s14 + $0x620] sm:$0xff]
        %v5979 = vld [vmem:[%s14 + $0x628] sm:$0xff]
        %v5980 = vld [vmem:[%s14 + $0x630] sm:$0xff]
        %v5981 = vld [vmem:[%s14 + $0x638] sm:$0xff]
        %v5982 = vld [vmem:[%s14 + $0x640] sm:$0xff]
        %v5983 = vld [vmem:[%s14 + $0x648] sm:$0xff]
        %v5984 = vld [vmem:[%s14 + $0x650] sm:$0xff]
        %v5985 = vld [vmem:[%s14 + $0x658] sm:$0xff]
        %v5986 = vld [vmem:[%s14 + $0x660] sm:$0xff]
        %v5987 = vld [vmem:[%s14 + $0x668] sm:$0xff]
        %v5988 = vld [vmem:[%s14 + $0x670] sm:$0xff]
        %v5989 = vld [vmem:[%s14 + $0x678] sm:$0xff]
        %v5990 = vld [vmem:[%s14 + $0x680] sm:$0xff]
        %v5991 = vld [vmem:[%s14 + $0x688] sm:$0xff]
        %v5992 = vld [vmem:[%s14 + $0x690] sm:$0xff]
        %v5993 = vld [vmem:[%s14 + $0x698] sm:$0xff]
        %v5994 = vld [vmem:[%s14 + $0x6a0] sm:$0xff]
        %v5995 = vld [vmem:[%s14 + $0x6a8] sm:$0xff]
        %v5996 = vld [vmem:[%s14 + $0x6b0] sm:$0xff]
        %v5997 = vld [vmem:[%s14 + $0x6b8] sm:$0xff]
        %v5998 = vld [vmem:[%s14 + $0x6c0] sm:$0xff]
        %v5999 = vld [vmem:[%s14 + $0x6c8] sm:$0xff]
        %v6000 = vld [vmem:[%s14 + $0x6d0] sm:$0xff]
        %v6001 = vld [vmem:[%s14 + $0x6d8] sm:$0xff]
        %v6002 = vld [vmem:[%s14 + $0x6e0] sm:$0xff]
        %v6003 = vld [vmem:[%s14 + $0x6e8] sm:$0xff]
        %v6004 = vld [vmem:[%s14 + $0x6f0] sm:$0xff]
        %v6005 = vld [vmem:[%s14 + $0x6f8] sm:$0xff]
        %v6006 = vld [vmem:[%s14 + $0x700] sm:$0xff]
        %v6007 = vld [vmem:[%s14 + $0x708] sm:$0xff]
        %v6008 = vld [vmem:[%s14 + $0x710] sm:$0xff]
        %v6009 = vld [vmem:[%s14 + $0x718] sm:$0xff]
        %v6010 = vld [vmem:[%s14 + $0x720] sm:$0xff]
        %v6011 = vld [vmem:[%s14 + $0x728] sm:$0xff]
        %v6012 = vld [vmem:[%s14 + $0x730] sm:$0xff]
        %v6013 = vld [vmem:[%s14 + $0x738] sm:$0xff]
        %v6014 = vld [vmem:[%s14 + $0x740] sm:$0xff]
        %v6015 = vld [vmem:[%s14 + $0x748] sm:$0xff]
        %v6016 = vld [vmem:[%s14 + $0x750] sm:$0xff]
        %v6017 = vld [vmem:[%s14 + $0x758] sm:$0xff]
        %v6018 = vld [vmem:[%s14 + $0x760] sm:$0xff]
        %v6019 = vld [vmem:[%s14 + $0x768] sm:$0xff]
        %v6020 = vld [vmem:[%s14 + $0x770] sm:$0xff]
        %v6021 = vld [vmem:[%s14 + $0x778] sm:$0xff]
        %v6022 = vld [vmem:[%s14 + $0x780] sm:$0xff]
        %v6023 = vld [vmem:[%s14 + $0x788] sm:$0xff]
        %v6024 = vld [vmem:[%s14 + $0x790] sm:$0xff]
        %v6025 = vld [vmem:[%s14 + $0x798] sm:$0xff]
        %v6026 = vld [vmem:[%s14 + $0x7a0] sm:$0xff]
        %v6027 = vld [vmem:[%s14 + $0x7a8] sm:$0xff]
        %v6028 = vld [vmem:[%s14 + $0x7b0] sm:$0xff]
        %v6029 = vld [vmem:[%s14 + $0x7b8] sm:$0xff]
        %v6030 = vld [vmem:[%s14 + $0x7c0] sm:$0xff]
        %v6031 = vld [vmem:[%s14 + $0x7c8] sm:$0xff]
        %v6032 = vld [vmem:[%s14 + $0x7d0] sm:$0xff]
        %v6033 = vld [vmem:[%s14 + $0x7d8] sm:$0xff]
        %v6034 = vld [vmem:[%s14 + $0x7e0] sm:$0xff]
        %v6035 = vld [vmem:[%s14 + $0x7e8] sm:$0xff]
        %v6036 = vld [vmem:[%s14 + $0x7f0] sm:$0xff]
        %v6037 = vld [vmem:[%s14 + $0x7f8] sm:$0xff]
        %v6038 = vlaneseq
        %v6039 = vshrl.u32 %v6038, 7
        %v6040 = vsub.s32 6, %v6039
        %v6041 = vrot.slane %v559, %v6040
        %6042 = vmatprep.subr.mxu0 0.0
        %6043 = vmatpush1.msra.mxu0 %v5782
        %6044 = vmatprep.subr.mxu0 0.0
        %6045 = vmatpush1.msra.mxu0 %v5783
        %6046 = vmatprep.subr.mxu0 0.0
        %6047 = vmatpush1.msra.mxu0 %v5784
        %6048 = vmatprep.subr.mxu0 0.0
        %6049 = vmatpush1.msra.mxu0 %v5785
        %6050 = vmatprep.subr.mxu0 0.0
        %6051 = vmatpush1.msra.mxu0 %v5786
        %6052 = vmatprep.subr.mxu0 0.0
        %6053 = vmatpush1.msra.mxu0 %v5787
        %6054 = vmatprep.subr.mxu0 0.0
        %6055 = vmatpush1.msra.mxu0 %v5788
        %6056 = vmatprep.subr.mxu0 0.0
        %6057 = vmatpush1.msra.mxu0 %v5789
        %6058 = vmatprep.subr.mxu0 0.0
        %6059 = vmatpush1.msra.mxu0 %v5790
        %6060 = vmatprep.subr.mxu0 0.0
        %6061 = vmatpush1.msra.mxu0 %v5791
        %6062 = vmatprep.subr.mxu0 0.0
        %6063 = vmatpush1.msra.mxu0 %v5792
        %6064 = vmatprep.subr.mxu0 0.0
        %6065 = vmatpush1.msra.mxu0 %v5793
        %6066 = vmatprep.subr.mxu0 0.0
        %6067 = vmatpush1.msra.mxu0 %v5794
        %6068 = vmatprep.subr.mxu0 0.0
        %6069 = vmatpush1.msra.mxu0 %v5795
        %6070 = vmatprep.subr.mxu0 0.0
        %6071 = vmatpush1.msra.mxu0 %v5796
        %6072 = vmatprep.subr.mxu0 0.0
        %6073 = vmatpush1.msra.mxu0 %v5797
        %6074 = vmatprep.subr.mxu0 0.0
        %6075 = vmatpush1.msra.mxu0 %v5798
        %6076 = vmatprep.subr.mxu0 0.0
        %6077 = vmatpush1.msra.mxu0 %v5799
        %6078 = vmatprep.subr.mxu0 0.0
        %6079 = vmatpush1.msra.mxu0 %v5800
        %6080 = vmatprep.subr.mxu0 0.0
        %6081 = vmatpush1.msra.mxu0 %v5801
        %6082 = vmatprep.subr.mxu0 0.0
        %6083 = vmatpush1.msra.mxu0 %v5802
        %6084 = vmatprep.subr.mxu0 0.0
        %6085 = vmatpush1.msra.mxu0 %v5803
        %6086 = vmatprep.subr.mxu0 0.0
        %6087 = vmatpush1.msra.mxu0 %v5804
        %6088 = vmatprep.subr.mxu0 0.0
        %6089 = vmatpush1.msra.mxu0 %v5805
        %6090 = vmatprep.subr.mxu0 0.0
        %6091 = vmatpush1.msra.mxu0 %v5806
        %6092 = vmatprep.subr.mxu0 0.0
        %6093 = vmatpush1.msra.mxu0 %v5807
        %6094 = vmatprep.subr.mxu0 0.0
        %6095 = vmatpush1.msra.mxu0 %v5808
        %6096 = vmatprep.subr.mxu0 0.0
        %6097 = vmatpush1.msra.mxu0 %v5809
        %6098 = vmatprep.subr.mxu0 0.0
        %6099 = vmatpush1.msra.mxu0 %v5810
        %6100 = vmatprep.subr.mxu0 0.0
        %6101 = vmatpush1.msra.mxu0 %v5811
        %6102 = vmatprep.subr.mxu0 0.0
        %6103 = vmatpush1.msra.mxu0 %v5812
        %6104 = vmatprep.subr.mxu0 0.0
        %6105 = vmatpush1.msra.mxu0 %v5813
        %6106 = vmatprep.mubr.f32.mxu0 %v5751
        %6107 = vmatmul.mubr.f32.gmra.mrb[0].mxu0 %v5750
        %v6108 = vpop.f32.mrb[0].mxu0
        %v6109 = vadd.f32 %v6041, %v6108
        %v6110 = vpop.f32.mrb[0].mxu0
        %6111 = vmatprep.mubr.f32.mxu0 %v5767
        %6112 = vmatmul.mubr.f32.gmra.mrb[0].mxu0 %v5766
        %v6113 = vpop.f32.mrb[0].mxu0
        %v6114 = vadd.f32 %v6041, %v6113
        %v6115 = vpop.f32.mrb[0].mxu0
        %6116 = vdwg.mxu0
        %6117 = vmatprep.subr.mxu0 0.0
        %6118 = vmatpush1.msra.mxu0 %v5814
        %6119 = vmatprep.subr.mxu0 0.0
        %6120 = vmatpush1.msra.mxu0 %v5815
        %6121 = vmatprep.subr.mxu0 0.0
        %6122 = vmatpush1.msra.mxu0 %v5816
        %6123 = vmatprep.subr.mxu0 0.0
        %6124 = vmatpush1.msra.mxu0 %v5817
        %6125 = vmatprep.subr.mxu0 0.0
        %6126 = vmatpush1.msra.mxu0 %v5818
        %6127 = vmatprep.subr.mxu0 0.0
        %6128 = vmatpush1.msra.mxu0 %v5819
        %6129 = vmatprep.subr.mxu0 0.0
        %6130 = vmatpush1.msra.mxu0 %v5820
        %6131 = vmatprep.subr.mxu0 0.0
        %6132 = vmatpush1.msra.mxu0 %v5821
        %6133 = vmatprep.subr.mxu0 0.0
        %6134 = vmatpush1.msra.mxu0 %v5822
        %6135 = vmatprep.subr.mxu0 0.0
        %6136 = vmatpush1.msra.mxu0 %v5823
        %6137 = vmatprep.subr.mxu0 0.0
        %6138 = vmatpush1.msra.mxu0 %v5824
        %6139 = vmatprep.subr.mxu0 0.0
        %6140 = vmatpush1.msra.mxu0 %v5825
        %6141 = vmatprep.subr.mxu0 0.0
        %6142 = vmatpush1.msra.mxu0 %v5826
        %6143 = vmatprep.subr.mxu0 0.0
        %6144 = vmatpush1.msra.mxu0 %v5827
        %6145 = vmatprep.subr.mxu0 0.0
        %6146 = vmatpush1.msra.mxu0 %v5828
        %6147 = vmatprep.subr.mxu0 0.0
        %6148 = vmatpush1.msra.mxu0 %v5829
        %6149 = vmatprep.subr.mxu0 0.0
        %6150 = vmatpush1.msra.mxu0 %v5830
        %6151 = vmatprep.subr.mxu0 0.0
        %6152 = vmatpush1.msra.mxu0 %v5831
        %6153 = vmatprep.subr.mxu0 0.0
        %6154 = vmatpush1.msra.mxu0 %v5832
        %6155 = vmatprep.subr.mxu0 0.0
        %6156 = vmatpush1.msra.mxu0 %v5833
        %6157 = vmatprep.subr.mxu0 0.0
        %6158 = vmatpush1.msra.mxu0 %v5834
        %6159 = vmatprep.subr.mxu0 0.0
        %6160 = vmatpush1.msra.mxu0 %v5835
        %6161 = vmatprep.subr.mxu0 0.0
        %6162 = vmatpush1.msra.mxu0 %v5836
        %6163 = vmatprep.subr.mxu0 0.0
        %6164 = vmatpush1.msra.mxu0 %v5837
        %6165 = vmatprep.subr.mxu0 0.0
        %6166 = vmatpush1.msra.mxu0 %v5838
        %6167 = vmatprep.subr.mxu0 0.0
        %6168 = vmatpush1.msra.mxu0 %v5839
        %6169 = vmatprep.subr.mxu0 0.0
        %6170 = vmatpush1.msra.mxu0 %v5840
        %6171 = vmatprep.subr.mxu0 0.0
        %6172 = vmatpush1.msra.mxu0 %v5841
        %6173 = vmatprep.subr.mxu0 0.0
        %6174 = vmatpush1.msra.mxu0 %v5842
        %6175 = vmatprep.subr.mxu0 0.0
        %6176 = vmatpush1.msra.mxu0 %v5843
        %6177 = vmatprep.subr.mxu0 0.0
        %6178 = vmatpush1.msra.mxu0 %v5844
        %6179 = vmatprep.subr.mxu0 0.0
        %6180 = vmatpush1.msra.mxu0 %v5845
        %6181 = vmatprep.mubr.f32.mxu0 %v5753
        %6182 = vmatmul.mubr.f32.gmra.mrb[0].mxu0 %v5752
        %v6183 = vpop.f32.mrb[0].mxu0
        %v6184 = vadd.f32 %v6109, %v6183
        %v6185 = vpop.f32.mrb[0].mxu0
        %6186 = vmatprep.mubr.f32.mxu0 %v5769
        %6187 = vmatmul.mubr.f32.gmra.mrb[0].mxu0 %v5768
        %v6188 = vpop.f32.mrb[0].mxu0
        %v6189 = vadd.f32 %v6114, %v6188
        %v6190 = vpop.f32.mrb[0].mxu0
        %6191 = vdwg.mxu0
        %6192 = vmatprep.subr.mxu0 0.0
        %6193 = vmatpush1.msra.mxu0 %v5846
        %6194 = vmatprep.subr.mxu0 0.0
        %6195 = vmatpush1.msra.mxu0 %v5847
        %6196 = vmatprep.subr.mxu0 0.0
        %6197 = vmatpush1.msra.mxu0 %v5848
        %6198 = vmatprep.subr.mxu0 0.0
        %6199 = vmatpush1.msra.mxu0 %v5849
        %6200 = vmatprep.subr.mxu0 0.0
        %6201 = vmatpush1.msra.mxu0 %v5850
        %6202 = vmatprep.subr.mxu0 0.0
        %6203 = vmatpush1.msra.mxu0 %v5851
        %6204 = vmatprep.subr.mxu0 0.0
        %6205 = vmatpush1.msra.mxu0 %v5852
        %6206 = vmatprep.subr.mxu0 0.0
        %6207 = vmatpush1.msra.mxu0 %v5853
        %6208 = vmatprep.subr.mxu0 0.0
        %6209 = vmatpush1.msra.mxu0 %v5854
        %6210 = vmatprep.subr.mxu0 0.0
        %6211 = vmatpush1.msra.mxu0 %v5855
        %6212 = vmatprep.subr.mxu0 0.0
        %6213 = vmatpush1.msra.mxu0 %v5856
        %6214 = vmatprep.subr.mxu0 0.0
        %6215 = vmatpush1.msra.mxu0 %v5857
        %6216 = vmatprep.subr.mxu0 0.0
        %6217 = vmatpush1.msra.mxu0 %v5858
        %6218 = vmatprep.subr.mxu0 0.0
        %6219 = vmatpush1.msra.mxu0 %v5859
        %6220 = vmatprep.subr.mxu0 0.0
        %6221 = vmatpush1.msra.mxu0 %v5860
        %6222 = vmatprep.subr.mxu0 0.0
        %6223 = vmatpush1.msra.mxu0 %v5861
        %6224 = vmatprep.subr.mxu0 0.0
        %6225 = vmatpush1.msra.mxu0 %v5862
        %6226 = vmatprep.subr.mxu0 0.0
        %6227 = vmatpush1.msra.mxu0 %v5863
        %6228 = vmatprep.subr.mxu0 0.0
        %6229 = vmatpush1.msra.mxu0 %v5864
        %6230 = vmatprep.subr.mxu0 0.0
        %6231 = vmatpush1.msra.mxu0 %v5865
        %6232 = vmatprep.subr.mxu0 0.0
        %6233 = vmatpush1.msra.mxu0 %v5866
        %6234 = vmatprep.subr.mxu0 0.0
        %6235 = vmatpush1.msra.mxu0 %v5867
        %6236 = vmatprep.subr.mxu0 0.0
        %6237 = vmatpush1.msra.mxu0 %v5868
        %6238 = vmatprep.subr.mxu0 0.0
        %6239 = vmatpush1.msra.mxu0 %v5869
        %6240 = vmatprep.subr.mxu0 0.0
        %6241 = vmatpush1.msra.mxu0 %v5870
        %6242 = vmatprep.subr.mxu0 0.0
        %6243 = vmatpush1.msra.mxu0 %v5871
        %6244 = vmatprep.subr.mxu0 0.0
        %6245 = vmatpush1.msra.mxu0 %v5872
        %6246 = vmatprep.subr.mxu0 0.0
        %6247 = vmatpush1.msra.mxu0 %v5873
        %6248 = vmatprep.subr.mxu0 0.0
        %6249 = vmatpush1.msra.mxu0 %v5874
        %6250 = vmatprep.subr.mxu0 0.0
        %6251 = vmatpush1.msra.mxu0 %v5875
        %6252 = vmatprep.subr.mxu0 0.0
        %6253 = vmatpush1.msra.mxu0 %v5876
        %6254 = vmatprep.subr.mxu0 0.0
        %6255 = vmatpush1.msra.mxu0 %v5877
        %6256 = vmatprep.mubr.f32.mxu0 %v5755
        %6257 = vmatmul.mubr.f32.gmra.mrb[0].mxu0 %v5754
        %v6258 = vpop.f32.mrb[0].mxu0
        %v6259 = vadd.f32 %v6184, %v6258
        %v6260 = vpop.f32.mrb[0].mxu0
        %6261 = vmatprep.mubr.f32.mxu0 %v5771
        %6262 = vmatmul.mubr.f32.gmra.mrb[0].mxu0 %v5770
        %v6263 = vpop.f32.mrb[0].mxu0
        %v6264 = vadd.f32 %v6189, %v6263
        %v6265 = vpop.f32.mrb[0].mxu0
        %6266 = vdwg.mxu0
        %6267 = vmatprep.subr.mxu0 0.0
        %6268 = vmatpush1.msra.mxu0 %v5878
        %6269 = vmatprep.subr.mxu0 0.0
        %6270 = vmatpush1.msra.mxu0 %v5879
        %6271 = vmatprep.subr.mxu0 0.0
        %6272 = vmatpush1.msra.mxu0 %v5880
        %6273 = vmatprep.subr.mxu0 0.0
        %6274 = vmatpush1.msra.mxu0 %v5881
        %6275 = vmatprep.subr.mxu0 0.0
        %6276 = vmatpush1.msra.mxu0 %v5882
        %6277 = vmatprep.subr.mxu0 0.0
        %6278 = vmatpush1.msra.mxu0 %v5883
        %6279 = vmatprep.subr.mxu0 0.0
        %6280 = vmatpush1.msra.mxu0 %v5884
        %6281 = vmatprep.subr.mxu0 0.0
        %6282 = vmatpush1.msra.mxu0 %v5885
        %6283 = vmatprep.subr.mxu0 0.0
        %6284 = vmatpush1.msra.mxu0 %v5886
        %6285 = vmatprep.subr.mxu0 0.0
        %6286 = vmatpush1.msra.mxu0 %v5887
        %6287 = vmatprep.subr.mxu0 0.0
        %6288 = vmatpush1.msra.mxu0 %v5888
        %6289 = vmatprep.subr.mxu0 0.0
        %6290 = vmatpush1.msra.mxu0 %v5889
        %6291 = vmatprep.subr.mxu0 0.0
        %6292 = vmatpush1.msra.mxu0 %v5890
        %6293 = vmatprep.subr.mxu0 0.0
        %6294 = vmatpush1.msra.mxu0 %v5891
        %6295 = vmatprep.subr.mxu0 0.0
        %6296 = vmatpush1.msra.mxu0 %v5892
        %6297 = vmatprep.subr.mxu0 0.0
        %6298 = vmatpush1.msra.mxu0 %v5893
        %6299 = vmatprep.subr.mxu0 0.0
        %6300 = vmatpush1.msra.mxu0 %v5894
        %6301 = vmatprep.subr.mxu0 0.0
        %6302 = vmatpush1.msra.mxu0 %v5895
        %6303 = vmatprep.subr.mxu0 0.0
        %6304 = vmatpush1.msra.mxu0 %v5896
        %6305 = vmatprep.subr.mxu0 0.0
        %6306 = vmatpush1.msra.mxu0 %v5897
        %6307 = vmatprep.subr.mxu0 0.0
        %6308 = vmatpush1.msra.mxu0 %v5898
        %6309 = vmatprep.subr.mxu0 0.0
        %6310 = vmatpush1.msra.mxu0 %v5899
        %6311 = vmatprep.subr.mxu0 0.0
        %6312 = vmatpush1.msra.mxu0 %v5900
        %6313 = vmatprep.subr.mxu0 0.0
        %6314 = vmatpush1.msra.mxu0 %v5901
        %6315 = vmatprep.subr.mxu0 0.0
        %6316 = vmatpush1.msra.mxu0 %v5902
        %6317 = vmatprep.subr.mxu0 0.0
        %6318 = vmatpush1.msra.mxu0 %v5903
        %6319 = vmatprep.subr.mxu0 0.0
        %6320 = vmatpush1.msra.mxu0 %v5904
        %6321 = vmatprep.subr.mxu0 0.0
        %6322 = vmatpush1.msra.mxu0 %v5905
        %6323 = vmatprep.subr.mxu0 0.0
        %6324 = vmatpush1.msra.mxu0 %v5906
        %6325 = vmatprep.subr.mxu0 0.0
        %6326 = vmatpush1.msra.mxu0 %v5907
        %6327 = vmatprep.subr.mxu0 0.0
        %6328 = vmatpush1.msra.mxu0 %v5908
        %6329 = vmatprep.subr.mxu0 0.0
        %6330 = vmatpush1.msra.mxu0 %v5909
        %6331 = vmatprep.mubr.f32.mxu0 %v5757
        %6332 = vmatmul.mubr.f32.gmra.mrb[0].mxu0 %v5756
        %v6333 = vpop.f32.mrb[0].mxu0
        %v6334 = vadd.f32 %v6259, %v6333
        %v6335 = vpop.f32.mrb[0].mxu0
        %6336 = vmatprep.mubr.f32.mxu0 %v5773
        %6337 = vmatmul.mubr.f32.gmra.mrb[0].mxu0 %v5772
        %v6338 = vpop.f32.mrb[0].mxu0
        %v6339 = vadd.f32 %v6264, %v6338
        %v6340 = vpop.f32.mrb[0].mxu0
        %6341 = vdwg.mxu0
        %6342 = vmatprep.subr.mxu0 0.0
        %6343 = vmatpush1.msra.mxu0 %v5910
        %6344 = vmatprep.subr.mxu0 0.0
        %6345 = vmatpush1.msra.mxu0 %v5911
        %6346 = vmatprep.subr.mxu0 0.0
        %6347 = vmatpush1.msra.mxu0 %v5912
        %6348 = vmatprep.subr.mxu0 0.0
        %6349 = vmatpush1.msra.mxu0 %v5913
        %6350 = vmatprep.subr.mxu0 0.0
        %6351 = vmatpush1.msra.mxu0 %v5914
        %6352 = vmatprep.subr.mxu0 0.0
        %6353 = vmatpush1.msra.mxu0 %v5915
        %6354 = vmatprep.subr.mxu0 0.0
        %6355 = vmatpush1.msra.mxu0 %v5916
        %6356 = vmatprep.subr.mxu0 0.0
        %6357 = vmatpush1.msra.mxu0 %v5917
        %6358 = vmatprep.subr.mxu0 0.0
        %6359 = vmatpush1.msra.mxu0 %v5918
        %6360 = vmatprep.subr.mxu0 0.0
        %6361 = vmatpush1.msra.mxu0 %v5919
        %6362 = vmatprep.subr.mxu0 0.0
        %6363 = vmatpush1.msra.mxu0 %v5920
        %6364 = vmatprep.subr.mxu0 0.0
        %6365 = vmatpush1.msra.mxu0 %v5921
        %6366 = vmatprep.subr.mxu0 0.0
        %6367 = vmatpush1.msra.mxu0 %v5922
        %6368 = vmatprep.subr.mxu0 0.0
        %6369 = vmatpush1.msra.mxu0 %v5923
        %6370 = vmatprep.subr.mxu0 0.0
        %6371 = vmatpush1.msra.mxu0 %v5924
        %6372 = vmatprep.subr.mxu0 0.0
        %6373 = vmatpush1.msra.mxu0 %v5925
        %6374 = vmatprep.subr.mxu0 0.0
        %6375 = vmatpush1.msra.mxu0 %v5926
        %6376 = vmatprep.subr.mxu0 0.0
        %6377 = vmatpush1.msra.mxu0 %v5927
        %6378 = vmatprep.subr.mxu0 0.0
        %6379 = vmatpush1.msra.mxu0 %v5928
        %6380 = vmatprep.subr.mxu0 0.0
        %6381 = vmatpush1.msra.mxu0 %v5929
        %6382 = vmatprep.subr.mxu0 0.0
        %6383 = vmatpush1.msra.mxu0 %v5930
        %6384 = vmatprep.subr.mxu0 0.0
        %6385 = vmatpush1.msra.mxu0 %v5931
        %6386 = vmatprep.subr.mxu0 0.0
        %6387 = vmatpush1.msra.mxu0 %v5932
        %6388 = vmatprep.subr.mxu0 0.0
        %6389 = vmatpush1.msra.mxu0 %v5933
        %6390 = vmatprep.subr.mxu0 0.0
        %6391 = vmatpush1.msra.mxu0 %v5934
        %6392 = vmatprep.subr.mxu0 0.0
        %6393 = vmatpush1.msra.mxu0 %v5935
        %6394 = vmatprep.subr.mxu0 0.0
        %6395 = vmatpush1.msra.mxu0 %v5936
        %6396 = vmatprep.subr.mxu0 0.0
        %6397 = vmatpush1.msra.mxu0 %v5937
        %6398 = vmatprep.subr.mxu0 0.0
        %6399 = vmatpush1.msra.mxu0 %v5938
        %6400 = vmatprep.subr.mxu0 0.0
        %6401 = vmatpush1.msra.mxu0 %v5939
        %6402 = vmatprep.subr.mxu0 0.0
        %6403 = vmatpush1.msra.mxu0 %v5940
        %6404 = vmatprep.subr.mxu0 0.0
        %6405 = vmatpush1.msra.mxu0 %v5941
        %6406 = vmatprep.mubr.f32.mxu0 %v5759
        %6407 = vmatmul.mubr.f32.gmra.mrb[0].mxu0 %v5758
        %v6408 = vpop.f32.mrb[0].mxu0
        %v6409 = vadd.f32 %v6334, %v6408
        %v6410 = vpop.f32.mrb[0].mxu0
        %6411 = vmatprep.mubr.f32.mxu0 %v5775
        %6412 = vmatmul.mubr.f32.gmra.mrb[0].mxu0 %v5774
        %v6413 = vpop.f32.mrb[0].mxu0
        %v6414 = vadd.f32 %v6339, %v6413
        %v6415 = vpop.f32.mrb[0].mxu0
        %6416 = vdwg.mxu0
        %6417 = vmatprep.subr.mxu0 0.0
        %6418 = vmatpush1.msra.mxu0 %v5942
        %6419 = vmatprep.subr.mxu0 0.0
        %6420 = vmatpush1.msra.mxu0 %v5943
        %6421 = vmatprep.subr.mxu0 0.0
        %6422 = vmatpush1.msra.mxu0 %v5944
        %6423 = vmatprep.subr.mxu0 0.0
        %6424 = vmatpush1.msra.mxu0 %v5945
        %6425 = vmatprep.subr.mxu0 0.0
        %6426 = vmatpush1.msra.mxu0 %v5946
        %6427 = vmatprep.subr.mxu0 0.0
        %6428 = vmatpush1.msra.mxu0 %v5947
        %6429 = vmatprep.subr.mxu0 0.0
        %6430 = vmatpush1.msra.mxu0 %v5948
        %6431 = vmatprep.subr.mxu0 0.0
        %6432 = vmatpush1.msra.mxu0 %v5949
        %6433 = vmatprep.subr.mxu0 0.0
        %6434 = vmatpush1.msra.mxu0 %v5950
        %6435 = vmatprep.subr.mxu0 0.0
        %6436 = vmatpush1.msra.mxu0 %v5951
        %6437 = vmatprep.subr.mxu0 0.0
        %6438 = vmatpush1.msra.mxu0 %v5952
        %6439 = vmatprep.subr.mxu0 0.0
        %6440 = vmatpush1.msra.mxu0 %v5953
        %6441 = vmatprep.subr.mxu0 0.0
        %6442 = vmatpush1.msra.mxu0 %v5954
        %6443 = vmatprep.subr.mxu0 0.0
        %6444 = vmatpush1.msra.mxu0 %v5955
        %6445 = vmatprep.subr.mxu0 0.0
        %6446 = vmatpush1.msra.mxu0 %v5956
        %6447 = vmatprep.subr.mxu0 0.0
        %6448 = vmatpush1.msra.mxu0 %v5957
        %6449 = vmatprep.subr.mxu0 0.0
        %6450 = vmatpush1.msra.mxu0 %v5958
        %6451 = vmatprep.subr.mxu0 0.0
        %6452 = vmatpush1.msra.mxu0 %v5959
        %6453 = vmatprep.subr.mxu0 0.0
        %6454 = vmatpush1.msra.mxu0 %v5960
        %6455 = vmatprep.subr.mxu0 0.0
        %6456 = vmatpush1.msra.mxu0 %v5961
        %6457 = vmatprep.subr.mxu0 0.0
        %6458 = vmatpush1.msra.mxu0 %v5962
        %6459 = vmatprep.subr.mxu0 0.0
        %6460 = vmatpush1.msra.mxu0 %v5963
        %6461 = vmatprep.subr.mxu0 0.0
        %6462 = vmatpush1.msra.mxu0 %v5964
        %6463 = vmatprep.subr.mxu0 0.0
        %6464 = vmatpush1.msra.mxu0 %v5965
        %6465 = vmatprep.subr.mxu0 0.0
        %6466 = vmatpush1.msra.mxu0 %v5966
        %6467 = vmatprep.subr.mxu0 0.0
        %6468 = vmatpush1.msra.mxu0 %v5967
        %6469 = vmatprep.subr.mxu0 0.0
        %6470 = vmatpush1.msra.mxu0 %v5968
        %6471 = vmatprep.subr.mxu0 0.0
        %6472 = vmatpush1.msra.mxu0 %v5969
        %6473 = vmatprep.subr.mxu0 0.0
        %6474 = vmatpush1.msra.mxu0 %v5970
        %6475 = vmatprep.subr.mxu0 0.0
        %6476 = vmatpush1.msra.mxu0 %v5971
        %6477 = vmatprep.subr.mxu0 0.0
        %6478 = vmatpush1.msra.mxu0 %v5972
        %6479 = vmatprep.subr.mxu0 0.0
        %6480 = vmatpush1.msra.mxu0 %v5973
        %6481 = vmatprep.mubr.f32.mxu0 %v5761
        %6482 = vmatmul.mubr.f32.gmra.mrb[0].mxu0 %v5760
        %v6483 = vpop.f32.mrb[0].mxu0
        %v6484 = vadd.f32 %v6409, %v6483
        %v6485 = vpop.f32.mrb[0].mxu0
        %6486 = vmatprep.mubr.f32.mxu0 %v5777
        %6487 = vmatmul.mubr.f32.gmra.mrb[0].mxu0 %v5776
        %v6488 = vpop.f32.mrb[0].mxu0
        %v6489 = vadd.f32 %v6414, %v6488
        %v6490 = vpop.f32.mrb[0].mxu0
        %6491 = vdwg.mxu0
        %6492 = vmatprep.subr.mxu0 0.0
        %6493 = vmatpush1.msra.mxu0 %v5974
        %6494 = vmatprep.subr.mxu0 0.0
        %6495 = vmatpush1.msra.mxu0 %v5975
        %6496 = vmatprep.subr.mxu0 0.0
        %6497 = vmatpush1.msra.mxu0 %v5976
        %6498 = vmatprep.subr.mxu0 0.0
        %6499 = vmatpush1.msra.mxu0 %v5977
        %6500 = vmatprep.subr.mxu0 0.0
        %6501 = vmatpush1.msra.mxu0 %v5978
        %6502 = vmatprep.subr.mxu0 0.0
        %6503 = vmatpush1.msra.mxu0 %v5979
        %6504 = vmatprep.subr.mxu0 0.0
        %6505 = vmatpush1.msra.mxu0 %v5980
        %6506 = vmatprep.subr.mxu0 0.0
        %6507 = vmatpush1.msra.mxu0 %v5981
        %6508 = vmatprep.subr.mxu0 0.0
        %6509 = vmatpush1.msra.mxu0 %v5982
        %6510 = vmatprep.subr.mxu0 0.0
        %6511 = vmatpush1.msra.mxu0 %v5983
        %6512 = vmatprep.subr.mxu0 0.0
        %6513 = vmatpush1.msra.mxu0 %v5984
        %6514 = vmatprep.subr.mxu0 0.0
        %6515 = vmatpush1.msra.mxu0 %v5985
        %6516 = vmatprep.subr.mxu0 0.0
        %6517 = vmatpush1.msra.mxu0 %v5986
        %6518 = vmatprep.subr.mxu0 0.0
        %6519 = vmatpush1.msra.mxu0 %v5987
        %6520 = vmatprep.subr.mxu0 0.0
        %6521 = vmatpush1.msra.mxu0 %v5988
        %6522 = vmatprep.subr.mxu0 0.0
        %6523 = vmatpush1.msra.mxu0 %v5989
        %6524 = vmatprep.subr.mxu0 0.0
        %6525 = vmatpush1.msra.mxu0 %v5990
        %6526 = vmatprep.subr.mxu0 0.0
        %6527 = vmatpush1.msra.mxu0 %v5991
        %6528 = vmatprep.subr.mxu0 0.0
        %6529 = vmatpush1.msra.mxu0 %v5992
        %6530 = vmatprep.subr.mxu0 0.0
        %6531 = vmatpush1.msra.mxu0 %v5993
        %6532 = vmatprep.subr.mxu0 0.0
        %6533 = vmatpush1.msra.mxu0 %v5994
        %6534 = vmatprep.subr.mxu0 0.0
        %6535 = vmatpush1.msra.mxu0 %v5995
        %6536 = vmatprep.subr.mxu0 0.0
        %6537 = vmatpush1.msra.mxu0 %v5996
        %6538 = vmatprep.subr.mxu0 0.0
        %6539 = vmatpush1.msra.mxu0 %v5997
        %6540 = vmatprep.subr.mxu0 0.0
        %6541 = vmatpush1.msra.mxu0 %v5998
        %6542 = vmatprep.subr.mxu0 0.0
        %6543 = vmatpush1.msra.mxu0 %v5999
        %6544 = vmatprep.subr.mxu0 0.0
        %6545 = vmatpush1.msra.mxu0 %v6000
        %6546 = vmatprep.subr.mxu0 0.0
        %6547 = vmatpush1.msra.mxu0 %v6001
        %6548 = vmatprep.subr.mxu0 0.0
        %6549 = vmatpush1.msra.mxu0 %v6002
        %6550 = vmatprep.subr.mxu0 0.0
        %6551 = vmatpush1.msra.mxu0 %v6003
        %6552 = vmatprep.subr.mxu0 0.0
        %6553 = vmatpush1.msra.mxu0 %v6004
        %6554 = vmatprep.subr.mxu0 0.0
        %6555 = vmatpush1.msra.mxu0 %v6005
        %6556 = vmatprep.mubr.f32.mxu0 %v5763
        %6557 = vmatmul.mubr.f32.gmra.mrb[0].mxu0 %v5762
        %v6558 = vpop.f32.mrb[0].mxu0
        %v6559 = vadd.f32 %v6484, %v6558
        %v6560 = vpop.f32.mrb[0].mxu0
        %6561 = vmatprep.mubr.f32.mxu0 %v5779
        %6562 = vmatmul.mubr.f32.gmra.mrb[0].mxu0 %v5778
        %v6563 = vpop.f32.mrb[0].mxu0
        %v6564 = vadd.f32 %v6489, %v6563
        %v6565 = vpop.f32.mrb[0].mxu0
        %6566 = vdwg.mxu0
        %6567 = vmatprep.subr.mxu0 0.0
        %6568 = vmatpush1.msra.mxu0 %v6006
        %6569 = vmatprep.subr.mxu0 0.0
        %6570 = vmatpush1.msra.mxu0 %v6007
        %6571 = vmatprep.subr.mxu0 0.0
        %6572 = vmatpush1.msra.mxu0 %v6008
        %6573 = vmatprep.subr.mxu0 0.0
        %6574 = vmatpush1.msra.mxu0 %v6009
        %6575 = vmatprep.subr.mxu0 0.0
        %6576 = vmatpush1.msra.mxu0 %v6010
        %6577 = vmatprep.subr.mxu0 0.0
        %6578 = vmatpush1.msra.mxu0 %v6011
        %6579 = vmatprep.subr.mxu0 0.0
        %6580 = vmatpush1.msra.mxu0 %v6012
        %6581 = vmatprep.subr.mxu0 0.0
        %6582 = vmatpush1.msra.mxu0 %v6013
        %6583 = vmatprep.subr.mxu0 0.0
        %6584 = vmatpush1.msra.mxu0 %v6014
        %6585 = vmatprep.subr.mxu0 0.0
        %6586 = vmatpush1.msra.mxu0 %v6015
        %6587 = vmatprep.subr.mxu0 0.0
        %6588 = vmatpush1.msra.mxu0 %v6016
        %6589 = vmatprep.subr.mxu0 0.0
        %6590 = vmatpush1.msra.mxu0 %v6017
        %6591 = vmatprep.subr.mxu0 0.0
        %6592 = vmatpush1.msra.mxu0 %v6018
        %6593 = vmatprep.subr.mxu0 0.0
        %6594 = vmatpush1.msra.mxu0 %v6019
        %6595 = vmatprep.subr.mxu0 0.0
        %6596 = vmatpush1.msra.mxu0 %v6020
        %6597 = vmatprep.subr.mxu0 0.0
        %6598 = vmatpush1.msra.mxu0 %v6021
        %6599 = vmatprep.subr.mxu0 0.0
        %6600 = vmatpush1.msra.mxu0 %v6022
        %6601 = vmatprep.subr.mxu0 0.0
        %6602 = vmatpush1.msra.mxu0 %v6023
        %6603 = vmatprep.subr.mxu0 0.0
        %6604 = vmatpush1.msra.mxu0 %v6024
        %6605 = vmatprep.subr.mxu0 0.0
        %6606 = vmatpush1.msra.mxu0 %v6025
        %6607 = vmatprep.subr.mxu0 0.0
        %6608 = vmatpush1.msra.mxu0 %v6026
        %6609 = vmatprep.subr.mxu0 0.0
        %6610 = vmatpush1.msra.mxu0 %v6027
        %6611 = vmatprep.subr.mxu0 0.0
        %6612 = vmatpush1.msra.mxu0 %v6028
        %6613 = vmatprep.subr.mxu0 0.0
        %6614 = vmatpush1.msra.mxu0 %v6029
        %6615 = vmatprep.subr.mxu0 0.0
        %6616 = vmatpush1.msra.mxu0 %v6030
        %6617 = vmatprep.subr.mxu0 0.0
        %6618 = vmatpush1.msra.mxu0 %v6031
        %6619 = vmatprep.subr.mxu0 0.0
        %6620 = vmatpush1.msra.mxu0 %v6032
        %6621 = vmatprep.subr.mxu0 0.0
        %6622 = vmatpush1.msra.mxu0 %v6033
        %6623 = vmatprep.subr.mxu0 0.0
        %6624 = vmatpush1.msra.mxu0 %v6034
        %6625 = vmatprep.subr.mxu0 0.0
        %6626 = vmatpush1.msra.mxu0 %v6035
        %6627 = vmatprep.subr.mxu0 0.0
        %6628 = vmatpush1.msra.mxu0 %v6036
        %6629 = vmatprep.subr.mxu0 0.0
        %6630 = vmatpush1.msra.mxu0 %v6037
        %6631 = vmatprep.mubr.f32.mxu0 %v5765
        %6632 = vmatmul.mubr.f32.gmra.mrb[0].mxu0 %v5764
        %v6633 = vpop.f32.mrb[0].mxu0
        %v6634 = vadd.f32 %v6559, %v6633
        %v6635 = vpop.f32.mrb[0].mxu0
        %6636 = vmatprep.mubr.f32.mxu0 %v5781
        %6637 = vmatmul.mubr.f32.gmra.mrb[0].mxu0 %v5780
        %v6638 = vpop.f32.mrb[0].mxu0
        %v6639 = vadd.f32 %v6564, %v6638
        %v6640 = vpop.f32.mrb[0].mxu0
        %6641 = vdwg.mxu0
        %v6642 = vadd.f32 %v6634, %v4978
        %v6643 = vadd.f32 %v6639, %v4979
        %v6644 = vsel %vm567, %v6642, 0.0
        %6645 = vadd.xlane.f32.xlu0 %v6644
        %v6646 = vpop.xlane.xlu0 %6645
        %v6647 = vsel %vm567, %v6643, 0.0
        %6648 = vadd.xlane.f32.xlu0 %v6647
        %v6649 = vpop.xlane.xlu0 %6648
        %v6650 = vmul.f32 %v6646, %v2726
        %v6651 = vmul.f32 %v6649, %v2726
        %v6652 = vsub.f32 %v6642, %v6650
        %v6653 = vsub.f32 %v6643, %v6651
        %v6654 = vmul.f32 %v6652, %v6652
        %v6655 = vmul.f32 %v6653, %v6653
        %v6656 = vsel %vm567, %v6654, 0.0
        %6657 = vadd.xlane.f32.xlu0 %v6656
        %v6658 = vpop.xlane.xlu0 %6657
        %v6659 = vsel %vm567, %v6655, 0.0
        %6660 = vadd.xlane.f32.xlu0 %v6659
        %v6661 = vpop.xlane.xlu0 %6660
        %v6662 = vmul.f32 %v6658, %v2726
        %v6663 = vmul.f32 %v6661, %v2726
        %v6664 = vadd.f32 %v6662, 1e-06
        %v6665 = vadd.f32 %v6663, 1e-06
        %v6666 = vrsqrt.pop %v6664
        %v6667 = vrsqrt.pop %v6665
        %v6668 = vmul.f32 %v6652, %v6666
        %v6669 = vmul.f32 %v6653, %v6667
        %v6670 = vlaneseq
        %v6671 = vshrl.u32 %v6670, 7
        %v6672 = vsub.s32 7, %v6671
        %v6673 = vrot.slane %v559, %v6672
        %v6674 = vmul.f32 %v6668, %v6673
        %v6675 = vmul.f32 %v6669, %v6673
        %v6676 = vlaneseq
        %v6677 = vshrl.u32 %v6676, 7
        %v6678 = vsub.s32 0, %v6677
        %v6679 = vrot.slane %v560, %v6678
        %v6680 = vadd.f32 %v6674, %v6679
        %v6681 = vadd.f32 %v6675, %v6679
        %6682 = vst.msk [vmem:[%s525] sm:$0xff] %vm567, %v6680
        %6683 = vst.msk [vmem:[%s525 + $0x8] sm:$0xff] %vm567, %v6681
        %s6684 = sand.u32 %s353, 1
        %s6685 = scalar_lea.sflag [#allocation6], %s6684
        %s6686 = sand.u32 %s353, 1
        %s6687 = smul.addr %s6686, 16
        %s6688 = scalar_lea.vmem [#allocation5], %s6687
        // Predicated region
        $region73: #{tpu_custom_call.1} parent=71 // pred_check
          %p6689 = pneg %p363
        $region74: #{tpu_custom_call.1} parent=71 // pred_check_branch
          %6691 = sbr.rel (%p6689) target = $region76
        $region75: #{tpu_custom_call.1} parent=71 // pred_region
          %s6693 = ssub.s32 256, 256
          %6694 = vsyncadd %s6685, %s6693
          %s6695 = smul.addr %s39, 2
          %s6696 = smul.addr %s6695, 128
          %s6697 = scalar_lea.hbm %s15, %s6696
          %s6698 = sshll.u32 %s6688, 4
          %s6699 = int_to_ptr.vmem [resolvable:$true] %s6698
          %6704 = dma.vmem_to_hbm [thread:$0]  %s6699, 256, %s6697, %s6685, 128, 128, 8
        $region76: #{tpu_custom_call.1} parent=71 // pred_fallthru
          _
      $region72: #{tpu_custom_call.1} parent=5 // pred_fallthru
        _
      %p6705 = scmp.le.s32.totalorder 2, %s34
      // Predicated region
      $region77: #{tpu_custom_call.1} parent=5 // pred_check
        %p6706 = pneg %p6705
      $region78: #{tpu_custom_call.1} parent=5 // pred_check_branch
        %6708 = sbr.rel (%p6706) target = $region80
      $region79: #{tpu_custom_call.1} parent=5 // pred_region
        %s6709 = ssub.s32 %s34, 2
        // Predicated region
        $region81: #{tpu_custom_call.1} parent=79 // pred_check
          %p6710 = pneg %p369
        $region82: #{tpu_custom_call.1} parent=79 // pred_check_branch
          %6712 = sbr.rel (%p6710) target = $region84
        $region83: #{tpu_custom_call.1} parent=79 // pred_region
          %s6713 = sand.u32 %s354, 1
          %s6714 = scalar_lea.sflag [#allocation6], %s6713
          %s6715 = sand.u32 %s354, 1
          %s6716 = smul.addr %s6715, 16
          %s6717 = scalar_lea.vmem [#allocation5], %s6716
          %6718 = dma.done %s6714, 256
        $region84: #{tpu_custom_call.1} parent=79 // pred_fallthru
          _
      $region80: #{tpu_custom_call.1} parent=5 // pred_fallthru
        _
    $region6: #{tpu_custom_call.1} parent=1 // loop_footer
      %s38 = sadd.s32 1, %s34
    $region7: #{tpu_custom_call.1} parent=1 // loop_footer_branch
      %33 = sbr.rel target = $region3
    $region8: #{tpu_custom_call.1} parent=1 // loop_exit
      _
    %6719 = vsyncpa [#allocation6], 1
    %s6720 = scalar_lea.sflag [#allocation6], 1
    %6721 = vsyncpa %s6720, 1

</llo_original>
